<compile_context>
chip_gen: v5e
topology: v5e:2x2
jax: 0.10.0
libtpu: 0.0.40
codegen_flags: <defaults>
</compile_context>

<pallas_src>
import functools

import jax
import jax.numpy as jnp
from jax.experimental import pallas as pl
from jax.experimental.pallas import tpu as pltpu

FC_OUT_PAD = 128     # logits padded 10 -> 128 for a lane-dense final store


# ---------------- fused conv (as im2col matmul) + 2x2 maxpool + bias + ReLU ----------------

def _matmul_pool_kernel(x_ref, w_ref, b_ref, o_ref, hp_ref, *, H, W):
    # x_ref : (tb, H, W, Kp)      im2col patches (lane order kh, kw, cin; zero-padded)
    # w_ref : (Kp, C)             per-layer weight matrix, rows ordered (kh, kw, cin)
    # b_ref : (1, C)
    # o_ref : (tb, H//2, W//2, C)
    # hp_ref: (tb, H//2, W, C) f32 scratch holding the h-pooled conv result
    tb = x_ref.shape[0]
    Kp = x_ref.shape[3]
    C = w_ref.shape[1]
    Ho, Wo = H // 2, W // 2
    M = tb * H * W

    # Single MXU matmul for the whole 5x5 conv on this batch tile.
    y = jnp.dot(x_ref[...].reshape(M, Kp), w_ref[...],
                preferred_element_type=jnp.float32)

    # 2x2 / stride-2 max pool: h via the split (Ho, 2) dim, w via stride-2
    # sublane reads.  Bias + ReLU applied after the pool (equivalent ordering).
    y = y.reshape(tb, Ho, 2, W, C)
    hp_ref[...] = jnp.maximum(y[:, :, 0, :, :], y[:, :, 1, :, :])
    pooled = jnp.maximum(hp_ref[:, :, pl.ds(0, Wo, stride=2), :],
                         hp_ref[:, :, pl.ds(1, Wo, stride=2), :])
    o_ref[...] = jnp.maximum(pooled + b_ref[...], 0.0).astype(o_ref.dtype)


def conv_relu_pool(x_cols, w_mat, b_row):
    """x_cols: (B, H, W, Kp) im2col patches -> (B, H//2, W//2, Cout)."""
    B, H, W, Kp = x_cols.shape
    C = w_mat.shape[1]
    Ho, Wo = H // 2, W // 2

    # Batch tile: largest power-of-2 divisor of B whose (double-buffered) input
    # tile stays around <= 4 MiB of VMEM.
    cap = max(1, (2 * 1024 * 1024) // (H * W * Kp * 4))
    tb = 1
    while tb * 2 <= cap and B % (tb * 2) == 0:
        tb *= 2

    kernel = functools.partial(_matmul_pool_kernel, H=H, W=W)
    return pl.pallas_call(
        kernel,
        out_shape=jax.ShapeDtypeStruct((B, Ho, Wo, C), x_cols.dtype),
        grid=(B // tb,),
        in_specs=[
            pl.BlockSpec((tb, H, W, Kp), lambda i: (i, 0, 0, 0)),
            pl.BlockSpec((Kp, C), lambda i: (0, 0)),
            pl.BlockSpec((1, C), lambda i: (0, 0)),
        ],
        out_specs=pl.BlockSpec((tb, Ho, Wo, C), lambda i: (i, 0, 0, 0)),
        scratch_shapes=[pltpu.VMEM((tb, Ho, W, C), jnp.float32)],
        compiler_params=pltpu.CompilerParams(
            dimension_semantics=("parallel",),
            vmem_limit_bytes=32 * 1024 * 1024),
    )(x_cols, w_mat, b_row)


# ---------------- fused FC head: fc1 -> ReLU -> fc2 -> ReLU -> fc3 ----------------

def _fc_head_kernel(x_ref, w1_ref, b1_ref, w2_ref, b2_ref, w3_ref, b3_ref, o_ref):
    h = jnp.dot(x_ref[...], w1_ref[...], preferred_element_type=jnp.float32)
    h = jnp.maximum(h + b1_ref[...], 0.0)
    h = jnp.dot(h, w2_ref[...], preferred_element_type=jnp.float32)
    h = jnp.maximum(h + b2_ref[...], 0.0)
    o = jnp.dot(h, w3_ref[...], preferred_element_type=jnp.float32) + b3_ref[...]
    o_ref[...] = o.astype(o_ref.dtype)


def fc_head(x, w1, b1, w2, b2, w3, b3):
    """x: (Bp, 1024) -> (Bp, FC_OUT_PAD).  Bp must be a multiple of the row tile."""
    B, K = x.shape
    N = w3.shape[1]
    tm = min(128, B)
    return pl.pallas_call(
        _fc_head_kernel,
        out_shape=jax.ShapeDtypeStruct((B, N), x.dtype),
        grid=(B // tm,),
        in_specs=[
            pl.BlockSpec((tm, K), lambda i: (i, 0)),
            pl.BlockSpec(w1.shape, lambda i: (0, 0)),
            pl.BlockSpec(b1.shape, lambda i: (0, 0)),
            pl.BlockSpec(w2.shape, lambda i: (0, 0)),
            pl.BlockSpec(b2.shape, lambda i: (0, 0)),
            pl.BlockSpec(w3.shape, lambda i: (0, 0)),
            pl.BlockSpec(b3.shape, lambda i: (0, 0)),
        ],
        out_specs=pl.BlockSpec((tm, N), lambda i: (i, 0)),
        compiler_params=pltpu.CompilerParams(
            dimension_semantics=("parallel",),
            vmem_limit_bytes=32 * 1024 * 1024),
    )(x, w1, b1, w2, b2, w3, b3)


# ---------------- parameters (PyTorch layout) and one-time prep ----------------

def init_params(key):
    ks = jax.random.split(key, 12)

    def u(k, shape, fan_in):
        bound = 1.0 / jnp.sqrt(float(fan_in))
        return jax.random.uniform(k, shape, jnp.float32, -bound, bound)

    p = {}
    p["conv1_w"] = u(ks[0], (16, 3, 5, 5), 3 * 25)
    p["conv1_b"] = u(ks[1], (16,), 3 * 25)
    p["conv2_w"] = u(ks[2], (32, 16, 5, 5), 16 * 25)
    p["conv2_b"] = u(ks[3], (32,), 16 * 25)
    p["conv3_w"] = u(ks[4], (64, 32, 5, 5), 32 * 25)
    p["conv3_b"] = u(ks[5], (64,), 32 * 25)
    p["fc1_w"] = u(ks[6], (1024, 1024), 1024)    # (out, in) like nn.Linear
    p["fc1_b"] = u(ks[7], (1024,), 1024)
    p["fc2_w"] = u(ks[8], (512, 1024), 1024)
    p["fc2_b"] = u(ks[9], (512,), 1024)
    p["fc3_w"] = u(ks[10], (10, 512), 512)
    p["fc3_b"] = u(ks[11], (10,), 512)
    return p


def _prep_conv(w_oihw, b):
    """(Cout, Cin, 5, 5) -> ((25*Cin padded to 128k, Cout), (1, Cout)); rows ordered (kh, kw, cin)."""
    Cout, Cin, K, _ = w_oihw.shape
    kdim = K * K * Cin
    kpad = ((kdim + 127) // 128) * 128
    w = jnp.transpose(w_oihw, (2, 3, 1, 0)).reshape(kdim, Cout)
    w = jnp.pad(w, ((0, kpad - kdim), (0, 0)))
    return w.astype(jnp.float32), b.reshape(1, Cout).astype(jnp.float32)


def prepare_params(p):
    """One-time layout prep: im2col conv weight matrices, FC weights pre-transposed,
    fc1 rows permuted to the NHWC flatten order, fc3 padded to 128 output lanes."""
    q = {}
    q["c1_w"], q["c1_b"] = _prep_conv(p["conv1_w"], p["conv1_b"])
    q["c2_w"], q["c2_b"] = _prep_conv(p["conv2_w"], p["conv2_b"])
    q["c3_w"], q["c3_b"] = _prep_conv(p["conv3_w"], p["conv3_b"])

    # fc1: torch flattens NCHW -> (c, h, w); our flatten is NHWC -> (h, w, c).
    w1 = p["fc1_w"].T.reshape(64, 4, 4, 1024)            # (c, h, w, out)
    w1 = jnp.transpose(w1, (1, 2, 0, 3)).reshape(4 * 4 * 64, 1024)
    q["fc1_w"] = w1
    q["fc1_b"] = p["fc1_b"].reshape(1, 1024)
    q["fc2_w"] = p["fc2_w"].T                             # (1024, 512)
    q["fc2_b"] = p["fc2_b"].reshape(1, 512)
    q["fc3_w"] = jnp.pad(p["fc3_w"].T, ((0, 0), (0, FC_OUT_PAD - 10)))   # (512, 128)
    q["fc3_b"] = jnp.pad(p["fc3_b"], (0, FC_OUT_PAD - 10)).reshape(1, FC_OUT_PAD)
    return q


# ---------------- wrapper-side im2col (layout plumbing, pure XLA) ----------------

def _im2col_5x5(x, kpad):
    """x: (B, H, W, C) NHWC -> (B, H, W, kpad); lanes ordered (kh, kw, c), zero-padded."""
    B, H, W, C = x.shape
    xp = jnp.pad(x, ((0, 0), (2, 2), (2, 2), (0, 0)))
    cols = [xp[:, di:di + H, dj:dj + W, :] for di in range(5) for dj in range(5)]
    y = jnp.concatenate(cols, axis=-1)                    # (B, H, W, 25*C)
    if kpad > 25 * C:
        y = jnp.pad(y, ((0, 0), (0, 0), (0, 0), (0, kpad - 25 * C)))
    return y


# ---------------- forward ----------------

@jax.jit
def baseline_forward(prepped, x_nchw):
    # x_nchw: (B, 3, 32, 32) float32 (PyTorch NCHW convention)
    B = x_nchw.shape[0]
    x = jnp.transpose(x_nchw, (0, 2, 3, 1)).astype(jnp.float32)      # NHWC (B, 32, 32, 3)

    x = conv_relu_pool(_im2col_5x5(x, prepped["c1_w"].shape[0]),
                       prepped["c1_w"], prepped["c1_b"])             # (B, 16, 16, 16)
    x = conv_relu_pool(_im2col_5x5(x, prepped["c2_w"].shape[0]),
                       prepped["c2_w"], prepped["c2_b"])             # (B, 8, 8, 32)
    x = conv_relu_pool(_im2col_5x5(x, prepped["c3_w"].shape[0]),
                       prepped["c3_w"], prepped["c3_b"])             # (B, 4, 4, 64)

    x = x.reshape(B, 4 * 4 * 64)                                     # matches permuted fc1 rows
    tm = 128 if B >= 128 else ((B + 7) // 8) * 8                     # sublane-aligned row tile
    Bp = ((B + tm - 1) // tm) * tm
    if Bp != B:
        x = jnp.pad(x, ((0, Bp - B), (0, 0)))
    logits = fc_head(x, prepped["fc1_w"], prepped["fc1_b"],
                     prepped["fc2_w"], prepped["fc2_b"],
                     prepped["fc3_w"], prepped["fc3_b"])             # (Bp, 128)
    return logits[:B, :10]


if __name__ == "__main__":
    key = jax.random.PRNGKey(0)
    pkey, xkey = jax.random.split(key)
    params = init_params(pkey)
    prepped = prepare_params(params)                                 # one-time layout prep
    x = jax.random.normal(xkey, (2, 3, 32, 32), jnp.float32)
    out = jax.block_until_ready(baseline_forward(prepped, x))
    assert out.shape == (2, 10)
    assert bool(jnp.all(jnp.isfinite(out)))
    print("KERNEL_OK")
</pallas_src>

<mosaic_0001>
module attributes {stable_mosaic.version = 11 : i64} {
  func.func @_matmul_pool_kernel(%arg0: i32, %arg1: memref<2x32x32x128xf32, #tpu.memory_space<vmem>>, %arg2: memref<128x16xf32, #tpu.memory_space<vmem>>, %arg3: memref<1x16xf32, #tpu.memory_space<vmem>>, %arg4: memref<2x16x16x16xf32, #tpu.memory_space<vmem>>, %arg5: memref<2x16x32x16xf32, #tpu.memory_space<vmem>>) attributes {dimension_semantics = [#tpu.dimension_semantics<parallel>], iteration_bounds = array<i64: 1>, scalar_prefetch = 0 : i64, scratch_operands = 1 : i64, tpu.core_type = #tpu.core_type<tc>, window_params = [{transform_indices = @transform_0, window_bounds = array<i64: 2, 32, 32, 128>}, {pipeline_mode = #tpu.pipeline_mode<synchronous>, transform_indices = @transform_1, window_bounds = array<i64: 128, 16>}, {pipeline_mode = #tpu.pipeline_mode<synchronous>, transform_indices = @transform_2, window_bounds = array<i64: 1, 16>}, {transform_indices = @transform_3, window_bounds = array<i64: 2, 16, 16, 16>}]} {
    %c0 = arith.constant 0 : index
    %c0_0 = arith.constant 0 : index
    %c0_1 = arith.constant 0 : index
    %c0_2 = arith.constant 0 : index
    %0 = vector.load %arg1[%c0, %c0_0, %c0_1, %c0_2] : memref<2x32x32x128xf32, #tpu.memory_space<vmem>>, vector<2x32x32x128xf32>
    %1 = vector.shape_cast %0 : vector<2x32x32x128xf32> to vector<2048x128xf32>
    %c0_3 = arith.constant 0 : index
    %c0_4 = arith.constant 0 : index
    %2 = vector.load %arg2[%c0_3, %c0_4] : memref<128x16xf32, #tpu.memory_space<vmem>>, vector<128x16xf32>
    %cst = arith.constant dense<0.000000e+00> : vector<2048x16xf32>
    %3 = tpu.matmul %1, %2, %cst {dimension_numbers = #tpu.dot_dimension_numbers<[1], [0], [0], [1], [0, 0, 1, 1], [], []>} : vector<2048x128xf32>, vector<128x16xf32>, vector<2048x16xf32> -> vector<2048x16xf32>
    %4 = vector.shape_cast %3 : vector<2048x16xf32> to vector<2x16x2x32x16xf32>
    %5 = vector.extract_strided_slice %4 {offsets = [0, 0, 0, 0, 0], sizes = [2, 16, 1, 32, 16], strides = [1, 1, 1, 1, 1]} : vector<2x16x2x32x16xf32> to vector<2x16x1x32x16xf32>
    %6 = vector.shape_cast %5 : vector<2x16x1x32x16xf32> to vector<2x16x32x16xf32>
    %7 = vector.extract_strided_slice %4 {offsets = [0, 0, 1, 0, 0], sizes = [2, 16, 1, 32, 16], strides = [1, 1, 1, 1, 1]} : vector<2x16x2x32x16xf32> to vector<2x16x1x32x16xf32>
    %8 = vector.shape_cast %7 : vector<2x16x1x32x16xf32> to vector<2x16x32x16xf32>
    %9 = arith.maximumf %6, %8 : vector<2x16x32x16xf32>
    %c0_5 = arith.constant 0 : index
    %c0_6 = arith.constant 0 : index
    %c0_7 = arith.constant 0 : index
    %c0_8 = arith.constant 0 : index
    %10 = vector.load %arg5[%c0_5, %c0_6, %c0_7, %c0_8] : memref<2x16x32x16xf32, #tpu.memory_space<vmem>>, vector<2x16x32x16xf32>
    tpu.vector_store %arg5[%c0_5, %c0_6, %c0_7, %c0_8], %9 {strides = array<i32>} : memref<2x16x32x16xf32, #tpu.memory_space<vmem>>, vector<2x16x32x16xf32>,
    %c0_9 = arith.constant 0 : index
    %c0_10 = arith.constant 0 : index
    %c0_11 = arith.constant 0 : index
    %c0_12 = arith.constant 0 : index
    %11 = tpu.strided_load %arg5[%c0_9, %c0_10, %c0_11, %c0_12] {strides = array<i32: 1, 1, 2, 1>} : memref<2x16x32x16xf32, #tpu.memory_space<vmem>>, vector<2x16x16x16xf32>
    %c0_13 = arith.constant 0 : index
    %c0_14 = arith.constant 0 : index
    %c1 = arith.constant 1 : index
    %c0_15 = arith.constant 0 : index
    %12 = tpu.strided_load %arg5[%c0_13, %c0_14, %c1, %c0_15] {strides = array<i32: 1, 1, 2, 1>} : memref<2x16x32x16xf32, #tpu.memory_space<vmem>>, vector<2x16x16x16xf32>
    %13 = arith.maximumf %11, %12 : vector<2x16x16x16xf32>
    %c0_16 = arith.constant 0 : index
    %c0_17 = arith.constant 0 : index
    %14 = vector.load %arg3[%c0_16, %c0_17] : memref<1x16xf32, #tpu.memory_space<vmem>>, vector<1x16xf32>
    %15 = vector.shape_cast %14 : vector<1x16xf32> to vector<1x1x1x16xf32>
    %16 = vector.broadcast %15 : vector<1x1x1x16xf32> to vector<2x16x16x16xf32>
    %17 = arith.addf %13, %16 : vector<2x16x16x16xf32>
    %cst_18 = arith.constant 0.000000e+00 : f32
    %18 = vector.broadcast %cst_18 : f32 to vector<2x16x16x16xf32>
    %19 = arith.maximumf %17, %18 : vector<2x16x16x16xf32>
    %c0_19 = arith.constant 0 : index
    %c0_20 = arith.constant 0 : index
    %c0_21 = arith.constant 0 : index
    %c0_22 = arith.constant 0 : index
    %20 = vector.load %arg4[%c0_19, %c0_20, %c0_21, %c0_22] : memref<2x16x16x16xf32, #tpu.memory_space<vmem>>, vector<2x16x16x16xf32>
    tpu.vector_store %arg4[%c0_19, %c0_20, %c0_21, %c0_22], %19 {strides = array<i32>} : memref<2x16x16x16xf32, #tpu.memory_space<vmem>>, vector<2x16x16x16xf32>,
    return
  }
  func.func @transform_0(%arg0: i32) -> (i32, i32, i32, i32) {
    %c0_i32 = arith.constant 0 : i32
    %c0_i32_0 = arith.constant 0 : i32
    %c0_i32_1 = arith.constant 0 : i32
    %c0_i32_2 = arith.constant 0 : i32
    return %arg0, %c0_i32, %c0_i32_0, %c0_i32_1 : i32, i32, i32, i32
  }
  func.func @transform_1(%arg0: i32) -> (i32, i32) {
    %c0_i32 = arith.constant 0 : i32
    %c0_i32_0 = arith.constant 0 : i32
    %c0_i32_1 = arith.constant 0 : i32
    return %c0_i32, %c0_i32_0 : i32, i32
  }
  func.func @transform_2(%arg0: i32) -> (i32, i32) {
    %c0_i32 = arith.constant 0 : i32
    %c0_i32_0 = arith.constant 0 : i32
    %c0_i32_1 = arith.constant 0 : i32
    return %c0_i32, %c0_i32_0 : i32, i32
  }
  func.func @transform_3(%arg0: i32) -> (i32, i32, i32, i32) {
    %c0_i32 = arith.constant 0 : i32
    %c0_i32_0 = arith.constant 0 : i32
    %c0_i32_1 = arith.constant 0 : i32
    %c0_i32_2 = arith.constant 0 : i32
    return %arg0, %c0_i32, %c0_i32_0, %c0_i32_1 : i32, i32, i32, i32
  }
}

module attributes {stable_mosaic.version = 11 : i64} {
  func.func @_matmul_pool_kernel(%arg0: i32, %arg1: memref<2x16x16x512xf32, #tpu.memory_space<vmem>>, %arg2: memref<512x32xf32, #tpu.memory_space<vmem>>, %arg3: memref<1x32xf32, #tpu.memory_space<vmem>>, %arg4: memref<2x8x8x32xf32, #tpu.memory_space<vmem>>, %arg5: memref<2x8x16x32xf32, #tpu.memory_space<vmem>>) attributes {dimension_semantics = [#tpu.dimension_semantics<parallel>], iteration_bounds = array<i64: 1>, scalar_prefetch = 0 : i64, scratch_operands = 1 : i64, tpu.core_type = #tpu.core_type<tc>, window_params = [{transform_indices = @transform_0, window_bounds = array<i64: 2, 16, 16, 512>}, {pipeline_mode = #tpu.pipeline_mode<synchronous>, transform_indices = @transform_1, window_bounds = array<i64: 512, 32>}, {pipeline_mode = #tpu.pipeline_mode<synchronous>, transform_indices = @transform_2, window_bounds = array<i64: 1, 32>}, {transform_indices = @transform_3, window_bounds = array<i64: 2, 8, 8, 32>}]} {
    %c0 = arith.constant 0 : index
    %c0_0 = arith.constant 0 : index
    %c0_1 = arith.constant 0 : index
    %c0_2 = arith.constant 0 : index
    %0 = vector.load %arg1[%c0, %c0_0, %c0_1, %c0_2] : memref<2x16x16x512xf32, #tpu.memory_space<vmem>>, vector<2x16x16x512xf32>
    %1 = vector.shape_cast %0 : vector<2x16x16x512xf32> to vector<512x512xf32>
    %c0_3 = arith.constant 0 : index
    %c0_4 = arith.constant 0 : index
    %2 = vector.load %arg2[%c0_3, %c0_4] : memref<512x32xf32, #tpu.memory_space<vmem>>, vector<512x32xf32>
    %cst = arith.constant dense<0.000000e+00> : vector<512x32xf32>
    %3 = tpu.matmul %1, %2, %cst {dimension_numbers = #tpu.dot_dimension_numbers<[1], [0], [0], [1], [0, 0, 1, 1], [], []>} : vector<512x512xf32>, vector<512x32xf32>, vector<512x32xf32> -> vector<512x32xf32>
    %4 = vector.shape_cast %3 : vector<512x32xf32> to vector<2x8x2x16x32xf32>
    %5 = vector.extract_strided_slice %4 {offsets = [0, 0, 0, 0, 0], sizes = [2, 8, 1, 16, 32], strides = [1, 1, 1, 1, 1]} : vector<2x8x2x16x32xf32> to vector<2x8x1x16x32xf32>
    %6 = vector.shape_cast %5 : vector<2x8x1x16x32xf32> to vector<2x8x16x32xf32>
    %7 = vector.extract_strided_slice %4 {offsets = [0, 0, 1, 0, 0], sizes = [2, 8, 1, 16, 32], strides = [1, 1, 1, 1, 1]} : vector<2x8x2x16x32xf32> to vector<2x8x1x16x32xf32>
    %8 = vector.shape_cast %7 : vector<2x8x1x16x32xf32> to vector<2x8x16x32xf32>
    %9 = arith.maximumf %6, %8 : vector<2x8x16x32xf32>
    %c0_5 = arith.constant 0 : index
    %c0_6 = arith.constant 0 : index
    %c0_7 = arith.constant 0 : index
    %c0_8 = arith.constant 0 : index
    %10 = vector.load %arg5[%c0_5, %c0_6, %c0_7, %c0_8] : memref<2x8x16x32xf32, #tpu.memory_space<vmem>>, vector<2x8x16x32xf32>
    tpu.vector_store %arg5[%c0_5, %c0_6, %c0_7, %c0_8], %9 {strides = array<i32>} : memref<2x8x16x32xf32, #tpu.memory_space<vmem>>, vector<2x8x16x32xf32>,
    %c0_9 = arith.constant 0 : index
    %c0_10 = arith.constant 0 : index
    %c0_11 = arith.constant 0 : index
    %c0_12 = arith.constant 0 : index
    %11 = tpu.strided_load %arg5[%c0_9, %c0_10, %c0_11, %c0_12] {strides = array<i32: 1, 1, 2, 1>} : memref<2x8x16x32xf32, #tpu.memory_space<vmem>>, vector<2x8x8x32xf32>
    %c0_13 = arith.constant 0 : index
    %c0_14 = arith.constant 0 : index
    %c1 = arith.constant 1 : index
    %c0_15 = arith.constant 0 : index
    %12 = tpu.strided_load %arg5[%c0_13, %c0_14, %c1, %c0_15] {strides = array<i32: 1, 1, 2, 1>} : memref<2x8x16x32xf32, #tpu.memory_space<vmem>>, vector<2x8x8x32xf32>
    %13 = arith.maximumf %11, %12 : vector<2x8x8x32xf32>
    %c0_16 = arith.constant 0 : index
    %c0_17 = arith.constant 0 : index
    %14 = vector.load %arg3[%c0_16, %c0_17] : memref<1x32xf32, #tpu.memory_space<vmem>>, vector<1x32xf32>
    %15 = vector.shape_cast %14 : vector<1x32xf32> to vector<1x1x1x32xf32>
    %16 = vector.broadcast %15 : vector<1x1x1x32xf32> to vector<2x8x8x32xf32>
    %17 = arith.addf %13, %16 : vector<2x8x8x32xf32>
    %cst_18 = arith.constant 0.000000e+00 : f32
    %18 = vector.broadcast %cst_18 : f32 to vector<2x8x8x32xf32>
    %19 = arith.maximumf %17, %18 : vector<2x8x8x32xf32>
    %c0_19 = arith.constant 0 : index
    %c0_20 = arith.constant 0 : index
    %c0_21 = arith.constant 0 : index
    %c0_22 = arith.constant 0 : index
    %20 = vector.load %arg4[%c0_19, %c0_20, %c0_21, %c0_22] : memref<2x8x8x32xf32, #tpu.memory_space<vmem>>, vector<2x8x8x32xf32>
    tpu.vector_store %arg4[%c0_19, %c0_20, %c0_21, %c0_22], %19 {strides = array<i32>} : memref<2x8x8x32xf32, #tpu.memory_space<vmem>>, vector<2x8x8x32xf32>,
    return
  }
  func.func @transform_0(%arg0: i32) -> (i32, i32, i32, i32) {
    %c0_i32 = arith.constant 0 : i32
    %c0_i32_0 = arith.constant 0 : i32
    %c0_i32_1 = arith.constant 0 : i32
    %c0_i32_2 = arith.constant 0 : i32
    return %arg0, %c0_i32, %c0_i32_0, %c0_i32_1 : i32, i32, i32, i32
  }
  func.func @transform_1(%arg0: i32) -> (i32, i32) {
    %c0_i32 = arith.constant 0 : i32
    %c0_i32_0 = arith.constant 0 : i32
    %c0_i32_1 = arith.constant 0 : i32
    return %c0_i32, %c0_i32_0 : i32, i32
  }
  func.func @transform_2(%arg0: i32) -> (i32, i32) {
    %c0_i32 = arith.constant 0 : i32
    %c0_i32_0 = arith.constant 0 : i32
    %c0_i32_1 = arith.constant 0 : i32
    return %c0_i32, %c0_i32_0 : i32, i32
  }
  func.func @transform_3(%arg0: i32) -> (i32, i32, i32, i32) {
    %c0_i32 = arith.constant 0 : i32
    %c0_i32_0 = arith.constant 0 : i32
    %c0_i32_1 = arith.constant 0 : i32
    %c0_i32_2 = arith.constant 0 : i32
    return %arg0, %c0_i32, %c0_i32_0, %c0_i32_1 : i32, i32, i32, i32
  }
}

module attributes {stable_mosaic.version = 11 : i64} {
  func.func @_fc_head_kernel(%arg0: i32, %arg1: memref<8x1024xf32, #tpu.memory_space<vmem>>, %arg2: memref<1024x1024xf32, #tpu.memory_space<vmem>>, %arg3: memref<1x1024xf32, #tpu.memory_space<vmem>>, %arg4: memref<1024x512xf32, #tpu.memory_space<vmem>>, %arg5: memref<1x512xf32, #tpu.memory_space<vmem>>, %arg6: memref<512x128xf32, #tpu.memory_space<vmem>>, %arg7: memref<1x128xf32, #tpu.memory_space<vmem>>, %arg8: memref<8x128xf32, #tpu.memory_space<vmem>>) attributes {dimension_semantics = [#tpu.dimension_semantics<parallel>], iteration_bounds = array<i64: 1>, scalar_prefetch = 0 : i64, scratch_operands = 0 : i64, tpu.core_type = #tpu.core_type<tc>, window_params = [{transform_indices = @transform_0, window_bounds = array<i64: 8, 1024>}, {pipeline_mode = #tpu.pipeline_mode<synchronous>, transform_indices = @transform_1, window_bounds = array<i64: 1024, 1024>}, {pipeline_mode = #tpu.pipeline_mode<synchronous>, transform_indices = @transform_2, window_bounds = array<i64: 1, 1024>}, {pipeline_mode = #tpu.pipeline_mode<synchronous>, transform_indices = @transform_3, window_bounds = array<i64: 1024, 512>}, {pipeline_mode = #tpu.pipeline_mode<synchronous>, transform_indices = @transform_4, window_bounds = array<i64: 1, 512>}, {pipeline_mode = #tpu.pipeline_mode<synchronous>, transform_indices = @transform_5, window_bounds = array<i64: 512, 128>}, {pipeline_mode = #tpu.pipeline_mode<synchronous>, transform_indices = @transform_6, window_bounds = array<i64: 1, 128>}, {transform_indices = @transform_7, window_bounds = array<i64: 8, 128>}]} {
    %c0 = arith.constant 0 : index
    %c0_0 = arith.constant 0 : index
    %0 = vector.load %arg1[%c0, %c0_0] : memref<8x1024xf32, #tpu.memory_space<vmem>>, vector<8x1024xf32>
    %c0_1 = arith.constant 0 : index
    %c0_2 = arith.constant 0 : index
    %1 = vector.load %arg2[%c0_1, %c0_2] : memref<1024x1024xf32, #tpu.memory_space<vmem>>, vector<1024x1024xf32>
    %cst = arith.constant dense<0.000000e+00> : vector<8x1024xf32>
    %2 = tpu.matmul %0, %1, %cst {dimension_numbers = #tpu.dot_dimension_numbers<[1], [0], [0], [1], [0, 0, 1, 1], [], []>} : vector<8x1024xf32>, vector<1024x1024xf32>, vector<8x1024xf32> -> vector<8x1024xf32>
    %c0_3 = arith.constant 0 : index
    %c0_4 = arith.constant 0 : index
    %3 = vector.load %arg3[%c0_3, %c0_4] : memref<1x1024xf32, #tpu.memory_space<vmem>>, vector<1x1024xf32>
    %4 = vector.broadcast %3 : vector<1x1024xf32> to vector<8x1024xf32>
    %5 = arith.addf %2, %4 : vector<8x1024xf32>
    %cst_5 = arith.constant 0.000000e+00 : f32
    %6 = vector.broadcast %cst_5 : f32 to vector<8x1024xf32>
    %7 = arith.maximumf %5, %6 : vector<8x1024xf32>
    %c0_6 = arith.constant 0 : index
    %c0_7 = arith.constant 0 : index
    %8 = vector.load %arg4[%c0_6, %c0_7] : memref<1024x512xf32, #tpu.memory_space<vmem>>, vector<1024x512xf32>
    %cst_8 = arith.constant dense<0.000000e+00> : vector<8x512xf32>
    %9 = tpu.matmul %7, %8, %cst_8 {dimension_numbers = #tpu.dot_dimension_numbers<[1], [0], [0], [1], [0, 0, 1, 1], [], []>} : vector<8x1024xf32>, vector<1024x512xf32>, vector<8x512xf32> -> vector<8x512xf32>
    %c0_9 = arith.constant 0 : index
    %c0_10 = arith.constant 0 : index
    %10 = vector.load %arg5[%c0_9, %c0_10] : memref<1x512xf32, #tpu.memory_space<vmem>>, vector<1x512xf32>
    %11 = vector.broadcast %10 : vector<1x512xf32> to vector<8x512xf32>
    %12 = arith.addf %9, %11 : vector<8x512xf32>
    %cst_11 = arith.constant 0.000000e+00 : f32
    %13 = vector.broadcast %cst_11 : f32 to vector<8x512xf32>
    %14 = arith.maximumf %12, %13 : vector<8x512xf32>
    %c0_12 = arith.constant 0 : index
    %c0_13 = arith.constant 0 : index
    %15 = vector.load %arg6[%c0_12, %c0_13] : memref<512x128xf32, #tpu.memory_space<vmem>>, vector<512x128xf32>
    %cst_14 = arith.constant dense<0.000000e+00> : vector<8x128xf32>
    %16 = tpu.matmul %14, %15, %cst_14 {dimension_numbers = #tpu.dot_dimension_numbers<[1], [0], [0], [1], [0, 0, 1, 1], [], []>} : vector<8x512xf32>, vector<512x128xf32>, vector<8x128xf32> -> vector<8x128xf32>
    %c0_15 = arith.constant 0 : index
    %c0_16 = arith.constant 0 : index
    %17 = vector.load %arg7[%c0_15, %c0_16] : memref<1x128xf32, #tpu.memory_space<vmem>>, vector<1x128xf32>
    %18 = vector.broadcast %17 : vector<1x128xf32> to vector<8x128xf32>
    %19 = arith.addf %16, %18 : vector<8x128xf32>
    %c0_17 = arith.constant 0 : index
    %c0_18 = arith.constant 0 : index
    %20 = vector.load %arg8[%c0_17, %c0_18] : memref<8x128xf32, #tpu.memory_space<vmem>>, vector<8x128xf32>
    tpu.vector_store %arg8[%c0_17, %c0_18], %19 {strides = array<i32>} : memref<8x128xf32, #tpu.memory_space<vmem>>, vector<8x128xf32>,
    return
  }
  func.func @transform_0(%arg0: i32) -> (i32, i32) {
    %c0_i32 = arith.constant 0 : i32
    %c0_i32_0 = arith.constant 0 : i32
    return %arg0, %c0_i32 : i32, i32
  }
  func.func @transform_1(%arg0: i32) -> (i32, i32) {
    %c0_i32 = arith.constant 0 : i32
    %c0_i32_0 = arith.constant 0 : i32
    %c0_i32_1 = arith.constant 0 : i32
    return %c0_i32, %c0_i32_0 : i32, i32
  }
  func.func @transform_2(%arg0: i32) -> (i32, i32) {
    %c0_i32 = arith.constant 0 : i32
    %c0_i32_0 = arith.constant 0 : i32
    %c0_i32_1 = arith.constant 0 : i32
    return %c0_i32, %c0_i32_0 : i32, i32
  }
  func.func @transform_3(%arg0: i32) -> (i32, i32) {
    %c0_i32 = arith.constant 0 : i32
    %c0_i32_0 = arith.constant 0 : i32
    %c0_i32_1 = arith.constant 0 : i32
    return %c0_i32, %c0_i32_0 : i32, i32
  }
  func.func @transform_4(%arg0: i32) -> (i32, i32) {
    %c0_i32 = arith.constant 0 : i32
    %c0_i32_0 = arith.constant 0 : i32
    %c0_i32_1 = arith.constant 0 : i32
    return %c0_i32, %c0_i32_0 : i32, i32
  }
  func.func @transform_5(%arg0: i32) -> (i32, i32) {
    %c0_i32 = arith.constant 0 : i32
    %c0_i32_0 = arith.constant 0 : i32
    %c0_i32_1 = arith.constant 0 : i32
    return %c0_i32, %c0_i32_0 : i32, i32
  }
  func.func @transform_6(%arg0: i32) -> (i32, i32) {
    %c0_i32 = arith.constant 0 : i32
    %c0_i32_0 = arith.constant 0 : i32
    %c0_i32_1 = arith.constant 0 : i32
    return %c0_i32, %c0_i32_0 : i32, i32
  }
  func.func @transform_7(%arg0: i32) -> (i32, i32) {
    %c0_i32 = arith.constant 0 : i32
    %c0_i32_0 = arith.constant 0 : i32
    return %arg0, %c0_i32 : i32, i32
  }
}

module attributes {stable_mosaic.version = 11 : i64} {
  func.func @_matmul_pool_kernel(%arg0: i32, %arg1: memref<2x8x8x896xf32, #tpu.memory_space<vmem>>, %arg2: memref<896x64xf32, #tpu.memory_space<vmem>>, %arg3: memref<1x64xf32, #tpu.memory_space<vmem>>, %arg4: memref<2x4x4x64xf32, #tpu.memory_space<vmem>>, %arg5: memref<2x4x8x64xf32, #tpu.memory_space<vmem>>) attributes {dimension_semantics = [#tpu.dimension_semantics<parallel>], iteration_bounds = array<i64: 1>, scalar_prefetch = 0 : i64, scratch_operands = 1 : i64, tpu.core_type = #tpu.core_type<tc>, window_params = [{transform_indices = @transform_0, window_bounds = array<i64: 2, 8, 8, 896>}, {pipeline_mode = #tpu.pipeline_mode<synchronous>, transform_indices = @transform_1, window_bounds = array<i64: 896, 64>}, {pipeline_mode = #tpu.pipeline_mode<synchronous>, transform_indices = @transform_2, window_bounds = array<i64: 1, 64>}, {transform_indices = @transform_3, window_bounds = array<i64: 2, 4, 4, 64>}]} {
    %c0 = arith.constant 0 : index
    %c0_0 = arith.constant 0 : index
    %c0_1 = arith.constant 0 : index
    %c0_2 = arith.constant 0 : index
    %0 = vector.load %arg1[%c0, %c0_0, %c0_1, %c0_2] : memref<2x8x8x896xf32, #tpu.memory_space<vmem>>, vector<2x8x8x896xf32>
    %1 = vector.shape_cast %0 : vector<2x8x8x896xf32> to vector<128x896xf32>
    %c0_3 = arith.constant 0 : index
    %c0_4 = arith.constant 0 : index
    %2 = vector.load %arg2[%c0_3, %c0_4] : memref<896x64xf32, #tpu.memory_space<vmem>>, vector<896x64xf32>
    %cst = arith.constant dense<0.000000e+00> : vector<128x64xf32>
    %3 = tpu.matmul %1, %2, %cst {dimension_numbers = #tpu.dot_dimension_numbers<[1], [0], [0], [1], [0, 0, 1, 1], [], []>} : vector<128x896xf32>, vector<896x64xf32>, vector<128x64xf32> -> vector<128x64xf32>
    %4 = vector.shape_cast %3 : vector<128x64xf32> to vector<2x4x2x8x64xf32>
    %5 = vector.extract_strided_slice %4 {offsets = [0, 0, 0, 0, 0], sizes = [2, 4, 1, 8, 64], strides = [1, 1, 1, 1, 1]} : vector<2x4x2x8x64xf32> to vector<2x4x1x8x64xf32>
    %6 = vector.shape_cast %5 : vector<2x4x1x8x64xf32> to vector<2x4x8x64xf32>
    %7 = vector.extract_strided_slice %4 {offsets = [0, 0, 1, 0, 0], sizes = [2, 4, 1, 8, 64], strides = [1, 1, 1, 1, 1]} : vector<2x4x2x8x64xf32> to vector<2x4x1x8x64xf32>
    %8 = vector.shape_cast %7 : vector<2x4x1x8x64xf32> to vector<2x4x8x64xf32>
    %9 = arith.maximumf %6, %8 : vector<2x4x8x64xf32>
    %c0_5 = arith.constant 0 : index
    %c0_6 = arith.constant 0 : index
    %c0_7 = arith.constant 0 : index
    %c0_8 = arith.constant 0 : index
    %10 = vector.load %arg5[%c0_5, %c0_6, %c0_7, %c0_8] : memref<2x4x8x64xf32, #tpu.memory_space<vmem>>, vector<2x4x8x64xf32>
    tpu.vector_store %arg5[%c0_5, %c0_6, %c0_7, %c0_8], %9 {strides = array<i32>} : memref<2x4x8x64xf32, #tpu.memory_space<vmem>>, vector<2x4x8x64xf32>,
    %c0_9 = arith.constant 0 : index
    %c0_10 = arith.constant 0 : index
    %c0_11 = arith.constant 0 : index
    %c0_12 = arith.constant 0 : index
    %11 = tpu.strided_load %arg5[%c0_9, %c0_10, %c0_11, %c0_12] {strides = array<i32: 1, 1, 2, 1>} : memref<2x4x8x64xf32, #tpu.memory_space<vmem>>, vector<2x4x4x64xf32>
    %c0_13 = arith.constant 0 : index
    %c0_14 = arith.constant 0 : index
    %c1 = arith.constant 1 : index
    %c0_15 = arith.constant 0 : index
    %12 = tpu.strided_load %arg5[%c0_13, %c0_14, %c1, %c0_15] {strides = array<i32: 1, 1, 2, 1>} : memref<2x4x8x64xf32, #tpu.memory_space<vmem>>, vector<2x4x4x64xf32>
    %13 = arith.maximumf %11, %12 : vector<2x4x4x64xf32>
    %c0_16 = arith.constant 0 : index
    %c0_17 = arith.constant 0 : index
    %14 = vector.load %arg3[%c0_16, %c0_17] : memref<1x64xf32, #tpu.memory_space<vmem>>, vector<1x64xf32>
    %15 = vector.shape_cast %14 : vector<1x64xf32> to vector<1x1x1x64xf32>
    %16 = vector.broadcast %15 : vector<1x1x1x64xf32> to vector<2x4x4x64xf32>
    %17 = arith.addf %13, %16 : vector<2x4x4x64xf32>
    %cst_18 = arith.constant 0.000000e+00 : f32
    %18 = vector.broadcast %cst_18 : f32 to vector<2x4x4x64xf32>
    %19 = arith.maximumf %17, %18 : vector<2x4x4x64xf32>
    %c0_19 = arith.constant 0 : index
    %c0_20 = arith.constant 0 : index
    %c0_21 = arith.constant 0 : index
    %c0_22 = arith.constant 0 : index
    %20 = vector.load %arg4[%c0_19, %c0_20, %c0_21, %c0_22] : memref<2x4x4x64xf32, #tpu.memory_space<vmem>>, vector<2x4x4x64xf32>
    tpu.vector_store %arg4[%c0_19, %c0_20, %c0_21, %c0_22], %19 {strides = array<i32>} : memref<2x4x4x64xf32, #tpu.memory_space<vmem>>, vector<2x4x4x64xf32>,
    return
  }
  func.func @transform_0(%arg0: i32) -> (i32, i32, i32, i32) {
    %c0_i32 = arith.constant 0 : i32
    %c0_i32_0 = arith.constant 0 : i32
    %c0_i32_1 = arith.constant 0 : i32
    %c0_i32_2 = arith.constant 0 : i32
    return %arg0, %c0_i32, %c0_i32_0, %c0_i32_1 : i32, i32, i32, i32
  }
  func.func @transform_1(%arg0: i32) -> (i32, i32) {
    %c0_i32 = arith.constant 0 : i32
    %c0_i32_0 = arith.constant 0 : i32
    %c0_i32_1 = arith.constant 0 : i32
    return %c0_i32, %c0_i32_0 : i32, i32
  }
  func.func @transform_2(%arg0: i32) -> (i32, i32) {
    %c0_i32 = arith.constant 0 : i32
    %c0_i32_0 = arith.constant 0 : i32
    %c0_i32_1 = arith.constant 0 : i32
    return %c0_i32, %c0_i32_0 : i32, i32
  }
  func.func @transform_3(%arg0: i32) -> (i32, i32, i32, i32) {
    %c0_i32 = arith.constant 0 : i32
    %c0_i32_0 = arith.constant 0 : i32
    %c0_i32_1 = arith.constant 0 : i32
    %c0_i32_2 = arith.constant 0 : i32
    return %arg0, %c0_i32, %c0_i32_0, %c0_i32_1 : i32, i32, i32, i32
  }
}

</mosaic_0001>

<llo_original>
// kernel: baseline_forward.4
$region0: #{baseline_forward.4}
  #allocation0 [shape = 'u32[]', space=smem, size = 0x4, offset = 0x4, fixed_abs, tag = 'smem constant byte address 0x4 - core index']
  #allocation1 [shape = 'u32[72,128]{1,0:T(1,128)}', space=vmem, size = 0x9000, scoped, tag = 'internal scratch']
  #allocation2 [shape = 'f32[2,16,32,16]{3,2,1,0:T(8,128)}', space=vmem, size = 0x80000, scoped, tag = 'scratch operand']
  %s0 = inlined_call_operand.vmem [shape: f32[2,32,32,128], index: 0, kind: input, shape index: {}]
  %s1 = inlined_call_operand.vmem [shape: f32[128,16], index: 1, kind: input, shape index: {}]
  %s2 = inlined_call_operand.vmem [shape: f32[1,16], index: 2, kind: input, shape index: {}]
  %s3 = inlined_call_operand.vmem [shape: f32[2,16,16,16], index: 3, kind: output, shape index: {}]
  %s4 = sld [smem:[#allocation0]]
  $region22: #{baseline_forward.4} parent=0
    _
  %s6 = ssub.s32 1, %s4
  %s7 = scalar_select 0, %s6, %s4
  // Predicated region
  $region2: #{baseline_forward.4} parent=0 // pred_check
    _
  $region3: #{baseline_forward.4} parent=0 // pred_check_branch
    %9 = sbr.rel (0) target = $region5
  $region4: #{baseline_forward.4} parent=0 // pred_region
    _
  $region5: #{baseline_forward.4} parent=0 // pred_fallthru
    _
  // Predicated region
  $region6: #{baseline_forward.4} parent=0 // pred_check
    _
  $region7: #{baseline_forward.4} parent=0 // pred_check_branch
    %11 = sbr.rel (0) target = $region9
  $region8: #{baseline_forward.4} parent=0 // pred_region
    _
  $region9: #{baseline_forward.4} parent=0 // pred_fallthru
    _
  // Predicated region
  $region10: #{baseline_forward.4} parent=0 // pred_check
    _
  $region11: #{baseline_forward.4} parent=0 // pred_check_branch
    %13 = sbr.rel (0) target = $region13
  $region12: #{baseline_forward.4} parent=0 // pred_region
    _
  $region13: #{baseline_forward.4} parent=0 // pred_fallthru
    _
  %v14 = vld [vmem:[%s0] sm:$0xff]
  %v15 = vld [vmem:[%s0 + $0x8] sm:$0xff]
  %v16 = vld [vmem:[%s0 + $0x10] sm:$0xff]
  %v17 = vld [vmem:[%s0 + $0x18] sm:$0xff]
  %v18 = vld [vmem:[%s0 + $0x20] sm:$0xff]
  %v19 = vld [vmem:[%s0 + $0x28] sm:$0xff]
  %v20 = vld [vmem:[%s0 + $0x30] sm:$0xff]
  %v21 = vld [vmem:[%s0 + $0x38] sm:$0xff]
  %v22 = vld [vmem:[%s0 + $0x40] sm:$0xff]
  %v23 = vld [vmem:[%s0 + $0x48] sm:$0xff]
  %v24 = vld [vmem:[%s0 + $0x50] sm:$0xff]
  %v25 = vld [vmem:[%s0 + $0x58] sm:$0xff]
  %v26 = vld [vmem:[%s0 + $0x60] sm:$0xff]
  %v27 = vld [vmem:[%s0 + $0x68] sm:$0xff]
  %v28 = vld [vmem:[%s0 + $0x70] sm:$0xff]
  %v29 = vld [vmem:[%s0 + $0x78] sm:$0xff]
  %v30 = vld [vmem:[%s0 + $0x80] sm:$0xff]
  %v31 = vld [vmem:[%s0 + $0x88] sm:$0xff]
  %v32 = vld [vmem:[%s0 + $0x90] sm:$0xff]
  %v33 = vld [vmem:[%s0 + $0x98] sm:$0xff]
  %v34 = vld [vmem:[%s0 + $0xa0] sm:$0xff]
  %v35 = vld [vmem:[%s0 + $0xa8] sm:$0xff]
  %v36 = vld [vmem:[%s0 + $0xb0] sm:$0xff]
  %v37 = vld [vmem:[%s0 + $0xb8] sm:$0xff]
  %v38 = vld [vmem:[%s0 + $0xc0] sm:$0xff]
  %v39 = vld [vmem:[%s0 + $0xc8] sm:$0xff]
  %v40 = vld [vmem:[%s0 + $0xd0] sm:$0xff]
  %v41 = vld [vmem:[%s0 + $0xd8] sm:$0xff]
  %v42 = vld [vmem:[%s0 + $0xe0] sm:$0xff]
  %v43 = vld [vmem:[%s0 + $0xe8] sm:$0xff]
  %v44 = vld [vmem:[%s0 + $0xf0] sm:$0xff]
  %v45 = vld [vmem:[%s0 + $0xf8] sm:$0xff]
  %v46 = vld [vmem:[%s0 + $0x100] sm:$0xff]
  %v47 = vld [vmem:[%s0 + $0x108] sm:$0xff]
  %v48 = vld [vmem:[%s0 + $0x110] sm:$0xff]
  %v49 = vld [vmem:[%s0 + $0x118] sm:$0xff]
  %v50 = vld [vmem:[%s0 + $0x120] sm:$0xff]
  %v51 = vld [vmem:[%s0 + $0x128] sm:$0xff]
  %v52 = vld [vmem:[%s0 + $0x130] sm:$0xff]
  %v53 = vld [vmem:[%s0 + $0x138] sm:$0xff]
  %v54 = vld [vmem:[%s0 + $0x140] sm:$0xff]
  %v55 = vld [vmem:[%s0 + $0x148] sm:$0xff]
  %v56 = vld [vmem:[%s0 + $0x150] sm:$0xff]
  %v57 = vld [vmem:[%s0 + $0x158] sm:$0xff]
  %v58 = vld [vmem:[%s0 + $0x160] sm:$0xff]
  %v59 = vld [vmem:[%s0 + $0x168] sm:$0xff]
  %v60 = vld [vmem:[%s0 + $0x170] sm:$0xff]
  %v61 = vld [vmem:[%s0 + $0x178] sm:$0xff]
  %v62 = vld [vmem:[%s0 + $0x180] sm:$0xff]
  %v63 = vld [vmem:[%s0 + $0x188] sm:$0xff]
  %v64 = vld [vmem:[%s0 + $0x190] sm:$0xff]
  %v65 = vld [vmem:[%s0 + $0x198] sm:$0xff]
  %v66 = vld [vmem:[%s0 + $0x1a0] sm:$0xff]
  %v67 = vld [vmem:[%s0 + $0x1a8] sm:$0xff]
  %v68 = vld [vmem:[%s0 + $0x1b0] sm:$0xff]
  %v69 = vld [vmem:[%s0 + $0x1b8] sm:$0xff]
  %v70 = vld [vmem:[%s0 + $0x1c0] sm:$0xff]
  %v71 = vld [vmem:[%s0 + $0x1c8] sm:$0xff]
  %v72 = vld [vmem:[%s0 + $0x1d0] sm:$0xff]
  %v73 = vld [vmem:[%s0 + $0x1d8] sm:$0xff]
  %v74 = vld [vmem:[%s0 + $0x1e0] sm:$0xff]
  %v75 = vld [vmem:[%s0 + $0x1e8] sm:$0xff]
  %v76 = vld [vmem:[%s0 + $0x1f0] sm:$0xff]
  %v77 = vld [vmem:[%s0 + $0x1f8] sm:$0xff]
  %v78 = vld [vmem:[%s0 + $0x200] sm:$0xff]
  %v79 = vld [vmem:[%s0 + $0x208] sm:$0xff]
  %v80 = vld [vmem:[%s0 + $0x210] sm:$0xff]
  %v81 = vld [vmem:[%s0 + $0x218] sm:$0xff]
  %v82 = vld [vmem:[%s0 + $0x220] sm:$0xff]
  %v83 = vld [vmem:[%s0 + $0x228] sm:$0xff]
  %v84 = vld [vmem:[%s0 + $0x230] sm:$0xff]
  %v85 = vld [vmem:[%s0 + $0x238] sm:$0xff]
  %v86 = vld [vmem:[%s0 + $0x240] sm:$0xff]
  %v87 = vld [vmem:[%s0 + $0x248] sm:$0xff]
  %v88 = vld [vmem:[%s0 + $0x250] sm:$0xff]
  %v89 = vld [vmem:[%s0 + $0x258] sm:$0xff]
  %v90 = vld [vmem:[%s0 + $0x260] sm:$0xff]
  %v91 = vld [vmem:[%s0 + $0x268] sm:$0xff]
  %v92 = vld [vmem:[%s0 + $0x270] sm:$0xff]
  %v93 = vld [vmem:[%s0 + $0x278] sm:$0xff]
  %v94 = vld [vmem:[%s0 + $0x280] sm:$0xff]
  %v95 = vld [vmem:[%s0 + $0x288] sm:$0xff]
  %v96 = vld [vmem:[%s0 + $0x290] sm:$0xff]
  %v97 = vld [vmem:[%s0 + $0x298] sm:$0xff]
  %v98 = vld [vmem:[%s0 + $0x2a0] sm:$0xff]
  %v99 = vld [vmem:[%s0 + $0x2a8] sm:$0xff]
  %v100 = vld [vmem:[%s0 + $0x2b0] sm:$0xff]
  %v101 = vld [vmem:[%s0 + $0x2b8] sm:$0xff]
  %v102 = vld [vmem:[%s0 + $0x2c0] sm:$0xff]
  %v103 = vld [vmem:[%s0 + $0x2c8] sm:$0xff]
  %v104 = vld [vmem:[%s0 + $0x2d0] sm:$0xff]
  %v105 = vld [vmem:[%s0 + $0x2d8] sm:$0xff]
  %v106 = vld [vmem:[%s0 + $0x2e0] sm:$0xff]
  %v107 = vld [vmem:[%s0 + $0x2e8] sm:$0xff]
  %v108 = vld [vmem:[%s0 + $0x2f0] sm:$0xff]
  %v109 = vld [vmem:[%s0 + $0x2f8] sm:$0xff]
  %v110 = vld [vmem:[%s0 + $0x300] sm:$0xff]
  %v111 = vld [vmem:[%s0 + $0x308] sm:$0xff]
  %v112 = vld [vmem:[%s0 + $0x310] sm:$0xff]
  %v113 = vld [vmem:[%s0 + $0x318] sm:$0xff]
  %v114 = vld [vmem:[%s0 + $0x320] sm:$0xff]
  %v115 = vld [vmem:[%s0 + $0x328] sm:$0xff]
  %v116 = vld [vmem:[%s0 + $0x330] sm:$0xff]
  %v117 = vld [vmem:[%s0 + $0x338] sm:$0xff]
  %v118 = vld [vmem:[%s0 + $0x340] sm:$0xff]
  %v119 = vld [vmem:[%s0 + $0x348] sm:$0xff]
  %v120 = vld [vmem:[%s0 + $0x350] sm:$0xff]
  %v121 = vld [vmem:[%s0 + $0x358] sm:$0xff]
  %v122 = vld [vmem:[%s0 + $0x360] sm:$0xff]
  %v123 = vld [vmem:[%s0 + $0x368] sm:$0xff]
  %v124 = vld [vmem:[%s0 + $0x370] sm:$0xff]
  %v125 = vld [vmem:[%s0 + $0x378] sm:$0xff]
  %v126 = vld [vmem:[%s0 + $0x380] sm:$0xff]
  %v127 = vld [vmem:[%s0 + $0x388] sm:$0xff]
  %v128 = vld [vmem:[%s0 + $0x390] sm:$0xff]
  %v129 = vld [vmem:[%s0 + $0x398] sm:$0xff]
  %v130 = vld [vmem:[%s0 + $0x3a0] sm:$0xff]
  %v131 = vld [vmem:[%s0 + $0x3a8] sm:$0xff]
  %v132 = vld [vmem:[%s0 + $0x3b0] sm:$0xff]
  %v133 = vld [vmem:[%s0 + $0x3b8] sm:$0xff]
  %v134 = vld [vmem:[%s0 + $0x3c0] sm:$0xff]
  %v135 = vld [vmem:[%s0 + $0x3c8] sm:$0xff]
  %v136 = vld [vmem:[%s0 + $0x3d0] sm:$0xff]
  %v137 = vld [vmem:[%s0 + $0x3d8] sm:$0xff]
  %v138 = vld [vmem:[%s0 + $0x3e0] sm:$0xff]
  %v139 = vld [vmem:[%s0 + $0x3e8] sm:$0xff]
  %v140 = vld [vmem:[%s0 + $0x3f0] sm:$0xff]
  %v141 = vld [vmem:[%s0 + $0x3f8] sm:$0xff]
  %v142 = vld [vmem:[%s0 + $0x400] sm:$0xff]
  %v143 = vld [vmem:[%s0 + $0x408] sm:$0xff]
  %v144 = vld [vmem:[%s0 + $0x410] sm:$0xff]
  %v145 = vld [vmem:[%s0 + $0x418] sm:$0xff]
  %v146 = vld [vmem:[%s0 + $0x420] sm:$0xff]
  %v147 = vld [vmem:[%s0 + $0x428] sm:$0xff]
  %v148 = vld [vmem:[%s0 + $0x430] sm:$0xff]
  %v149 = vld [vmem:[%s0 + $0x438] sm:$0xff]
  %v150 = vld [vmem:[%s0 + $0x440] sm:$0xff]
  %v151 = vld [vmem:[%s0 + $0x448] sm:$0xff]
  %v152 = vld [vmem:[%s0 + $0x450] sm:$0xff]
  %v153 = vld [vmem:[%s0 + $0x458] sm:$0xff]
  %v154 = vld [vmem:[%s0 + $0x460] sm:$0xff]
  %v155 = vld [vmem:[%s0 + $0x468] sm:$0xff]
  %v156 = vld [vmem:[%s0 + $0x470] sm:$0xff]
  %v157 = vld [vmem:[%s0 + $0x478] sm:$0xff]
  %v158 = vld [vmem:[%s0 + $0x480] sm:$0xff]
  %v159 = vld [vmem:[%s0 + $0x488] sm:$0xff]
  %v160 = vld [vmem:[%s0 + $0x490] sm:$0xff]
  %v161 = vld [vmem:[%s0 + $0x498] sm:$0xff]
  %v162 = vld [vmem:[%s0 + $0x4a0] sm:$0xff]
  %v163 = vld [vmem:[%s0 + $0x4a8] sm:$0xff]
  %v164 = vld [vmem:[%s0 + $0x4b0] sm:$0xff]
  %v165 = vld [vmem:[%s0 + $0x4b8] sm:$0xff]
  %v166 = vld [vmem:[%s0 + $0x4c0] sm:$0xff]
  %v167 = vld [vmem:[%s0 + $0x4c8] sm:$0xff]
  %v168 = vld [vmem:[%s0 + $0x4d0] sm:$0xff]
  %v169 = vld [vmem:[%s0 + $0x4d8] sm:$0xff]
  %v170 = vld [vmem:[%s0 + $0x4e0] sm:$0xff]
  %v171 = vld [vmem:[%s0 + $0x4e8] sm:$0xff]
  %v172 = vld [vmem:[%s0 + $0x4f0] sm:$0xff]
  %v173 = vld [vmem:[%s0 + $0x4f8] sm:$0xff]
  %v174 = vld [vmem:[%s0 + $0x500] sm:$0xff]
  %v175 = vld [vmem:[%s0 + $0x508] sm:$0xff]
  %v176 = vld [vmem:[%s0 + $0x510] sm:$0xff]
  %v177 = vld [vmem:[%s0 + $0x518] sm:$0xff]
  %v178 = vld [vmem:[%s0 + $0x520] sm:$0xff]
  %v179 = vld [vmem:[%s0 + $0x528] sm:$0xff]
  %v180 = vld [vmem:[%s0 + $0x530] sm:$0xff]
  %v181 = vld [vmem:[%s0 + $0x538] sm:$0xff]
  %v182 = vld [vmem:[%s0 + $0x540] sm:$0xff]
  %v183 = vld [vmem:[%s0 + $0x548] sm:$0xff]
  %v184 = vld [vmem:[%s0 + $0x550] sm:$0xff]
  %v185 = vld [vmem:[%s0 + $0x558] sm:$0xff]
  %v186 = vld [vmem:[%s0 + $0x560] sm:$0xff]
  %v187 = vld [vmem:[%s0 + $0x568] sm:$0xff]
  %v188 = vld [vmem:[%s0 + $0x570] sm:$0xff]
  %v189 = vld [vmem:[%s0 + $0x578] sm:$0xff]
  %v190 = vld [vmem:[%s0 + $0x580] sm:$0xff]
  %v191 = vld [vmem:[%s0 + $0x588] sm:$0xff]
  %v192 = vld [vmem:[%s0 + $0x590] sm:$0xff]
  %v193 = vld [vmem:[%s0 + $0x598] sm:$0xff]
  %v194 = vld [vmem:[%s0 + $0x5a0] sm:$0xff]
  %v195 = vld [vmem:[%s0 + $0x5a8] sm:$0xff]
  %v196 = vld [vmem:[%s0 + $0x5b0] sm:$0xff]
  %v197 = vld [vmem:[%s0 + $0x5b8] sm:$0xff]
  %v198 = vld [vmem:[%s0 + $0x5c0] sm:$0xff]
  %v199 = vld [vmem:[%s0 + $0x5c8] sm:$0xff]
  %v200 = vld [vmem:[%s0 + $0x5d0] sm:$0xff]
  %v201 = vld [vmem:[%s0 + $0x5d8] sm:$0xff]
  %v202 = vld [vmem:[%s0 + $0x5e0] sm:$0xff]
  %v203 = vld [vmem:[%s0 + $0x5e8] sm:$0xff]
  %v204 = vld [vmem:[%s0 + $0x5f0] sm:$0xff]
  %v205 = vld [vmem:[%s0 + $0x5f8] sm:$0xff]
  %v206 = vld [vmem:[%s0 + $0x600] sm:$0xff]
  %v207 = vld [vmem:[%s0 + $0x608] sm:$0xff]
  %v208 = vld [vmem:[%s0 + $0x610] sm:$0xff]
  %v209 = vld [vmem:[%s0 + $0x618] sm:$0xff]
  %v210 = vld [vmem:[%s0 + $0x620] sm:$0xff]
  %v211 = vld [vmem:[%s0 + $0x628] sm:$0xff]
  %v212 = vld [vmem:[%s0 + $0x630] sm:$0xff]
  %v213 = vld [vmem:[%s0 + $0x638] sm:$0xff]
  %v214 = vld [vmem:[%s0 + $0x640] sm:$0xff]
  %v215 = vld [vmem:[%s0 + $0x648] sm:$0xff]
  %v216 = vld [vmem:[%s0 + $0x650] sm:$0xff]
  %v217 = vld [vmem:[%s0 + $0x658] sm:$0xff]
  %v218 = vld [vmem:[%s0 + $0x660] sm:$0xff]
  %v219 = vld [vmem:[%s0 + $0x668] sm:$0xff]
  %v220 = vld [vmem:[%s0 + $0x670] sm:$0xff]
  %v221 = vld [vmem:[%s0 + $0x678] sm:$0xff]
  %v222 = vld [vmem:[%s0 + $0x680] sm:$0xff]
  %v223 = vld [vmem:[%s0 + $0x688] sm:$0xff]
  %v224 = vld [vmem:[%s0 + $0x690] sm:$0xff]
  %v225 = vld [vmem:[%s0 + $0x698] sm:$0xff]
  %v226 = vld [vmem:[%s0 + $0x6a0] sm:$0xff]
  %v227 = vld [vmem:[%s0 + $0x6a8] sm:$0xff]
  %v228 = vld [vmem:[%s0 + $0x6b0] sm:$0xff]
  %v229 = vld [vmem:[%s0 + $0x6b8] sm:$0xff]
  %v230 = vld [vmem:[%s0 + $0x6c0] sm:$0xff]
  %v231 = vld [vmem:[%s0 + $0x6c8] sm:$0xff]
  %v232 = vld [vmem:[%s0 + $0x6d0] sm:$0xff]
  %v233 = vld [vmem:[%s0 + $0x6d8] sm:$0xff]
  %v234 = vld [vmem:[%s0 + $0x6e0] sm:$0xff]
  %v235 = vld [vmem:[%s0 + $0x6e8] sm:$0xff]
  %v236 = vld [vmem:[%s0 + $0x6f0] sm:$0xff]
  %v237 = vld [vmem:[%s0 + $0x6f8] sm:$0xff]
  %v238 = vld [vmem:[%s0 + $0x700] sm:$0xff]
  %v239 = vld [vmem:[%s0 + $0x708] sm:$0xff]
  %v240 = vld [vmem:[%s0 + $0x710] sm:$0xff]
  %v241 = vld [vmem:[%s0 + $0x718] sm:$0xff]
  %v242 = vld [vmem:[%s0 + $0x720] sm:$0xff]
  %v243 = vld [vmem:[%s0 + $0x728] sm:$0xff]
  %v244 = vld [vmem:[%s0 + $0x730] sm:$0xff]
  %v245 = vld [vmem:[%s0 + $0x738] sm:$0xff]
  %v246 = vld [vmem:[%s0 + $0x740] sm:$0xff]
  %v247 = vld [vmem:[%s0 + $0x748] sm:$0xff]
  %v248 = vld [vmem:[%s0 + $0x750] sm:$0xff]
  %v249 = vld [vmem:[%s0 + $0x758] sm:$0xff]
  %v250 = vld [vmem:[%s0 + $0x760] sm:$0xff]
  %v251 = vld [vmem:[%s0 + $0x768] sm:$0xff]
  %v252 = vld [vmem:[%s0 + $0x770] sm:$0xff]
  %v253 = vld [vmem:[%s0 + $0x778] sm:$0xff]
  %v254 = vld [vmem:[%s0 + $0x780] sm:$0xff]
  %v255 = vld [vmem:[%s0 + $0x788] sm:$0xff]
  %v256 = vld [vmem:[%s0 + $0x790] sm:$0xff]
  %v257 = vld [vmem:[%s0 + $0x798] sm:$0xff]
  %v258 = vld [vmem:[%s0 + $0x7a0] sm:$0xff]
  %v259 = vld [vmem:[%s0 + $0x7a8] sm:$0xff]
  %v260 = vld [vmem:[%s0 + $0x7b0] sm:$0xff]
  %v261 = vld [vmem:[%s0 + $0x7b8] sm:$0xff]
  %v262 = vld [vmem:[%s0 + $0x7c0] sm:$0xff]
  %v263 = vld [vmem:[%s0 + $0x7c8] sm:$0xff]
  %v264 = vld [vmem:[%s0 + $0x7d0] sm:$0xff]
  %v265 = vld [vmem:[%s0 + $0x7d8] sm:$0xff]
  %v266 = vld [vmem:[%s0 + $0x7e0] sm:$0xff]
  %v267 = vld [vmem:[%s0 + $0x7e8] sm:$0xff]
  %v268 = vld [vmem:[%s0 + $0x7f0] sm:$0xff]
  %v269 = vld [vmem:[%s0 + $0x7f8] sm:$0xff]
  %v270 = vld [vmem:[%s1] sm:$0xff]
  %v271 = vld [vmem:[%s1 + $0x8] sm:$0xff]
  %v272 = vld [vmem:[%s1 + $0x10] sm:$0xff]
  %v273 = vld [vmem:[%s1 + $0x18] sm:$0xff]
  %v274 = vld [vmem:[%s1 + $0x20] sm:$0xff]
  %v275 = vld [vmem:[%s1 + $0x28] sm:$0xff]
  %v276 = vld [vmem:[%s1 + $0x30] sm:$0xff]
  %v277 = vld [vmem:[%s1 + $0x38] sm:$0xff]
  %v278 = vld [vmem:[%s1 + $0x40] sm:$0xff]
  %v279 = vld [vmem:[%s1 + $0x48] sm:$0xff]
  %v280 = vld [vmem:[%s1 + $0x50] sm:$0xff]
  %v281 = vld [vmem:[%s1 + $0x58] sm:$0xff]
  %v282 = vld [vmem:[%s1 + $0x60] sm:$0xff]
  %v283 = vld [vmem:[%s1 + $0x68] sm:$0xff]
  %v284 = vld [vmem:[%s1 + $0x70] sm:$0xff]
  %v285 = vld [vmem:[%s1 + $0x78] sm:$0xff]
  %286 = vmatpush.msra.mxu0 %v285
  %287 = vmatpush.msra.mxu0 %v284
  %288 = vmatpush.msra.mxu0 %v283
  %289 = vmatpush.msra.mxu0 %v282
  %290 = vmatpush.msra.mxu0 %v281
  %291 = vmatpush.msra.mxu0 %v280
  %292 = vmatpush.msra.mxu0 %v279
  %293 = vmatpush.msra.mxu0 %v278
  %294 = vmatpush.msra.mxu0 %v277
  %295 = vmatpush.msra.mxu0 %v276
  %296 = vmatpush.msra.mxu0 %v275
  %297 = vmatpush.msra.mxu0 %v274
  %298 = vmatpush.msra.mxu0 %v273
  %299 = vmatpush.msra.mxu0 %v272
  %300 = vmatpush.msra.mxu0 %v271
  %301 = vmatpush.msra.mxu0 %v270
  %302 = vmatmul.f32.gmra.mxu0 %v14
  %v303 = vpop.f32.mrf.mxu0
  %v304 = vadd.f32 0.0, %v303
  %305 = vmatmul.f32.gmra.mxu0 %v15
  %v306 = vpop.f32.mrf.mxu0
  %v307 = vadd.f32 0.0, %v306
  %308 = vmatmul.f32.gmra.mxu0 %v16
  %v309 = vpop.f32.mrf.mxu0
  %v310 = vadd.f32 0.0, %v309
  %311 = vmatmul.f32.gmra.mxu0 %v17
  %v312 = vpop.f32.mrf.mxu0
  %v313 = vadd.f32 0.0, %v312
  %314 = vmatmul.f32.gmra.mxu0 %v18
  %v315 = vpop.f32.mrf.mxu0
  %v316 = vadd.f32 0.0, %v315
  %317 = vmatmul.f32.gmra.mxu0 %v19
  %v318 = vpop.f32.mrf.mxu0
  %v319 = vadd.f32 0.0, %v318
  %320 = vmatmul.f32.gmra.mxu0 %v20
  %v321 = vpop.f32.mrf.mxu0
  %v322 = vadd.f32 0.0, %v321
  %323 = vmatmul.f32.gmra.mxu0 %v21
  %v324 = vpop.f32.mrf.mxu0
  %v325 = vadd.f32 0.0, %v324
  %326 = vmatmul.f32.gmra.mxu0 %v22
  %v327 = vpop.f32.mrf.mxu0
  %v328 = vadd.f32 0.0, %v327
  %329 = vmatmul.f32.gmra.mxu0 %v23
  %v330 = vpop.f32.mrf.mxu0
  %v331 = vadd.f32 0.0, %v330
  %332 = vmatmul.f32.gmra.mxu0 %v24
  %v333 = vpop.f32.mrf.mxu0
  %v334 = vadd.f32 0.0, %v333
  %335 = vmatmul.f32.gmra.mxu0 %v25
  %v336 = vpop.f32.mrf.mxu0
  %v337 = vadd.f32 0.0, %v336
  %338 = vmatmul.f32.gmra.mxu0 %v26
  %v339 = vpop.f32.mrf.mxu0
  %v340 = vadd.f32 0.0, %v339
  %341 = vmatmul.f32.gmra.mxu0 %v27
  %v342 = vpop.f32.mrf.mxu0
  %v343 = vadd.f32 0.0, %v342
  %344 = vmatmul.f32.gmra.mxu0 %v28
  %v345 = vpop.f32.mrf.mxu0
  %v346 = vadd.f32 0.0, %v345
  %347 = vmatmul.f32.gmra.mxu0 %v29
  %v348 = vpop.f32.mrf.mxu0
  %v349 = vadd.f32 0.0, %v348
  %350 = vmatmul.f32.gmra.mxu0 %v30
  %v351 = vpop.f32.mrf.mxu0
  %v352 = vadd.f32 0.0, %v351
  %353 = vmatmul.f32.gmra.mxu0 %v31
  %v354 = vpop.f32.mrf.mxu0
  %v355 = vadd.f32 0.0, %v354
  %356 = vmatmul.f32.gmra.mxu0 %v32
  %v357 = vpop.f32.mrf.mxu0
  %v358 = vadd.f32 0.0, %v357
  %359 = vmatmul.f32.gmra.mxu0 %v33
  %v360 = vpop.f32.mrf.mxu0
  %v361 = vadd.f32 0.0, %v360
  %362 = vmatmul.f32.gmra.mxu0 %v34
  %v363 = vpop.f32.mrf.mxu0
  %v364 = vadd.f32 0.0, %v363
  %365 = vmatmul.f32.gmra.mxu0 %v35
  %v366 = vpop.f32.mrf.mxu0
  %v367 = vadd.f32 0.0, %v366
  %368 = vmatmul.f32.gmra.mxu0 %v36
  %v369 = vpop.f32.mrf.mxu0
  %v370 = vadd.f32 0.0, %v369
  %371 = vmatmul.f32.gmra.mxu0 %v37
  %v372 = vpop.f32.mrf.mxu0
  %v373 = vadd.f32 0.0, %v372
  %374 = vmatmul.f32.gmra.mxu0 %v38
  %v375 = vpop.f32.mrf.mxu0
  %v376 = vadd.f32 0.0, %v375
  %377 = vmatmul.f32.gmra.mxu0 %v39
  %v378 = vpop.f32.mrf.mxu0
  %v379 = vadd.f32 0.0, %v378
  %380 = vmatmul.f32.gmra.mxu0 %v40
  %v381 = vpop.f32.mrf.mxu0
  %v382 = vadd.f32 0.0, %v381
  %383 = vmatmul.f32.gmra.mxu0 %v41
  %v384 = vpop.f32.mrf.mxu0
  %v385 = vadd.f32 0.0, %v384
  %386 = vmatmul.f32.gmra.mxu0 %v42
  %v387 = vpop.f32.mrf.mxu0
  %v388 = vadd.f32 0.0, %v387
  %389 = vmatmul.f32.gmra.mxu0 %v43
  %v390 = vpop.f32.mrf.mxu0
  %v391 = vadd.f32 0.0, %v390
  %392 = vmatmul.f32.gmra.mxu0 %v44
  %v393 = vpop.f32.mrf.mxu0
  %v394 = vadd.f32 0.0, %v393
  %395 = vmatmul.f32.gmra.mxu0 %v45
  %v396 = vpop.f32.mrf.mxu0
  %v397 = vadd.f32 0.0, %v396
  %398 = vmatmul.f32.gmra.mxu0 %v46
  %v399 = vpop.f32.mrf.mxu0
  %v400 = vadd.f32 0.0, %v399
  %401 = vmatmul.f32.gmra.mxu0 %v47
  %v402 = vpop.f32.mrf.mxu0
  %v403 = vadd.f32 0.0, %v402
  %404 = vmatmul.f32.gmra.mxu0 %v48
  %v405 = vpop.f32.mrf.mxu0
  %v406 = vadd.f32 0.0, %v405
  %407 = vmatmul.f32.gmra.mxu0 %v49
  %v408 = vpop.f32.mrf.mxu0
  %v409 = vadd.f32 0.0, %v408
  %410 = vmatmul.f32.gmra.mxu0 %v50
  %v411 = vpop.f32.mrf.mxu0
  %v412 = vadd.f32 0.0, %v411
  %413 = vmatmul.f32.gmra.mxu0 %v51
  %v414 = vpop.f32.mrf.mxu0
  %v415 = vadd.f32 0.0, %v414
  %416 = vmatmul.f32.gmra.mxu0 %v52
  %v417 = vpop.f32.mrf.mxu0
  %v418 = vadd.f32 0.0, %v417
  %419 = vmatmul.f32.gmra.mxu0 %v53
  %v420 = vpop.f32.mrf.mxu0
  %v421 = vadd.f32 0.0, %v420
  %422 = vmatmul.f32.gmra.mxu0 %v54
  %v423 = vpop.f32.mrf.mxu0
  %v424 = vadd.f32 0.0, %v423
  %425 = vmatmul.f32.gmra.mxu0 %v55
  %v426 = vpop.f32.mrf.mxu0
  %v427 = vadd.f32 0.0, %v426
  %428 = vmatmul.f32.gmra.mxu0 %v56
  %v429 = vpop.f32.mrf.mxu0
  %v430 = vadd.f32 0.0, %v429
  %431 = vmatmul.f32.gmra.mxu0 %v57
  %v432 = vpop.f32.mrf.mxu0
  %v433 = vadd.f32 0.0, %v432
  %434 = vmatmul.f32.gmra.mxu0 %v58
  %v435 = vpop.f32.mrf.mxu0
  %v436 = vadd.f32 0.0, %v435
  %437 = vmatmul.f32.gmra.mxu0 %v59
  %v438 = vpop.f32.mrf.mxu0
  %v439 = vadd.f32 0.0, %v438
  %440 = vmatmul.f32.gmra.mxu0 %v60
  %v441 = vpop.f32.mrf.mxu0
  %v442 = vadd.f32 0.0, %v441
  %443 = vmatmul.f32.gmra.mxu0 %v61
  %v444 = vpop.f32.mrf.mxu0
  %v445 = vadd.f32 0.0, %v444
  %446 = vmatmul.f32.gmra.mxu0 %v62
  %v447 = vpop.f32.mrf.mxu0
  %v448 = vadd.f32 0.0, %v447
  %449 = vmatmul.f32.gmra.mxu0 %v63
  %v450 = vpop.f32.mrf.mxu0
  %v451 = vadd.f32 0.0, %v450
  %452 = vmatmul.f32.gmra.mxu0 %v64
  %v453 = vpop.f32.mrf.mxu0
  %v454 = vadd.f32 0.0, %v453
  %455 = vmatmul.f32.gmra.mxu0 %v65
  %v456 = vpop.f32.mrf.mxu0
  %v457 = vadd.f32 0.0, %v456
  %458 = vmatmul.f32.gmra.mxu0 %v66
  %v459 = vpop.f32.mrf.mxu0
  %v460 = vadd.f32 0.0, %v459
  %461 = vmatmul.f32.gmra.mxu0 %v67
  %v462 = vpop.f32.mrf.mxu0
  %v463 = vadd.f32 0.0, %v462
  %464 = vmatmul.f32.gmra.mxu0 %v68
  %v465 = vpop.f32.mrf.mxu0
  %v466 = vadd.f32 0.0, %v465
  %467 = vmatmul.f32.gmra.mxu0 %v69
  %v468 = vpop.f32.mrf.mxu0
  %v469 = vadd.f32 0.0, %v468
  %470 = vmatmul.f32.gmra.mxu0 %v70
  %v471 = vpop.f32.mrf.mxu0
  %v472 = vadd.f32 0.0, %v471
  %473 = vmatmul.f32.gmra.mxu0 %v71
  %v474 = vpop.f32.mrf.mxu0
  %v475 = vadd.f32 0.0, %v474
  %476 = vmatmul.f32.gmra.mxu0 %v72
  %v477 = vpop.f32.mrf.mxu0
  %v478 = vadd.f32 0.0, %v477
  %479 = vmatmul.f32.gmra.mxu0 %v73
  %v480 = vpop.f32.mrf.mxu0
  %v481 = vadd.f32 0.0, %v480
  %482 = vmatmul.f32.gmra.mxu0 %v74
  %v483 = vpop.f32.mrf.mxu0
  %v484 = vadd.f32 0.0, %v483
  %485 = vmatmul.f32.gmra.mxu0 %v75
  %v486 = vpop.f32.mrf.mxu0
  %v487 = vadd.f32 0.0, %v486
  %488 = vmatmul.f32.gmra.mxu0 %v76
  %v489 = vpop.f32.mrf.mxu0
  %v490 = vadd.f32 0.0, %v489
  %491 = vmatmul.f32.gmra.mxu0 %v77
  %v492 = vpop.f32.mrf.mxu0
  %v493 = vadd.f32 0.0, %v492
  %494 = vmatmul.f32.gmra.mxu0 %v78
  %v495 = vpop.f32.mrf.mxu0
  %v496 = vadd.f32 0.0, %v495
  %497 = vmatmul.f32.gmra.mxu0 %v79
  %v498 = vpop.f32.mrf.mxu0
  %v499 = vadd.f32 0.0, %v498
  %500 = vmatmul.f32.gmra.mxu0 %v80
  %v501 = vpop.f32.mrf.mxu0
  %v502 = vadd.f32 0.0, %v501
  %503 = vmatmul.f32.gmra.mxu0 %v81
  %v504 = vpop.f32.mrf.mxu0
  %v505 = vadd.f32 0.0, %v504
  %506 = vmatmul.f32.gmra.mxu0 %v82
  %v507 = vpop.f32.mrf.mxu0
  %v508 = vadd.f32 0.0, %v507
  %509 = vmatmul.f32.gmra.mxu0 %v83
  %v510 = vpop.f32.mrf.mxu0
  %v511 = vadd.f32 0.0, %v510
  %512 = vmatmul.f32.gmra.mxu0 %v84
  %v513 = vpop.f32.mrf.mxu0
  %v514 = vadd.f32 0.0, %v513
  %515 = vmatmul.f32.gmra.mxu0 %v85
  %v516 = vpop.f32.mrf.mxu0
  %v517 = vadd.f32 0.0, %v516
  %518 = vmatmul.f32.gmra.mxu0 %v86
  %v519 = vpop.f32.mrf.mxu0
  %v520 = vadd.f32 0.0, %v519
  %521 = vmatmul.f32.gmra.mxu0 %v87
  %v522 = vpop.f32.mrf.mxu0
  %v523 = vadd.f32 0.0, %v522
  %524 = vmatmul.f32.gmra.mxu0 %v88
  %v525 = vpop.f32.mrf.mxu0
  %v526 = vadd.f32 0.0, %v525
  %527 = vmatmul.f32.gmra.mxu0 %v89
  %v528 = vpop.f32.mrf.mxu0
  %v529 = vadd.f32 0.0, %v528
  %530 = vmatmul.f32.gmra.mxu0 %v90
  %v531 = vpop.f32.mrf.mxu0
  %v532 = vadd.f32 0.0, %v531
  %533 = vmatmul.f32.gmra.mxu0 %v91
  %v534 = vpop.f32.mrf.mxu0
  %v535 = vadd.f32 0.0, %v534
  %536 = vmatmul.f32.gmra.mxu0 %v92
  %v537 = vpop.f32.mrf.mxu0
  %v538 = vadd.f32 0.0, %v537
  %539 = vmatmul.f32.gmra.mxu0 %v93
  %v540 = vpop.f32.mrf.mxu0
  %v541 = vadd.f32 0.0, %v540
  %542 = vmatmul.f32.gmra.mxu0 %v94
  %v543 = vpop.f32.mrf.mxu0
  %v544 = vadd.f32 0.0, %v543
  %545 = vmatmul.f32.gmra.mxu0 %v95
  %v546 = vpop.f32.mrf.mxu0
  %v547 = vadd.f32 0.0, %v546
  %548 = vmatmul.f32.gmra.mxu0 %v96
  %v549 = vpop.f32.mrf.mxu0
  %v550 = vadd.f32 0.0, %v549
  %551 = vmatmul.f32.gmra.mxu0 %v97
  %v552 = vpop.f32.mrf.mxu0
  %v553 = vadd.f32 0.0, %v552
  %554 = vmatmul.f32.gmra.mxu0 %v98
  %v555 = vpop.f32.mrf.mxu0
  %v556 = vadd.f32 0.0, %v555
  %557 = vmatmul.f32.gmra.mxu0 %v99
  %v558 = vpop.f32.mrf.mxu0
  %v559 = vadd.f32 0.0, %v558
  %560 = vmatmul.f32.gmra.mxu0 %v100
  %v561 = vpop.f32.mrf.mxu0
  %v562 = vadd.f32 0.0, %v561
  %563 = vmatmul.f32.gmra.mxu0 %v101
  %v564 = vpop.f32.mrf.mxu0
  %v565 = vadd.f32 0.0, %v564
  %566 = vmatmul.f32.gmra.mxu0 %v102
  %v567 = vpop.f32.mrf.mxu0
  %v568 = vadd.f32 0.0, %v567
  %569 = vmatmul.f32.gmra.mxu0 %v103
  %v570 = vpop.f32.mrf.mxu0
  %v571 = vadd.f32 0.0, %v570
  %572 = vmatmul.f32.gmra.mxu0 %v104
  %v573 = vpop.f32.mrf.mxu0
  %v574 = vadd.f32 0.0, %v573
  %575 = vmatmul.f32.gmra.mxu0 %v105
  %v576 = vpop.f32.mrf.mxu0
  %v577 = vadd.f32 0.0, %v576
  %578 = vmatmul.f32.gmra.mxu0 %v106
  %v579 = vpop.f32.mrf.mxu0
  %v580 = vadd.f32 0.0, %v579
  %581 = vmatmul.f32.gmra.mxu0 %v107
  %v582 = vpop.f32.mrf.mxu0
  %v583 = vadd.f32 0.0, %v582
  %584 = vmatmul.f32.gmra.mxu0 %v108
  %v585 = vpop.f32.mrf.mxu0
  %v586 = vadd.f32 0.0, %v585
  %587 = vmatmul.f32.gmra.mxu0 %v109
  %v588 = vpop.f32.mrf.mxu0
  %v589 = vadd.f32 0.0, %v588
  %590 = vmatmul.f32.gmra.mxu0 %v110
  %v591 = vpop.f32.mrf.mxu0
  %v592 = vadd.f32 0.0, %v591
  %593 = vmatmul.f32.gmra.mxu0 %v111
  %v594 = vpop.f32.mrf.mxu0
  %v595 = vadd.f32 0.0, %v594
  %596 = vmatmul.f32.gmra.mxu0 %v112
  %v597 = vpop.f32.mrf.mxu0
  %v598 = vadd.f32 0.0, %v597
  %599 = vmatmul.f32.gmra.mxu0 %v113
  %v600 = vpop.f32.mrf.mxu0
  %v601 = vadd.f32 0.0, %v600
  %602 = vmatmul.f32.gmra.mxu0 %v114
  %v603 = vpop.f32.mrf.mxu0
  %v604 = vadd.f32 0.0, %v603
  %605 = vmatmul.f32.gmra.mxu0 %v115
  %v606 = vpop.f32.mrf.mxu0
  %v607 = vadd.f32 0.0, %v606
  %608 = vmatmul.f32.gmra.mxu0 %v116
  %v609 = vpop.f32.mrf.mxu0
  %v610 = vadd.f32 0.0, %v609
  %611 = vmatmul.f32.gmra.mxu0 %v117
  %v612 = vpop.f32.mrf.mxu0
  %v613 = vadd.f32 0.0, %v612
  %614 = vmatmul.f32.gmra.mxu0 %v118
  %v615 = vpop.f32.mrf.mxu0
  %v616 = vadd.f32 0.0, %v615
  %617 = vmatmul.f32.gmra.mxu0 %v119
  %v618 = vpop.f32.mrf.mxu0
  %v619 = vadd.f32 0.0, %v618
  %620 = vmatmul.f32.gmra.mxu0 %v120
  %v621 = vpop.f32.mrf.mxu0
  %v622 = vadd.f32 0.0, %v621
  %623 = vmatmul.f32.gmra.mxu0 %v121
  %v624 = vpop.f32.mrf.mxu0
  %v625 = vadd.f32 0.0, %v624
  %626 = vmatmul.f32.gmra.mxu0 %v122
  %v627 = vpop.f32.mrf.mxu0
  %v628 = vadd.f32 0.0, %v627
  %629 = vmatmul.f32.gmra.mxu0 %v123
  %v630 = vpop.f32.mrf.mxu0
  %v631 = vadd.f32 0.0, %v630
  %632 = vmatmul.f32.gmra.mxu0 %v124
  %v633 = vpop.f32.mrf.mxu0
  %v634 = vadd.f32 0.0, %v633
  %635 = vmatmul.f32.gmra.mxu0 %v125
  %v636 = vpop.f32.mrf.mxu0
  %v637 = vadd.f32 0.0, %v636
  %638 = vmatmul.f32.gmra.mxu0 %v126
  %v639 = vpop.f32.mrf.mxu0
  %v640 = vadd.f32 0.0, %v639
  %641 = vmatmul.f32.gmra.mxu0 %v127
  %v642 = vpop.f32.mrf.mxu0
  %v643 = vadd.f32 0.0, %v642
  %644 = vmatmul.f32.gmra.mxu0 %v128
  %v645 = vpop.f32.mrf.mxu0
  %v646 = vadd.f32 0.0, %v645
  %647 = vmatmul.f32.gmra.mxu0 %v129
  %v648 = vpop.f32.mrf.mxu0
  %v649 = vadd.f32 0.0, %v648
  %650 = vmatmul.f32.gmra.mxu0 %v130
  %v651 = vpop.f32.mrf.mxu0
  %v652 = vadd.f32 0.0, %v651
  %653 = vmatmul.f32.gmra.mxu0 %v131
  %v654 = vpop.f32.mrf.mxu0
  %v655 = vadd.f32 0.0, %v654
  %656 = vmatmul.f32.gmra.mxu0 %v132
  %v657 = vpop.f32.mrf.mxu0
  %v658 = vadd.f32 0.0, %v657
  %659 = vmatmul.f32.gmra.mxu0 %v133
  %v660 = vpop.f32.mrf.mxu0
  %v661 = vadd.f32 0.0, %v660
  %662 = vmatmul.f32.gmra.mxu0 %v134
  %v663 = vpop.f32.mrf.mxu0
  %v664 = vadd.f32 0.0, %v663
  %665 = vmatmul.f32.gmra.mxu0 %v135
  %v666 = vpop.f32.mrf.mxu0
  %v667 = vadd.f32 0.0, %v666
  %668 = vmatmul.f32.gmra.mxu0 %v136
  %v669 = vpop.f32.mrf.mxu0
  %v670 = vadd.f32 0.0, %v669
  %671 = vmatmul.f32.gmra.mxu0 %v137
  %v672 = vpop.f32.mrf.mxu0
  %v673 = vadd.f32 0.0, %v672
  %674 = vmatmul.f32.gmra.mxu0 %v138
  %v675 = vpop.f32.mrf.mxu0
  %v676 = vadd.f32 0.0, %v675
  %677 = vmatmul.f32.gmra.mxu0 %v139
  %v678 = vpop.f32.mrf.mxu0
  %v679 = vadd.f32 0.0, %v678
  %680 = vmatmul.f32.gmra.mxu0 %v140
  %v681 = vpop.f32.mrf.mxu0
  %v682 = vadd.f32 0.0, %v681
  %683 = vmatmul.f32.gmra.mxu0 %v141
  %v684 = vpop.f32.mrf.mxu0
  %v685 = vadd.f32 0.0, %v684
  %686 = vmatmul.f32.gmra.mxu0 %v142
  %v687 = vpop.f32.mrf.mxu0
  %v688 = vadd.f32 0.0, %v687
  %689 = vmatmul.f32.gmra.mxu0 %v143
  %v690 = vpop.f32.mrf.mxu0
  %v691 = vadd.f32 0.0, %v690
  %692 = vmatmul.f32.gmra.mxu0 %v144
  %v693 = vpop.f32.mrf.mxu0
  %v694 = vadd.f32 0.0, %v693
  %695 = vmatmul.f32.gmra.mxu0 %v145
  %v696 = vpop.f32.mrf.mxu0
  %v697 = vadd.f32 0.0, %v696
  %698 = vmatmul.f32.gmra.mxu0 %v146
  %v699 = vpop.f32.mrf.mxu0
  %v700 = vadd.f32 0.0, %v699
  %701 = vmatmul.f32.gmra.mxu0 %v147
  %v702 = vpop.f32.mrf.mxu0
  %v703 = vadd.f32 0.0, %v702
  %704 = vmatmul.f32.gmra.mxu0 %v148
  %v705 = vpop.f32.mrf.mxu0
  %v706 = vadd.f32 0.0, %v705
  %707 = vmatmul.f32.gmra.mxu0 %v149
  %v708 = vpop.f32.mrf.mxu0
  %v709 = vadd.f32 0.0, %v708
  %710 = vmatmul.f32.gmra.mxu0 %v150
  %v711 = vpop.f32.mrf.mxu0
  %v712 = vadd.f32 0.0, %v711
  %713 = vmatmul.f32.gmra.mxu0 %v151
  %v714 = vpop.f32.mrf.mxu0
  %v715 = vadd.f32 0.0, %v714
  %716 = vmatmul.f32.gmra.mxu0 %v152
  %v717 = vpop.f32.mrf.mxu0
  %v718 = vadd.f32 0.0, %v717
  %719 = vmatmul.f32.gmra.mxu0 %v153
  %v720 = vpop.f32.mrf.mxu0
  %v721 = vadd.f32 0.0, %v720
  %722 = vmatmul.f32.gmra.mxu0 %v154
  %v723 = vpop.f32.mrf.mxu0
  %v724 = vadd.f32 0.0, %v723
  %725 = vmatmul.f32.gmra.mxu0 %v155
  %v726 = vpop.f32.mrf.mxu0
  %v727 = vadd.f32 0.0, %v726
  %728 = vmatmul.f32.gmra.mxu0 %v156
  %v729 = vpop.f32.mrf.mxu0
  %v730 = vadd.f32 0.0, %v729
  %731 = vmatmul.f32.gmra.mxu0 %v157
  %v732 = vpop.f32.mrf.mxu0
  %v733 = vadd.f32 0.0, %v732
  %734 = vmatmul.f32.gmra.mxu0 %v158
  %v735 = vpop.f32.mrf.mxu0
  %v736 = vadd.f32 0.0, %v735
  %737 = vmatmul.f32.gmra.mxu0 %v159
  %v738 = vpop.f32.mrf.mxu0
  %v739 = vadd.f32 0.0, %v738
  %740 = vmatmul.f32.gmra.mxu0 %v160
  %v741 = vpop.f32.mrf.mxu0
  %v742 = vadd.f32 0.0, %v741
  %743 = vmatmul.f32.gmra.mxu0 %v161
  %v744 = vpop.f32.mrf.mxu0
  %v745 = vadd.f32 0.0, %v744
  %746 = vmatmul.f32.gmra.mxu0 %v162
  %v747 = vpop.f32.mrf.mxu0
  %v748 = vadd.f32 0.0, %v747
  %749 = vmatmul.f32.gmra.mxu0 %v163
  %v750 = vpop.f32.mrf.mxu0
  %v751 = vadd.f32 0.0, %v750
  %752 = vmatmul.f32.gmra.mxu0 %v164
  %v753 = vpop.f32.mrf.mxu0
  %v754 = vadd.f32 0.0, %v753
  %755 = vmatmul.f32.gmra.mxu0 %v165
  %v756 = vpop.f32.mrf.mxu0
  %v757 = vadd.f32 0.0, %v756
  %758 = vmatmul.f32.gmra.mxu0 %v166
  %v759 = vpop.f32.mrf.mxu0
  %v760 = vadd.f32 0.0, %v759
  %761 = vmatmul.f32.gmra.mxu0 %v167
  %v762 = vpop.f32.mrf.mxu0
  %v763 = vadd.f32 0.0, %v762
  %764 = vmatmul.f32.gmra.mxu0 %v168
  %v765 = vpop.f32.mrf.mxu0
  %v766 = vadd.f32 0.0, %v765
  %767 = vmatmul.f32.gmra.mxu0 %v169
  %v768 = vpop.f32.mrf.mxu0
  %v769 = vadd.f32 0.0, %v768
  %770 = vmatmul.f32.gmra.mxu0 %v170
  %v771 = vpop.f32.mrf.mxu0
  %v772 = vadd.f32 0.0, %v771
  %773 = vmatmul.f32.gmra.mxu0 %v171
  %v774 = vpop.f32.mrf.mxu0
  %v775 = vadd.f32 0.0, %v774
  %776 = vmatmul.f32.gmra.mxu0 %v172
  %v777 = vpop.f32.mrf.mxu0
  %v778 = vadd.f32 0.0, %v777
  %779 = vmatmul.f32.gmra.mxu0 %v173
  %v780 = vpop.f32.mrf.mxu0
  %v781 = vadd.f32 0.0, %v780
  %782 = vmatmul.f32.gmra.mxu0 %v174
  %v783 = vpop.f32.mrf.mxu0
  %v784 = vadd.f32 0.0, %v783
  %785 = vmatmul.f32.gmra.mxu0 %v175
  %v786 = vpop.f32.mrf.mxu0
  %v787 = vadd.f32 0.0, %v786
  %788 = vmatmul.f32.gmra.mxu0 %v176
  %v789 = vpop.f32.mrf.mxu0
  %v790 = vadd.f32 0.0, %v789
  %791 = vmatmul.f32.gmra.mxu0 %v177
  %v792 = vpop.f32.mrf.mxu0
  %v793 = vadd.f32 0.0, %v792
  %794 = vmatmul.f32.gmra.mxu0 %v178
  %v795 = vpop.f32.mrf.mxu0
  %v796 = vadd.f32 0.0, %v795
  %797 = vmatmul.f32.gmra.mxu0 %v179
  %v798 = vpop.f32.mrf.mxu0
  %v799 = vadd.f32 0.0, %v798
  %800 = vmatmul.f32.gmra.mxu0 %v180
  %v801 = vpop.f32.mrf.mxu0
  %v802 = vadd.f32 0.0, %v801
  %803 = vmatmul.f32.gmra.mxu0 %v181
  %v804 = vpop.f32.mrf.mxu0
  %v805 = vadd.f32 0.0, %v804
  %806 = vmatmul.f32.gmra.mxu0 %v182
  %v807 = vpop.f32.mrf.mxu0
  %v808 = vadd.f32 0.0, %v807
  %809 = vmatmul.f32.gmra.mxu0 %v183
  %v810 = vpop.f32.mrf.mxu0
  %v811 = vadd.f32 0.0, %v810
  %812 = vmatmul.f32.gmra.mxu0 %v184
  %v813 = vpop.f32.mrf.mxu0
  %v814 = vadd.f32 0.0, %v813
  %815 = vmatmul.f32.gmra.mxu0 %v185
  %v816 = vpop.f32.mrf.mxu0
  %v817 = vadd.f32 0.0, %v816
  %818 = vmatmul.f32.gmra.mxu0 %v186
  %v819 = vpop.f32.mrf.mxu0
  %v820 = vadd.f32 0.0, %v819
  %821 = vmatmul.f32.gmra.mxu0 %v187
  %v822 = vpop.f32.mrf.mxu0
  %v823 = vadd.f32 0.0, %v822
  %824 = vmatmul.f32.gmra.mxu0 %v188
  %v825 = vpop.f32.mrf.mxu0
  %v826 = vadd.f32 0.0, %v825
  %827 = vmatmul.f32.gmra.mxu0 %v189
  %v828 = vpop.f32.mrf.mxu0
  %v829 = vadd.f32 0.0, %v828
  %830 = vmatmul.f32.gmra.mxu0 %v190
  %v831 = vpop.f32.mrf.mxu0
  %v832 = vadd.f32 0.0, %v831
  %833 = vmatmul.f32.gmra.mxu0 %v191
  %v834 = vpop.f32.mrf.mxu0
  %v835 = vadd.f32 0.0, %v834
  %836 = vmatmul.f32.gmra.mxu0 %v192
  %v837 = vpop.f32.mrf.mxu0
  %v838 = vadd.f32 0.0, %v837
  %839 = vmatmul.f32.gmra.mxu0 %v193
  %v840 = vpop.f32.mrf.mxu0
  %v841 = vadd.f32 0.0, %v840
  %842 = vmatmul.f32.gmra.mxu0 %v194
  %v843 = vpop.f32.mrf.mxu0
  %v844 = vadd.f32 0.0, %v843
  %845 = vmatmul.f32.gmra.mxu0 %v195
  %v846 = vpop.f32.mrf.mxu0
  %v847 = vadd.f32 0.0, %v846
  %848 = vmatmul.f32.gmra.mxu0 %v196
  %v849 = vpop.f32.mrf.mxu0
  %v850 = vadd.f32 0.0, %v849
  %851 = vmatmul.f32.gmra.mxu0 %v197
  %v852 = vpop.f32.mrf.mxu0
  %v853 = vadd.f32 0.0, %v852
  %854 = vmatmul.f32.gmra.mxu0 %v198
  %v855 = vpop.f32.mrf.mxu0
  %v856 = vadd.f32 0.0, %v855
  %857 = vmatmul.f32.gmra.mxu0 %v199
  %v858 = vpop.f32.mrf.mxu0
  %v859 = vadd.f32 0.0, %v858
  %860 = vmatmul.f32.gmra.mxu0 %v200
  %v861 = vpop.f32.mrf.mxu0
  %v862 = vadd.f32 0.0, %v861
  %863 = vmatmul.f32.gmra.mxu0 %v201
  %v864 = vpop.f32.mrf.mxu0
  %v865 = vadd.f32 0.0, %v864
  %866 = vmatmul.f32.gmra.mxu0 %v202
  %v867 = vpop.f32.mrf.mxu0
  %v868 = vadd.f32 0.0, %v867
  %869 = vmatmul.f32.gmra.mxu0 %v203
  %v870 = vpop.f32.mrf.mxu0
  %v871 = vadd.f32 0.0, %v870
  %872 = vmatmul.f32.gmra.mxu0 %v204
  %v873 = vpop.f32.mrf.mxu0
  %v874 = vadd.f32 0.0, %v873
  %875 = vmatmul.f32.gmra.mxu0 %v205
  %v876 = vpop.f32.mrf.mxu0
  %v877 = vadd.f32 0.0, %v876
  %878 = vmatmul.f32.gmra.mxu0 %v206
  %v879 = vpop.f32.mrf.mxu0
  %v880 = vadd.f32 0.0, %v879
  %881 = vmatmul.f32.gmra.mxu0 %v207
  %v882 = vpop.f32.mrf.mxu0
  %v883 = vadd.f32 0.0, %v882
  %884 = vmatmul.f32.gmra.mxu0 %v208
  %v885 = vpop.f32.mrf.mxu0
  %v886 = vadd.f32 0.0, %v885
  %887 = vmatmul.f32.gmra.mxu0 %v209
  %v888 = vpop.f32.mrf.mxu0
  %v889 = vadd.f32 0.0, %v888
  %890 = vmatmul.f32.gmra.mxu0 %v210
  %v891 = vpop.f32.mrf.mxu0
  %v892 = vadd.f32 0.0, %v891
  %893 = vmatmul.f32.gmra.mxu0 %v211
  %v894 = vpop.f32.mrf.mxu0
  %v895 = vadd.f32 0.0, %v894
  %896 = vmatmul.f32.gmra.mxu0 %v212
  %v897 = vpop.f32.mrf.mxu0
  %v898 = vadd.f32 0.0, %v897
  %899 = vmatmul.f32.gmra.mxu0 %v213
  %v900 = vpop.f32.mrf.mxu0
  %v901 = vadd.f32 0.0, %v900
  %902 = vmatmul.f32.gmra.mxu0 %v214
  %v903 = vpop.f32.mrf.mxu0
  %v904 = vadd.f32 0.0, %v903
  %905 = vmatmul.f32.gmra.mxu0 %v215
  %v906 = vpop.f32.mrf.mxu0
  %v907 = vadd.f32 0.0, %v906
  %908 = vmatmul.f32.gmra.mxu0 %v216
  %v909 = vpop.f32.mrf.mxu0
  %v910 = vadd.f32 0.0, %v909
  %911 = vmatmul.f32.gmra.mxu0 %v217
  %v912 = vpop.f32.mrf.mxu0
  %v913 = vadd.f32 0.0, %v912
  %914 = vmatmul.f32.gmra.mxu0 %v218
  %v915 = vpop.f32.mrf.mxu0
  %v916 = vadd.f32 0.0, %v915
  %917 = vmatmul.f32.gmra.mxu0 %v219
  %v918 = vpop.f32.mrf.mxu0
  %v919 = vadd.f32 0.0, %v918
  %920 = vmatmul.f32.gmra.mxu0 %v220
  %v921 = vpop.f32.mrf.mxu0
  %v922 = vadd.f32 0.0, %v921
  %923 = vmatmul.f32.gmra.mxu0 %v221
  %v924 = vpop.f32.mrf.mxu0
  %v925 = vadd.f32 0.0, %v924
  %926 = vmatmul.f32.gmra.mxu0 %v222
  %v927 = vpop.f32.mrf.mxu0
  %v928 = vadd.f32 0.0, %v927
  %929 = vmatmul.f32.gmra.mxu0 %v223
  %v930 = vpop.f32.mrf.mxu0
  %v931 = vadd.f32 0.0, %v930
  %932 = vmatmul.f32.gmra.mxu0 %v224
  %v933 = vpop.f32.mrf.mxu0
  %v934 = vadd.f32 0.0, %v933
  %935 = vmatmul.f32.gmra.mxu0 %v225
  %v936 = vpop.f32.mrf.mxu0
  %v937 = vadd.f32 0.0, %v936
  %938 = vmatmul.f32.gmra.mxu0 %v226
  %v939 = vpop.f32.mrf.mxu0
  %v940 = vadd.f32 0.0, %v939
  %941 = vmatmul.f32.gmra.mxu0 %v227
  %v942 = vpop.f32.mrf.mxu0
  %v943 = vadd.f32 0.0, %v942
  %944 = vmatmul.f32.gmra.mxu0 %v228
  %v945 = vpop.f32.mrf.mxu0
  %v946 = vadd.f32 0.0, %v945
  %947 = vmatmul.f32.gmra.mxu0 %v229
  %v948 = vpop.f32.mrf.mxu0
  %v949 = vadd.f32 0.0, %v948
  %950 = vmatmul.f32.gmra.mxu0 %v230
  %v951 = vpop.f32.mrf.mxu0
  %v952 = vadd.f32 0.0, %v951
  %953 = vmatmul.f32.gmra.mxu0 %v231
  %v954 = vpop.f32.mrf.mxu0
  %v955 = vadd.f32 0.0, %v954
  %956 = vmatmul.f32.gmra.mxu0 %v232
  %v957 = vpop.f32.mrf.mxu0
  %v958 = vadd.f32 0.0, %v957
  %959 = vmatmul.f32.gmra.mxu0 %v233
  %v960 = vpop.f32.mrf.mxu0
  %v961 = vadd.f32 0.0, %v960
  %962 = vmatmul.f32.gmra.mxu0 %v234
  %v963 = vpop.f32.mrf.mxu0
  %v964 = vadd.f32 0.0, %v963
  %965 = vmatmul.f32.gmra.mxu0 %v235
  %v966 = vpop.f32.mrf.mxu0
  %v967 = vadd.f32 0.0, %v966
  %968 = vmatmul.f32.gmra.mxu0 %v236
  %v969 = vpop.f32.mrf.mxu0
  %v970 = vadd.f32 0.0, %v969
  %971 = vmatmul.f32.gmra.mxu0 %v237
  %v972 = vpop.f32.mrf.mxu0
  %v973 = vadd.f32 0.0, %v972
  %974 = vmatmul.f32.gmra.mxu0 %v238
  %v975 = vpop.f32.mrf.mxu0
  %v976 = vadd.f32 0.0, %v975
  %977 = vmatmul.f32.gmra.mxu0 %v239
  %v978 = vpop.f32.mrf.mxu0
  %v979 = vadd.f32 0.0, %v978
  %980 = vmatmul.f32.gmra.mxu0 %v240
  %v981 = vpop.f32.mrf.mxu0
  %v982 = vadd.f32 0.0, %v981
  %983 = vmatmul.f32.gmra.mxu0 %v241
  %v984 = vpop.f32.mrf.mxu0
  %v985 = vadd.f32 0.0, %v984
  %986 = vmatmul.f32.gmra.mxu0 %v242
  %v987 = vpop.f32.mrf.mxu0
  %v988 = vadd.f32 0.0, %v987
  %989 = vmatmul.f32.gmra.mxu0 %v243
  %v990 = vpop.f32.mrf.mxu0
  %v991 = vadd.f32 0.0, %v990
  %992 = vmatmul.f32.gmra.mxu0 %v244
  %v993 = vpop.f32.mrf.mxu0
  %v994 = vadd.f32 0.0, %v993
  %995 = vmatmul.f32.gmra.mxu0 %v245
  %v996 = vpop.f32.mrf.mxu0
  %v997 = vadd.f32 0.0, %v996
  %998 = vmatmul.f32.gmra.mxu0 %v246
  %v999 = vpop.f32.mrf.mxu0
  %v1000 = vadd.f32 0.0, %v999
  %1001 = vmatmul.f32.gmra.mxu0 %v247
  %v1002 = vpop.f32.mrf.mxu0
  %v1003 = vadd.f32 0.0, %v1002
  %1004 = vmatmul.f32.gmra.mxu0 %v248
  %v1005 = vpop.f32.mrf.mxu0
  %v1006 = vadd.f32 0.0, %v1005
  %1007 = vmatmul.f32.gmra.mxu0 %v249
  %v1008 = vpop.f32.mrf.mxu0
  %v1009 = vadd.f32 0.0, %v1008
  %1010 = vmatmul.f32.gmra.mxu0 %v250
  %v1011 = vpop.f32.mrf.mxu0
  %v1012 = vadd.f32 0.0, %v1011
  %1013 = vmatmul.f32.gmra.mxu0 %v251
  %v1014 = vpop.f32.mrf.mxu0
  %v1015 = vadd.f32 0.0, %v1014
  %1016 = vmatmul.f32.gmra.mxu0 %v252
  %v1017 = vpop.f32.mrf.mxu0
  %v1018 = vadd.f32 0.0, %v1017
  %1019 = vmatmul.f32.gmra.mxu0 %v253
  %v1020 = vpop.f32.mrf.mxu0
  %v1021 = vadd.f32 0.0, %v1020
  %1022 = vmatmul.f32.gmra.mxu0 %v254
  %v1023 = vpop.f32.mrf.mxu0
  %v1024 = vadd.f32 0.0, %v1023
  %1025 = vmatmul.f32.gmra.mxu0 %v255
  %v1026 = vpop.f32.mrf.mxu0
  %v1027 = vadd.f32 0.0, %v1026
  %1028 = vmatmul.f32.gmra.mxu0 %v256
  %v1029 = vpop.f32.mrf.mxu0
  %v1030 = vadd.f32 0.0, %v1029
  %1031 = vmatmul.f32.gmra.mxu0 %v257
  %v1032 = vpop.f32.mrf.mxu0
  %v1033 = vadd.f32 0.0, %v1032
  %1034 = vmatmul.f32.gmra.mxu0 %v258
  %v1035 = vpop.f32.mrf.mxu0
  %v1036 = vadd.f32 0.0, %v1035
  %1037 = vmatmul.f32.gmra.mxu0 %v259
  %v1038 = vpop.f32.mrf.mxu0
  %v1039 = vadd.f32 0.0, %v1038
  %1040 = vmatmul.f32.gmra.mxu0 %v260
  %v1041 = vpop.f32.mrf.mxu0
  %v1042 = vadd.f32 0.0, %v1041
  %1043 = vmatmul.f32.gmra.mxu0 %v261
  %v1044 = vpop.f32.mrf.mxu0
  %v1045 = vadd.f32 0.0, %v1044
  %1046 = vmatmul.f32.gmra.mxu0 %v262
  %v1047 = vpop.f32.mrf.mxu0
  %v1048 = vadd.f32 0.0, %v1047
  %1049 = vmatmul.f32.gmra.mxu0 %v263
  %v1050 = vpop.f32.mrf.mxu0
  %v1051 = vadd.f32 0.0, %v1050
  %1052 = vmatmul.f32.gmra.mxu0 %v264
  %v1053 = vpop.f32.mrf.mxu0
  %v1054 = vadd.f32 0.0, %v1053
  %1055 = vmatmul.f32.gmra.mxu0 %v265
  %v1056 = vpop.f32.mrf.mxu0
  %v1057 = vadd.f32 0.0, %v1056
  %1058 = vmatmul.f32.gmra.mxu0 %v266
  %v1059 = vpop.f32.mrf.mxu0
  %v1060 = vadd.f32 0.0, %v1059
  %1061 = vmatmul.f32.gmra.mxu0 %v267
  %v1062 = vpop.f32.mrf.mxu0
  %v1063 = vadd.f32 0.0, %v1062
  %1064 = vmatmul.f32.gmra.mxu0 %v268
  %v1065 = vpop.f32.mrf.mxu0
  %v1066 = vadd.f32 0.0, %v1065
  %1067 = vmatmul.f32.gmra.mxu0 %v269
  %v1068 = vpop.f32.mrf.mxu0
  %v1069 = vadd.f32 0.0, %v1068
  %1070 = vdwg.mxu0
  %v1071 = vmax.f32 %v304, %v316
  %v1072 = vmax.f32 %v307, %v319
  %v1073 = vmax.f32 %v310, %v322
  %v1074 = vmax.f32 %v313, %v325
  %v1075 = vmax.f32 %v328, %v340
  %v1076 = vmax.f32 %v331, %v343
  %v1077 = vmax.f32 %v334, %v346
  %v1078 = vmax.f32 %v337, %v349
  %v1079 = vmax.f32 %v352, %v364
  %v1080 = vmax.f32 %v355, %v367
  %v1081 = vmax.f32 %v358, %v370
  %v1082 = vmax.f32 %v361, %v373
  %v1083 = vmax.f32 %v376, %v388
  %v1084 = vmax.f32 %v379, %v391
  %v1085 = vmax.f32 %v382, %v394
  %v1086 = vmax.f32 %v385, %v397
  %v1087 = vmax.f32 %v400, %v412
  %v1088 = vmax.f32 %v403, %v415
  %v1089 = vmax.f32 %v406, %v418
  %v1090 = vmax.f32 %v409, %v421
  %v1091 = vmax.f32 %v424, %v436
  %v1092 = vmax.f32 %v427, %v439
  %v1093 = vmax.f32 %v430, %v442
  %v1094 = vmax.f32 %v433, %v445
  %v1095 = vmax.f32 %v448, %v460
  %v1096 = vmax.f32 %v451, %v463
  %v1097 = vmax.f32 %v454, %v466
  %v1098 = vmax.f32 %v457, %v469
  %v1099 = vmax.f32 %v472, %v484
  %v1100 = vmax.f32 %v475, %v487
  %v1101 = vmax.f32 %v478, %v490
  %v1102 = vmax.f32 %v481, %v493
  %v1103 = vmax.f32 %v496, %v508
  %v1104 = vmax.f32 %v499, %v511
  %v1105 = vmax.f32 %v502, %v514
  %v1106 = vmax.f32 %v505, %v517
  %v1107 = vmax.f32 %v520, %v532
  %v1108 = vmax.f32 %v523, %v535
  %v1109 = vmax.f32 %v526, %v538
  %v1110 = vmax.f32 %v529, %v541
  %v1111 = vmax.f32 %v544, %v556
  %v1112 = vmax.f32 %v547, %v559
  %v1113 = vmax.f32 %v550, %v562
  %v1114 = vmax.f32 %v553, %v565
  %v1115 = vmax.f32 %v568, %v580
  %v1116 = vmax.f32 %v571, %v583
  %v1117 = vmax.f32 %v574, %v586
  %v1118 = vmax.f32 %v577, %v589
  %v1119 = vmax.f32 %v592, %v604
  %v1120 = vmax.f32 %v595, %v607
  %v1121 = vmax.f32 %v598, %v610
  %v1122 = vmax.f32 %v601, %v613
  %v1123 = vmax.f32 %v616, %v628
  %v1124 = vmax.f32 %v619, %v631
  %v1125 = vmax.f32 %v622, %v634
  %v1126 = vmax.f32 %v625, %v637
  %v1127 = vmax.f32 %v640, %v652
  %v1128 = vmax.f32 %v643, %v655
  %v1129 = vmax.f32 %v646, %v658
  %v1130 = vmax.f32 %v649, %v661
  %v1131 = vmax.f32 %v664, %v676
  %v1132 = vmax.f32 %v667, %v679
  %v1133 = vmax.f32 %v670, %v682
  %v1134 = vmax.f32 %v673, %v685
  %v1135 = vmax.f32 %v688, %v700
  %v1136 = vmax.f32 %v691, %v703
  %v1137 = vmax.f32 %v694, %v706
  %v1138 = vmax.f32 %v697, %v709
  %v1139 = vmax.f32 %v712, %v724
  %v1140 = vmax.f32 %v715, %v727
  %v1141 = vmax.f32 %v718, %v730
  %v1142 = vmax.f32 %v721, %v733
  %v1143 = vmax.f32 %v736, %v748
  %v1144 = vmax.f32 %v739, %v751
  %v1145 = vmax.f32 %v742, %v754
  %v1146 = vmax.f32 %v745, %v757
  %v1147 = vmax.f32 %v760, %v772
  %v1148 = vmax.f32 %v763, %v775
  %v1149 = vmax.f32 %v766, %v778
  %v1150 = vmax.f32 %v769, %v781
  %v1151 = vmax.f32 %v784, %v796
  %v1152 = vmax.f32 %v787, %v799
  %v1153 = vmax.f32 %v790, %v802
  %v1154 = vmax.f32 %v793, %v805
  %v1155 = vmax.f32 %v808, %v820
  %v1156 = vmax.f32 %v811, %v823
  %v1157 = vmax.f32 %v814, %v826
  %v1158 = vmax.f32 %v817, %v829
  %v1159 = vmax.f32 %v832, %v844
  %v1160 = vmax.f32 %v835, %v847
  %v1161 = vmax.f32 %v838, %v850
  %v1162 = vmax.f32 %v841, %v853
  %v1163 = vmax.f32 %v856, %v868
  %v1164 = vmax.f32 %v859, %v871
  %v1165 = vmax.f32 %v862, %v874
  %v1166 = vmax.f32 %v865, %v877
  %v1167 = vmax.f32 %v880, %v892
  %v1168 = vmax.f32 %v883, %v895
  %v1169 = vmax.f32 %v886, %v898
  %v1170 = vmax.f32 %v889, %v901
  %v1171 = vmax.f32 %v904, %v916
  %v1172 = vmax.f32 %v907, %v919
  %v1173 = vmax.f32 %v910, %v922
  %v1174 = vmax.f32 %v913, %v925
  %v1175 = vmax.f32 %v928, %v940
  %v1176 = vmax.f32 %v931, %v943
  %v1177 = vmax.f32 %v934, %v946
  %v1178 = vmax.f32 %v937, %v949
  %v1179 = vmax.f32 %v952, %v964
  %v1180 = vmax.f32 %v955, %v967
  %v1181 = vmax.f32 %v958, %v970
  %v1182 = vmax.f32 %v961, %v973
  %v1183 = vmax.f32 %v976, %v988
  %v1184 = vmax.f32 %v979, %v991
  %v1185 = vmax.f32 %v982, %v994
  %v1186 = vmax.f32 %v985, %v997
  %v1187 = vmax.f32 %v1000, %v1012
  %v1188 = vmax.f32 %v1003, %v1015
  %v1189 = vmax.f32 %v1006, %v1018
  %v1190 = vmax.f32 %v1009, %v1021
  %v1191 = vmax.f32 %v1024, %v1036
  %v1192 = vmax.f32 %v1027, %v1039
  %v1193 = vmax.f32 %v1030, %v1042
  %v1194 = vmax.f32 %v1033, %v1045
  %v1195 = vmax.f32 %v1048, %v1060
  %v1196 = vmax.f32 %v1051, %v1063
  %v1197 = vmax.f32 %v1054, %v1066
  %v1198 = vmax.f32 %v1057, %v1069
  %vm1199 = vcmask 130048
  %1200 = vst.msk [vmem:[#allocation2] sm:$0xff] %vm1199, %v1071
  %1201 = vst.msk [vmem:[#allocation2 + $0x8] sm:$0xff] %vm1199, %v1072
  %1202 = vst.msk [vmem:[#allocation2 + $0x10] sm:$0xff] %vm1199, %v1073
  %1203 = vst.msk [vmem:[#allocation2 + $0x18] sm:$0xff] %vm1199, %v1074
  %1204 = vst.msk [vmem:[#allocation2 + $0x20] sm:$0xff] %vm1199, %v1075
  %1205 = vst.msk [vmem:[#allocation2 + $0x28] sm:$0xff] %vm1199, %v1076
  %1206 = vst.msk [vmem:[#allocation2 + $0x30] sm:$0xff] %vm1199, %v1077
  %1207 = vst.msk [vmem:[#allocation2 + $0x38] sm:$0xff] %vm1199, %v1078
  %1208 = vst.msk [vmem:[#allocation2 + $0x40] sm:$0xff] %vm1199, %v1079
  %1209 = vst.msk [vmem:[#allocation2 + $0x48] sm:$0xff] %vm1199, %v1080
  %1210 = vst.msk [vmem:[#allocation2 + $0x50] sm:$0xff] %vm1199, %v1081
  %1211 = vst.msk [vmem:[#allocation2 + $0x58] sm:$0xff] %vm1199, %v1082
  %1212 = vst.msk [vmem:[#allocation2 + $0x60] sm:$0xff] %vm1199, %v1083
  %1213 = vst.msk [vmem:[#allocation2 + $0x68] sm:$0xff] %vm1199, %v1084
  %1214 = vst.msk [vmem:[#allocation2 + $0x70] sm:$0xff] %vm1199, %v1085
  %1215 = vst.msk [vmem:[#allocation2 + $0x78] sm:$0xff] %vm1199, %v1086
  %1216 = vst.msk [vmem:[#allocation2 + $0x80] sm:$0xff] %vm1199, %v1087
  %1217 = vst.msk [vmem:[#allocation2 + $0x88] sm:$0xff] %vm1199, %v1088
  %1218 = vst.msk [vmem:[#allocation2 + $0x90] sm:$0xff] %vm1199, %v1089
  %1219 = vst.msk [vmem:[#allocation2 + $0x98] sm:$0xff] %vm1199, %v1090
  %1220 = vst.msk [vmem:[#allocation2 + $0xa0] sm:$0xff] %vm1199, %v1091
  %1221 = vst.msk [vmem:[#allocation2 + $0xa8] sm:$0xff] %vm1199, %v1092
  %1222 = vst.msk [vmem:[#allocation2 + $0xb0] sm:$0xff] %vm1199, %v1093
  %1223 = vst.msk [vmem:[#allocation2 + $0xb8] sm:$0xff] %vm1199, %v1094
  %1224 = vst.msk [vmem:[#allocation2 + $0xc0] sm:$0xff] %vm1199, %v1095
  %1225 = vst.msk [vmem:[#allocation2 + $0xc8] sm:$0xff] %vm1199, %v1096
  %1226 = vst.msk [vmem:[#allocation2 + $0xd0] sm:$0xff] %vm1199, %v1097
  %1227 = vst.msk [vmem:[#allocation2 + $0xd8] sm:$0xff] %vm1199, %v1098
  %1228 = vst.msk [vmem:[#allocation2 + $0xe0] sm:$0xff] %vm1199, %v1099
  %1229 = vst.msk [vmem:[#allocation2 + $0xe8] sm:$0xff] %vm1199, %v1100
  %1230 = vst.msk [vmem:[#allocation2 + $0xf0] sm:$0xff] %vm1199, %v1101
  %1231 = vst.msk [vmem:[#allocation2 + $0xf8] sm:$0xff] %vm1199, %v1102
  %1232 = vst.msk [vmem:[#allocation2 + $0x100] sm:$0xff] %vm1199, %v1103
  %1233 = vst.msk [vmem:[#allocation2 + $0x108] sm:$0xff] %vm1199, %v1104
  %1234 = vst.msk [vmem:[#allocation2 + $0x110] sm:$0xff] %vm1199, %v1105
  %1235 = vst.msk [vmem:[#allocation2 + $0x118] sm:$0xff] %vm1199, %v1106
  %1236 = vst.msk [vmem:[#allocation2 + $0x120] sm:$0xff] %vm1199, %v1107
  %1237 = vst.msk [vmem:[#allocation2 + $0x128] sm:$0xff] %vm1199, %v1108
  %1238 = vst.msk [vmem:[#allocation2 + $0x130] sm:$0xff] %vm1199, %v1109
  %1239 = vst.msk [vmem:[#allocation2 + $0x138] sm:$0xff] %vm1199, %v1110
  %1240 = vst.msk [vmem:[#allocation2 + $0x140] sm:$0xff] %vm1199, %v1111
  %1241 = vst.msk [vmem:[#allocation2 + $0x148] sm:$0xff] %vm1199, %v1112
  %1242 = vst.msk [vmem:[#allocation2 + $0x150] sm:$0xff] %vm1199, %v1113
  %1243 = vst.msk [vmem:[#allocation2 + $0x158] sm:$0xff] %vm1199, %v1114
  %1244 = vst.msk [vmem:[#allocation2 + $0x160] sm:$0xff] %vm1199, %v1115
  %1245 = vst.msk [vmem:[#allocation2 + $0x168] sm:$0xff] %vm1199, %v1116
  %1246 = vst.msk [vmem:[#allocation2 + $0x170] sm:$0xff] %vm1199, %v1117
  %1247 = vst.msk [vmem:[#allocation2 + $0x178] sm:$0xff] %vm1199, %v1118
  %1248 = vst.msk [vmem:[#allocation2 + $0x180] sm:$0xff] %vm1199, %v1119
  %1249 = vst.msk [vmem:[#allocation2 + $0x188] sm:$0xff] %vm1199, %v1120
  %1250 = vst.msk [vmem:[#allocation2 + $0x190] sm:$0xff] %vm1199, %v1121
  %1251 = vst.msk [vmem:[#allocation2 + $0x198] sm:$0xff] %vm1199, %v1122
  %1252 = vst.msk [vmem:[#allocation2 + $0x1a0] sm:$0xff] %vm1199, %v1123
  %1253 = vst.msk [vmem:[#allocation2 + $0x1a8] sm:$0xff] %vm1199, %v1124
  %1254 = vst.msk [vmem:[#allocation2 + $0x1b0] sm:$0xff] %vm1199, %v1125
  %1255 = vst.msk [vmem:[#allocation2 + $0x1b8] sm:$0xff] %vm1199, %v1126
  %1256 = vst.msk [vmem:[#allocation2 + $0x1c0] sm:$0xff] %vm1199, %v1127
  %1257 = vst.msk [vmem:[#allocation2 + $0x1c8] sm:$0xff] %vm1199, %v1128
  %1258 = vst.msk [vmem:[#allocation2 + $0x1d0] sm:$0xff] %vm1199, %v1129
  %1259 = vst.msk [vmem:[#allocation2 + $0x1d8] sm:$0xff] %vm1199, %v1130
  %1260 = vst.msk [vmem:[#allocation2 + $0x1e0] sm:$0xff] %vm1199, %v1131
  %1261 = vst.msk [vmem:[#allocation2 + $0x1e8] sm:$0xff] %vm1199, %v1132
  %1262 = vst.msk [vmem:[#allocation2 + $0x1f0] sm:$0xff] %vm1199, %v1133
  %1263 = vst.msk [vmem:[#allocation2 + $0x1f8] sm:$0xff] %vm1199, %v1134
  %1264 = vst.msk [vmem:[#allocation2 + $0x200] sm:$0xff] %vm1199, %v1135
  %1265 = vst.msk [vmem:[#allocation2 + $0x208] sm:$0xff] %vm1199, %v1136
  %1266 = vst.msk [vmem:[#allocation2 + $0x210] sm:$0xff] %vm1199, %v1137
  %1267 = vst.msk [vmem:[#allocation2 + $0x218] sm:$0xff] %vm1199, %v1138
  %1268 = vst.msk [vmem:[#allocation2 + $0x220] sm:$0xff] %vm1199, %v1139
  %1269 = vst.msk [vmem:[#allocation2 + $0x228] sm:$0xff] %vm1199, %v1140
  %1270 = vst.msk [vmem:[#allocation2 + $0x230] sm:$0xff] %vm1199, %v1141
  %1271 = vst.msk [vmem:[#allocation2 + $0x238] sm:$0xff] %vm1199, %v1142
  %1272 = vst.msk [vmem:[#allocation2 + $0x240] sm:$0xff] %vm1199, %v1143
  %1273 = vst.msk [vmem:[#allocation2 + $0x248] sm:$0xff] %vm1199, %v1144
  %1274 = vst.msk [vmem:[#allocation2 + $0x250] sm:$0xff] %vm1199, %v1145
  %1275 = vst.msk [vmem:[#allocation2 + $0x258] sm:$0xff] %vm1199, %v1146
  %1276 = vst.msk [vmem:[#allocation2 + $0x260] sm:$0xff] %vm1199, %v1147
  %1277 = vst.msk [vmem:[#allocation2 + $0x268] sm:$0xff] %vm1199, %v1148
  %1278 = vst.msk [vmem:[#allocation2 + $0x270] sm:$0xff] %vm1199, %v1149
  %1279 = vst.msk [vmem:[#allocation2 + $0x278] sm:$0xff] %vm1199, %v1150
  %1280 = vst.msk [vmem:[#allocation2 + $0x280] sm:$0xff] %vm1199, %v1151
  %1281 = vst.msk [vmem:[#allocation2 + $0x288] sm:$0xff] %vm1199, %v1152
  %1282 = vst.msk [vmem:[#allocation2 + $0x290] sm:$0xff] %vm1199, %v1153
  %1283 = vst.msk [vmem:[#allocation2 + $0x298] sm:$0xff] %vm1199, %v1154
  %1284 = vst.msk [vmem:[#allocation2 + $0x2a0] sm:$0xff] %vm1199, %v1155
  %1285 = vst.msk [vmem:[#allocation2 + $0x2a8] sm:$0xff] %vm1199, %v1156
  %1286 = vst.msk [vmem:[#allocation2 + $0x2b0] sm:$0xff] %vm1199, %v1157
  %1287 = vst.msk [vmem:[#allocation2 + $0x2b8] sm:$0xff] %vm1199, %v1158
  %1288 = vst.msk [vmem:[#allocation2 + $0x2c0] sm:$0xff] %vm1199, %v1159
  %1289 = vst.msk [vmem:[#allocation2 + $0x2c8] sm:$0xff] %vm1199, %v1160
  %1290 = vst.msk [vmem:[#allocation2 + $0x2d0] sm:$0xff] %vm1199, %v1161
  %1291 = vst.msk [vmem:[#allocation2 + $0x2d8] sm:$0xff] %vm1199, %v1162
  %1292 = vst.msk [vmem:[#allocation2 + $0x2e0] sm:$0xff] %vm1199, %v1163
  %1293 = vst.msk [vmem:[#allocation2 + $0x2e8] sm:$0xff] %vm1199, %v1164
  %1294 = vst.msk [vmem:[#allocation2 + $0x2f0] sm:$0xff] %vm1199, %v1165
  %1295 = vst.msk [vmem:[#allocation2 + $0x2f8] sm:$0xff] %vm1199, %v1166
  %1296 = vst.msk [vmem:[#allocation2 + $0x300] sm:$0xff] %vm1199, %v1167
  %1297 = vst.msk [vmem:[#allocation2 + $0x308] sm:$0xff] %vm1199, %v1168
  %1298 = vst.msk [vmem:[#allocation2 + $0x310] sm:$0xff] %vm1199, %v1169
  %1299 = vst.msk [vmem:[#allocation2 + $0x318] sm:$0xff] %vm1199, %v1170
  %1300 = vst.msk [vmem:[#allocation2 + $0x320] sm:$0xff] %vm1199, %v1171
  %1301 = vst.msk [vmem:[#allocation2 + $0x328] sm:$0xff] %vm1199, %v1172
  %1302 = vst.msk [vmem:[#allocation2 + $0x330] sm:$0xff] %vm1199, %v1173
  %1303 = vst.msk [vmem:[#allocation2 + $0x338] sm:$0xff] %vm1199, %v1174
  %1304 = vst.msk [vmem:[#allocation2 + $0x340] sm:$0xff] %vm1199, %v1175
  %1305 = vst.msk [vmem:[#allocation2 + $0x348] sm:$0xff] %vm1199, %v1176
  %1306 = vst.msk [vmem:[#allocation2 + $0x350] sm:$0xff] %vm1199, %v1177
  %1307 = vst.msk [vmem:[#allocation2 + $0x358] sm:$0xff] %vm1199, %v1178
  %1308 = vst.msk [vmem:[#allocation2 + $0x360] sm:$0xff] %vm1199, %v1179
  %1309 = vst.msk [vmem:[#allocation2 + $0x368] sm:$0xff] %vm1199, %v1180
  %1310 = vst.msk [vmem:[#allocation2 + $0x370] sm:$0xff] %vm1199, %v1181
  %1311 = vst.msk [vmem:[#allocation2 + $0x378] sm:$0xff] %vm1199, %v1182
  %1312 = vst.msk [vmem:[#allocation2 + $0x380] sm:$0xff] %vm1199, %v1183
  %1313 = vst.msk [vmem:[#allocation2 + $0x388] sm:$0xff] %vm1199, %v1184
  %1314 = vst.msk [vmem:[#allocation2 + $0x390] sm:$0xff] %vm1199, %v1185
  %1315 = vst.msk [vmem:[#allocation2 + $0x398] sm:$0xff] %vm1199, %v1186
  %1316 = vst.msk [vmem:[#allocation2 + $0x3a0] sm:$0xff] %vm1199, %v1187
  %1317 = vst.msk [vmem:[#allocation2 + $0x3a8] sm:$0xff] %vm1199, %v1188
  %1318 = vst.msk [vmem:[#allocation2 + $0x3b0] sm:$0xff] %vm1199, %v1189
  %1319 = vst.msk [vmem:[#allocation2 + $0x3b8] sm:$0xff] %vm1199, %v1190
  %1320 = vst.msk [vmem:[#allocation2 + $0x3c0] sm:$0xff] %vm1199, %v1191
  %1321 = vst.msk [vmem:[#allocation2 + $0x3c8] sm:$0xff] %vm1199, %v1192
  %1322 = vst.msk [vmem:[#allocation2 + $0x3d0] sm:$0xff] %vm1199, %v1193
  %1323 = vst.msk [vmem:[#allocation2 + $0x3d8] sm:$0xff] %vm1199, %v1194
  %1324 = vst.msk [vmem:[#allocation2 + $0x3e0] sm:$0xff] %vm1199, %v1195
  %1325 = vst.msk [vmem:[#allocation2 + $0x3e8] sm:$0xff] %vm1199, %v1196
  %1326 = vst.msk [vmem:[#allocation2 + $0x3f0] sm:$0xff] %vm1199, %v1197
  %1327 = vst.msk [vmem:[#allocation2 + $0x3f8] sm:$0xff] %vm1199, %v1198
  %v1328 = vld [vmem:[#allocation2] ss:$2 sm:$0xff]
  %s1329 = scalar_lea.vmem [#allocation2], 16
  %v1330 = vld [vmem:[%s1329] ss:$2 sm:$0xff]
  %s1331 = scalar_lea.vmem [#allocation2], 32
  %v1332 = vld [vmem:[%s1331] ss:$2 sm:$0xff]
  %s1333 = scalar_lea.vmem [#allocation2], 48
  %v1334 = vld [vmem:[%s1333] ss:$2 sm:$0xff]
  %s1335 = scalar_lea.vmem [#allocation2], 64
  %v1336 = vld [vmem:[%s1335] ss:$2 sm:$0xff]
  %s1337 = scalar_lea.vmem [#allocation2], 80
  %v1338 = vld [vmem:[%s1337] ss:$2 sm:$0xff]
  %s1339 = scalar_lea.vmem [#allocation2], 96
  %v1340 = vld [vmem:[%s1339] ss:$2 sm:$0xff]
  %s1341 = scalar_lea.vmem [#allocation2], 112
  %v1342 = vld [vmem:[%s1341] ss:$2 sm:$0xff]
  %s1343 = scalar_lea.vmem [#allocation2], 128
  %v1344 = vld [vmem:[%s1343] ss:$2 sm:$0xff]
  %s1345 = scalar_lea.vmem [#allocation2], 144
  %v1346 = vld [vmem:[%s1345] ss:$2 sm:$0xff]
  %s1347 = scalar_lea.vmem [#allocation2], 160
  %v1348 = vld [vmem:[%s1347] ss:$2 sm:$0xff]
  %s1349 = scalar_lea.vmem [#allocation2], 176
  %v1350 = vld [vmem:[%s1349] ss:$2 sm:$0xff]
  %s1351 = scalar_lea.vmem [#allocation2], 192
  %v1352 = vld [vmem:[%s1351] ss:$2 sm:$0xff]
  %s1353 = scalar_lea.vmem [#allocation2], 208
  %v1354 = vld [vmem:[%s1353] ss:$2 sm:$0xff]
  %s1355 = scalar_lea.vmem [#allocation2], 224
  %v1356 = vld [vmem:[%s1355] ss:$2 sm:$0xff]
  %s1357 = scalar_lea.vmem [#allocation2], 240
  %v1358 = vld [vmem:[%s1357] ss:$2 sm:$0xff]
  %s1359 = scalar_lea.vmem [#allocation2], 256
  %v1360 = vld [vmem:[%s1359] ss:$2 sm:$0xff]
  %s1361 = scalar_lea.vmem [#allocation2], 272
  %v1362 = vld [vmem:[%s1361] ss:$2 sm:$0xff]
  %s1363 = scalar_lea.vmem [#allocation2], 288
  %v1364 = vld [vmem:[%s1363] ss:$2 sm:$0xff]
  %s1365 = scalar_lea.vmem [#allocation2], 304
  %v1366 = vld [vmem:[%s1365] ss:$2 sm:$0xff]
  %s1367 = scalar_lea.vmem [#allocation2], 320
  %v1368 = vld [vmem:[%s1367] ss:$2 sm:$0xff]
  %s1369 = scalar_lea.vmem [#allocation2], 336
  %v1370 = vld [vmem:[%s1369] ss:$2 sm:$0xff]
  %s1371 = scalar_lea.vmem [#allocation2], 352
  %v1372 = vld [vmem:[%s1371] ss:$2 sm:$0xff]
  %s1373 = scalar_lea.vmem [#allocation2], 368
  %v1374 = vld [vmem:[%s1373] ss:$2 sm:$0xff]
  %s1375 = scalar_lea.vmem [#allocation2], 384
  %v1376 = vld [vmem:[%s1375] ss:$2 sm:$0xff]
  %s1377 = scalar_lea.vmem [#allocation2], 400
  %v1378 = vld [vmem:[%s1377] ss:$2 sm:$0xff]
  %s1379 = scalar_lea.vmem [#allocation2], 416
  %v1380 = vld [vmem:[%s1379] ss:$2 sm:$0xff]
  %s1381 = scalar_lea.vmem [#allocation2], 432
  %v1382 = vld [vmem:[%s1381] ss:$2 sm:$0xff]
  %s1383 = scalar_lea.vmem [#allocation2], 448
  %v1384 = vld [vmem:[%s1383] ss:$2 sm:$0xff]
  %s1385 = scalar_lea.vmem [#allocation2], 464
  %v1386 = vld [vmem:[%s1385] ss:$2 sm:$0xff]
  %s1387 = scalar_lea.vmem [#allocation2], 480
  %v1388 = vld [vmem:[%s1387] ss:$2 sm:$0xff]
  %s1389 = scalar_lea.vmem [#allocation2], 496
  %v1390 = vld [vmem:[%s1389] ss:$2 sm:$0xff]
  %s1391 = scalar_lea.vmem [#allocation2], 512
  %v1392 = vld [vmem:[%s1391] ss:$2 sm:$0xff]
  %s1393 = scalar_lea.vmem [#allocation2], 528
  %v1394 = vld [vmem:[%s1393] ss:$2 sm:$0xff]
  %s1395 = scalar_lea.vmem [#allocation2], 544
  %v1396 = vld [vmem:[%s1395] ss:$2 sm:$0xff]
  %s1397 = scalar_lea.vmem [#allocation2], 560
  %v1398 = vld [vmem:[%s1397] ss:$2 sm:$0xff]
  %s1399 = scalar_lea.vmem [#allocation2], 576
  %v1400 = vld [vmem:[%s1399] ss:$2 sm:$0xff]
  %s1401 = scalar_lea.vmem [#allocation2], 592
  %v1402 = vld [vmem:[%s1401] ss:$2 sm:$0xff]
  %s1403 = scalar_lea.vmem [#allocation2], 608
  %v1404 = vld [vmem:[%s1403] ss:$2 sm:$0xff]
  %s1405 = scalar_lea.vmem [#allocation2], 624
  %v1406 = vld [vmem:[%s1405] ss:$2 sm:$0xff]
  %s1407 = scalar_lea.vmem [#allocation2], 640
  %v1408 = vld [vmem:[%s1407] ss:$2 sm:$0xff]
  %s1409 = scalar_lea.vmem [#allocation2], 656
  %v1410 = vld [vmem:[%s1409] ss:$2 sm:$0xff]
  %s1411 = scalar_lea.vmem [#allocation2], 672
  %v1412 = vld [vmem:[%s1411] ss:$2 sm:$0xff]
  %s1413 = scalar_lea.vmem [#allocation2], 688
  %v1414 = vld [vmem:[%s1413] ss:$2 sm:$0xff]
  %s1415 = scalar_lea.vmem [#allocation2], 704
  %v1416 = vld [vmem:[%s1415] ss:$2 sm:$0xff]
  %s1417 = scalar_lea.vmem [#allocation2], 720
  %v1418 = vld [vmem:[%s1417] ss:$2 sm:$0xff]
  %s1419 = scalar_lea.vmem [#allocation2], 736
  %v1420 = vld [vmem:[%s1419] ss:$2 sm:$0xff]
  %s1421 = scalar_lea.vmem [#allocation2], 752
  %v1422 = vld [vmem:[%s1421] ss:$2 sm:$0xff]
  %s1423 = scalar_lea.vmem [#allocation2], 768
  %v1424 = vld [vmem:[%s1423] ss:$2 sm:$0xff]
  %s1425 = scalar_lea.vmem [#allocation2], 784
  %v1426 = vld [vmem:[%s1425] ss:$2 sm:$0xff]
  %s1427 = scalar_lea.vmem [#allocation2], 800
  %v1428 = vld [vmem:[%s1427] ss:$2 sm:$0xff]
  %s1429 = scalar_lea.vmem [#allocation2], 816
  %v1430 = vld [vmem:[%s1429] ss:$2 sm:$0xff]
  %s1431 = scalar_lea.vmem [#allocation2], 832
  %v1432 = vld [vmem:[%s1431] ss:$2 sm:$0xff]
  %s1433 = scalar_lea.vmem [#allocation2], 848
  %v1434 = vld [vmem:[%s1433] ss:$2 sm:$0xff]
  %s1435 = scalar_lea.vmem [#allocation2], 864
  %v1436 = vld [vmem:[%s1435] ss:$2 sm:$0xff]
  %s1437 = scalar_lea.vmem [#allocation2], 880
  %v1438 = vld [vmem:[%s1437] ss:$2 sm:$0xff]
  %s1439 = scalar_lea.vmem [#allocation2], 896
  %v1440 = vld [vmem:[%s1439] ss:$2 sm:$0xff]
  %s1441 = scalar_lea.vmem [#allocation2], 912
  %v1442 = vld [vmem:[%s1441] ss:$2 sm:$0xff]
  %s1443 = scalar_lea.vmem [#allocation2], 928
  %v1444 = vld [vmem:[%s1443] ss:$2 sm:$0xff]
  %s1445 = scalar_lea.vmem [#allocation2], 944
  %v1446 = vld [vmem:[%s1445] ss:$2 sm:$0xff]
  %s1447 = scalar_lea.vmem [#allocation2], 960
  %v1448 = vld [vmem:[%s1447] ss:$2 sm:$0xff]
  %s1449 = scalar_lea.vmem [#allocation2], 976
  %v1450 = vld [vmem:[%s1449] ss:$2 sm:$0xff]
  %s1451 = scalar_lea.vmem [#allocation2], 992
  %v1452 = vld [vmem:[%s1451] ss:$2 sm:$0xff]
  %s1453 = scalar_lea.vmem [#allocation2], 1008
  %v1454 = vld [vmem:[%s1453] ss:$2 sm:$0xff]
  %s1455 = scalar_lea.vmem [#allocation2], 1
  %v1456 = vld [vmem:[%s1455] ss:$2 sm:$0xff]
  %s1457 = scalar_lea.vmem [#allocation2], 17
  %v1458 = vld [vmem:[%s1457] ss:$2 sm:$0xff]
  %s1459 = scalar_lea.vmem [#allocation2], 33
  %v1460 = vld [vmem:[%s1459] ss:$2 sm:$0xff]
  %s1461 = scalar_lea.vmem [#allocation2], 49
  %v1462 = vld [vmem:[%s1461] ss:$2 sm:$0xff]
  %s1463 = scalar_lea.vmem [#allocation2], 65
  %v1464 = vld [vmem:[%s1463] ss:$2 sm:$0xff]
  %s1465 = scalar_lea.vmem [#allocation2], 81
  %v1466 = vld [vmem:[%s1465] ss:$2 sm:$0xff]
  %s1467 = scalar_lea.vmem [#allocation2], 97
  %v1468 = vld [vmem:[%s1467] ss:$2 sm:$0xff]
  %s1469 = scalar_lea.vmem [#allocation2], 113
  %v1470 = vld [vmem:[%s1469] ss:$2 sm:$0xff]
  %s1471 = scalar_lea.vmem [#allocation2], 129
  %v1472 = vld [vmem:[%s1471] ss:$2 sm:$0xff]
  %s1473 = scalar_lea.vmem [#allocation2], 145
  %v1474 = vld [vmem:[%s1473] ss:$2 sm:$0xff]
  %s1475 = scalar_lea.vmem [#allocation2], 161
  %v1476 = vld [vmem:[%s1475] ss:$2 sm:$0xff]
  %s1477 = scalar_lea.vmem [#allocation2], 177
  %v1478 = vld [vmem:[%s1477] ss:$2 sm:$0xff]
  %s1479 = scalar_lea.vmem [#allocation2], 193
  %v1480 = vld [vmem:[%s1479] ss:$2 sm:$0xff]
  %s1481 = scalar_lea.vmem [#allocation2], 209
  %v1482 = vld [vmem:[%s1481] ss:$2 sm:$0xff]
  %s1483 = scalar_lea.vmem [#allocation2], 225
  %v1484 = vld [vmem:[%s1483] ss:$2 sm:$0xff]
  %s1485 = scalar_lea.vmem [#allocation2], 241
  %v1486 = vld [vmem:[%s1485] ss:$2 sm:$0xff]
  %s1487 = scalar_lea.vmem [#allocation2], 257
  %v1488 = vld [vmem:[%s1487] ss:$2 sm:$0xff]
  %s1489 = scalar_lea.vmem [#allocation2], 273
  %v1490 = vld [vmem:[%s1489] ss:$2 sm:$0xff]
  %s1491 = scalar_lea.vmem [#allocation2], 289
  %v1492 = vld [vmem:[%s1491] ss:$2 sm:$0xff]
  %s1493 = scalar_lea.vmem [#allocation2], 305
  %v1494 = vld [vmem:[%s1493] ss:$2 sm:$0xff]
  %s1495 = scalar_lea.vmem [#allocation2], 321
  %v1496 = vld [vmem:[%s1495] ss:$2 sm:$0xff]
  %s1497 = scalar_lea.vmem [#allocation2], 337
  %v1498 = vld [vmem:[%s1497] ss:$2 sm:$0xff]
  %s1499 = scalar_lea.vmem [#allocation2], 353
  %v1500 = vld [vmem:[%s1499] ss:$2 sm:$0xff]
  %s1501 = scalar_lea.vmem [#allocation2], 369
  %v1502 = vld [vmem:[%s1501] ss:$2 sm:$0xff]
  %s1503 = scalar_lea.vmem [#allocation2], 385
  %v1504 = vld [vmem:[%s1503] ss:$2 sm:$0xff]
  %s1505 = scalar_lea.vmem [#allocation2], 401
  %v1506 = vld [vmem:[%s1505] ss:$2 sm:$0xff]
  %s1507 = scalar_lea.vmem [#allocation2], 417
  %v1508 = vld [vmem:[%s1507] ss:$2 sm:$0xff]
  %s1509 = scalar_lea.vmem [#allocation2], 433
  %v1510 = vld [vmem:[%s1509] ss:$2 sm:$0xff]
  %s1511 = scalar_lea.vmem [#allocation2], 449
  %v1512 = vld [vmem:[%s1511] ss:$2 sm:$0xff]
  %s1513 = scalar_lea.vmem [#allocation2], 465
  %v1514 = vld [vmem:[%s1513] ss:$2 sm:$0xff]
  %s1515 = scalar_lea.vmem [#allocation2], 481
  %v1516 = vld [vmem:[%s1515] ss:$2 sm:$0xff]
  %s1517 = scalar_lea.vmem [#allocation2], 497
  %v1518 = vld [vmem:[%s1517] ss:$2 sm:$0xff]
  %s1519 = scalar_lea.vmem [#allocation2], 513
  %v1520 = vld [vmem:[%s1519] ss:$2 sm:$0xff]
  %s1521 = scalar_lea.vmem [#allocation2], 529
  %v1522 = vld [vmem:[%s1521] ss:$2 sm:$0xff]
  %s1523 = scalar_lea.vmem [#allocation2], 545
  %v1524 = vld [vmem:[%s1523] ss:$2 sm:$0xff]
  %s1525 = scalar_lea.vmem [#allocation2], 561
  %v1526 = vld [vmem:[%s1525] ss:$2 sm:$0xff]
  %s1527 = scalar_lea.vmem [#allocation2], 577
  %v1528 = vld [vmem:[%s1527] ss:$2 sm:$0xff]
  %s1529 = scalar_lea.vmem [#allocation2], 593
  %v1530 = vld [vmem:[%s1529] ss:$2 sm:$0xff]
  %s1531 = scalar_lea.vmem [#allocation2], 609
  %v1532 = vld [vmem:[%s1531] ss:$2 sm:$0xff]
  %s1533 = scalar_lea.vmem [#allocation2], 625
  %v1534 = vld [vmem:[%s1533] ss:$2 sm:$0xff]
  %s1535 = scalar_lea.vmem [#allocation2], 641
  %v1536 = vld [vmem:[%s1535] ss:$2 sm:$0xff]
  %s1537 = scalar_lea.vmem [#allocation2], 657
  %v1538 = vld [vmem:[%s1537] ss:$2 sm:$0xff]
  %s1539 = scalar_lea.vmem [#allocation2], 673
  %v1540 = vld [vmem:[%s1539] ss:$2 sm:$0xff]
  %s1541 = scalar_lea.vmem [#allocation2], 689
  %v1542 = vld [vmem:[%s1541] ss:$2 sm:$0xff]
  %s1543 = scalar_lea.vmem [#allocation2], 705
  %v1544 = vld [vmem:[%s1543] ss:$2 sm:$0xff]
  %s1545 = scalar_lea.vmem [#allocation2], 721
  %v1546 = vld [vmem:[%s1545] ss:$2 sm:$0xff]
  %s1547 = scalar_lea.vmem [#allocation2], 737
  %v1548 = vld [vmem:[%s1547] ss:$2 sm:$0xff]
  %s1549 = scalar_lea.vmem [#allocation2], 753
  %v1550 = vld [vmem:[%s1549] ss:$2 sm:$0xff]
  %s1551 = scalar_lea.vmem [#allocation2], 769
  %v1552 = vld [vmem:[%s1551] ss:$2 sm:$0xff]
  %s1553 = scalar_lea.vmem [#allocation2], 785
  %v1554 = vld [vmem:[%s1553] ss:$2 sm:$0xff]
  %s1555 = scalar_lea.vmem [#allocation2], 801
  %v1556 = vld [vmem:[%s1555] ss:$2 sm:$0xff]
  %s1557 = scalar_lea.vmem [#allocation2], 817
  %v1558 = vld [vmem:[%s1557] ss:$2 sm:$0xff]
  %s1559 = scalar_lea.vmem [#allocation2], 833
  %v1560 = vld [vmem:[%s1559] ss:$2 sm:$0xff]
  %s1561 = scalar_lea.vmem [#allocation2], 849
  %v1562 = vld [vmem:[%s1561] ss:$2 sm:$0xff]
  %s1563 = scalar_lea.vmem [#allocation2], 865
  %v1564 = vld [vmem:[%s1563] ss:$2 sm:$0xff]
  %s1565 = scalar_lea.vmem [#allocation2], 881
  %v1566 = vld [vmem:[%s1565] ss:$2 sm:$0xff]
  %s1567 = scalar_lea.vmem [#allocation2], 897
  %v1568 = vld [vmem:[%s1567] ss:$2 sm:$0xff]
  %s1569 = scalar_lea.vmem [#allocation2], 913
  %v1570 = vld [vmem:[%s1569] ss:$2 sm:$0xff]
  %s1571 = scalar_lea.vmem [#allocation2], 929
  %v1572 = vld [vmem:[%s1571] ss:$2 sm:$0xff]
  %s1573 = scalar_lea.vmem [#allocation2], 945
  %v1574 = vld [vmem:[%s1573] ss:$2 sm:$0xff]
  %s1575 = scalar_lea.vmem [#allocation2], 961
  %v1576 = vld [vmem:[%s1575] ss:$2 sm:$0xff]
  %s1577 = scalar_lea.vmem [#allocation2], 977
  %v1578 = vld [vmem:[%s1577] ss:$2 sm:$0xff]
  %s1579 = scalar_lea.vmem [#allocation2], 993
  %v1580 = vld [vmem:[%s1579] ss:$2 sm:$0xff]
  %s1581 = scalar_lea.vmem [#allocation2], 1009
  %v1582 = vld [vmem:[%s1581] ss:$2 sm:$0xff]
  %v1583 = vmax.f32 %v1328, %v1456
  %v1584 = vmax.f32 %v1330, %v1458
  %v1585 = vmax.f32 %v1332, %v1460
  %v1586 = vmax.f32 %v1334, %v1462
  %v1587 = vmax.f32 %v1336, %v1464
  %v1588 = vmax.f32 %v1338, %v1466
  %v1589 = vmax.f32 %v1340, %v1468
  %v1590 = vmax.f32 %v1342, %v1470
  %v1591 = vmax.f32 %v1344, %v1472
  %v1592 = vmax.f32 %v1346, %v1474
  %v1593 = vmax.f32 %v1348, %v1476
  %v1594 = vmax.f32 %v1350, %v1478
  %v1595 = vmax.f32 %v1352, %v1480
  %v1596 = vmax.f32 %v1354, %v1482
  %v1597 = vmax.f32 %v1356, %v1484
  %v1598 = vmax.f32 %v1358, %v1486
  %v1599 = vmax.f32 %v1360, %v1488
  %v1600 = vmax.f32 %v1362, %v1490
  %v1601 = vmax.f32 %v1364, %v1492
  %v1602 = vmax.f32 %v1366, %v1494
  %v1603 = vmax.f32 %v1368, %v1496
  %v1604 = vmax.f32 %v1370, %v1498
  %v1605 = vmax.f32 %v1372, %v1500
  %v1606 = vmax.f32 %v1374, %v1502
  %v1607 = vmax.f32 %v1376, %v1504
  %v1608 = vmax.f32 %v1378, %v1506
  %v1609 = vmax.f32 %v1380, %v1508
  %v1610 = vmax.f32 %v1382, %v1510
  %v1611 = vmax.f32 %v1384, %v1512
  %v1612 = vmax.f32 %v1386, %v1514
  %v1613 = vmax.f32 %v1388, %v1516
  %v1614 = vmax.f32 %v1390, %v1518
  %v1615 = vmax.f32 %v1392, %v1520
  %v1616 = vmax.f32 %v1394, %v1522
  %v1617 = vmax.f32 %v1396, %v1524
  %v1618 = vmax.f32 %v1398, %v1526
  %v1619 = vmax.f32 %v1400, %v1528
  %v1620 = vmax.f32 %v1402, %v1530
  %v1621 = vmax.f32 %v1404, %v1532
  %v1622 = vmax.f32 %v1406, %v1534
  %v1623 = vmax.f32 %v1408, %v1536
  %v1624 = vmax.f32 %v1410, %v1538
  %v1625 = vmax.f32 %v1412, %v1540
  %v1626 = vmax.f32 %v1414, %v1542
  %v1627 = vmax.f32 %v1416, %v1544
  %v1628 = vmax.f32 %v1418, %v1546
  %v1629 = vmax.f32 %v1420, %v1548
  %v1630 = vmax.f32 %v1422, %v1550
  %v1631 = vmax.f32 %v1424, %v1552
  %v1632 = vmax.f32 %v1426, %v1554
  %v1633 = vmax.f32 %v1428, %v1556
  %v1634 = vmax.f32 %v1430, %v1558
  %v1635 = vmax.f32 %v1432, %v1560
  %v1636 = vmax.f32 %v1434, %v1562
  %v1637 = vmax.f32 %v1436, %v1564
  %v1638 = vmax.f32 %v1438, %v1566
  %v1639 = vmax.f32 %v1440, %v1568
  %v1640 = vmax.f32 %v1442, %v1570
  %v1641 = vmax.f32 %v1444, %v1572
  %v1642 = vmax.f32 %v1446, %v1574
  %v1643 = vmax.f32 %v1448, %v1576
  %v1644 = vmax.f32 %v1450, %v1578
  %v1645 = vmax.f32 %v1452, %v1580
  %v1646 = vmax.f32 %v1454, %v1582
  %v1647 = vld [vmem:[%s2] sm:$0x1]
  %v1649 = vperm.slane %v1647, 0
  %v1651 = vadd.f32 %v1583, %v1649
  %v1652 = vadd.f32 %v1584, %v1649
  %v1653 = vadd.f32 %v1585, %v1649
  %v1654 = vadd.f32 %v1586, %v1649
  %v1655 = vadd.f32 %v1587, %v1649
  %v1656 = vadd.f32 %v1588, %v1649
  %v1657 = vadd.f32 %v1589, %v1649
  %v1658 = vadd.f32 %v1590, %v1649
  %v1659 = vadd.f32 %v1591, %v1649
  %v1660 = vadd.f32 %v1592, %v1649
  %v1661 = vadd.f32 %v1593, %v1649
  %v1662 = vadd.f32 %v1594, %v1649
  %v1663 = vadd.f32 %v1595, %v1649
  %v1664 = vadd.f32 %v1596, %v1649
  %v1665 = vadd.f32 %v1597, %v1649
  %v1666 = vadd.f32 %v1598, %v1649
  %v1667 = vadd.f32 %v1599, %v1649
  %v1668 = vadd.f32 %v1600, %v1649
  %v1669 = vadd.f32 %v1601, %v1649
  %v1670 = vadd.f32 %v1602, %v1649
  %v1671 = vadd.f32 %v1603, %v1649
  %v1672 = vadd.f32 %v1604, %v1649
  %v1673 = vadd.f32 %v1605, %v1649
  %v1674 = vadd.f32 %v1606, %v1649
  %v1675 = vadd.f32 %v1607, %v1649
  %v1676 = vadd.f32 %v1608, %v1649
  %v1677 = vadd.f32 %v1609, %v1649
  %v1678 = vadd.f32 %v1610, %v1649
  %v1679 = vadd.f32 %v1611, %v1649
  %v1680 = vadd.f32 %v1612, %v1649
  %v1681 = vadd.f32 %v1613, %v1649
  %v1682 = vadd.f32 %v1614, %v1649
  %v1683 = vadd.f32 %v1615, %v1649
  %v1684 = vadd.f32 %v1616, %v1649
  %v1685 = vadd.f32 %v1617, %v1649
  %v1686 = vadd.f32 %v1618, %v1649
  %v1687 = vadd.f32 %v1619, %v1649
  %v1688 = vadd.f32 %v1620, %v1649
  %v1689 = vadd.f32 %v1621, %v1649
  %v1690 = vadd.f32 %v1622, %v1649
  %v1691 = vadd.f32 %v1623, %v1649
  %v1692 = vadd.f32 %v1624, %v1649
  %v1693 = vadd.f32 %v1625, %v1649
  %v1694 = vadd.f32 %v1626, %v1649
  %v1695 = vadd.f32 %v1627, %v1649
  %v1696 = vadd.f32 %v1628, %v1649
  %v1697 = vadd.f32 %v1629, %v1649
  %v1698 = vadd.f32 %v1630, %v1649
  %v1699 = vadd.f32 %v1631, %v1649
  %v1700 = vadd.f32 %v1632, %v1649
  %v1701 = vadd.f32 %v1633, %v1649
  %v1702 = vadd.f32 %v1634, %v1649
  %v1703 = vadd.f32 %v1635, %v1649
  %v1704 = vadd.f32 %v1636, %v1649
  %v1705 = vadd.f32 %v1637, %v1649
  %v1706 = vadd.f32 %v1638, %v1649
  %v1707 = vadd.f32 %v1639, %v1649
  %v1708 = vadd.f32 %v1640, %v1649
  %v1709 = vadd.f32 %v1641, %v1649
  %v1710 = vadd.f32 %v1642, %v1649
  %v1711 = vadd.f32 %v1643, %v1649
  %v1712 = vadd.f32 %v1644, %v1649
  %v1713 = vadd.f32 %v1645, %v1649
  %v1714 = vadd.f32 %v1646, %v1649
  %v1715 = vmax.f32 %v1651, 0.0
  %v1716 = vmax.f32 %v1652, 0.0
  %v1717 = vmax.f32 %v1653, 0.0
  %v1718 = vmax.f32 %v1654, 0.0
  %v1719 = vmax.f32 %v1655, 0.0
  %v1720 = vmax.f32 %v1656, 0.0
  %v1721 = vmax.f32 %v1657, 0.0
  %v1722 = vmax.f32 %v1658, 0.0
  %v1723 = vmax.f32 %v1659, 0.0
  %v1724 = vmax.f32 %v1660, 0.0
  %v1725 = vmax.f32 %v1661, 0.0
  %v1726 = vmax.f32 %v1662, 0.0
  %v1727 = vmax.f32 %v1663, 0.0
  %v1728 = vmax.f32 %v1664, 0.0
  %v1729 = vmax.f32 %v1665, 0.0
  %v1730 = vmax.f32 %v1666, 0.0
  %v1731 = vmax.f32 %v1667, 0.0
  %v1732 = vmax.f32 %v1668, 0.0
  %v1733 = vmax.f32 %v1669, 0.0
  %v1734 = vmax.f32 %v1670, 0.0
  %v1735 = vmax.f32 %v1671, 0.0
  %v1736 = vmax.f32 %v1672, 0.0
  %v1737 = vmax.f32 %v1673, 0.0
  %v1738 = vmax.f32 %v1674, 0.0
  %v1739 = vmax.f32 %v1675, 0.0
  %v1740 = vmax.f32 %v1676, 0.0
  %v1741 = vmax.f32 %v1677, 0.0
  %v1742 = vmax.f32 %v1678, 0.0
  %v1743 = vmax.f32 %v1679, 0.0
  %v1744 = vmax.f32 %v1680, 0.0
  %v1745 = vmax.f32 %v1681, 0.0
  %v1746 = vmax.f32 %v1682, 0.0
  %v1747 = vmax.f32 %v1683, 0.0
  %v1748 = vmax.f32 %v1684, 0.0
  %v1749 = vmax.f32 %v1685, 0.0
  %v1750 = vmax.f32 %v1686, 0.0
  %v1751 = vmax.f32 %v1687, 0.0
  %v1752 = vmax.f32 %v1688, 0.0
  %v1753 = vmax.f32 %v1689, 0.0
  %v1754 = vmax.f32 %v1690, 0.0
  %v1755 = vmax.f32 %v1691, 0.0
  %v1756 = vmax.f32 %v1692, 0.0
  %v1757 = vmax.f32 %v1693, 0.0
  %v1758 = vmax.f32 %v1694, 0.0
  %v1759 = vmax.f32 %v1695, 0.0
  %v1760 = vmax.f32 %v1696, 0.0
  %v1761 = vmax.f32 %v1697, 0.0
  %v1762 = vmax.f32 %v1698, 0.0
  %v1763 = vmax.f32 %v1699, 0.0
  %v1764 = vmax.f32 %v1700, 0.0
  %v1765 = vmax.f32 %v1701, 0.0
  %v1766 = vmax.f32 %v1702, 0.0
  %v1767 = vmax.f32 %v1703, 0.0
  %v1768 = vmax.f32 %v1704, 0.0
  %v1769 = vmax.f32 %v1705, 0.0
  %v1770 = vmax.f32 %v1706, 0.0
  %v1771 = vmax.f32 %v1707, 0.0
  %v1772 = vmax.f32 %v1708, 0.0
  %v1773 = vmax.f32 %v1709, 0.0
  %v1774 = vmax.f32 %v1710, 0.0
  %v1775 = vmax.f32 %v1711, 0.0
  %v1776 = vmax.f32 %v1712, 0.0
  %v1777 = vmax.f32 %v1713, 0.0
  %v1778 = vmax.f32 %v1714, 0.0
  %1779 = vst.msk [vmem:[%s3] sm:$0xff] %vm1199, %v1715
  %1780 = vst.msk [vmem:[%s3 + $0x8] sm:$0xff] %vm1199, %v1716
  %1781 = vst.msk [vmem:[%s3 + $0x10] sm:$0xff] %vm1199, %v1717
  %1782 = vst.msk [vmem:[%s3 + $0x18] sm:$0xff] %vm1199, %v1718
  %1783 = vst.msk [vmem:[%s3 + $0x20] sm:$0xff] %vm1199, %v1719
  %1784 = vst.msk [vmem:[%s3 + $0x28] sm:$0xff] %vm1199, %v1720
  %1785 = vst.msk [vmem:[%s3 + $0x30] sm:$0xff] %vm1199, %v1721
  %1786 = vst.msk [vmem:[%s3 + $0x38] sm:$0xff] %vm1199, %v1722
  %1787 = vst.msk [vmem:[%s3 + $0x40] sm:$0xff] %vm1199, %v1723
  %1788 = vst.msk [vmem:[%s3 + $0x48] sm:$0xff] %vm1199, %v1724
  %1789 = vst.msk [vmem:[%s3 + $0x50] sm:$0xff] %vm1199, %v1725
  %1790 = vst.msk [vmem:[%s3 + $0x58] sm:$0xff] %vm1199, %v1726
  %1791 = vst.msk [vmem:[%s3 + $0x60] sm:$0xff] %vm1199, %v1727
  %1792 = vst.msk [vmem:[%s3 + $0x68] sm:$0xff] %vm1199, %v1728
  %1793 = vst.msk [vmem:[%s3 + $0x70] sm:$0xff] %vm1199, %v1729
  %1794 = vst.msk [vmem:[%s3 + $0x78] sm:$0xff] %vm1199, %v1730
  %1795 = vst.msk [vmem:[%s3 + $0x80] sm:$0xff] %vm1199, %v1731
  %1796 = vst.msk [vmem:[%s3 + $0x88] sm:$0xff] %vm1199, %v1732
  %1797 = vst.msk [vmem:[%s3 + $0x90] sm:$0xff] %vm1199, %v1733
  %1798 = vst.msk [vmem:[%s3 + $0x98] sm:$0xff] %vm1199, %v1734
  %1799 = vst.msk [vmem:[%s3 + $0xa0] sm:$0xff] %vm1199, %v1735
  %1800 = vst.msk [vmem:[%s3 + $0xa8] sm:$0xff] %vm1199, %v1736
  %1801 = vst.msk [vmem:[%s3 + $0xb0] sm:$0xff] %vm1199, %v1737
  %1802 = vst.msk [vmem:[%s3 + $0xb8] sm:$0xff] %vm1199, %v1738
  %1803 = vst.msk [vmem:[%s3 + $0xc0] sm:$0xff] %vm1199, %v1739
  %1804 = vst.msk [vmem:[%s3 + $0xc8] sm:$0xff] %vm1199, %v1740
  %1805 = vst.msk [vmem:[%s3 + $0xd0] sm:$0xff] %vm1199, %v1741
  %1806 = vst.msk [vmem:[%s3 + $0xd8] sm:$0xff] %vm1199, %v1742
  %1807 = vst.msk [vmem:[%s3 + $0xe0] sm:$0xff] %vm1199, %v1743
  %1808 = vst.msk [vmem:[%s3 + $0xe8] sm:$0xff] %vm1199, %v1744
  %1809 = vst.msk [vmem:[%s3 + $0xf0] sm:$0xff] %vm1199, %v1745
  %1810 = vst.msk [vmem:[%s3 + $0xf8] sm:$0xff] %vm1199, %v1746
  %1811 = vst.msk [vmem:[%s3 + $0x100] sm:$0xff] %vm1199, %v1747
  %1812 = vst.msk [vmem:[%s3 + $0x108] sm:$0xff] %vm1199, %v1748
  %1813 = vst.msk [vmem:[%s3 + $0x110] sm:$0xff] %vm1199, %v1749
  %1814 = vst.msk [vmem:[%s3 + $0x118] sm:$0xff] %vm1199, %v1750
  %1815 = vst.msk [vmem:[%s3 + $0x120] sm:$0xff] %vm1199, %v1751
  %1816 = vst.msk [vmem:[%s3 + $0x128] sm:$0xff] %vm1199, %v1752
  %1817 = vst.msk [vmem:[%s3 + $0x130] sm:$0xff] %vm1199, %v1753
  %1818 = vst.msk [vmem:[%s3 + $0x138] sm:$0xff] %vm1199, %v1754
  %1819 = vst.msk [vmem:[%s3 + $0x140] sm:$0xff] %vm1199, %v1755
  %1820 = vst.msk [vmem:[%s3 + $0x148] sm:$0xff] %vm1199, %v1756
  %1821 = vst.msk [vmem:[%s3 + $0x150] sm:$0xff] %vm1199, %v1757
  %1822 = vst.msk [vmem:[%s3 + $0x158] sm:$0xff] %vm1199, %v1758
  %1823 = vst.msk [vmem:[%s3 + $0x160] sm:$0xff] %vm1199, %v1759
  %1824 = vst.msk [vmem:[%s3 + $0x168] sm:$0xff] %vm1199, %v1760
  %1825 = vst.msk [vmem:[%s3 + $0x170] sm:$0xff] %vm1199, %v1761
  %1826 = vst.msk [vmem:[%s3 + $0x178] sm:$0xff] %vm1199, %v1762
  %1827 = vst.msk [vmem:[%s3 + $0x180] sm:$0xff] %vm1199, %v1763
  %1828 = vst.msk [vmem:[%s3 + $0x188] sm:$0xff] %vm1199, %v1764
  %1829 = vst.msk [vmem:[%s3 + $0x190] sm:$0xff] %vm1199, %v1765
  %1830 = vst.msk [vmem:[%s3 + $0x198] sm:$0xff] %vm1199, %v1766
  %1831 = vst.msk [vmem:[%s3 + $0x1a0] sm:$0xff] %vm1199, %v1767
  %1832 = vst.msk [vmem:[%s3 + $0x1a8] sm:$0xff] %vm1199, %v1768
  %1833 = vst.msk [vmem:[%s3 + $0x1b0] sm:$0xff] %vm1199, %v1769
  %1834 = vst.msk [vmem:[%s3 + $0x1b8] sm:$0xff] %vm1199, %v1770
  %1835 = vst.msk [vmem:[%s3 + $0x1c0] sm:$0xff] %vm1199, %v1771
  %1836 = vst.msk [vmem:[%s3 + $0x1c8] sm:$0xff] %vm1199, %v1772
  %1837 = vst.msk [vmem:[%s3 + $0x1d0] sm:$0xff] %vm1199, %v1773
  %1838 = vst.msk [vmem:[%s3 + $0x1d8] sm:$0xff] %vm1199, %v1774
  %1839 = vst.msk [vmem:[%s3 + $0x1e0] sm:$0xff] %vm1199, %v1775
  %1840 = vst.msk [vmem:[%s3 + $0x1e8] sm:$0xff] %vm1199, %v1776
  %1841 = vst.msk [vmem:[%s3 + $0x1f0] sm:$0xff] %vm1199, %v1777
  %1842 = vst.msk [vmem:[%s3 + $0x1f8] sm:$0xff] %vm1199, %v1778
  // Predicated region
  $region14: #{baseline_forward.4} parent=0 // pred_check
    _
  $region15: #{baseline_forward.4} parent=0 // pred_check_branch
    %1844 = sbr.rel (0) target = $region17
  $region16: #{baseline_forward.4} parent=0 // pred_region
    _
  $region17: #{baseline_forward.4} parent=0 // pred_fallthru
    _
  // Predicated region
  $region18: #{baseline_forward.4} parent=0 // pred_check
    _
  $region19: #{baseline_forward.4} parent=0 // pred_check_branch
    %1846 = sbr.rel (0) target = $region21
  $region20: #{baseline_forward.4} parent=0 // pred_region
    _
  $region21: #{baseline_forward.4} parent=0 // pred_fallthru
    _

// kernel: baseline_forward.5
$region0: #{baseline_forward.5}
  #allocation0 [shape = 'u32[]', space=smem, size = 0x4, offset = 0x4, fixed_abs, tag = 'smem constant byte address 0x4 - core index']
  #allocation1 [shape = 'u32[72,128]{1,0:T(1,128)}', space=vmem, size = 0x9000, scoped, tag = 'internal scratch']
  #allocation2 [shape = 'f32[2,8,16,32]{3,2,1,0:T(8,128)}', space=vmem, size = 0x20000, scoped, tag = 'scratch operand']
  %s0 = inlined_call_operand.vmem [shape: f32[2,16,16,512], index: 0, kind: input, shape index: {}]
  %s1 = inlined_call_operand.vmem [shape: f32[512,32], index: 1, kind: input, shape index: {}]
  %s2 = inlined_call_operand.vmem [shape: f32[1,32], index: 2, kind: input, shape index: {}]
  %s3 = inlined_call_operand.vmem [shape: f32[2,8,8,32], index: 3, kind: output, shape index: {}]
  %s4 = sld [smem:[#allocation0]]
  $region22: #{baseline_forward.5} parent=0
    _
  %s6 = ssub.s32 1, %s4
  %s7 = scalar_select 0, %s6, %s4
  // Predicated region
  $region2: #{baseline_forward.5} parent=0 // pred_check
    _
  $region3: #{baseline_forward.5} parent=0 // pred_check_branch
    %9 = sbr.rel (0) target = $region5
  $region4: #{baseline_forward.5} parent=0 // pred_region
    _
  $region5: #{baseline_forward.5} parent=0 // pred_fallthru
    _
  // Predicated region
  $region6: #{baseline_forward.5} parent=0 // pred_check
    _
  $region7: #{baseline_forward.5} parent=0 // pred_check_branch
    %11 = sbr.rel (0) target = $region9
  $region8: #{baseline_forward.5} parent=0 // pred_region
    _
  $region9: #{baseline_forward.5} parent=0 // pred_fallthru
    _
  // Predicated region
  $region10: #{baseline_forward.5} parent=0 // pred_check
    _
  $region11: #{baseline_forward.5} parent=0 // pred_check_branch
    %13 = sbr.rel (0) target = $region13
  $region12: #{baseline_forward.5} parent=0 // pred_region
    _
  $region13: #{baseline_forward.5} parent=0 // pred_fallthru
    _
  %v14 = vld [vmem:[%s0] sm:$0xff]
  %v15 = vld [vmem:[%s0 + $0x8] sm:$0xff]
  %v16 = vld [vmem:[%s0 + $0x10] sm:$0xff]
  %v17 = vld [vmem:[%s0 + $0x18] sm:$0xff]
  %v18 = vld [vmem:[%s0 + $0x20] sm:$0xff]
  %v19 = vld [vmem:[%s0 + $0x28] sm:$0xff]
  %v20 = vld [vmem:[%s0 + $0x30] sm:$0xff]
  %v21 = vld [vmem:[%s0 + $0x38] sm:$0xff]
  %v22 = vld [vmem:[%s0 + $0x40] sm:$0xff]
  %v23 = vld [vmem:[%s0 + $0x48] sm:$0xff]
  %v24 = vld [vmem:[%s0 + $0x50] sm:$0xff]
  %v25 = vld [vmem:[%s0 + $0x58] sm:$0xff]
  %v26 = vld [vmem:[%s0 + $0x60] sm:$0xff]
  %v27 = vld [vmem:[%s0 + $0x68] sm:$0xff]
  %v28 = vld [vmem:[%s0 + $0x70] sm:$0xff]
  %v29 = vld [vmem:[%s0 + $0x78] sm:$0xff]
  %v30 = vld [vmem:[%s0 + $0x80] sm:$0xff]
  %v31 = vld [vmem:[%s0 + $0x88] sm:$0xff]
  %v32 = vld [vmem:[%s0 + $0x90] sm:$0xff]
  %v33 = vld [vmem:[%s0 + $0x98] sm:$0xff]
  %v34 = vld [vmem:[%s0 + $0xa0] sm:$0xff]
  %v35 = vld [vmem:[%s0 + $0xa8] sm:$0xff]
  %v36 = vld [vmem:[%s0 + $0xb0] sm:$0xff]
  %v37 = vld [vmem:[%s0 + $0xb8] sm:$0xff]
  %v38 = vld [vmem:[%s0 + $0xc0] sm:$0xff]
  %v39 = vld [vmem:[%s0 + $0xc8] sm:$0xff]
  %v40 = vld [vmem:[%s0 + $0xd0] sm:$0xff]
  %v41 = vld [vmem:[%s0 + $0xd8] sm:$0xff]
  %v42 = vld [vmem:[%s0 + $0xe0] sm:$0xff]
  %v43 = vld [vmem:[%s0 + $0xe8] sm:$0xff]
  %v44 = vld [vmem:[%s0 + $0xf0] sm:$0xff]
  %v45 = vld [vmem:[%s0 + $0xf8] sm:$0xff]
  %v46 = vld [vmem:[%s0 + $0x100] sm:$0xff]
  %v47 = vld [vmem:[%s0 + $0x108] sm:$0xff]
  %v48 = vld [vmem:[%s0 + $0x110] sm:$0xff]
  %v49 = vld [vmem:[%s0 + $0x118] sm:$0xff]
  %v50 = vld [vmem:[%s0 + $0x120] sm:$0xff]
  %v51 = vld [vmem:[%s0 + $0x128] sm:$0xff]
  %v52 = vld [vmem:[%s0 + $0x130] sm:$0xff]
  %v53 = vld [vmem:[%s0 + $0x138] sm:$0xff]
  %v54 = vld [vmem:[%s0 + $0x140] sm:$0xff]
  %v55 = vld [vmem:[%s0 + $0x148] sm:$0xff]
  %v56 = vld [vmem:[%s0 + $0x150] sm:$0xff]
  %v57 = vld [vmem:[%s0 + $0x158] sm:$0xff]
  %v58 = vld [vmem:[%s0 + $0x160] sm:$0xff]
  %v59 = vld [vmem:[%s0 + $0x168] sm:$0xff]
  %v60 = vld [vmem:[%s0 + $0x170] sm:$0xff]
  %v61 = vld [vmem:[%s0 + $0x178] sm:$0xff]
  %v62 = vld [vmem:[%s0 + $0x180] sm:$0xff]
  %v63 = vld [vmem:[%s0 + $0x188] sm:$0xff]
  %v64 = vld [vmem:[%s0 + $0x190] sm:$0xff]
  %v65 = vld [vmem:[%s0 + $0x198] sm:$0xff]
  %v66 = vld [vmem:[%s0 + $0x1a0] sm:$0xff]
  %v67 = vld [vmem:[%s0 + $0x1a8] sm:$0xff]
  %v68 = vld [vmem:[%s0 + $0x1b0] sm:$0xff]
  %v69 = vld [vmem:[%s0 + $0x1b8] sm:$0xff]
  %v70 = vld [vmem:[%s0 + $0x1c0] sm:$0xff]
  %v71 = vld [vmem:[%s0 + $0x1c8] sm:$0xff]
  %v72 = vld [vmem:[%s0 + $0x1d0] sm:$0xff]
  %v73 = vld [vmem:[%s0 + $0x1d8] sm:$0xff]
  %v74 = vld [vmem:[%s0 + $0x1e0] sm:$0xff]
  %v75 = vld [vmem:[%s0 + $0x1e8] sm:$0xff]
  %v76 = vld [vmem:[%s0 + $0x1f0] sm:$0xff]
  %v77 = vld [vmem:[%s0 + $0x1f8] sm:$0xff]
  %v78 = vld [vmem:[%s0 + $0x200] sm:$0xff]
  %v79 = vld [vmem:[%s0 + $0x208] sm:$0xff]
  %v80 = vld [vmem:[%s0 + $0x210] sm:$0xff]
  %v81 = vld [vmem:[%s0 + $0x218] sm:$0xff]
  %v82 = vld [vmem:[%s0 + $0x220] sm:$0xff]
  %v83 = vld [vmem:[%s0 + $0x228] sm:$0xff]
  %v84 = vld [vmem:[%s0 + $0x230] sm:$0xff]
  %v85 = vld [vmem:[%s0 + $0x238] sm:$0xff]
  %v86 = vld [vmem:[%s0 + $0x240] sm:$0xff]
  %v87 = vld [vmem:[%s0 + $0x248] sm:$0xff]
  %v88 = vld [vmem:[%s0 + $0x250] sm:$0xff]
  %v89 = vld [vmem:[%s0 + $0x258] sm:$0xff]
  %v90 = vld [vmem:[%s0 + $0x260] sm:$0xff]
  %v91 = vld [vmem:[%s0 + $0x268] sm:$0xff]
  %v92 = vld [vmem:[%s0 + $0x270] sm:$0xff]
  %v93 = vld [vmem:[%s0 + $0x278] sm:$0xff]
  %v94 = vld [vmem:[%s0 + $0x280] sm:$0xff]
  %v95 = vld [vmem:[%s0 + $0x288] sm:$0xff]
  %v96 = vld [vmem:[%s0 + $0x290] sm:$0xff]
  %v97 = vld [vmem:[%s0 + $0x298] sm:$0xff]
  %v98 = vld [vmem:[%s0 + $0x2a0] sm:$0xff]
  %v99 = vld [vmem:[%s0 + $0x2a8] sm:$0xff]
  %v100 = vld [vmem:[%s0 + $0x2b0] sm:$0xff]
  %v101 = vld [vmem:[%s0 + $0x2b8] sm:$0xff]
  %v102 = vld [vmem:[%s0 + $0x2c0] sm:$0xff]
  %v103 = vld [vmem:[%s0 + $0x2c8] sm:$0xff]
  %v104 = vld [vmem:[%s0 + $0x2d0] sm:$0xff]
  %v105 = vld [vmem:[%s0 + $0x2d8] sm:$0xff]
  %v106 = vld [vmem:[%s0 + $0x2e0] sm:$0xff]
  %v107 = vld [vmem:[%s0 + $0x2e8] sm:$0xff]
  %v108 = vld [vmem:[%s0 + $0x2f0] sm:$0xff]
  %v109 = vld [vmem:[%s0 + $0x2f8] sm:$0xff]
  %v110 = vld [vmem:[%s0 + $0x300] sm:$0xff]
  %v111 = vld [vmem:[%s0 + $0x308] sm:$0xff]
  %v112 = vld [vmem:[%s0 + $0x310] sm:$0xff]
  %v113 = vld [vmem:[%s0 + $0x318] sm:$0xff]
  %v114 = vld [vmem:[%s0 + $0x320] sm:$0xff]
  %v115 = vld [vmem:[%s0 + $0x328] sm:$0xff]
  %v116 = vld [vmem:[%s0 + $0x330] sm:$0xff]
  %v117 = vld [vmem:[%s0 + $0x338] sm:$0xff]
  %v118 = vld [vmem:[%s0 + $0x340] sm:$0xff]
  %v119 = vld [vmem:[%s0 + $0x348] sm:$0xff]
  %v120 = vld [vmem:[%s0 + $0x350] sm:$0xff]
  %v121 = vld [vmem:[%s0 + $0x358] sm:$0xff]
  %v122 = vld [vmem:[%s0 + $0x360] sm:$0xff]
  %v123 = vld [vmem:[%s0 + $0x368] sm:$0xff]
  %v124 = vld [vmem:[%s0 + $0x370] sm:$0xff]
  %v125 = vld [vmem:[%s0 + $0x378] sm:$0xff]
  %v126 = vld [vmem:[%s0 + $0x380] sm:$0xff]
  %v127 = vld [vmem:[%s0 + $0x388] sm:$0xff]
  %v128 = vld [vmem:[%s0 + $0x390] sm:$0xff]
  %v129 = vld [vmem:[%s0 + $0x398] sm:$0xff]
  %v130 = vld [vmem:[%s0 + $0x3a0] sm:$0xff]
  %v131 = vld [vmem:[%s0 + $0x3a8] sm:$0xff]
  %v132 = vld [vmem:[%s0 + $0x3b0] sm:$0xff]
  %v133 = vld [vmem:[%s0 + $0x3b8] sm:$0xff]
  %v134 = vld [vmem:[%s0 + $0x3c0] sm:$0xff]
  %v135 = vld [vmem:[%s0 + $0x3c8] sm:$0xff]
  %v136 = vld [vmem:[%s0 + $0x3d0] sm:$0xff]
  %v137 = vld [vmem:[%s0 + $0x3d8] sm:$0xff]
  %v138 = vld [vmem:[%s0 + $0x3e0] sm:$0xff]
  %v139 = vld [vmem:[%s0 + $0x3e8] sm:$0xff]
  %v140 = vld [vmem:[%s0 + $0x3f0] sm:$0xff]
  %v141 = vld [vmem:[%s0 + $0x3f8] sm:$0xff]
  %v142 = vld [vmem:[%s0 + $0x400] sm:$0xff]
  %v143 = vld [vmem:[%s0 + $0x408] sm:$0xff]
  %v144 = vld [vmem:[%s0 + $0x410] sm:$0xff]
  %v145 = vld [vmem:[%s0 + $0x418] sm:$0xff]
  %v146 = vld [vmem:[%s0 + $0x420] sm:$0xff]
  %v147 = vld [vmem:[%s0 + $0x428] sm:$0xff]
  %v148 = vld [vmem:[%s0 + $0x430] sm:$0xff]
  %v149 = vld [vmem:[%s0 + $0x438] sm:$0xff]
  %v150 = vld [vmem:[%s0 + $0x440] sm:$0xff]
  %v151 = vld [vmem:[%s0 + $0x448] sm:$0xff]
  %v152 = vld [vmem:[%s0 + $0x450] sm:$0xff]
  %v153 = vld [vmem:[%s0 + $0x458] sm:$0xff]
  %v154 = vld [vmem:[%s0 + $0x460] sm:$0xff]
  %v155 = vld [vmem:[%s0 + $0x468] sm:$0xff]
  %v156 = vld [vmem:[%s0 + $0x470] sm:$0xff]
  %v157 = vld [vmem:[%s0 + $0x478] sm:$0xff]
  %v158 = vld [vmem:[%s0 + $0x480] sm:$0xff]
  %v159 = vld [vmem:[%s0 + $0x488] sm:$0xff]
  %v160 = vld [vmem:[%s0 + $0x490] sm:$0xff]
  %v161 = vld [vmem:[%s0 + $0x498] sm:$0xff]
  %v162 = vld [vmem:[%s0 + $0x4a0] sm:$0xff]
  %v163 = vld [vmem:[%s0 + $0x4a8] sm:$0xff]
  %v164 = vld [vmem:[%s0 + $0x4b0] sm:$0xff]
  %v165 = vld [vmem:[%s0 + $0x4b8] sm:$0xff]
  %v166 = vld [vmem:[%s0 + $0x4c0] sm:$0xff]
  %v167 = vld [vmem:[%s0 + $0x4c8] sm:$0xff]
  %v168 = vld [vmem:[%s0 + $0x4d0] sm:$0xff]
  %v169 = vld [vmem:[%s0 + $0x4d8] sm:$0xff]
  %v170 = vld [vmem:[%s0 + $0x4e0] sm:$0xff]
  %v171 = vld [vmem:[%s0 + $0x4e8] sm:$0xff]
  %v172 = vld [vmem:[%s0 + $0x4f0] sm:$0xff]
  %v173 = vld [vmem:[%s0 + $0x4f8] sm:$0xff]
  %v174 = vld [vmem:[%s0 + $0x500] sm:$0xff]
  %v175 = vld [vmem:[%s0 + $0x508] sm:$0xff]
  %v176 = vld [vmem:[%s0 + $0x510] sm:$0xff]
  %v177 = vld [vmem:[%s0 + $0x518] sm:$0xff]
  %v178 = vld [vmem:[%s0 + $0x520] sm:$0xff]
  %v179 = vld [vmem:[%s0 + $0x528] sm:$0xff]
  %v180 = vld [vmem:[%s0 + $0x530] sm:$0xff]
  %v181 = vld [vmem:[%s0 + $0x538] sm:$0xff]
  %v182 = vld [vmem:[%s0 + $0x540] sm:$0xff]
  %v183 = vld [vmem:[%s0 + $0x548] sm:$0xff]
  %v184 = vld [vmem:[%s0 + $0x550] sm:$0xff]
  %v185 = vld [vmem:[%s0 + $0x558] sm:$0xff]
  %v186 = vld [vmem:[%s0 + $0x560] sm:$0xff]
  %v187 = vld [vmem:[%s0 + $0x568] sm:$0xff]
  %v188 = vld [vmem:[%s0 + $0x570] sm:$0xff]
  %v189 = vld [vmem:[%s0 + $0x578] sm:$0xff]
  %v190 = vld [vmem:[%s0 + $0x580] sm:$0xff]
  %v191 = vld [vmem:[%s0 + $0x588] sm:$0xff]
  %v192 = vld [vmem:[%s0 + $0x590] sm:$0xff]
  %v193 = vld [vmem:[%s0 + $0x598] sm:$0xff]
  %v194 = vld [vmem:[%s0 + $0x5a0] sm:$0xff]
  %v195 = vld [vmem:[%s0 + $0x5a8] sm:$0xff]
  %v196 = vld [vmem:[%s0 + $0x5b0] sm:$0xff]
  %v197 = vld [vmem:[%s0 + $0x5b8] sm:$0xff]
  %v198 = vld [vmem:[%s0 + $0x5c0] sm:$0xff]
  %v199 = vld [vmem:[%s0 + $0x5c8] sm:$0xff]
  %v200 = vld [vmem:[%s0 + $0x5d0] sm:$0xff]
  %v201 = vld [vmem:[%s0 + $0x5d8] sm:$0xff]
  %v202 = vld [vmem:[%s0 + $0x5e0] sm:$0xff]
  %v203 = vld [vmem:[%s0 + $0x5e8] sm:$0xff]
  %v204 = vld [vmem:[%s0 + $0x5f0] sm:$0xff]
  %v205 = vld [vmem:[%s0 + $0x5f8] sm:$0xff]
  %v206 = vld [vmem:[%s0 + $0x600] sm:$0xff]
  %v207 = vld [vmem:[%s0 + $0x608] sm:$0xff]
  %v208 = vld [vmem:[%s0 + $0x610] sm:$0xff]
  %v209 = vld [vmem:[%s0 + $0x618] sm:$0xff]
  %v210 = vld [vmem:[%s0 + $0x620] sm:$0xff]
  %v211 = vld [vmem:[%s0 + $0x628] sm:$0xff]
  %v212 = vld [vmem:[%s0 + $0x630] sm:$0xff]
  %v213 = vld [vmem:[%s0 + $0x638] sm:$0xff]
  %v214 = vld [vmem:[%s0 + $0x640] sm:$0xff]
  %v215 = vld [vmem:[%s0 + $0x648] sm:$0xff]
  %v216 = vld [vmem:[%s0 + $0x650] sm:$0xff]
  %v217 = vld [vmem:[%s0 + $0x658] sm:$0xff]
  %v218 = vld [vmem:[%s0 + $0x660] sm:$0xff]
  %v219 = vld [vmem:[%s0 + $0x668] sm:$0xff]
  %v220 = vld [vmem:[%s0 + $0x670] sm:$0xff]
  %v221 = vld [vmem:[%s0 + $0x678] sm:$0xff]
  %v222 = vld [vmem:[%s0 + $0x680] sm:$0xff]
  %v223 = vld [vmem:[%s0 + $0x688] sm:$0xff]
  %v224 = vld [vmem:[%s0 + $0x690] sm:$0xff]
  %v225 = vld [vmem:[%s0 + $0x698] sm:$0xff]
  %v226 = vld [vmem:[%s0 + $0x6a0] sm:$0xff]
  %v227 = vld [vmem:[%s0 + $0x6a8] sm:$0xff]
  %v228 = vld [vmem:[%s0 + $0x6b0] sm:$0xff]
  %v229 = vld [vmem:[%s0 + $0x6b8] sm:$0xff]
  %v230 = vld [vmem:[%s0 + $0x6c0] sm:$0xff]
  %v231 = vld [vmem:[%s0 + $0x6c8] sm:$0xff]
  %v232 = vld [vmem:[%s0 + $0x6d0] sm:$0xff]
  %v233 = vld [vmem:[%s0 + $0x6d8] sm:$0xff]
  %v234 = vld [vmem:[%s0 + $0x6e0] sm:$0xff]
  %v235 = vld [vmem:[%s0 + $0x6e8] sm:$0xff]
  %v236 = vld [vmem:[%s0 + $0x6f0] sm:$0xff]
  %v237 = vld [vmem:[%s0 + $0x6f8] sm:$0xff]
  %v238 = vld [vmem:[%s0 + $0x700] sm:$0xff]
  %v239 = vld [vmem:[%s0 + $0x708] sm:$0xff]
  %v240 = vld [vmem:[%s0 + $0x710] sm:$0xff]
  %v241 = vld [vmem:[%s0 + $0x718] sm:$0xff]
  %v242 = vld [vmem:[%s0 + $0x720] sm:$0xff]
  %v243 = vld [vmem:[%s0 + $0x728] sm:$0xff]
  %v244 = vld [vmem:[%s0 + $0x730] sm:$0xff]
  %v245 = vld [vmem:[%s0 + $0x738] sm:$0xff]
  %v246 = vld [vmem:[%s0 + $0x740] sm:$0xff]
  %v247 = vld [vmem:[%s0 + $0x748] sm:$0xff]
  %v248 = vld [vmem:[%s0 + $0x750] sm:$0xff]
  %v249 = vld [vmem:[%s0 + $0x758] sm:$0xff]
  %v250 = vld [vmem:[%s0 + $0x760] sm:$0xff]
  %v251 = vld [vmem:[%s0 + $0x768] sm:$0xff]
  %v252 = vld [vmem:[%s0 + $0x770] sm:$0xff]
  %v253 = vld [vmem:[%s0 + $0x778] sm:$0xff]
  %v254 = vld [vmem:[%s0 + $0x780] sm:$0xff]
  %v255 = vld [vmem:[%s0 + $0x788] sm:$0xff]
  %v256 = vld [vmem:[%s0 + $0x790] sm:$0xff]
  %v257 = vld [vmem:[%s0 + $0x798] sm:$0xff]
  %v258 = vld [vmem:[%s0 + $0x7a0] sm:$0xff]
  %v259 = vld [vmem:[%s0 + $0x7a8] sm:$0xff]
  %v260 = vld [vmem:[%s0 + $0x7b0] sm:$0xff]
  %v261 = vld [vmem:[%s0 + $0x7b8] sm:$0xff]
  %v262 = vld [vmem:[%s0 + $0x7c0] sm:$0xff]
  %v263 = vld [vmem:[%s0 + $0x7c8] sm:$0xff]
  %v264 = vld [vmem:[%s0 + $0x7d0] sm:$0xff]
  %v265 = vld [vmem:[%s0 + $0x7d8] sm:$0xff]
  %v266 = vld [vmem:[%s0 + $0x7e0] sm:$0xff]
  %v267 = vld [vmem:[%s0 + $0x7e8] sm:$0xff]
  %v268 = vld [vmem:[%s0 + $0x7f0] sm:$0xff]
  %v269 = vld [vmem:[%s0 + $0x7f8] sm:$0xff]
  %v270 = vld [vmem:[%s1] sm:$0xff]
  %v271 = vld [vmem:[%s1 + $0x8] sm:$0xff]
  %v272 = vld [vmem:[%s1 + $0x10] sm:$0xff]
  %v273 = vld [vmem:[%s1 + $0x18] sm:$0xff]
  %v274 = vld [vmem:[%s1 + $0x20] sm:$0xff]
  %v275 = vld [vmem:[%s1 + $0x28] sm:$0xff]
  %v276 = vld [vmem:[%s1 + $0x30] sm:$0xff]
  %v277 = vld [vmem:[%s1 + $0x38] sm:$0xff]
  %v278 = vld [vmem:[%s1 + $0x40] sm:$0xff]
  %v279 = vld [vmem:[%s1 + $0x48] sm:$0xff]
  %v280 = vld [vmem:[%s1 + $0x50] sm:$0xff]
  %v281 = vld [vmem:[%s1 + $0x58] sm:$0xff]
  %v282 = vld [vmem:[%s1 + $0x60] sm:$0xff]
  %v283 = vld [vmem:[%s1 + $0x68] sm:$0xff]
  %v284 = vld [vmem:[%s1 + $0x70] sm:$0xff]
  %v285 = vld [vmem:[%s1 + $0x78] sm:$0xff]
  %v286 = vld [vmem:[%s1 + $0x80] sm:$0xff]
  %v287 = vld [vmem:[%s1 + $0x88] sm:$0xff]
  %v288 = vld [vmem:[%s1 + $0x90] sm:$0xff]
  %v289 = vld [vmem:[%s1 + $0x98] sm:$0xff]
  %v290 = vld [vmem:[%s1 + $0xa0] sm:$0xff]
  %v291 = vld [vmem:[%s1 + $0xa8] sm:$0xff]
  %v292 = vld [vmem:[%s1 + $0xb0] sm:$0xff]
  %v293 = vld [vmem:[%s1 + $0xb8] sm:$0xff]
  %v294 = vld [vmem:[%s1 + $0xc0] sm:$0xff]
  %v295 = vld [vmem:[%s1 + $0xc8] sm:$0xff]
  %v296 = vld [vmem:[%s1 + $0xd0] sm:$0xff]
  %v297 = vld [vmem:[%s1 + $0xd8] sm:$0xff]
  %v298 = vld [vmem:[%s1 + $0xe0] sm:$0xff]
  %v299 = vld [vmem:[%s1 + $0xe8] sm:$0xff]
  %v300 = vld [vmem:[%s1 + $0xf0] sm:$0xff]
  %v301 = vld [vmem:[%s1 + $0xf8] sm:$0xff]
  %v302 = vld [vmem:[%s1 + $0x100] sm:$0xff]
  %v303 = vld [vmem:[%s1 + $0x108] sm:$0xff]
  %v304 = vld [vmem:[%s1 + $0x110] sm:$0xff]
  %v305 = vld [vmem:[%s1 + $0x118] sm:$0xff]
  %v306 = vld [vmem:[%s1 + $0x120] sm:$0xff]
  %v307 = vld [vmem:[%s1 + $0x128] sm:$0xff]
  %v308 = vld [vmem:[%s1 + $0x130] sm:$0xff]
  %v309 = vld [vmem:[%s1 + $0x138] sm:$0xff]
  %v310 = vld [vmem:[%s1 + $0x140] sm:$0xff]
  %v311 = vld [vmem:[%s1 + $0x148] sm:$0xff]
  %v312 = vld [vmem:[%s1 + $0x150] sm:$0xff]
  %v313 = vld [vmem:[%s1 + $0x158] sm:$0xff]
  %v314 = vld [vmem:[%s1 + $0x160] sm:$0xff]
  %v315 = vld [vmem:[%s1 + $0x168] sm:$0xff]
  %v316 = vld [vmem:[%s1 + $0x170] sm:$0xff]
  %v317 = vld [vmem:[%s1 + $0x178] sm:$0xff]
  %v318 = vld [vmem:[%s1 + $0x180] sm:$0xff]
  %v319 = vld [vmem:[%s1 + $0x188] sm:$0xff]
  %v320 = vld [vmem:[%s1 + $0x190] sm:$0xff]
  %v321 = vld [vmem:[%s1 + $0x198] sm:$0xff]
  %v322 = vld [vmem:[%s1 + $0x1a0] sm:$0xff]
  %v323 = vld [vmem:[%s1 + $0x1a8] sm:$0xff]
  %v324 = vld [vmem:[%s1 + $0x1b0] sm:$0xff]
  %v325 = vld [vmem:[%s1 + $0x1b8] sm:$0xff]
  %v326 = vld [vmem:[%s1 + $0x1c0] sm:$0xff]
  %v327 = vld [vmem:[%s1 + $0x1c8] sm:$0xff]
  %v328 = vld [vmem:[%s1 + $0x1d0] sm:$0xff]
  %v329 = vld [vmem:[%s1 + $0x1d8] sm:$0xff]
  %v330 = vld [vmem:[%s1 + $0x1e0] sm:$0xff]
  %v331 = vld [vmem:[%s1 + $0x1e8] sm:$0xff]
  %v332 = vld [vmem:[%s1 + $0x1f0] sm:$0xff]
  %v333 = vld [vmem:[%s1 + $0x1f8] sm:$0xff]
  %334 = vmatpush.msra.mxu0 %v285
  %335 = vmatpush.msra.mxu0 %v284
  %336 = vmatpush.msra.mxu0 %v283
  %337 = vmatpush.msra.mxu0 %v282
  %338 = vmatpush.msra.mxu0 %v281
  %339 = vmatpush.msra.mxu0 %v280
  %340 = vmatpush.msra.mxu0 %v279
  %341 = vmatpush.msra.mxu0 %v278
  %342 = vmatpush.msra.mxu0 %v277
  %343 = vmatpush.msra.mxu0 %v276
  %344 = vmatpush.msra.mxu0 %v275
  %345 = vmatpush.msra.mxu0 %v274
  %346 = vmatpush.msra.mxu0 %v273
  %347 = vmatpush.msra.mxu0 %v272
  %348 = vmatpush.msra.mxu0 %v271
  %349 = vmatpush.msra.mxu0 %v270
  %350 = vmatmul.f32.gmra.mxu0 %v14
  %v351 = vpop.f32.mrf.mxu0
  %v352 = vadd.f32 0.0, %v351
  %353 = vmatmul.f32.gmra.mxu0 %v18
  %v354 = vpop.f32.mrf.mxu0
  %v355 = vadd.f32 0.0, %v354
  %356 = vmatmul.f32.gmra.mxu0 %v22
  %v357 = vpop.f32.mrf.mxu0
  %v358 = vadd.f32 0.0, %v357
  %359 = vmatmul.f32.gmra.mxu0 %v26
  %v360 = vpop.f32.mrf.mxu0
  %v361 = vadd.f32 0.0, %v360
  %362 = vmatmul.f32.gmra.mxu0 %v30
  %v363 = vpop.f32.mrf.mxu0
  %v364 = vadd.f32 0.0, %v363
  %365 = vmatmul.f32.gmra.mxu0 %v34
  %v366 = vpop.f32.mrf.mxu0
  %v367 = vadd.f32 0.0, %v366
  %368 = vmatmul.f32.gmra.mxu0 %v38
  %v369 = vpop.f32.mrf.mxu0
  %v370 = vadd.f32 0.0, %v369
  %371 = vmatmul.f32.gmra.mxu0 %v42
  %v372 = vpop.f32.mrf.mxu0
  %v373 = vadd.f32 0.0, %v372
  %374 = vmatmul.f32.gmra.mxu0 %v46
  %v375 = vpop.f32.mrf.mxu0
  %v376 = vadd.f32 0.0, %v375
  %377 = vmatmul.f32.gmra.mxu0 %v50
  %v378 = vpop.f32.mrf.mxu0
  %v379 = vadd.f32 0.0, %v378
  %380 = vmatmul.f32.gmra.mxu0 %v54
  %v381 = vpop.f32.mrf.mxu0
  %v382 = vadd.f32 0.0, %v381
  %383 = vmatmul.f32.gmra.mxu0 %v58
  %v384 = vpop.f32.mrf.mxu0
  %v385 = vadd.f32 0.0, %v384
  %386 = vmatmul.f32.gmra.mxu0 %v62
  %v387 = vpop.f32.mrf.mxu0
  %v388 = vadd.f32 0.0, %v387
  %389 = vmatmul.f32.gmra.mxu0 %v66
  %v390 = vpop.f32.mrf.mxu0
  %v391 = vadd.f32 0.0, %v390
  %392 = vmatmul.f32.gmra.mxu0 %v70
  %v393 = vpop.f32.mrf.mxu0
  %v394 = vadd.f32 0.0, %v393
  %395 = vmatmul.f32.gmra.mxu0 %v74
  %v396 = vpop.f32.mrf.mxu0
  %v397 = vadd.f32 0.0, %v396
  %398 = vmatmul.f32.gmra.mxu0 %v78
  %v399 = vpop.f32.mrf.mxu0
  %v400 = vadd.f32 0.0, %v399
  %401 = vmatmul.f32.gmra.mxu0 %v82
  %v402 = vpop.f32.mrf.mxu0
  %v403 = vadd.f32 0.0, %v402
  %404 = vmatmul.f32.gmra.mxu0 %v86
  %v405 = vpop.f32.mrf.mxu0
  %v406 = vadd.f32 0.0, %v405
  %407 = vmatmul.f32.gmra.mxu0 %v90
  %v408 = vpop.f32.mrf.mxu0
  %v409 = vadd.f32 0.0, %v408
  %410 = vmatmul.f32.gmra.mxu0 %v94
  %v411 = vpop.f32.mrf.mxu0
  %v412 = vadd.f32 0.0, %v411
  %413 = vmatmul.f32.gmra.mxu0 %v98
  %v414 = vpop.f32.mrf.mxu0
  %v415 = vadd.f32 0.0, %v414
  %416 = vmatmul.f32.gmra.mxu0 %v102
  %v417 = vpop.f32.mrf.mxu0
  %v418 = vadd.f32 0.0, %v417
  %419 = vmatmul.f32.gmra.mxu0 %v106
  %v420 = vpop.f32.mrf.mxu0
  %v421 = vadd.f32 0.0, %v420
  %422 = vmatmul.f32.gmra.mxu0 %v110
  %v423 = vpop.f32.mrf.mxu0
  %v424 = vadd.f32 0.0, %v423
  %425 = vmatmul.f32.gmra.mxu0 %v114
  %v426 = vpop.f32.mrf.mxu0
  %v427 = vadd.f32 0.0, %v426
  %428 = vmatmul.f32.gmra.mxu0 %v118
  %v429 = vpop.f32.mrf.mxu0
  %v430 = vadd.f32 0.0, %v429
  %431 = vmatmul.f32.gmra.mxu0 %v122
  %v432 = vpop.f32.mrf.mxu0
  %v433 = vadd.f32 0.0, %v432
  %434 = vmatmul.f32.gmra.mxu0 %v126
  %v435 = vpop.f32.mrf.mxu0
  %v436 = vadd.f32 0.0, %v435
  %437 = vmatmul.f32.gmra.mxu0 %v130
  %v438 = vpop.f32.mrf.mxu0
  %v439 = vadd.f32 0.0, %v438
  %440 = vmatmul.f32.gmra.mxu0 %v134
  %v441 = vpop.f32.mrf.mxu0
  %v442 = vadd.f32 0.0, %v441
  %443 = vmatmul.f32.gmra.mxu0 %v138
  %v444 = vpop.f32.mrf.mxu0
  %v445 = vadd.f32 0.0, %v444
  %446 = vmatmul.f32.gmra.mxu0 %v142
  %v447 = vpop.f32.mrf.mxu0
  %v448 = vadd.f32 0.0, %v447
  %449 = vmatmul.f32.gmra.mxu0 %v146
  %v450 = vpop.f32.mrf.mxu0
  %v451 = vadd.f32 0.0, %v450
  %452 = vmatmul.f32.gmra.mxu0 %v150
  %v453 = vpop.f32.mrf.mxu0
  %v454 = vadd.f32 0.0, %v453
  %455 = vmatmul.f32.gmra.mxu0 %v154
  %v456 = vpop.f32.mrf.mxu0
  %v457 = vadd.f32 0.0, %v456
  %458 = vmatmul.f32.gmra.mxu0 %v158
  %v459 = vpop.f32.mrf.mxu0
  %v460 = vadd.f32 0.0, %v459
  %461 = vmatmul.f32.gmra.mxu0 %v162
  %v462 = vpop.f32.mrf.mxu0
  %v463 = vadd.f32 0.0, %v462
  %464 = vmatmul.f32.gmra.mxu0 %v166
  %v465 = vpop.f32.mrf.mxu0
  %v466 = vadd.f32 0.0, %v465
  %467 = vmatmul.f32.gmra.mxu0 %v170
  %v468 = vpop.f32.mrf.mxu0
  %v469 = vadd.f32 0.0, %v468
  %470 = vmatmul.f32.gmra.mxu0 %v174
  %v471 = vpop.f32.mrf.mxu0
  %v472 = vadd.f32 0.0, %v471
  %473 = vmatmul.f32.gmra.mxu0 %v178
  %v474 = vpop.f32.mrf.mxu0
  %v475 = vadd.f32 0.0, %v474
  %476 = vmatmul.f32.gmra.mxu0 %v182
  %v477 = vpop.f32.mrf.mxu0
  %v478 = vadd.f32 0.0, %v477
  %479 = vmatmul.f32.gmra.mxu0 %v186
  %v480 = vpop.f32.mrf.mxu0
  %v481 = vadd.f32 0.0, %v480
  %482 = vmatmul.f32.gmra.mxu0 %v190
  %v483 = vpop.f32.mrf.mxu0
  %v484 = vadd.f32 0.0, %v483
  %485 = vmatmul.f32.gmra.mxu0 %v194
  %v486 = vpop.f32.mrf.mxu0
  %v487 = vadd.f32 0.0, %v486
  %488 = vmatmul.f32.gmra.mxu0 %v198
  %v489 = vpop.f32.mrf.mxu0
  %v490 = vadd.f32 0.0, %v489
  %491 = vmatmul.f32.gmra.mxu0 %v202
  %v492 = vpop.f32.mrf.mxu0
  %v493 = vadd.f32 0.0, %v492
  %494 = vmatmul.f32.gmra.mxu0 %v206
  %v495 = vpop.f32.mrf.mxu0
  %v496 = vadd.f32 0.0, %v495
  %497 = vmatmul.f32.gmra.mxu0 %v210
  %v498 = vpop.f32.mrf.mxu0
  %v499 = vadd.f32 0.0, %v498
  %500 = vmatmul.f32.gmra.mxu0 %v214
  %v501 = vpop.f32.mrf.mxu0
  %v502 = vadd.f32 0.0, %v501
  %503 = vmatmul.f32.gmra.mxu0 %v218
  %v504 = vpop.f32.mrf.mxu0
  %v505 = vadd.f32 0.0, %v504
  %506 = vmatmul.f32.gmra.mxu0 %v222
  %v507 = vpop.f32.mrf.mxu0
  %v508 = vadd.f32 0.0, %v507
  %509 = vmatmul.f32.gmra.mxu0 %v226
  %v510 = vpop.f32.mrf.mxu0
  %v511 = vadd.f32 0.0, %v510
  %512 = vmatmul.f32.gmra.mxu0 %v230
  %v513 = vpop.f32.mrf.mxu0
  %v514 = vadd.f32 0.0, %v513
  %515 = vmatmul.f32.gmra.mxu0 %v234
  %v516 = vpop.f32.mrf.mxu0
  %v517 = vadd.f32 0.0, %v516
  %518 = vmatmul.f32.gmra.mxu0 %v238
  %v519 = vpop.f32.mrf.mxu0
  %v520 = vadd.f32 0.0, %v519
  %521 = vmatmul.f32.gmra.mxu0 %v242
  %v522 = vpop.f32.mrf.mxu0
  %v523 = vadd.f32 0.0, %v522
  %524 = vmatmul.f32.gmra.mxu0 %v246
  %v525 = vpop.f32.mrf.mxu0
  %v526 = vadd.f32 0.0, %v525
  %527 = vmatmul.f32.gmra.mxu0 %v250
  %v528 = vpop.f32.mrf.mxu0
  %v529 = vadd.f32 0.0, %v528
  %530 = vmatmul.f32.gmra.mxu0 %v254
  %v531 = vpop.f32.mrf.mxu0
  %v532 = vadd.f32 0.0, %v531
  %533 = vmatmul.f32.gmra.mxu0 %v258
  %v534 = vpop.f32.mrf.mxu0
  %v535 = vadd.f32 0.0, %v534
  %536 = vmatmul.f32.gmra.mxu0 %v262
  %v537 = vpop.f32.mrf.mxu0
  %v538 = vadd.f32 0.0, %v537
  %539 = vmatmul.f32.gmra.mxu0 %v266
  %v540 = vpop.f32.mrf.mxu0
  %v541 = vadd.f32 0.0, %v540
  %542 = vdwg.mxu0
  %543 = vmatpush.msra.mxu0 %v301
  %544 = vmatpush.msra.mxu0 %v300
  %545 = vmatpush.msra.mxu0 %v299
  %546 = vmatpush.msra.mxu0 %v298
  %547 = vmatpush.msra.mxu0 %v297
  %548 = vmatpush.msra.mxu0 %v296
  %549 = vmatpush.msra.mxu0 %v295
  %550 = vmatpush.msra.mxu0 %v294
  %551 = vmatpush.msra.mxu0 %v293
  %552 = vmatpush.msra.mxu0 %v292
  %553 = vmatpush.msra.mxu0 %v291
  %554 = vmatpush.msra.mxu0 %v290
  %555 = vmatpush.msra.mxu0 %v289
  %556 = vmatpush.msra.mxu0 %v288
  %557 = vmatpush.msra.mxu0 %v287
  %558 = vmatpush.msra.mxu0 %v286
  %559 = vmatmul.f32.gmra.mxu0 %v15
  %v560 = vpop.f32.mrf.mxu0
  %v561 = vadd.f32 %v352, %v560
  %562 = vmatmul.f32.gmra.mxu0 %v19
  %v563 = vpop.f32.mrf.mxu0
  %v564 = vadd.f32 %v355, %v563
  %565 = vmatmul.f32.gmra.mxu0 %v23
  %v566 = vpop.f32.mrf.mxu0
  %v567 = vadd.f32 %v358, %v566
  %568 = vmatmul.f32.gmra.mxu0 %v27
  %v569 = vpop.f32.mrf.mxu0
  %v570 = vadd.f32 %v361, %v569
  %571 = vmatmul.f32.gmra.mxu0 %v31
  %v572 = vpop.f32.mrf.mxu0
  %v573 = vadd.f32 %v364, %v572
  %574 = vmatmul.f32.gmra.mxu0 %v35
  %v575 = vpop.f32.mrf.mxu0
  %v576 = vadd.f32 %v367, %v575
  %577 = vmatmul.f32.gmra.mxu0 %v39
  %v578 = vpop.f32.mrf.mxu0
  %v579 = vadd.f32 %v370, %v578
  %580 = vmatmul.f32.gmra.mxu0 %v43
  %v581 = vpop.f32.mrf.mxu0
  %v582 = vadd.f32 %v373, %v581
  %583 = vmatmul.f32.gmra.mxu0 %v47
  %v584 = vpop.f32.mrf.mxu0
  %v585 = vadd.f32 %v376, %v584
  %586 = vmatmul.f32.gmra.mxu0 %v51
  %v587 = vpop.f32.mrf.mxu0
  %v588 = vadd.f32 %v379, %v587
  %589 = vmatmul.f32.gmra.mxu0 %v55
  %v590 = vpop.f32.mrf.mxu0
  %v591 = vadd.f32 %v382, %v590
  %592 = vmatmul.f32.gmra.mxu0 %v59
  %v593 = vpop.f32.mrf.mxu0
  %v594 = vadd.f32 %v385, %v593
  %595 = vmatmul.f32.gmra.mxu0 %v63
  %v596 = vpop.f32.mrf.mxu0
  %v597 = vadd.f32 %v388, %v596
  %598 = vmatmul.f32.gmra.mxu0 %v67
  %v599 = vpop.f32.mrf.mxu0
  %v600 = vadd.f32 %v391, %v599
  %601 = vmatmul.f32.gmra.mxu0 %v71
  %v602 = vpop.f32.mrf.mxu0
  %v603 = vadd.f32 %v394, %v602
  %604 = vmatmul.f32.gmra.mxu0 %v75
  %v605 = vpop.f32.mrf.mxu0
  %v606 = vadd.f32 %v397, %v605
  %607 = vmatmul.f32.gmra.mxu0 %v79
  %v608 = vpop.f32.mrf.mxu0
  %v609 = vadd.f32 %v400, %v608
  %610 = vmatmul.f32.gmra.mxu0 %v83
  %v611 = vpop.f32.mrf.mxu0
  %v612 = vadd.f32 %v403, %v611
  %613 = vmatmul.f32.gmra.mxu0 %v87
  %v614 = vpop.f32.mrf.mxu0
  %v615 = vadd.f32 %v406, %v614
  %616 = vmatmul.f32.gmra.mxu0 %v91
  %v617 = vpop.f32.mrf.mxu0
  %v618 = vadd.f32 %v409, %v617
  %619 = vmatmul.f32.gmra.mxu0 %v95
  %v620 = vpop.f32.mrf.mxu0
  %v621 = vadd.f32 %v412, %v620
  %622 = vmatmul.f32.gmra.mxu0 %v99
  %v623 = vpop.f32.mrf.mxu0
  %v624 = vadd.f32 %v415, %v623
  %625 = vmatmul.f32.gmra.mxu0 %v103
  %v626 = vpop.f32.mrf.mxu0
  %v627 = vadd.f32 %v418, %v626
  %628 = vmatmul.f32.gmra.mxu0 %v107
  %v629 = vpop.f32.mrf.mxu0
  %v630 = vadd.f32 %v421, %v629
  %631 = vmatmul.f32.gmra.mxu0 %v111
  %v632 = vpop.f32.mrf.mxu0
  %v633 = vadd.f32 %v424, %v632
  %634 = vmatmul.f32.gmra.mxu0 %v115
  %v635 = vpop.f32.mrf.mxu0
  %v636 = vadd.f32 %v427, %v635
  %637 = vmatmul.f32.gmra.mxu0 %v119
  %v638 = vpop.f32.mrf.mxu0
  %v639 = vadd.f32 %v430, %v638
  %640 = vmatmul.f32.gmra.mxu0 %v123
  %v641 = vpop.f32.mrf.mxu0
  %v642 = vadd.f32 %v433, %v641
  %643 = vmatmul.f32.gmra.mxu0 %v127
  %v644 = vpop.f32.mrf.mxu0
  %v645 = vadd.f32 %v436, %v644
  %646 = vmatmul.f32.gmra.mxu0 %v131
  %v647 = vpop.f32.mrf.mxu0
  %v648 = vadd.f32 %v439, %v647
  %649 = vmatmul.f32.gmra.mxu0 %v135
  %v650 = vpop.f32.mrf.mxu0
  %v651 = vadd.f32 %v442, %v650
  %652 = vmatmul.f32.gmra.mxu0 %v139
  %v653 = vpop.f32.mrf.mxu0
  %v654 = vadd.f32 %v445, %v653
  %655 = vmatmul.f32.gmra.mxu0 %v143
  %v656 = vpop.f32.mrf.mxu0
  %v657 = vadd.f32 %v448, %v656
  %658 = vmatmul.f32.gmra.mxu0 %v147
  %v659 = vpop.f32.mrf.mxu0
  %v660 = vadd.f32 %v451, %v659
  %661 = vmatmul.f32.gmra.mxu0 %v151
  %v662 = vpop.f32.mrf.mxu0
  %v663 = vadd.f32 %v454, %v662
  %664 = vmatmul.f32.gmra.mxu0 %v155
  %v665 = vpop.f32.mrf.mxu0
  %v666 = vadd.f32 %v457, %v665
  %667 = vmatmul.f32.gmra.mxu0 %v159
  %v668 = vpop.f32.mrf.mxu0
  %v669 = vadd.f32 %v460, %v668
  %670 = vmatmul.f32.gmra.mxu0 %v163
  %v671 = vpop.f32.mrf.mxu0
  %v672 = vadd.f32 %v463, %v671
  %673 = vmatmul.f32.gmra.mxu0 %v167
  %v674 = vpop.f32.mrf.mxu0
  %v675 = vadd.f32 %v466, %v674
  %676 = vmatmul.f32.gmra.mxu0 %v171
  %v677 = vpop.f32.mrf.mxu0
  %v678 = vadd.f32 %v469, %v677
  %679 = vmatmul.f32.gmra.mxu0 %v175
  %v680 = vpop.f32.mrf.mxu0
  %v681 = vadd.f32 %v472, %v680
  %682 = vmatmul.f32.gmra.mxu0 %v179
  %v683 = vpop.f32.mrf.mxu0
  %v684 = vadd.f32 %v475, %v683
  %685 = vmatmul.f32.gmra.mxu0 %v183
  %v686 = vpop.f32.mrf.mxu0
  %v687 = vadd.f32 %v478, %v686
  %688 = vmatmul.f32.gmra.mxu0 %v187
  %v689 = vpop.f32.mrf.mxu0
  %v690 = vadd.f32 %v481, %v689
  %691 = vmatmul.f32.gmra.mxu0 %v191
  %v692 = vpop.f32.mrf.mxu0
  %v693 = vadd.f32 %v484, %v692
  %694 = vmatmul.f32.gmra.mxu0 %v195
  %v695 = vpop.f32.mrf.mxu0
  %v696 = vadd.f32 %v487, %v695
  %697 = vmatmul.f32.gmra.mxu0 %v199
  %v698 = vpop.f32.mrf.mxu0
  %v699 = vadd.f32 %v490, %v698
  %700 = vmatmul.f32.gmra.mxu0 %v203
  %v701 = vpop.f32.mrf.mxu0
  %v702 = vadd.f32 %v493, %v701
  %703 = vmatmul.f32.gmra.mxu0 %v207
  %v704 = vpop.f32.mrf.mxu0
  %v705 = vadd.f32 %v496, %v704
  %706 = vmatmul.f32.gmra.mxu0 %v211
  %v707 = vpop.f32.mrf.mxu0
  %v708 = vadd.f32 %v499, %v707
  %709 = vmatmul.f32.gmra.mxu0 %v215
  %v710 = vpop.f32.mrf.mxu0
  %v711 = vadd.f32 %v502, %v710
  %712 = vmatmul.f32.gmra.mxu0 %v219
  %v713 = vpop.f32.mrf.mxu0
  %v714 = vadd.f32 %v505, %v713
  %715 = vmatmul.f32.gmra.mxu0 %v223
  %v716 = vpop.f32.mrf.mxu0
  %v717 = vadd.f32 %v508, %v716
  %718 = vmatmul.f32.gmra.mxu0 %v227
  %v719 = vpop.f32.mrf.mxu0
  %v720 = vadd.f32 %v511, %v719
  %721 = vmatmul.f32.gmra.mxu0 %v231
  %v722 = vpop.f32.mrf.mxu0
  %v723 = vadd.f32 %v514, %v722
  %724 = vmatmul.f32.gmra.mxu0 %v235
  %v725 = vpop.f32.mrf.mxu0
  %v726 = vadd.f32 %v517, %v725
  %727 = vmatmul.f32.gmra.mxu0 %v239
  %v728 = vpop.f32.mrf.mxu0
  %v729 = vadd.f32 %v520, %v728
  %730 = vmatmul.f32.gmra.mxu0 %v243
  %v731 = vpop.f32.mrf.mxu0
  %v732 = vadd.f32 %v523, %v731
  %733 = vmatmul.f32.gmra.mxu0 %v247
  %v734 = vpop.f32.mrf.mxu0
  %v735 = vadd.f32 %v526, %v734
  %736 = vmatmul.f32.gmra.mxu0 %v251
  %v737 = vpop.f32.mrf.mxu0
  %v738 = vadd.f32 %v529, %v737
  %739 = vmatmul.f32.gmra.mxu0 %v255
  %v740 = vpop.f32.mrf.mxu0
  %v741 = vadd.f32 %v532, %v740
  %742 = vmatmul.f32.gmra.mxu0 %v259
  %v743 = vpop.f32.mrf.mxu0
  %v744 = vadd.f32 %v535, %v743
  %745 = vmatmul.f32.gmra.mxu0 %v263
  %v746 = vpop.f32.mrf.mxu0
  %v747 = vadd.f32 %v538, %v746
  %748 = vmatmul.f32.gmra.mxu0 %v267
  %v749 = vpop.f32.mrf.mxu0
  %v750 = vadd.f32 %v541, %v749
  %751 = vdwg.mxu0
  %752 = vmatpush.msra.mxu0 %v317
  %753 = vmatpush.msra.mxu0 %v316
  %754 = vmatpush.msra.mxu0 %v315
  %755 = vmatpush.msra.mxu0 %v314
  %756 = vmatpush.msra.mxu0 %v313
  %757 = vmatpush.msra.mxu0 %v312
  %758 = vmatpush.msra.mxu0 %v311
  %759 = vmatpush.msra.mxu0 %v310
  %760 = vmatpush.msra.mxu0 %v309
  %761 = vmatpush.msra.mxu0 %v308
  %762 = vmatpush.msra.mxu0 %v307
  %763 = vmatpush.msra.mxu0 %v306
  %764 = vmatpush.msra.mxu0 %v305
  %765 = vmatpush.msra.mxu0 %v304
  %766 = vmatpush.msra.mxu0 %v303
  %767 = vmatpush.msra.mxu0 %v302
  %768 = vmatmul.f32.gmra.mxu0 %v16
  %v769 = vpop.f32.mrf.mxu0
  %v770 = vadd.f32 %v561, %v769
  %771 = vmatmul.f32.gmra.mxu0 %v20
  %v772 = vpop.f32.mrf.mxu0
  %v773 = vadd.f32 %v564, %v772
  %774 = vmatmul.f32.gmra.mxu0 %v24
  %v775 = vpop.f32.mrf.mxu0
  %v776 = vadd.f32 %v567, %v775
  %777 = vmatmul.f32.gmra.mxu0 %v28
  %v778 = vpop.f32.mrf.mxu0
  %v779 = vadd.f32 %v570, %v778
  %780 = vmatmul.f32.gmra.mxu0 %v32
  %v781 = vpop.f32.mrf.mxu0
  %v782 = vadd.f32 %v573, %v781
  %783 = vmatmul.f32.gmra.mxu0 %v36
  %v784 = vpop.f32.mrf.mxu0
  %v785 = vadd.f32 %v576, %v784
  %786 = vmatmul.f32.gmra.mxu0 %v40
  %v787 = vpop.f32.mrf.mxu0
  %v788 = vadd.f32 %v579, %v787
  %789 = vmatmul.f32.gmra.mxu0 %v44
  %v790 = vpop.f32.mrf.mxu0
  %v791 = vadd.f32 %v582, %v790
  %792 = vmatmul.f32.gmra.mxu0 %v48
  %v793 = vpop.f32.mrf.mxu0
  %v794 = vadd.f32 %v585, %v793
  %795 = vmatmul.f32.gmra.mxu0 %v52
  %v796 = vpop.f32.mrf.mxu0
  %v797 = vadd.f32 %v588, %v796
  %798 = vmatmul.f32.gmra.mxu0 %v56
  %v799 = vpop.f32.mrf.mxu0
  %v800 = vadd.f32 %v591, %v799
  %801 = vmatmul.f32.gmra.mxu0 %v60
  %v802 = vpop.f32.mrf.mxu0
  %v803 = vadd.f32 %v594, %v802
  %804 = vmatmul.f32.gmra.mxu0 %v64
  %v805 = vpop.f32.mrf.mxu0
  %v806 = vadd.f32 %v597, %v805
  %807 = vmatmul.f32.gmra.mxu0 %v68
  %v808 = vpop.f32.mrf.mxu0
  %v809 = vadd.f32 %v600, %v808
  %810 = vmatmul.f32.gmra.mxu0 %v72
  %v811 = vpop.f32.mrf.mxu0
  %v812 = vadd.f32 %v603, %v811
  %813 = vmatmul.f32.gmra.mxu0 %v76
  %v814 = vpop.f32.mrf.mxu0
  %v815 = vadd.f32 %v606, %v814
  %816 = vmatmul.f32.gmra.mxu0 %v80
  %v817 = vpop.f32.mrf.mxu0
  %v818 = vadd.f32 %v609, %v817
  %819 = vmatmul.f32.gmra.mxu0 %v84
  %v820 = vpop.f32.mrf.mxu0
  %v821 = vadd.f32 %v612, %v820
  %822 = vmatmul.f32.gmra.mxu0 %v88
  %v823 = vpop.f32.mrf.mxu0
  %v824 = vadd.f32 %v615, %v823
  %825 = vmatmul.f32.gmra.mxu0 %v92
  %v826 = vpop.f32.mrf.mxu0
  %v827 = vadd.f32 %v618, %v826
  %828 = vmatmul.f32.gmra.mxu0 %v96
  %v829 = vpop.f32.mrf.mxu0
  %v830 = vadd.f32 %v621, %v829
  %831 = vmatmul.f32.gmra.mxu0 %v100
  %v832 = vpop.f32.mrf.mxu0
  %v833 = vadd.f32 %v624, %v832
  %834 = vmatmul.f32.gmra.mxu0 %v104
  %v835 = vpop.f32.mrf.mxu0
  %v836 = vadd.f32 %v627, %v835
  %837 = vmatmul.f32.gmra.mxu0 %v108
  %v838 = vpop.f32.mrf.mxu0
  %v839 = vadd.f32 %v630, %v838
  %840 = vmatmul.f32.gmra.mxu0 %v112
  %v841 = vpop.f32.mrf.mxu0
  %v842 = vadd.f32 %v633, %v841
  %843 = vmatmul.f32.gmra.mxu0 %v116
  %v844 = vpop.f32.mrf.mxu0
  %v845 = vadd.f32 %v636, %v844
  %846 = vmatmul.f32.gmra.mxu0 %v120
  %v847 = vpop.f32.mrf.mxu0
  %v848 = vadd.f32 %v639, %v847
  %849 = vmatmul.f32.gmra.mxu0 %v124
  %v850 = vpop.f32.mrf.mxu0
  %v851 = vadd.f32 %v642, %v850
  %852 = vmatmul.f32.gmra.mxu0 %v128
  %v853 = vpop.f32.mrf.mxu0
  %v854 = vadd.f32 %v645, %v853
  %855 = vmatmul.f32.gmra.mxu0 %v132
  %v856 = vpop.f32.mrf.mxu0
  %v857 = vadd.f32 %v648, %v856
  %858 = vmatmul.f32.gmra.mxu0 %v136
  %v859 = vpop.f32.mrf.mxu0
  %v860 = vadd.f32 %v651, %v859
  %861 = vmatmul.f32.gmra.mxu0 %v140
  %v862 = vpop.f32.mrf.mxu0
  %v863 = vadd.f32 %v654, %v862
  %864 = vmatmul.f32.gmra.mxu0 %v144
  %v865 = vpop.f32.mrf.mxu0
  %v866 = vadd.f32 %v657, %v865
  %867 = vmatmul.f32.gmra.mxu0 %v148
  %v868 = vpop.f32.mrf.mxu0
  %v869 = vadd.f32 %v660, %v868
  %870 = vmatmul.f32.gmra.mxu0 %v152
  %v871 = vpop.f32.mrf.mxu0
  %v872 = vadd.f32 %v663, %v871
  %873 = vmatmul.f32.gmra.mxu0 %v156
  %v874 = vpop.f32.mrf.mxu0
  %v875 = vadd.f32 %v666, %v874
  %876 = vmatmul.f32.gmra.mxu0 %v160
  %v877 = vpop.f32.mrf.mxu0
  %v878 = vadd.f32 %v669, %v877
  %879 = vmatmul.f32.gmra.mxu0 %v164
  %v880 = vpop.f32.mrf.mxu0
  %v881 = vadd.f32 %v672, %v880
  %882 = vmatmul.f32.gmra.mxu0 %v168
  %v883 = vpop.f32.mrf.mxu0
  %v884 = vadd.f32 %v675, %v883
  %885 = vmatmul.f32.gmra.mxu0 %v172
  %v886 = vpop.f32.mrf.mxu0
  %v887 = vadd.f32 %v678, %v886
  %888 = vmatmul.f32.gmra.mxu0 %v176
  %v889 = vpop.f32.mrf.mxu0
  %v890 = vadd.f32 %v681, %v889
  %891 = vmatmul.f32.gmra.mxu0 %v180
  %v892 = vpop.f32.mrf.mxu0
  %v893 = vadd.f32 %v684, %v892
  %894 = vmatmul.f32.gmra.mxu0 %v184
  %v895 = vpop.f32.mrf.mxu0
  %v896 = vadd.f32 %v687, %v895
  %897 = vmatmul.f32.gmra.mxu0 %v188
  %v898 = vpop.f32.mrf.mxu0
  %v899 = vadd.f32 %v690, %v898
  %900 = vmatmul.f32.gmra.mxu0 %v192
  %v901 = vpop.f32.mrf.mxu0
  %v902 = vadd.f32 %v693, %v901
  %903 = vmatmul.f32.gmra.mxu0 %v196
  %v904 = vpop.f32.mrf.mxu0
  %v905 = vadd.f32 %v696, %v904
  %906 = vmatmul.f32.gmra.mxu0 %v200
  %v907 = vpop.f32.mrf.mxu0
  %v908 = vadd.f32 %v699, %v907
  %909 = vmatmul.f32.gmra.mxu0 %v204
  %v910 = vpop.f32.mrf.mxu0
  %v911 = vadd.f32 %v702, %v910
  %912 = vmatmul.f32.gmra.mxu0 %v208
  %v913 = vpop.f32.mrf.mxu0
  %v914 = vadd.f32 %v705, %v913
  %915 = vmatmul.f32.gmra.mxu0 %v212
  %v916 = vpop.f32.mrf.mxu0
  %v917 = vadd.f32 %v708, %v916
  %918 = vmatmul.f32.gmra.mxu0 %v216
  %v919 = vpop.f32.mrf.mxu0
  %v920 = vadd.f32 %v711, %v919
  %921 = vmatmul.f32.gmra.mxu0 %v220
  %v922 = vpop.f32.mrf.mxu0
  %v923 = vadd.f32 %v714, %v922
  %924 = vmatmul.f32.gmra.mxu0 %v224
  %v925 = vpop.f32.mrf.mxu0
  %v926 = vadd.f32 %v717, %v925
  %927 = vmatmul.f32.gmra.mxu0 %v228
  %v928 = vpop.f32.mrf.mxu0
  %v929 = vadd.f32 %v720, %v928
  %930 = vmatmul.f32.gmra.mxu0 %v232
  %v931 = vpop.f32.mrf.mxu0
  %v932 = vadd.f32 %v723, %v931
  %933 = vmatmul.f32.gmra.mxu0 %v236
  %v934 = vpop.f32.mrf.mxu0
  %v935 = vadd.f32 %v726, %v934
  %936 = vmatmul.f32.gmra.mxu0 %v240
  %v937 = vpop.f32.mrf.mxu0
  %v938 = vadd.f32 %v729, %v937
  %939 = vmatmul.f32.gmra.mxu0 %v244
  %v940 = vpop.f32.mrf.mxu0
  %v941 = vadd.f32 %v732, %v940
  %942 = vmatmul.f32.gmra.mxu0 %v248
  %v943 = vpop.f32.mrf.mxu0
  %v944 = vadd.f32 %v735, %v943
  %945 = vmatmul.f32.gmra.mxu0 %v252
  %v946 = vpop.f32.mrf.mxu0
  %v947 = vadd.f32 %v738, %v946
  %948 = vmatmul.f32.gmra.mxu0 %v256
  %v949 = vpop.f32.mrf.mxu0
  %v950 = vadd.f32 %v741, %v949
  %951 = vmatmul.f32.gmra.mxu0 %v260
  %v952 = vpop.f32.mrf.mxu0
  %v953 = vadd.f32 %v744, %v952
  %954 = vmatmul.f32.gmra.mxu0 %v264
  %v955 = vpop.f32.mrf.mxu0
  %v956 = vadd.f32 %v747, %v955
  %957 = vmatmul.f32.gmra.mxu0 %v268
  %v958 = vpop.f32.mrf.mxu0
  %v959 = vadd.f32 %v750, %v958
  %960 = vdwg.mxu0
  %961 = vmatpush.msra.mxu0 %v333
  %962 = vmatpush.msra.mxu0 %v332
  %963 = vmatpush.msra.mxu0 %v331
  %964 = vmatpush.msra.mxu0 %v330
  %965 = vmatpush.msra.mxu0 %v329
  %966 = vmatpush.msra.mxu0 %v328
  %967 = vmatpush.msra.mxu0 %v327
  %968 = vmatpush.msra.mxu0 %v326
  %969 = vmatpush.msra.mxu0 %v325
  %970 = vmatpush.msra.mxu0 %v324
  %971 = vmatpush.msra.mxu0 %v323
  %972 = vmatpush.msra.mxu0 %v322
  %973 = vmatpush.msra.mxu0 %v321
  %974 = vmatpush.msra.mxu0 %v320
  %975 = vmatpush.msra.mxu0 %v319
  %976 = vmatpush.msra.mxu0 %v318
  %977 = vmatmul.f32.gmra.mxu0 %v17
  %v978 = vpop.f32.mrf.mxu0
  %v979 = vadd.f32 %v770, %v978
  %980 = vmatmul.f32.gmra.mxu0 %v21
  %v981 = vpop.f32.mrf.mxu0
  %v982 = vadd.f32 %v773, %v981
  %983 = vmatmul.f32.gmra.mxu0 %v25
  %v984 = vpop.f32.mrf.mxu0
  %v985 = vadd.f32 %v776, %v984
  %986 = vmatmul.f32.gmra.mxu0 %v29
  %v987 = vpop.f32.mrf.mxu0
  %v988 = vadd.f32 %v779, %v987
  %989 = vmatmul.f32.gmra.mxu0 %v33
  %v990 = vpop.f32.mrf.mxu0
  %v991 = vadd.f32 %v782, %v990
  %992 = vmatmul.f32.gmra.mxu0 %v37
  %v993 = vpop.f32.mrf.mxu0
  %v994 = vadd.f32 %v785, %v993
  %995 = vmatmul.f32.gmra.mxu0 %v41
  %v996 = vpop.f32.mrf.mxu0
  %v997 = vadd.f32 %v788, %v996
  %998 = vmatmul.f32.gmra.mxu0 %v45
  %v999 = vpop.f32.mrf.mxu0
  %v1000 = vadd.f32 %v791, %v999
  %1001 = vmatmul.f32.gmra.mxu0 %v49
  %v1002 = vpop.f32.mrf.mxu0
  %v1003 = vadd.f32 %v794, %v1002
  %1004 = vmatmul.f32.gmra.mxu0 %v53
  %v1005 = vpop.f32.mrf.mxu0
  %v1006 = vadd.f32 %v797, %v1005
  %1007 = vmatmul.f32.gmra.mxu0 %v57
  %v1008 = vpop.f32.mrf.mxu0
  %v1009 = vadd.f32 %v800, %v1008
  %1010 = vmatmul.f32.gmra.mxu0 %v61
  %v1011 = vpop.f32.mrf.mxu0
  %v1012 = vadd.f32 %v803, %v1011
  %1013 = vmatmul.f32.gmra.mxu0 %v65
  %v1014 = vpop.f32.mrf.mxu0
  %v1015 = vadd.f32 %v806, %v1014
  %1016 = vmatmul.f32.gmra.mxu0 %v69
  %v1017 = vpop.f32.mrf.mxu0
  %v1018 = vadd.f32 %v809, %v1017
  %1019 = vmatmul.f32.gmra.mxu0 %v73
  %v1020 = vpop.f32.mrf.mxu0
  %v1021 = vadd.f32 %v812, %v1020
  %1022 = vmatmul.f32.gmra.mxu0 %v77
  %v1023 = vpop.f32.mrf.mxu0
  %v1024 = vadd.f32 %v815, %v1023
  %1025 = vmatmul.f32.gmra.mxu0 %v81
  %v1026 = vpop.f32.mrf.mxu0
  %v1027 = vadd.f32 %v818, %v1026
  %1028 = vmatmul.f32.gmra.mxu0 %v85
  %v1029 = vpop.f32.mrf.mxu0
  %v1030 = vadd.f32 %v821, %v1029
  %1031 = vmatmul.f32.gmra.mxu0 %v89
  %v1032 = vpop.f32.mrf.mxu0
  %v1033 = vadd.f32 %v824, %v1032
  %1034 = vmatmul.f32.gmra.mxu0 %v93
  %v1035 = vpop.f32.mrf.mxu0
  %v1036 = vadd.f32 %v827, %v1035
  %1037 = vmatmul.f32.gmra.mxu0 %v97
  %v1038 = vpop.f32.mrf.mxu0
  %v1039 = vadd.f32 %v830, %v1038
  %1040 = vmatmul.f32.gmra.mxu0 %v101
  %v1041 = vpop.f32.mrf.mxu0
  %v1042 = vadd.f32 %v833, %v1041
  %1043 = vmatmul.f32.gmra.mxu0 %v105
  %v1044 = vpop.f32.mrf.mxu0
  %v1045 = vadd.f32 %v836, %v1044
  %1046 = vmatmul.f32.gmra.mxu0 %v109
  %v1047 = vpop.f32.mrf.mxu0
  %v1048 = vadd.f32 %v839, %v1047
  %1049 = vmatmul.f32.gmra.mxu0 %v113
  %v1050 = vpop.f32.mrf.mxu0
  %v1051 = vadd.f32 %v842, %v1050
  %1052 = vmatmul.f32.gmra.mxu0 %v117
  %v1053 = vpop.f32.mrf.mxu0
  %v1054 = vadd.f32 %v845, %v1053
  %1055 = vmatmul.f32.gmra.mxu0 %v121
  %v1056 = vpop.f32.mrf.mxu0
  %v1057 = vadd.f32 %v848, %v1056
  %1058 = vmatmul.f32.gmra.mxu0 %v125
  %v1059 = vpop.f32.mrf.mxu0
  %v1060 = vadd.f32 %v851, %v1059
  %1061 = vmatmul.f32.gmra.mxu0 %v129
  %v1062 = vpop.f32.mrf.mxu0
  %v1063 = vadd.f32 %v854, %v1062
  %1064 = vmatmul.f32.gmra.mxu0 %v133
  %v1065 = vpop.f32.mrf.mxu0
  %v1066 = vadd.f32 %v857, %v1065
  %1067 = vmatmul.f32.gmra.mxu0 %v137
  %v1068 = vpop.f32.mrf.mxu0
  %v1069 = vadd.f32 %v860, %v1068
  %1070 = vmatmul.f32.gmra.mxu0 %v141
  %v1071 = vpop.f32.mrf.mxu0
  %v1072 = vadd.f32 %v863, %v1071
  %1073 = vmatmul.f32.gmra.mxu0 %v145
  %v1074 = vpop.f32.mrf.mxu0
  %v1075 = vadd.f32 %v866, %v1074
  %1076 = vmatmul.f32.gmra.mxu0 %v149
  %v1077 = vpop.f32.mrf.mxu0
  %v1078 = vadd.f32 %v869, %v1077
  %1079 = vmatmul.f32.gmra.mxu0 %v153
  %v1080 = vpop.f32.mrf.mxu0
  %v1081 = vadd.f32 %v872, %v1080
  %1082 = vmatmul.f32.gmra.mxu0 %v157
  %v1083 = vpop.f32.mrf.mxu0
  %v1084 = vadd.f32 %v875, %v1083
  %1085 = vmatmul.f32.gmra.mxu0 %v161
  %v1086 = vpop.f32.mrf.mxu0
  %v1087 = vadd.f32 %v878, %v1086
  %1088 = vmatmul.f32.gmra.mxu0 %v165
  %v1089 = vpop.f32.mrf.mxu0
  %v1090 = vadd.f32 %v881, %v1089
  %1091 = vmatmul.f32.gmra.mxu0 %v169
  %v1092 = vpop.f32.mrf.mxu0
  %v1093 = vadd.f32 %v884, %v1092
  %1094 = vmatmul.f32.gmra.mxu0 %v173
  %v1095 = vpop.f32.mrf.mxu0
  %v1096 = vadd.f32 %v887, %v1095
  %1097 = vmatmul.f32.gmra.mxu0 %v177
  %v1098 = vpop.f32.mrf.mxu0
  %v1099 = vadd.f32 %v890, %v1098
  %1100 = vmatmul.f32.gmra.mxu0 %v181
  %v1101 = vpop.f32.mrf.mxu0
  %v1102 = vadd.f32 %v893, %v1101
  %1103 = vmatmul.f32.gmra.mxu0 %v185
  %v1104 = vpop.f32.mrf.mxu0
  %v1105 = vadd.f32 %v896, %v1104
  %1106 = vmatmul.f32.gmra.mxu0 %v189
  %v1107 = vpop.f32.mrf.mxu0
  %v1108 = vadd.f32 %v899, %v1107
  %1109 = vmatmul.f32.gmra.mxu0 %v193
  %v1110 = vpop.f32.mrf.mxu0
  %v1111 = vadd.f32 %v902, %v1110
  %1112 = vmatmul.f32.gmra.mxu0 %v197
  %v1113 = vpop.f32.mrf.mxu0
  %v1114 = vadd.f32 %v905, %v1113
  %1115 = vmatmul.f32.gmra.mxu0 %v201
  %v1116 = vpop.f32.mrf.mxu0
  %v1117 = vadd.f32 %v908, %v1116
  %1118 = vmatmul.f32.gmra.mxu0 %v205
  %v1119 = vpop.f32.mrf.mxu0
  %v1120 = vadd.f32 %v911, %v1119
  %1121 = vmatmul.f32.gmra.mxu0 %v209
  %v1122 = vpop.f32.mrf.mxu0
  %v1123 = vadd.f32 %v914, %v1122
  %1124 = vmatmul.f32.gmra.mxu0 %v213
  %v1125 = vpop.f32.mrf.mxu0
  %v1126 = vadd.f32 %v917, %v1125
  %1127 = vmatmul.f32.gmra.mxu0 %v217
  %v1128 = vpop.f32.mrf.mxu0
  %v1129 = vadd.f32 %v920, %v1128
  %1130 = vmatmul.f32.gmra.mxu0 %v221
  %v1131 = vpop.f32.mrf.mxu0
  %v1132 = vadd.f32 %v923, %v1131
  %1133 = vmatmul.f32.gmra.mxu0 %v225
  %v1134 = vpop.f32.mrf.mxu0
  %v1135 = vadd.f32 %v926, %v1134
  %1136 = vmatmul.f32.gmra.mxu0 %v229
  %v1137 = vpop.f32.mrf.mxu0
  %v1138 = vadd.f32 %v929, %v1137
  %1139 = vmatmul.f32.gmra.mxu0 %v233
  %v1140 = vpop.f32.mrf.mxu0
  %v1141 = vadd.f32 %v932, %v1140
  %1142 = vmatmul.f32.gmra.mxu0 %v237
  %v1143 = vpop.f32.mrf.mxu0
  %v1144 = vadd.f32 %v935, %v1143
  %1145 = vmatmul.f32.gmra.mxu0 %v241
  %v1146 = vpop.f32.mrf.mxu0
  %v1147 = vadd.f32 %v938, %v1146
  %1148 = vmatmul.f32.gmra.mxu0 %v245
  %v1149 = vpop.f32.mrf.mxu0
  %v1150 = vadd.f32 %v941, %v1149
  %1151 = vmatmul.f32.gmra.mxu0 %v249
  %v1152 = vpop.f32.mrf.mxu0
  %v1153 = vadd.f32 %v944, %v1152
  %1154 = vmatmul.f32.gmra.mxu0 %v253
  %v1155 = vpop.f32.mrf.mxu0
  %v1156 = vadd.f32 %v947, %v1155
  %1157 = vmatmul.f32.gmra.mxu0 %v257
  %v1158 = vpop.f32.mrf.mxu0
  %v1159 = vadd.f32 %v950, %v1158
  %1160 = vmatmul.f32.gmra.mxu0 %v261
  %v1161 = vpop.f32.mrf.mxu0
  %v1162 = vadd.f32 %v953, %v1161
  %1163 = vmatmul.f32.gmra.mxu0 %v265
  %v1164 = vpop.f32.mrf.mxu0
  %v1165 = vadd.f32 %v956, %v1164
  %1166 = vmatmul.f32.gmra.mxu0 %v269
  %v1167 = vpop.f32.mrf.mxu0
  %v1168 = vadd.f32 %v959, %v1167
  %1169 = vdwg.mxu0
  %v1170 = vmax.f32 %v979, %v985
  %v1171 = vmax.f32 %v982, %v988
  %v1172 = vmax.f32 %v991, %v997
  %v1173 = vmax.f32 %v994, %v1000
  %v1174 = vmax.f32 %v1003, %v1009
  %v1175 = vmax.f32 %v1006, %v1012
  %v1176 = vmax.f32 %v1015, %v1021
  %v1177 = vmax.f32 %v1018, %v1024
  %v1178 = vmax.f32 %v1027, %v1033
  %v1179 = vmax.f32 %v1030, %v1036
  %v1180 = vmax.f32 %v1039, %v1045
  %v1181 = vmax.f32 %v1042, %v1048
  %v1182 = vmax.f32 %v1051, %v1057
  %v1183 = vmax.f32 %v1054, %v1060
  %v1184 = vmax.f32 %v1063, %v1069
  %v1185 = vmax.f32 %v1066, %v1072
  %v1186 = vmax.f32 %v1075, %v1081
  %v1187 = vmax.f32 %v1078, %v1084
  %v1188 = vmax.f32 %v1087, %v1093
  %v1189 = vmax.f32 %v1090, %v1096
  %v1190 = vmax.f32 %v1099, %v1105
  %v1191 = vmax.f32 %v1102, %v1108
  %v1192 = vmax.f32 %v1111, %v1117
  %v1193 = vmax.f32 %v1114, %v1120
  %v1194 = vmax.f32 %v1123, %v1129
  %v1195 = vmax.f32 %v1126, %v1132
  %v1196 = vmax.f32 %v1135, %v1141
  %v1197 = vmax.f32 %v1138, %v1144
  %v1198 = vmax.f32 %v1147, %v1153
  %v1199 = vmax.f32 %v1150, %v1156
  %v1200 = vmax.f32 %v1159, %v1165
  %v1201 = vmax.f32 %v1162, %v1168
  %vm1202 = vcmask 261120
  %1203 = vst.msk [vmem:[#allocation2] sm:$0xff] %vm1202, %v1170
  %1204 = vst.msk [vmem:[#allocation2 + $0x8] sm:$0xff] %vm1202, %v1171
  %1205 = vst.msk [vmem:[#allocation2 + $0x10] sm:$0xff] %vm1202, %v1172
  %1206 = vst.msk [vmem:[#allocation2 + $0x18] sm:$0xff] %vm1202, %v1173
  %1207 = vst.msk [vmem:[#allocation2 + $0x20] sm:$0xff] %vm1202, %v1174
  %1208 = vst.msk [vmem:[#allocation2 + $0x28] sm:$0xff] %vm1202, %v1175
  %1209 = vst.msk [vmem:[#allocation2 + $0x30] sm:$0xff] %vm1202, %v1176
  %1210 = vst.msk [vmem:[#allocation2 + $0x38] sm:$0xff] %vm1202, %v1177
  %1211 = vst.msk [vmem:[#allocation2 + $0x40] sm:$0xff] %vm1202, %v1178
  %1212 = vst.msk [vmem:[#allocation2 + $0x48] sm:$0xff] %vm1202, %v1179
  %1213 = vst.msk [vmem:[#allocation2 + $0x50] sm:$0xff] %vm1202, %v1180
  %1214 = vst.msk [vmem:[#allocation2 + $0x58] sm:$0xff] %vm1202, %v1181
  %1215 = vst.msk [vmem:[#allocation2 + $0x60] sm:$0xff] %vm1202, %v1182
  %1216 = vst.msk [vmem:[#allocation2 + $0x68] sm:$0xff] %vm1202, %v1183
  %1217 = vst.msk [vmem:[#allocation2 + $0x70] sm:$0xff] %vm1202, %v1184
  %1218 = vst.msk [vmem:[#allocation2 + $0x78] sm:$0xff] %vm1202, %v1185
  %1219 = vst.msk [vmem:[#allocation2 + $0x80] sm:$0xff] %vm1202, %v1186
  %1220 = vst.msk [vmem:[#allocation2 + $0x88] sm:$0xff] %vm1202, %v1187
  %1221 = vst.msk [vmem:[#allocation2 + $0x90] sm:$0xff] %vm1202, %v1188
  %1222 = vst.msk [vmem:[#allocation2 + $0x98] sm:$0xff] %vm1202, %v1189
  %1223 = vst.msk [vmem:[#allocation2 + $0xa0] sm:$0xff] %vm1202, %v1190
  %1224 = vst.msk [vmem:[#allocation2 + $0xa8] sm:$0xff] %vm1202, %v1191
  %1225 = vst.msk [vmem:[#allocation2 + $0xb0] sm:$0xff] %vm1202, %v1192
  %1226 = vst.msk [vmem:[#allocation2 + $0xb8] sm:$0xff] %vm1202, %v1193
  %1227 = vst.msk [vmem:[#allocation2 + $0xc0] sm:$0xff] %vm1202, %v1194
  %1228 = vst.msk [vmem:[#allocation2 + $0xc8] sm:$0xff] %vm1202, %v1195
  %1229 = vst.msk [vmem:[#allocation2 + $0xd0] sm:$0xff] %vm1202, %v1196
  %1230 = vst.msk [vmem:[#allocation2 + $0xd8] sm:$0xff] %vm1202, %v1197
  %1231 = vst.msk [vmem:[#allocation2 + $0xe0] sm:$0xff] %vm1202, %v1198
  %1232 = vst.msk [vmem:[#allocation2 + $0xe8] sm:$0xff] %vm1202, %v1199
  %1233 = vst.msk [vmem:[#allocation2 + $0xf0] sm:$0xff] %vm1202, %v1200
  %1234 = vst.msk [vmem:[#allocation2 + $0xf8] sm:$0xff] %vm1202, %v1201
  %v1235 = vld [vmem:[#allocation2] ss:$2 sm:$0xff]
  %s1236 = scalar_lea.vmem [#allocation2], 16
  %v1237 = vld [vmem:[%s1236] ss:$2 sm:$0xff]
  %s1238 = scalar_lea.vmem [#allocation2], 32
  %v1239 = vld [vmem:[%s1238] ss:$2 sm:$0xff]
  %s1240 = scalar_lea.vmem [#allocation2], 48
  %v1241 = vld [vmem:[%s1240] ss:$2 sm:$0xff]
  %s1242 = scalar_lea.vmem [#allocation2], 64
  %v1243 = vld [vmem:[%s1242] ss:$2 sm:$0xff]
  %s1244 = scalar_lea.vmem [#allocation2], 80
  %v1245 = vld [vmem:[%s1244] ss:$2 sm:$0xff]
  %s1246 = scalar_lea.vmem [#allocation2], 96
  %v1247 = vld [vmem:[%s1246] ss:$2 sm:$0xff]
  %s1248 = scalar_lea.vmem [#allocation2], 112
  %v1249 = vld [vmem:[%s1248] ss:$2 sm:$0xff]
  %s1250 = scalar_lea.vmem [#allocation2], 128
  %v1251 = vld [vmem:[%s1250] ss:$2 sm:$0xff]
  %s1252 = scalar_lea.vmem [#allocation2], 144
  %v1253 = vld [vmem:[%s1252] ss:$2 sm:$0xff]
  %s1254 = scalar_lea.vmem [#allocation2], 160
  %v1255 = vld [vmem:[%s1254] ss:$2 sm:$0xff]
  %s1256 = scalar_lea.vmem [#allocation2], 176
  %v1257 = vld [vmem:[%s1256] ss:$2 sm:$0xff]
  %s1258 = scalar_lea.vmem [#allocation2], 192
  %v1259 = vld [vmem:[%s1258] ss:$2 sm:$0xff]
  %s1260 = scalar_lea.vmem [#allocation2], 208
  %v1261 = vld [vmem:[%s1260] ss:$2 sm:$0xff]
  %s1262 = scalar_lea.vmem [#allocation2], 224
  %v1263 = vld [vmem:[%s1262] ss:$2 sm:$0xff]
  %s1264 = scalar_lea.vmem [#allocation2], 240
  %v1265 = vld [vmem:[%s1264] ss:$2 sm:$0xff]
  %s1266 = scalar_lea.vmem [#allocation2], 1
  %v1267 = vld [vmem:[%s1266] ss:$2 sm:$0xff]
  %s1268 = scalar_lea.vmem [#allocation2], 17
  %v1269 = vld [vmem:[%s1268] ss:$2 sm:$0xff]
  %s1270 = scalar_lea.vmem [#allocation2], 33
  %v1271 = vld [vmem:[%s1270] ss:$2 sm:$0xff]
  %s1272 = scalar_lea.vmem [#allocation2], 49
  %v1273 = vld [vmem:[%s1272] ss:$2 sm:$0xff]
  %s1274 = scalar_lea.vmem [#allocation2], 65
  %v1275 = vld [vmem:[%s1274] ss:$2 sm:$0xff]
  %s1276 = scalar_lea.vmem [#allocation2], 81
  %v1277 = vld [vmem:[%s1276] ss:$2 sm:$0xff]
  %s1278 = scalar_lea.vmem [#allocation2], 97
  %v1279 = vld [vmem:[%s1278] ss:$2 sm:$0xff]
  %s1280 = scalar_lea.vmem [#allocation2], 113
  %v1281 = vld [vmem:[%s1280] ss:$2 sm:$0xff]
  %s1282 = scalar_lea.vmem [#allocation2], 129
  %v1283 = vld [vmem:[%s1282] ss:$2 sm:$0xff]
  %s1284 = scalar_lea.vmem [#allocation2], 145
  %v1285 = vld [vmem:[%s1284] ss:$2 sm:$0xff]
  %s1286 = scalar_lea.vmem [#allocation2], 161
  %v1287 = vld [vmem:[%s1286] ss:$2 sm:$0xff]
  %s1288 = scalar_lea.vmem [#allocation2], 177
  %v1289 = vld [vmem:[%s1288] ss:$2 sm:$0xff]
  %s1290 = scalar_lea.vmem [#allocation2], 193
  %v1291 = vld [vmem:[%s1290] ss:$2 sm:$0xff]
  %s1292 = scalar_lea.vmem [#allocation2], 209
  %v1293 = vld [vmem:[%s1292] ss:$2 sm:$0xff]
  %s1294 = scalar_lea.vmem [#allocation2], 225
  %v1295 = vld [vmem:[%s1294] ss:$2 sm:$0xff]
  %s1296 = scalar_lea.vmem [#allocation2], 241
  %v1297 = vld [vmem:[%s1296] ss:$2 sm:$0xff]
  %v1298 = vmax.f32 %v1235, %v1267
  %v1299 = vmax.f32 %v1237, %v1269
  %v1300 = vmax.f32 %v1239, %v1271
  %v1301 = vmax.f32 %v1241, %v1273
  %v1302 = vmax.f32 %v1243, %v1275
  %v1303 = vmax.f32 %v1245, %v1277
  %v1304 = vmax.f32 %v1247, %v1279
  %v1305 = vmax.f32 %v1249, %v1281
  %v1306 = vmax.f32 %v1251, %v1283
  %v1307 = vmax.f32 %v1253, %v1285
  %v1308 = vmax.f32 %v1255, %v1287
  %v1309 = vmax.f32 %v1257, %v1289
  %v1310 = vmax.f32 %v1259, %v1291
  %v1311 = vmax.f32 %v1261, %v1293
  %v1312 = vmax.f32 %v1263, %v1295
  %v1313 = vmax.f32 %v1265, %v1297
  %v1314 = vld [vmem:[%s2] sm:$0x1]
  %v1316 = vperm.slane %v1314, 0
  %v1318 = vadd.f32 %v1298, %v1316
  %v1319 = vadd.f32 %v1299, %v1316
  %v1320 = vadd.f32 %v1300, %v1316
  %v1321 = vadd.f32 %v1301, %v1316
  %v1322 = vadd.f32 %v1302, %v1316
  %v1323 = vadd.f32 %v1303, %v1316
  %v1324 = vadd.f32 %v1304, %v1316
  %v1325 = vadd.f32 %v1305, %v1316
  %v1326 = vadd.f32 %v1306, %v1316
  %v1327 = vadd.f32 %v1307, %v1316
  %v1328 = vadd.f32 %v1308, %v1316
  %v1329 = vadd.f32 %v1309, %v1316
  %v1330 = vadd.f32 %v1310, %v1316
  %v1331 = vadd.f32 %v1311, %v1316
  %v1332 = vadd.f32 %v1312, %v1316
  %v1333 = vadd.f32 %v1313, %v1316
  %v1334 = vmax.f32 %v1318, 0.0
  %v1335 = vmax.f32 %v1319, 0.0
  %v1336 = vmax.f32 %v1320, 0.0
  %v1337 = vmax.f32 %v1321, 0.0
  %v1338 = vmax.f32 %v1322, 0.0
  %v1339 = vmax.f32 %v1323, 0.0
  %v1340 = vmax.f32 %v1324, 0.0
  %v1341 = vmax.f32 %v1325, 0.0
  %v1342 = vmax.f32 %v1326, 0.0
  %v1343 = vmax.f32 %v1327, 0.0
  %v1344 = vmax.f32 %v1328, 0.0
  %v1345 = vmax.f32 %v1329, 0.0
  %v1346 = vmax.f32 %v1330, 0.0
  %v1347 = vmax.f32 %v1331, 0.0
  %v1348 = vmax.f32 %v1332, 0.0
  %v1349 = vmax.f32 %v1333, 0.0
  %1350 = vst.msk [vmem:[%s3] sm:$0xff] %vm1202, %v1334
  %1351 = vst.msk [vmem:[%s3 + $0x8] sm:$0xff] %vm1202, %v1335
  %1352 = vst.msk [vmem:[%s3 + $0x10] sm:$0xff] %vm1202, %v1336
  %1353 = vst.msk [vmem:[%s3 + $0x18] sm:$0xff] %vm1202, %v1337
  %1354 = vst.msk [vmem:[%s3 + $0x20] sm:$0xff] %vm1202, %v1338
  %1355 = vst.msk [vmem:[%s3 + $0x28] sm:$0xff] %vm1202, %v1339
  %1356 = vst.msk [vmem:[%s3 + $0x30] sm:$0xff] %vm1202, %v1340
  %1357 = vst.msk [vmem:[%s3 + $0x38] sm:$0xff] %vm1202, %v1341
  %1358 = vst.msk [vmem:[%s3 + $0x40] sm:$0xff] %vm1202, %v1342
  %1359 = vst.msk [vmem:[%s3 + $0x48] sm:$0xff] %vm1202, %v1343
  %1360 = vst.msk [vmem:[%s3 + $0x50] sm:$0xff] %vm1202, %v1344
  %1361 = vst.msk [vmem:[%s3 + $0x58] sm:$0xff] %vm1202, %v1345
  %1362 = vst.msk [vmem:[%s3 + $0x60] sm:$0xff] %vm1202, %v1346
  %1363 = vst.msk [vmem:[%s3 + $0x68] sm:$0xff] %vm1202, %v1347
  %1364 = vst.msk [vmem:[%s3 + $0x70] sm:$0xff] %vm1202, %v1348
  %1365 = vst.msk [vmem:[%s3 + $0x78] sm:$0xff] %vm1202, %v1349
  // Predicated region
  $region14: #{baseline_forward.5} parent=0 // pred_check
    _
  $region15: #{baseline_forward.5} parent=0 // pred_check_branch
    %1367 = sbr.rel (0) target = $region17
  $region16: #{baseline_forward.5} parent=0 // pred_region
    _
  $region17: #{baseline_forward.5} parent=0 // pred_fallthru
    _
  // Predicated region
  $region18: #{baseline_forward.5} parent=0 // pred_check
    _
  $region19: #{baseline_forward.5} parent=0 // pred_check_branch
    %1369 = sbr.rel (0) target = $region21
  $region20: #{baseline_forward.5} parent=0 // pred_region
    _
  $region21: #{baseline_forward.5} parent=0 // pred_fallthru
    _

// kernel: baseline_forward.6
$region0: #{baseline_forward.6}
  #allocation0 [shape = 'u32[]', space=smem, size = 0x4, offset = 0x4, fixed_abs, tag = 'smem constant byte address 0x4 - core index']
  #allocation1 [shape = 'u32[72,128]{1,0:T(1,128)}', space=vmem, size = 0x9000, scoped, tag = 'internal scratch']
  #allocation2 [shape = 'f32[2,4,8,64]{3,2,1,0:T(8,128)}', space=vmem, size = 0x8000, scoped, tag = 'scratch operand']
  %s0 = inlined_call_operand.vmem [shape: f32[2,8,8,896], index: 0, kind: input, shape index: {}]
  %s1 = inlined_call_operand.vmem [shape: f32[896,64], index: 1, kind: input, shape index: {}]
  %s2 = inlined_call_operand.vmem [shape: f32[1,64], index: 2, kind: input, shape index: {}]
  %s3 = inlined_call_operand.vmem [shape: f32[2,4,4,64], index: 3, kind: output, shape index: {}]
  %s4 = sld [smem:[#allocation0]]
  $region22: #{baseline_forward.6} parent=0
    _
  %s6 = ssub.s32 1, %s4
  %s7 = scalar_select 0, %s6, %s4
  // Predicated region
  $region2: #{baseline_forward.6} parent=0 // pred_check
    _
  $region3: #{baseline_forward.6} parent=0 // pred_check_branch
    %9 = sbr.rel (0) target = $region5
  $region4: #{baseline_forward.6} parent=0 // pred_region
    _
  $region5: #{baseline_forward.6} parent=0 // pred_fallthru
    _
  // Predicated region
  $region6: #{baseline_forward.6} parent=0 // pred_check
    _
  $region7: #{baseline_forward.6} parent=0 // pred_check_branch
    %11 = sbr.rel (0) target = $region9
  $region8: #{baseline_forward.6} parent=0 // pred_region
    _
  $region9: #{baseline_forward.6} parent=0 // pred_fallthru
    _
  // Predicated region
  $region10: #{baseline_forward.6} parent=0 // pred_check
    _
  $region11: #{baseline_forward.6} parent=0 // pred_check_branch
    %13 = sbr.rel (0) target = $region13
  $region12: #{baseline_forward.6} parent=0 // pred_region
    _
  $region13: #{baseline_forward.6} parent=0 // pred_fallthru
    _
  %v14 = vld [vmem:[%s0] sm:$0xff]
  %v15 = vld [vmem:[%s0 + $0x8] sm:$0xff]
  %v16 = vld [vmem:[%s0 + $0x10] sm:$0xff]
  %v17 = vld [vmem:[%s0 + $0x18] sm:$0xff]
  %v18 = vld [vmem:[%s0 + $0x20] sm:$0xff]
  %v19 = vld [vmem:[%s0 + $0x28] sm:$0xff]
  %v20 = vld [vmem:[%s0 + $0x30] sm:$0xff]
  %v21 = vld [vmem:[%s0 + $0x38] sm:$0xff]
  %v22 = vld [vmem:[%s0 + $0x40] sm:$0xff]
  %v23 = vld [vmem:[%s0 + $0x48] sm:$0xff]
  %v24 = vld [vmem:[%s0 + $0x50] sm:$0xff]
  %v25 = vld [vmem:[%s0 + $0x58] sm:$0xff]
  %v26 = vld [vmem:[%s0 + $0x60] sm:$0xff]
  %v27 = vld [vmem:[%s0 + $0x68] sm:$0xff]
  %v28 = vld [vmem:[%s0 + $0x70] sm:$0xff]
  %v29 = vld [vmem:[%s0 + $0x78] sm:$0xff]
  %v30 = vld [vmem:[%s0 + $0x80] sm:$0xff]
  %v31 = vld [vmem:[%s0 + $0x88] sm:$0xff]
  %v32 = vld [vmem:[%s0 + $0x90] sm:$0xff]
  %v33 = vld [vmem:[%s0 + $0x98] sm:$0xff]
  %v34 = vld [vmem:[%s0 + $0xa0] sm:$0xff]
  %v35 = vld [vmem:[%s0 + $0xa8] sm:$0xff]
  %v36 = vld [vmem:[%s0 + $0xb0] sm:$0xff]
  %v37 = vld [vmem:[%s0 + $0xb8] sm:$0xff]
  %v38 = vld [vmem:[%s0 + $0xc0] sm:$0xff]
  %v39 = vld [vmem:[%s0 + $0xc8] sm:$0xff]
  %v40 = vld [vmem:[%s0 + $0xd0] sm:$0xff]
  %v41 = vld [vmem:[%s0 + $0xd8] sm:$0xff]
  %v42 = vld [vmem:[%s0 + $0xe0] sm:$0xff]
  %v43 = vld [vmem:[%s0 + $0xe8] sm:$0xff]
  %v44 = vld [vmem:[%s0 + $0xf0] sm:$0xff]
  %v45 = vld [vmem:[%s0 + $0xf8] sm:$0xff]
  %v46 = vld [vmem:[%s0 + $0x100] sm:$0xff]
  %v47 = vld [vmem:[%s0 + $0x108] sm:$0xff]
  %v48 = vld [vmem:[%s0 + $0x110] sm:$0xff]
  %v49 = vld [vmem:[%s0 + $0x118] sm:$0xff]
  %v50 = vld [vmem:[%s0 + $0x120] sm:$0xff]
  %v51 = vld [vmem:[%s0 + $0x128] sm:$0xff]
  %v52 = vld [vmem:[%s0 + $0x130] sm:$0xff]
  %v53 = vld [vmem:[%s0 + $0x138] sm:$0xff]
  %v54 = vld [vmem:[%s0 + $0x140] sm:$0xff]
  %v55 = vld [vmem:[%s0 + $0x148] sm:$0xff]
  %v56 = vld [vmem:[%s0 + $0x150] sm:$0xff]
  %v57 = vld [vmem:[%s0 + $0x158] sm:$0xff]
  %v58 = vld [vmem:[%s0 + $0x160] sm:$0xff]
  %v59 = vld [vmem:[%s0 + $0x168] sm:$0xff]
  %v60 = vld [vmem:[%s0 + $0x170] sm:$0xff]
  %v61 = vld [vmem:[%s0 + $0x178] sm:$0xff]
  %v62 = vld [vmem:[%s0 + $0x180] sm:$0xff]
  %v63 = vld [vmem:[%s0 + $0x188] sm:$0xff]
  %v64 = vld [vmem:[%s0 + $0x190] sm:$0xff]
  %v65 = vld [vmem:[%s0 + $0x198] sm:$0xff]
  %v66 = vld [vmem:[%s0 + $0x1a0] sm:$0xff]
  %v67 = vld [vmem:[%s0 + $0x1a8] sm:$0xff]
  %v68 = vld [vmem:[%s0 + $0x1b0] sm:$0xff]
  %v69 = vld [vmem:[%s0 + $0x1b8] sm:$0xff]
  %v70 = vld [vmem:[%s0 + $0x1c0] sm:$0xff]
  %v71 = vld [vmem:[%s0 + $0x1c8] sm:$0xff]
  %v72 = vld [vmem:[%s0 + $0x1d0] sm:$0xff]
  %v73 = vld [vmem:[%s0 + $0x1d8] sm:$0xff]
  %v74 = vld [vmem:[%s0 + $0x1e0] sm:$0xff]
  %v75 = vld [vmem:[%s0 + $0x1e8] sm:$0xff]
  %v76 = vld [vmem:[%s0 + $0x1f0] sm:$0xff]
  %v77 = vld [vmem:[%s0 + $0x1f8] sm:$0xff]
  %v78 = vld [vmem:[%s0 + $0x200] sm:$0xff]
  %v79 = vld [vmem:[%s0 + $0x208] sm:$0xff]
  %v80 = vld [vmem:[%s0 + $0x210] sm:$0xff]
  %v81 = vld [vmem:[%s0 + $0x218] sm:$0xff]
  %v82 = vld [vmem:[%s0 + $0x220] sm:$0xff]
  %v83 = vld [vmem:[%s0 + $0x228] sm:$0xff]
  %v84 = vld [vmem:[%s0 + $0x230] sm:$0xff]
  %v85 = vld [vmem:[%s0 + $0x238] sm:$0xff]
  %v86 = vld [vmem:[%s0 + $0x240] sm:$0xff]
  %v87 = vld [vmem:[%s0 + $0x248] sm:$0xff]
  %v88 = vld [vmem:[%s0 + $0x250] sm:$0xff]
  %v89 = vld [vmem:[%s0 + $0x258] sm:$0xff]
  %v90 = vld [vmem:[%s0 + $0x260] sm:$0xff]
  %v91 = vld [vmem:[%s0 + $0x268] sm:$0xff]
  %v92 = vld [vmem:[%s0 + $0x270] sm:$0xff]
  %v93 = vld [vmem:[%s0 + $0x278] sm:$0xff]
  %v94 = vld [vmem:[%s0 + $0x280] sm:$0xff]
  %v95 = vld [vmem:[%s0 + $0x288] sm:$0xff]
  %v96 = vld [vmem:[%s0 + $0x290] sm:$0xff]
  %v97 = vld [vmem:[%s0 + $0x298] sm:$0xff]
  %v98 = vld [vmem:[%s0 + $0x2a0] sm:$0xff]
  %v99 = vld [vmem:[%s0 + $0x2a8] sm:$0xff]
  %v100 = vld [vmem:[%s0 + $0x2b0] sm:$0xff]
  %v101 = vld [vmem:[%s0 + $0x2b8] sm:$0xff]
  %v102 = vld [vmem:[%s0 + $0x2c0] sm:$0xff]
  %v103 = vld [vmem:[%s0 + $0x2c8] sm:$0xff]
  %v104 = vld [vmem:[%s0 + $0x2d0] sm:$0xff]
  %v105 = vld [vmem:[%s0 + $0x2d8] sm:$0xff]
  %v106 = vld [vmem:[%s0 + $0x2e0] sm:$0xff]
  %v107 = vld [vmem:[%s0 + $0x2e8] sm:$0xff]
  %v108 = vld [vmem:[%s0 + $0x2f0] sm:$0xff]
  %v109 = vld [vmem:[%s0 + $0x2f8] sm:$0xff]
  %v110 = vld [vmem:[%s0 + $0x300] sm:$0xff]
  %v111 = vld [vmem:[%s0 + $0x308] sm:$0xff]
  %v112 = vld [vmem:[%s0 + $0x310] sm:$0xff]
  %v113 = vld [vmem:[%s0 + $0x318] sm:$0xff]
  %v114 = vld [vmem:[%s0 + $0x320] sm:$0xff]
  %v115 = vld [vmem:[%s0 + $0x328] sm:$0xff]
  %v116 = vld [vmem:[%s0 + $0x330] sm:$0xff]
  %v117 = vld [vmem:[%s0 + $0x338] sm:$0xff]
  %v118 = vld [vmem:[%s0 + $0x340] sm:$0xff]
  %v119 = vld [vmem:[%s0 + $0x348] sm:$0xff]
  %v120 = vld [vmem:[%s0 + $0x350] sm:$0xff]
  %v121 = vld [vmem:[%s0 + $0x358] sm:$0xff]
  %v122 = vld [vmem:[%s0 + $0x360] sm:$0xff]
  %v123 = vld [vmem:[%s0 + $0x368] sm:$0xff]
  %v124 = vld [vmem:[%s0 + $0x370] sm:$0xff]
  %v125 = vld [vmem:[%s0 + $0x378] sm:$0xff]
  %v126 = vld [vmem:[%s1] sm:$0xff]
  %v127 = vld [vmem:[%s1 + $0x8] sm:$0xff]
  %v128 = vld [vmem:[%s1 + $0x10] sm:$0xff]
  %v129 = vld [vmem:[%s1 + $0x18] sm:$0xff]
  %v130 = vld [vmem:[%s1 + $0x20] sm:$0xff]
  %v131 = vld [vmem:[%s1 + $0x28] sm:$0xff]
  %v132 = vld [vmem:[%s1 + $0x30] sm:$0xff]
  %v133 = vld [vmem:[%s1 + $0x38] sm:$0xff]
  %v134 = vld [vmem:[%s1 + $0x40] sm:$0xff]
  %v135 = vld [vmem:[%s1 + $0x48] sm:$0xff]
  %v136 = vld [vmem:[%s1 + $0x50] sm:$0xff]
  %v137 = vld [vmem:[%s1 + $0x58] sm:$0xff]
  %v138 = vld [vmem:[%s1 + $0x60] sm:$0xff]
  %v139 = vld [vmem:[%s1 + $0x68] sm:$0xff]
  %v140 = vld [vmem:[%s1 + $0x70] sm:$0xff]
  %v141 = vld [vmem:[%s1 + $0x78] sm:$0xff]
  %v142 = vld [vmem:[%s1 + $0x80] sm:$0xff]
  %v143 = vld [vmem:[%s1 + $0x88] sm:$0xff]
  %v144 = vld [vmem:[%s1 + $0x90] sm:$0xff]
  %v145 = vld [vmem:[%s1 + $0x98] sm:$0xff]
  %v146 = vld [vmem:[%s1 + $0xa0] sm:$0xff]
  %v147 = vld [vmem:[%s1 + $0xa8] sm:$0xff]
  %v148 = vld [vmem:[%s1 + $0xb0] sm:$0xff]
  %v149 = vld [vmem:[%s1 + $0xb8] sm:$0xff]
  %v150 = vld [vmem:[%s1 + $0xc0] sm:$0xff]
  %v151 = vld [vmem:[%s1 + $0xc8] sm:$0xff]
  %v152 = vld [vmem:[%s1 + $0xd0] sm:$0xff]
  %v153 = vld [vmem:[%s1 + $0xd8] sm:$0xff]
  %v154 = vld [vmem:[%s1 + $0xe0] sm:$0xff]
  %v155 = vld [vmem:[%s1 + $0xe8] sm:$0xff]
  %v156 = vld [vmem:[%s1 + $0xf0] sm:$0xff]
  %v157 = vld [vmem:[%s1 + $0xf8] sm:$0xff]
  %v158 = vld [vmem:[%s1 + $0x100] sm:$0xff]
  %v159 = vld [vmem:[%s1 + $0x108] sm:$0xff]
  %v160 = vld [vmem:[%s1 + $0x110] sm:$0xff]
  %v161 = vld [vmem:[%s1 + $0x118] sm:$0xff]
  %v162 = vld [vmem:[%s1 + $0x120] sm:$0xff]
  %v163 = vld [vmem:[%s1 + $0x128] sm:$0xff]
  %v164 = vld [vmem:[%s1 + $0x130] sm:$0xff]
  %v165 = vld [vmem:[%s1 + $0x138] sm:$0xff]
  %v166 = vld [vmem:[%s1 + $0x140] sm:$0xff]
  %v167 = vld [vmem:[%s1 + $0x148] sm:$0xff]
  %v168 = vld [vmem:[%s1 + $0x150] sm:$0xff]
  %v169 = vld [vmem:[%s1 + $0x158] sm:$0xff]
  %v170 = vld [vmem:[%s1 + $0x160] sm:$0xff]
  %v171 = vld [vmem:[%s1 + $0x168] sm:$0xff]
  %v172 = vld [vmem:[%s1 + $0x170] sm:$0xff]
  %v173 = vld [vmem:[%s1 + $0x178] sm:$0xff]
  %v174 = vld [vmem:[%s1 + $0x180] sm:$0xff]
  %v175 = vld [vmem:[%s1 + $0x188] sm:$0xff]
  %v176 = vld [vmem:[%s1 + $0x190] sm:$0xff]
  %v177 = vld [vmem:[%s1 + $0x198] sm:$0xff]
  %v178 = vld [vmem:[%s1 + $0x1a0] sm:$0xff]
  %v179 = vld [vmem:[%s1 + $0x1a8] sm:$0xff]
  %v180 = vld [vmem:[%s1 + $0x1b0] sm:$0xff]
  %v181 = vld [vmem:[%s1 + $0x1b8] sm:$0xff]
  %v182 = vld [vmem:[%s1 + $0x1c0] sm:$0xff]
  %v183 = vld [vmem:[%s1 + $0x1c8] sm:$0xff]
  %v184 = vld [vmem:[%s1 + $0x1d0] sm:$0xff]
  %v185 = vld [vmem:[%s1 + $0x1d8] sm:$0xff]
  %v186 = vld [vmem:[%s1 + $0x1e0] sm:$0xff]
  %v187 = vld [vmem:[%s1 + $0x1e8] sm:$0xff]
  %v188 = vld [vmem:[%s1 + $0x1f0] sm:$0xff]
  %v189 = vld [vmem:[%s1 + $0x1f8] sm:$0xff]
  %v190 = vld [vmem:[%s1 + $0x200] sm:$0xff]
  %v191 = vld [vmem:[%s1 + $0x208] sm:$0xff]
  %v192 = vld [vmem:[%s1 + $0x210] sm:$0xff]
  %v193 = vld [vmem:[%s1 + $0x218] sm:$0xff]
  %v194 = vld [vmem:[%s1 + $0x220] sm:$0xff]
  %v195 = vld [vmem:[%s1 + $0x228] sm:$0xff]
  %v196 = vld [vmem:[%s1 + $0x230] sm:$0xff]
  %v197 = vld [vmem:[%s1 + $0x238] sm:$0xff]
  %v198 = vld [vmem:[%s1 + $0x240] sm:$0xff]
  %v199 = vld [vmem:[%s1 + $0x248] sm:$0xff]
  %v200 = vld [vmem:[%s1 + $0x250] sm:$0xff]
  %v201 = vld [vmem:[%s1 + $0x258] sm:$0xff]
  %v202 = vld [vmem:[%s1 + $0x260] sm:$0xff]
  %v203 = vld [vmem:[%s1 + $0x268] sm:$0xff]
  %v204 = vld [vmem:[%s1 + $0x270] sm:$0xff]
  %v205 = vld [vmem:[%s1 + $0x278] sm:$0xff]
  %v206 = vld [vmem:[%s1 + $0x280] sm:$0xff]
  %v207 = vld [vmem:[%s1 + $0x288] sm:$0xff]
  %v208 = vld [vmem:[%s1 + $0x290] sm:$0xff]
  %v209 = vld [vmem:[%s1 + $0x298] sm:$0xff]
  %v210 = vld [vmem:[%s1 + $0x2a0] sm:$0xff]
  %v211 = vld [vmem:[%s1 + $0x2a8] sm:$0xff]
  %v212 = vld [vmem:[%s1 + $0x2b0] sm:$0xff]
  %v213 = vld [vmem:[%s1 + $0x2b8] sm:$0xff]
  %v214 = vld [vmem:[%s1 + $0x2c0] sm:$0xff]
  %v215 = vld [vmem:[%s1 + $0x2c8] sm:$0xff]
  %v216 = vld [vmem:[%s1 + $0x2d0] sm:$0xff]
  %v217 = vld [vmem:[%s1 + $0x2d8] sm:$0xff]
  %v218 = vld [vmem:[%s1 + $0x2e0] sm:$0xff]
  %v219 = vld [vmem:[%s1 + $0x2e8] sm:$0xff]
  %v220 = vld [vmem:[%s1 + $0x2f0] sm:$0xff]
  %v221 = vld [vmem:[%s1 + $0x2f8] sm:$0xff]
  %v222 = vld [vmem:[%s1 + $0x300] sm:$0xff]
  %v223 = vld [vmem:[%s1 + $0x308] sm:$0xff]
  %v224 = vld [vmem:[%s1 + $0x310] sm:$0xff]
  %v225 = vld [vmem:[%s1 + $0x318] sm:$0xff]
  %v226 = vld [vmem:[%s1 + $0x320] sm:$0xff]
  %v227 = vld [vmem:[%s1 + $0x328] sm:$0xff]
  %v228 = vld [vmem:[%s1 + $0x330] sm:$0xff]
  %v229 = vld [vmem:[%s1 + $0x338] sm:$0xff]
  %v230 = vld [vmem:[%s1 + $0x340] sm:$0xff]
  %v231 = vld [vmem:[%s1 + $0x348] sm:$0xff]
  %v232 = vld [vmem:[%s1 + $0x350] sm:$0xff]
  %v233 = vld [vmem:[%s1 + $0x358] sm:$0xff]
  %v234 = vld [vmem:[%s1 + $0x360] sm:$0xff]
  %v235 = vld [vmem:[%s1 + $0x368] sm:$0xff]
  %v236 = vld [vmem:[%s1 + $0x370] sm:$0xff]
  %v237 = vld [vmem:[%s1 + $0x378] sm:$0xff]
  %238 = vmatpush.msra.mxu0 %v141
  %239 = vmatpush.msra.mxu0 %v140
  %240 = vmatpush.msra.mxu0 %v139
  %241 = vmatpush.msra.mxu0 %v138
  %242 = vmatpush.msra.mxu0 %v137
  %243 = vmatpush.msra.mxu0 %v136
  %244 = vmatpush.msra.mxu0 %v135
  %245 = vmatpush.msra.mxu0 %v134
  %246 = vmatpush.msra.mxu0 %v133
  %247 = vmatpush.msra.mxu0 %v132
  %248 = vmatpush.msra.mxu0 %v131
  %249 = vmatpush.msra.mxu0 %v130
  %250 = vmatpush.msra.mxu0 %v129
  %251 = vmatpush.msra.mxu0 %v128
  %252 = vmatpush.msra.mxu0 %v127
  %253 = vmatpush.msra.mxu0 %v126
  %254 = vmatmul.f32.gmra.mxu0 %v14
  %v255 = vpop.f32.mrf.mxu0
  %v256 = vadd.f32 0.0, %v255
  %257 = vmatmul.f32.gmra.mxu0 %v21
  %v258 = vpop.f32.mrf.mxu0
  %v259 = vadd.f32 0.0, %v258
  %260 = vmatmul.f32.gmra.mxu0 %v28
  %v261 = vpop.f32.mrf.mxu0
  %v262 = vadd.f32 0.0, %v261
  %263 = vmatmul.f32.gmra.mxu0 %v35
  %v264 = vpop.f32.mrf.mxu0
  %v265 = vadd.f32 0.0, %v264
  %266 = vmatmul.f32.gmra.mxu0 %v42
  %v267 = vpop.f32.mrf.mxu0
  %v268 = vadd.f32 0.0, %v267
  %269 = vmatmul.f32.gmra.mxu0 %v49
  %v270 = vpop.f32.mrf.mxu0
  %v271 = vadd.f32 0.0, %v270
  %272 = vmatmul.f32.gmra.mxu0 %v56
  %v273 = vpop.f32.mrf.mxu0
  %v274 = vadd.f32 0.0, %v273
  %275 = vmatmul.f32.gmra.mxu0 %v63
  %v276 = vpop.f32.mrf.mxu0
  %v277 = vadd.f32 0.0, %v276
  %278 = vmatmul.f32.gmra.mxu0 %v70
  %v279 = vpop.f32.mrf.mxu0
  %v280 = vadd.f32 0.0, %v279
  %281 = vmatmul.f32.gmra.mxu0 %v77
  %v282 = vpop.f32.mrf.mxu0
  %v283 = vadd.f32 0.0, %v282
  %284 = vmatmul.f32.gmra.mxu0 %v84
  %v285 = vpop.f32.mrf.mxu0
  %v286 = vadd.f32 0.0, %v285
  %287 = vmatmul.f32.gmra.mxu0 %v91
  %v288 = vpop.f32.mrf.mxu0
  %v289 = vadd.f32 0.0, %v288
  %290 = vmatmul.f32.gmra.mxu0 %v98
  %v291 = vpop.f32.mrf.mxu0
  %v292 = vadd.f32 0.0, %v291
  %293 = vmatmul.f32.gmra.mxu0 %v105
  %v294 = vpop.f32.mrf.mxu0
  %v295 = vadd.f32 0.0, %v294
  %296 = vmatmul.f32.gmra.mxu0 %v112
  %v297 = vpop.f32.mrf.mxu0
  %v298 = vadd.f32 0.0, %v297
  %299 = vmatmul.f32.gmra.mxu0 %v119
  %v300 = vpop.f32.mrf.mxu0
  %v301 = vadd.f32 0.0, %v300
  %302 = vdwg.mxu0
  %303 = vmatpush.msra.mxu0 %v157
  %304 = vmatpush.msra.mxu0 %v156
  %305 = vmatpush.msra.mxu0 %v155
  %306 = vmatpush.msra.mxu0 %v154
  %307 = vmatpush.msra.mxu0 %v153
  %308 = vmatpush.msra.mxu0 %v152
  %309 = vmatpush.msra.mxu0 %v151
  %310 = vmatpush.msra.mxu0 %v150
  %311 = vmatpush.msra.mxu0 %v149
  %312 = vmatpush.msra.mxu0 %v148
  %313 = vmatpush.msra.mxu0 %v147
  %314 = vmatpush.msra.mxu0 %v146
  %315 = vmatpush.msra.mxu0 %v145
  %316 = vmatpush.msra.mxu0 %v144
  %317 = vmatpush.msra.mxu0 %v143
  %318 = vmatpush.msra.mxu0 %v142
  %319 = vmatmul.f32.gmra.mxu0 %v15
  %v320 = vpop.f32.mrf.mxu0
  %v321 = vadd.f32 %v256, %v320
  %322 = vmatmul.f32.gmra.mxu0 %v22
  %v323 = vpop.f32.mrf.mxu0
  %v324 = vadd.f32 %v259, %v323
  %325 = vmatmul.f32.gmra.mxu0 %v29
  %v326 = vpop.f32.mrf.mxu0
  %v327 = vadd.f32 %v262, %v326
  %328 = vmatmul.f32.gmra.mxu0 %v36
  %v329 = vpop.f32.mrf.mxu0
  %v330 = vadd.f32 %v265, %v329
  %331 = vmatmul.f32.gmra.mxu0 %v43
  %v332 = vpop.f32.mrf.mxu0
  %v333 = vadd.f32 %v268, %v332
  %334 = vmatmul.f32.gmra.mxu0 %v50
  %v335 = vpop.f32.mrf.mxu0
  %v336 = vadd.f32 %v271, %v335
  %337 = vmatmul.f32.gmra.mxu0 %v57
  %v338 = vpop.f32.mrf.mxu0
  %v339 = vadd.f32 %v274, %v338
  %340 = vmatmul.f32.gmra.mxu0 %v64
  %v341 = vpop.f32.mrf.mxu0
  %v342 = vadd.f32 %v277, %v341
  %343 = vmatmul.f32.gmra.mxu0 %v71
  %v344 = vpop.f32.mrf.mxu0
  %v345 = vadd.f32 %v280, %v344
  %346 = vmatmul.f32.gmra.mxu0 %v78
  %v347 = vpop.f32.mrf.mxu0
  %v348 = vadd.f32 %v283, %v347
  %349 = vmatmul.f32.gmra.mxu0 %v85
  %v350 = vpop.f32.mrf.mxu0
  %v351 = vadd.f32 %v286, %v350
  %352 = vmatmul.f32.gmra.mxu0 %v92
  %v353 = vpop.f32.mrf.mxu0
  %v354 = vadd.f32 %v289, %v353
  %355 = vmatmul.f32.gmra.mxu0 %v99
  %v356 = vpop.f32.mrf.mxu0
  %v357 = vadd.f32 %v292, %v356
  %358 = vmatmul.f32.gmra.mxu0 %v106
  %v359 = vpop.f32.mrf.mxu0
  %v360 = vadd.f32 %v295, %v359
  %361 = vmatmul.f32.gmra.mxu0 %v113
  %v362 = vpop.f32.mrf.mxu0
  %v363 = vadd.f32 %v298, %v362
  %364 = vmatmul.f32.gmra.mxu0 %v120
  %v365 = vpop.f32.mrf.mxu0
  %v366 = vadd.f32 %v301, %v365
  %367 = vdwg.mxu0
  %368 = vmatpush.msra.mxu0 %v173
  %369 = vmatpush.msra.mxu0 %v172
  %370 = vmatpush.msra.mxu0 %v171
  %371 = vmatpush.msra.mxu0 %v170
  %372 = vmatpush.msra.mxu0 %v169
  %373 = vmatpush.msra.mxu0 %v168
  %374 = vmatpush.msra.mxu0 %v167
  %375 = vmatpush.msra.mxu0 %v166
  %376 = vmatpush.msra.mxu0 %v165
  %377 = vmatpush.msra.mxu0 %v164
  %378 = vmatpush.msra.mxu0 %v163
  %379 = vmatpush.msra.mxu0 %v162
  %380 = vmatpush.msra.mxu0 %v161
  %381 = vmatpush.msra.mxu0 %v160
  %382 = vmatpush.msra.mxu0 %v159
  %383 = vmatpush.msra.mxu0 %v158
  %384 = vmatmul.f32.gmra.mxu0 %v16
  %v385 = vpop.f32.mrf.mxu0
  %v386 = vadd.f32 %v321, %v385
  %387 = vmatmul.f32.gmra.mxu0 %v23
  %v388 = vpop.f32.mrf.mxu0
  %v389 = vadd.f32 %v324, %v388
  %390 = vmatmul.f32.gmra.mxu0 %v30
  %v391 = vpop.f32.mrf.mxu0
  %v392 = vadd.f32 %v327, %v391
  %393 = vmatmul.f32.gmra.mxu0 %v37
  %v394 = vpop.f32.mrf.mxu0
  %v395 = vadd.f32 %v330, %v394
  %396 = vmatmul.f32.gmra.mxu0 %v44
  %v397 = vpop.f32.mrf.mxu0
  %v398 = vadd.f32 %v333, %v397
  %399 = vmatmul.f32.gmra.mxu0 %v51
  %v400 = vpop.f32.mrf.mxu0
  %v401 = vadd.f32 %v336, %v400
  %402 = vmatmul.f32.gmra.mxu0 %v58
  %v403 = vpop.f32.mrf.mxu0
  %v404 = vadd.f32 %v339, %v403
  %405 = vmatmul.f32.gmra.mxu0 %v65
  %v406 = vpop.f32.mrf.mxu0
  %v407 = vadd.f32 %v342, %v406
  %408 = vmatmul.f32.gmra.mxu0 %v72
  %v409 = vpop.f32.mrf.mxu0
  %v410 = vadd.f32 %v345, %v409
  %411 = vmatmul.f32.gmra.mxu0 %v79
  %v412 = vpop.f32.mrf.mxu0
  %v413 = vadd.f32 %v348, %v412
  %414 = vmatmul.f32.gmra.mxu0 %v86
  %v415 = vpop.f32.mrf.mxu0
  %v416 = vadd.f32 %v351, %v415
  %417 = vmatmul.f32.gmra.mxu0 %v93
  %v418 = vpop.f32.mrf.mxu0
  %v419 = vadd.f32 %v354, %v418
  %420 = vmatmul.f32.gmra.mxu0 %v100
  %v421 = vpop.f32.mrf.mxu0
  %v422 = vadd.f32 %v357, %v421
  %423 = vmatmul.f32.gmra.mxu0 %v107
  %v424 = vpop.f32.mrf.mxu0
  %v425 = vadd.f32 %v360, %v424
  %426 = vmatmul.f32.gmra.mxu0 %v114
  %v427 = vpop.f32.mrf.mxu0
  %v428 = vadd.f32 %v363, %v427
  %429 = vmatmul.f32.gmra.mxu0 %v121
  %v430 = vpop.f32.mrf.mxu0
  %v431 = vadd.f32 %v366, %v430
  %432 = vdwg.mxu0
  %433 = vmatpush.msra.mxu0 %v189
  %434 = vmatpush.msra.mxu0 %v188
  %435 = vmatpush.msra.mxu0 %v187
  %436 = vmatpush.msra.mxu0 %v186
  %437 = vmatpush.msra.mxu0 %v185
  %438 = vmatpush.msra.mxu0 %v184
  %439 = vmatpush.msra.mxu0 %v183
  %440 = vmatpush.msra.mxu0 %v182
  %441 = vmatpush.msra.mxu0 %v181
  %442 = vmatpush.msra.mxu0 %v180
  %443 = vmatpush.msra.mxu0 %v179
  %444 = vmatpush.msra.mxu0 %v178
  %445 = vmatpush.msra.mxu0 %v177
  %446 = vmatpush.msra.mxu0 %v176
  %447 = vmatpush.msra.mxu0 %v175
  %448 = vmatpush.msra.mxu0 %v174
  %449 = vmatmul.f32.gmra.mxu0 %v17
  %v450 = vpop.f32.mrf.mxu0
  %v451 = vadd.f32 %v386, %v450
  %452 = vmatmul.f32.gmra.mxu0 %v24
  %v453 = vpop.f32.mrf.mxu0
  %v454 = vadd.f32 %v389, %v453
  %455 = vmatmul.f32.gmra.mxu0 %v31
  %v456 = vpop.f32.mrf.mxu0
  %v457 = vadd.f32 %v392, %v456
  %458 = vmatmul.f32.gmra.mxu0 %v38
  %v459 = vpop.f32.mrf.mxu0
  %v460 = vadd.f32 %v395, %v459
  %461 = vmatmul.f32.gmra.mxu0 %v45
  %v462 = vpop.f32.mrf.mxu0
  %v463 = vadd.f32 %v398, %v462
  %464 = vmatmul.f32.gmra.mxu0 %v52
  %v465 = vpop.f32.mrf.mxu0
  %v466 = vadd.f32 %v401, %v465
  %467 = vmatmul.f32.gmra.mxu0 %v59
  %v468 = vpop.f32.mrf.mxu0
  %v469 = vadd.f32 %v404, %v468
  %470 = vmatmul.f32.gmra.mxu0 %v66
  %v471 = vpop.f32.mrf.mxu0
  %v472 = vadd.f32 %v407, %v471
  %473 = vmatmul.f32.gmra.mxu0 %v73
  %v474 = vpop.f32.mrf.mxu0
  %v475 = vadd.f32 %v410, %v474
  %476 = vmatmul.f32.gmra.mxu0 %v80
  %v477 = vpop.f32.mrf.mxu0
  %v478 = vadd.f32 %v413, %v477
  %479 = vmatmul.f32.gmra.mxu0 %v87
  %v480 = vpop.f32.mrf.mxu0
  %v481 = vadd.f32 %v416, %v480
  %482 = vmatmul.f32.gmra.mxu0 %v94
  %v483 = vpop.f32.mrf.mxu0
  %v484 = vadd.f32 %v419, %v483
  %485 = vmatmul.f32.gmra.mxu0 %v101
  %v486 = vpop.f32.mrf.mxu0
  %v487 = vadd.f32 %v422, %v486
  %488 = vmatmul.f32.gmra.mxu0 %v108
  %v489 = vpop.f32.mrf.mxu0
  %v490 = vadd.f32 %v425, %v489
  %491 = vmatmul.f32.gmra.mxu0 %v115
  %v492 = vpop.f32.mrf.mxu0
  %v493 = vadd.f32 %v428, %v492
  %494 = vmatmul.f32.gmra.mxu0 %v122
  %v495 = vpop.f32.mrf.mxu0
  %v496 = vadd.f32 %v431, %v495
  %497 = vdwg.mxu0
  %498 = vmatpush.msra.mxu0 %v205
  %499 = vmatpush.msra.mxu0 %v204
  %500 = vmatpush.msra.mxu0 %v203
  %501 = vmatpush.msra.mxu0 %v202
  %502 = vmatpush.msra.mxu0 %v201
  %503 = vmatpush.msra.mxu0 %v200
  %504 = vmatpush.msra.mxu0 %v199
  %505 = vmatpush.msra.mxu0 %v198
  %506 = vmatpush.msra.mxu0 %v197
  %507 = vmatpush.msra.mxu0 %v196
  %508 = vmatpush.msra.mxu0 %v195
  %509 = vmatpush.msra.mxu0 %v194
  %510 = vmatpush.msra.mxu0 %v193
  %511 = vmatpush.msra.mxu0 %v192
  %512 = vmatpush.msra.mxu0 %v191
  %513 = vmatpush.msra.mxu0 %v190
  %514 = vmatmul.f32.gmra.mxu0 %v18
  %v515 = vpop.f32.mrf.mxu0
  %v516 = vadd.f32 %v451, %v515
  %517 = vmatmul.f32.gmra.mxu0 %v25
  %v518 = vpop.f32.mrf.mxu0
  %v519 = vadd.f32 %v454, %v518
  %520 = vmatmul.f32.gmra.mxu0 %v32
  %v521 = vpop.f32.mrf.mxu0
  %v522 = vadd.f32 %v457, %v521
  %523 = vmatmul.f32.gmra.mxu0 %v39
  %v524 = vpop.f32.mrf.mxu0
  %v525 = vadd.f32 %v460, %v524
  %526 = vmatmul.f32.gmra.mxu0 %v46
  %v527 = vpop.f32.mrf.mxu0
  %v528 = vadd.f32 %v463, %v527
  %529 = vmatmul.f32.gmra.mxu0 %v53
  %v530 = vpop.f32.mrf.mxu0
  %v531 = vadd.f32 %v466, %v530
  %532 = vmatmul.f32.gmra.mxu0 %v60
  %v533 = vpop.f32.mrf.mxu0
  %v534 = vadd.f32 %v469, %v533
  %535 = vmatmul.f32.gmra.mxu0 %v67
  %v536 = vpop.f32.mrf.mxu0
  %v537 = vadd.f32 %v472, %v536
  %538 = vmatmul.f32.gmra.mxu0 %v74
  %v539 = vpop.f32.mrf.mxu0
  %v540 = vadd.f32 %v475, %v539
  %541 = vmatmul.f32.gmra.mxu0 %v81
  %v542 = vpop.f32.mrf.mxu0
  %v543 = vadd.f32 %v478, %v542
  %544 = vmatmul.f32.gmra.mxu0 %v88
  %v545 = vpop.f32.mrf.mxu0
  %v546 = vadd.f32 %v481, %v545
  %547 = vmatmul.f32.gmra.mxu0 %v95
  %v548 = vpop.f32.mrf.mxu0
  %v549 = vadd.f32 %v484, %v548
  %550 = vmatmul.f32.gmra.mxu0 %v102
  %v551 = vpop.f32.mrf.mxu0
  %v552 = vadd.f32 %v487, %v551
  %553 = vmatmul.f32.gmra.mxu0 %v109
  %v554 = vpop.f32.mrf.mxu0
  %v555 = vadd.f32 %v490, %v554
  %556 = vmatmul.f32.gmra.mxu0 %v116
  %v557 = vpop.f32.mrf.mxu0
  %v558 = vadd.f32 %v493, %v557
  %559 = vmatmul.f32.gmra.mxu0 %v123
  %v560 = vpop.f32.mrf.mxu0
  %v561 = vadd.f32 %v496, %v560
  %562 = vdwg.mxu0
  %563 = vmatpush.msra.mxu0 %v221
  %564 = vmatpush.msra.mxu0 %v220
  %565 = vmatpush.msra.mxu0 %v219
  %566 = vmatpush.msra.mxu0 %v218
  %567 = vmatpush.msra.mxu0 %v217
  %568 = vmatpush.msra.mxu0 %v216
  %569 = vmatpush.msra.mxu0 %v215
  %570 = vmatpush.msra.mxu0 %v214
  %571 = vmatpush.msra.mxu0 %v213
  %572 = vmatpush.msra.mxu0 %v212
  %573 = vmatpush.msra.mxu0 %v211
  %574 = vmatpush.msra.mxu0 %v210
  %575 = vmatpush.msra.mxu0 %v209
  %576 = vmatpush.msra.mxu0 %v208
  %577 = vmatpush.msra.mxu0 %v207
  %578 = vmatpush.msra.mxu0 %v206
  %579 = vmatmul.f32.gmra.mxu0 %v19
  %v580 = vpop.f32.mrf.mxu0
  %v581 = vadd.f32 %v516, %v580
  %582 = vmatmul.f32.gmra.mxu0 %v26
  %v583 = vpop.f32.mrf.mxu0
  %v584 = vadd.f32 %v519, %v583
  %585 = vmatmul.f32.gmra.mxu0 %v33
  %v586 = vpop.f32.mrf.mxu0
  %v587 = vadd.f32 %v522, %v586
  %588 = vmatmul.f32.gmra.mxu0 %v40
  %v589 = vpop.f32.mrf.mxu0
  %v590 = vadd.f32 %v525, %v589
  %591 = vmatmul.f32.gmra.mxu0 %v47
  %v592 = vpop.f32.mrf.mxu0
  %v593 = vadd.f32 %v528, %v592
  %594 = vmatmul.f32.gmra.mxu0 %v54
  %v595 = vpop.f32.mrf.mxu0
  %v596 = vadd.f32 %v531, %v595
  %597 = vmatmul.f32.gmra.mxu0 %v61
  %v598 = vpop.f32.mrf.mxu0
  %v599 = vadd.f32 %v534, %v598
  %600 = vmatmul.f32.gmra.mxu0 %v68
  %v601 = vpop.f32.mrf.mxu0
  %v602 = vadd.f32 %v537, %v601
  %603 = vmatmul.f32.gmra.mxu0 %v75
  %v604 = vpop.f32.mrf.mxu0
  %v605 = vadd.f32 %v540, %v604
  %606 = vmatmul.f32.gmra.mxu0 %v82
  %v607 = vpop.f32.mrf.mxu0
  %v608 = vadd.f32 %v543, %v607
  %609 = vmatmul.f32.gmra.mxu0 %v89
  %v610 = vpop.f32.mrf.mxu0
  %v611 = vadd.f32 %v546, %v610
  %612 = vmatmul.f32.gmra.mxu0 %v96
  %v613 = vpop.f32.mrf.mxu0
  %v614 = vadd.f32 %v549, %v613
  %615 = vmatmul.f32.gmra.mxu0 %v103
  %v616 = vpop.f32.mrf.mxu0
  %v617 = vadd.f32 %v552, %v616
  %618 = vmatmul.f32.gmra.mxu0 %v110
  %v619 = vpop.f32.mrf.mxu0
  %v620 = vadd.f32 %v555, %v619
  %621 = vmatmul.f32.gmra.mxu0 %v117
  %v622 = vpop.f32.mrf.mxu0
  %v623 = vadd.f32 %v558, %v622
  %624 = vmatmul.f32.gmra.mxu0 %v124
  %v625 = vpop.f32.mrf.mxu0
  %v626 = vadd.f32 %v561, %v625
  %627 = vdwg.mxu0
  %628 = vmatpush.msra.mxu0 %v237
  %629 = vmatpush.msra.mxu0 %v236
  %630 = vmatpush.msra.mxu0 %v235
  %631 = vmatpush.msra.mxu0 %v234
  %632 = vmatpush.msra.mxu0 %v233
  %633 = vmatpush.msra.mxu0 %v232
  %634 = vmatpush.msra.mxu0 %v231
  %635 = vmatpush.msra.mxu0 %v230
  %636 = vmatpush.msra.mxu0 %v229
  %637 = vmatpush.msra.mxu0 %v228
  %638 = vmatpush.msra.mxu0 %v227
  %639 = vmatpush.msra.mxu0 %v226
  %640 = vmatpush.msra.mxu0 %v225
  %641 = vmatpush.msra.mxu0 %v224
  %642 = vmatpush.msra.mxu0 %v223
  %643 = vmatpush.msra.mxu0 %v222
  %644 = vmatmul.f32.gmra.mxu0 %v20
  %v645 = vpop.f32.mrf.mxu0
  %v646 = vadd.f32 %v581, %v645
  %647 = vmatmul.f32.gmra.mxu0 %v27
  %v648 = vpop.f32.mrf.mxu0
  %v649 = vadd.f32 %v584, %v648
  %650 = vmatmul.f32.gmra.mxu0 %v34
  %v651 = vpop.f32.mrf.mxu0
  %v652 = vadd.f32 %v587, %v651
  %653 = vmatmul.f32.gmra.mxu0 %v41
  %v654 = vpop.f32.mrf.mxu0
  %v655 = vadd.f32 %v590, %v654
  %656 = vmatmul.f32.gmra.mxu0 %v48
  %v657 = vpop.f32.mrf.mxu0
  %v658 = vadd.f32 %v593, %v657
  %659 = vmatmul.f32.gmra.mxu0 %v55
  %v660 = vpop.f32.mrf.mxu0
  %v661 = vadd.f32 %v596, %v660
  %662 = vmatmul.f32.gmra.mxu0 %v62
  %v663 = vpop.f32.mrf.mxu0
  %v664 = vadd.f32 %v599, %v663
  %665 = vmatmul.f32.gmra.mxu0 %v69
  %v666 = vpop.f32.mrf.mxu0
  %v667 = vadd.f32 %v602, %v666
  %668 = vmatmul.f32.gmra.mxu0 %v76
  %v669 = vpop.f32.mrf.mxu0
  %v670 = vadd.f32 %v605, %v669
  %671 = vmatmul.f32.gmra.mxu0 %v83
  %v672 = vpop.f32.mrf.mxu0
  %v673 = vadd.f32 %v608, %v672
  %674 = vmatmul.f32.gmra.mxu0 %v90
  %v675 = vpop.f32.mrf.mxu0
  %v676 = vadd.f32 %v611, %v675
  %677 = vmatmul.f32.gmra.mxu0 %v97
  %v678 = vpop.f32.mrf.mxu0
  %v679 = vadd.f32 %v614, %v678
  %680 = vmatmul.f32.gmra.mxu0 %v104
  %v681 = vpop.f32.mrf.mxu0
  %v682 = vadd.f32 %v617, %v681
  %683 = vmatmul.f32.gmra.mxu0 %v111
  %v684 = vpop.f32.mrf.mxu0
  %v685 = vadd.f32 %v620, %v684
  %686 = vmatmul.f32.gmra.mxu0 %v118
  %v687 = vpop.f32.mrf.mxu0
  %v688 = vadd.f32 %v623, %v687
  %689 = vmatmul.f32.gmra.mxu0 %v125
  %v690 = vpop.f32.mrf.mxu0
  %v691 = vadd.f32 %v626, %v690
  %692 = vdwg.mxu0
  %v693 = vmax.f32 %v646, %v649
  %v694 = vmax.f32 %v652, %v655
  %v695 = vmax.f32 %v658, %v661
  %v696 = vmax.f32 %v664, %v667
  %v697 = vmax.f32 %v670, %v673
  %v698 = vmax.f32 %v676, %v679
  %v699 = vmax.f32 %v682, %v685
  %v700 = vmax.f32 %v688, %v691
  %vm701 = vcmask 523264
  %702 = vst.msk [vmem:[#allocation2] sm:$0xff] %vm701, %v693
  %703 = vst.msk [vmem:[#allocation2 + $0x8] sm:$0xff] %vm701, %v694
  %704 = vst.msk [vmem:[#allocation2 + $0x10] sm:$0xff] %vm701, %v695
  %705 = vst.msk [vmem:[#allocation2 + $0x18] sm:$0xff] %vm701, %v696
  %706 = vst.msk [vmem:[#allocation2 + $0x20] sm:$0xff] %vm701, %v697
  %707 = vst.msk [vmem:[#allocation2 + $0x28] sm:$0xff] %vm701, %v698
  %708 = vst.msk [vmem:[#allocation2 + $0x30] sm:$0xff] %vm701, %v699
  %709 = vst.msk [vmem:[#allocation2 + $0x38] sm:$0xff] %vm701, %v700
  %v710 = vld [vmem:[#allocation2] ss:$2 sm:$0xf]
  %s711 = scalar_lea.vmem [#allocation2], 8
  %v712 = vld [vmem:[%s711] ss:$2 sm:$0xf]
  %s713 = scalar_lea.vmem [#allocation2], 16
  %v714 = vld [vmem:[%s713] ss:$2 sm:$0xf]
  %s715 = scalar_lea.vmem [#allocation2], 24
  %v716 = vld [vmem:[%s715] ss:$2 sm:$0xf]
  %s717 = scalar_lea.vmem [#allocation2], 32
  %v718 = vld [vmem:[%s717] ss:$2 sm:$0xf]
  %s719 = scalar_lea.vmem [#allocation2], 40
  %v720 = vld [vmem:[%s719] ss:$2 sm:$0xf]
  %s721 = scalar_lea.vmem [#allocation2], 48
  %v722 = vld [vmem:[%s721] ss:$2 sm:$0xf]
  %s723 = scalar_lea.vmem [#allocation2], 56
  %v724 = vld [vmem:[%s723] ss:$2 sm:$0xf]
  %s725 = scalar_lea.vmem [#allocation2], 1
  %v726 = vld [vmem:[%s725] ss:$2 sm:$0xf]
  %s727 = scalar_lea.vmem [#allocation2], 9
  %v728 = vld [vmem:[%s727] ss:$2 sm:$0xf]
  %s729 = scalar_lea.vmem [#allocation2], 17
  %v730 = vld [vmem:[%s729] ss:$2 sm:$0xf]
  %s731 = scalar_lea.vmem [#allocation2], 25
  %v732 = vld [vmem:[%s731] ss:$2 sm:$0xf]
  %s733 = scalar_lea.vmem [#allocation2], 33
  %v734 = vld [vmem:[%s733] ss:$2 sm:$0xf]
  %s735 = scalar_lea.vmem [#allocation2], 41
  %v736 = vld [vmem:[%s735] ss:$2 sm:$0xf]
  %s737 = scalar_lea.vmem [#allocation2], 49
  %v738 = vld [vmem:[%s737] ss:$2 sm:$0xf]
  %s739 = scalar_lea.vmem [#allocation2], 57
  %v740 = vld [vmem:[%s739] ss:$2 sm:$0xf]
  %v741 = vmax.f32 %v710, %v726
  %v742 = vmax.f32 %v712, %v728
  %v743 = vmax.f32 %v714, %v730
  %v744 = vmax.f32 %v716, %v732
  %v745 = vmax.f32 %v718, %v734
  %v746 = vmax.f32 %v720, %v736
  %v747 = vmax.f32 %v722, %v738
  %v748 = vmax.f32 %v724, %v740
  %v749 = vld [vmem:[%s2] sm:$0x1]
  %v751 = vperm.slane %v749, 0
  %v753 = vadd.f32 %v741, %v751
  %v754 = vadd.f32 %v742, %v751
  %v755 = vadd.f32 %v743, %v751
  %v756 = vadd.f32 %v744, %v751
  %v757 = vadd.f32 %v745, %v751
  %v758 = vadd.f32 %v746, %v751
  %v759 = vadd.f32 %v747, %v751
  %v760 = vadd.f32 %v748, %v751
  %v761 = vmax.f32 %v753, 0.0
  %v762 = vmax.f32 %v754, 0.0
  %v763 = vmax.f32 %v755, 0.0
  %v764 = vmax.f32 %v756, 0.0
  %v765 = vmax.f32 %v757, 0.0
  %v766 = vmax.f32 %v758, 0.0
  %v767 = vmax.f32 %v759, 0.0
  %v768 = vmax.f32 %v760, 0.0
  %vm769 = vcmask 519168
  %770 = vst.msk [vmem:[%s3] sm:$0xf] %vm769, %v761
  %771 = vst.msk [vmem:[%s3 + $0x4] sm:$0xf] %vm769, %v762
  %772 = vst.msk [vmem:[%s3 + $0x8] sm:$0xf] %vm769, %v763
  %773 = vst.msk [vmem:[%s3 + $0xc] sm:$0xf] %vm769, %v764
  %774 = vst.msk [vmem:[%s3 + $0x10] sm:$0xf] %vm769, %v765
  %775 = vst.msk [vmem:[%s3 + $0x14] sm:$0xf] %vm769, %v766
  %776 = vst.msk [vmem:[%s3 + $0x18] sm:$0xf] %vm769, %v767
  %777 = vst.msk [vmem:[%s3 + $0x1c] sm:$0xf] %vm769, %v768
  // Predicated region
  $region14: #{baseline_forward.6} parent=0 // pred_check
    _
  $region15: #{baseline_forward.6} parent=0 // pred_check_branch
    %779 = sbr.rel (0) target = $region17
  $region16: #{baseline_forward.6} parent=0 // pred_region
    _
  $region17: #{baseline_forward.6} parent=0 // pred_fallthru
    _
  // Predicated region
  $region18: #{baseline_forward.6} parent=0 // pred_check
    _
  $region19: #{baseline_forward.6} parent=0 // pred_check_branch
    %781 = sbr.rel (0) target = $region21
  $region20: #{baseline_forward.6} parent=0 // pred_region
    _
  $region21: #{baseline_forward.6} parent=0 // pred_fallthru
    _

// kernel: baseline_forward.7
$region0: #{baseline_forward.7}
  #allocation0 [shape = 'u32[]', space=smem, size = 0x4, offset = 0x4, fixed_abs, tag = 'smem constant byte address 0x4 - core index']
  #allocation1 [shape = 'u32[72,128]{1,0:T(1,128)}', space=vmem, size = 0x9000, scoped, tag = 'internal scratch']
  %s0 = inlined_call_operand.vmem [shape: f32[8,1024], index: 0, kind: input, shape index: {}]
  %s1 = inlined_call_operand.vmem [shape: f32[1024,1024], index: 1, kind: input, shape index: {}]
  %s2 = inlined_call_operand.vmem [shape: f32[1,1024], index: 2, kind: input, shape index: {}]
  %s3 = inlined_call_operand.vmem [shape: f32[1024,512], index: 3, kind: input, shape index: {}]
  %s4 = inlined_call_operand.vmem [shape: f32[1,512], index: 4, kind: input, shape index: {}]
  %s5 = inlined_call_operand.vmem [shape: f32[512,128], index: 5, kind: input, shape index: {}]
  %s6 = inlined_call_operand.vmem [shape: f32[1,128], index: 6, kind: input, shape index: {}]
  %s7 = inlined_call_operand.vmem [shape: f32[8,128], index: 7, kind: output, shape index: {}]
  %s8 = sld [smem:[#allocation0]]
  $region38: #{baseline_forward.7} parent=0
    _
  %s10 = ssub.s32 1, %s8
  %s11 = scalar_select 0, %s10, %s8
  // Predicated region
  $region2: #{baseline_forward.7} parent=0 // pred_check
    _
  $region3: #{baseline_forward.7} parent=0 // pred_check_branch
    %13 = sbr.rel (0) target = $region5
  $region4: #{baseline_forward.7} parent=0 // pred_region
    _
  $region5: #{baseline_forward.7} parent=0 // pred_fallthru
    _
  // Predicated region
  $region6: #{baseline_forward.7} parent=0 // pred_check
    _
  $region7: #{baseline_forward.7} parent=0 // pred_check_branch
    %15 = sbr.rel (0) target = $region9
  $region8: #{baseline_forward.7} parent=0 // pred_region
    _
  $region9: #{baseline_forward.7} parent=0 // pred_fallthru
    _
  // Predicated region
  $region10: #{baseline_forward.7} parent=0 // pred_check
    _
  $region11: #{baseline_forward.7} parent=0 // pred_check_branch
    %17 = sbr.rel (0) target = $region13
  $region12: #{baseline_forward.7} parent=0 // pred_region
    _
  $region13: #{baseline_forward.7} parent=0 // pred_fallthru
    _
  // Predicated region
  $region14: #{baseline_forward.7} parent=0 // pred_check
    _
  $region15: #{baseline_forward.7} parent=0 // pred_check_branch
    %19 = sbr.rel (0) target = $region17
  $region16: #{baseline_forward.7} parent=0 // pred_region
    _
  $region17: #{baseline_forward.7} parent=0 // pred_fallthru
    _
  // Predicated region
  $region18: #{baseline_forward.7} parent=0 // pred_check
    _
  $region19: #{baseline_forward.7} parent=0 // pred_check_branch
    %21 = sbr.rel (0) target = $region21
  $region20: #{baseline_forward.7} parent=0 // pred_region
    _
  $region21: #{baseline_forward.7} parent=0 // pred_fallthru
    _
  // Predicated region
  $region22: #{baseline_forward.7} parent=0 // pred_check
    _
  $region23: #{baseline_forward.7} parent=0 // pred_check_branch
    %23 = sbr.rel (0) target = $region25
  $region24: #{baseline_forward.7} parent=0 // pred_region
    _
  $region25: #{baseline_forward.7} parent=0 // pred_fallthru
    _
  // Predicated region
  $region26: #{baseline_forward.7} parent=0 // pred_check
    _
  $region27: #{baseline_forward.7} parent=0 // pred_check_branch
    %25 = sbr.rel (0) target = $region29
  $region28: #{baseline_forward.7} parent=0 // pred_region
    _
  $region29: #{baseline_forward.7} parent=0 // pred_fallthru
    _
  %v26 = vld [vmem:[%s0] sm:$0xff]
  %v27 = vld [vmem:[%s0 + $0x8] sm:$0xff]
  %v28 = vld [vmem:[%s0 + $0x10] sm:$0xff]
  %v29 = vld [vmem:[%s0 + $0x18] sm:$0xff]
  %v30 = vld [vmem:[%s0 + $0x20] sm:$0xff]
  %v31 = vld [vmem:[%s0 + $0x28] sm:$0xff]
  %v32 = vld [vmem:[%s0 + $0x30] sm:$0xff]
  %v33 = vld [vmem:[%s0 + $0x38] sm:$0xff]
  %v34 = vld [vmem:[%s1] sm:$0xff]
  %v35 = vld [vmem:[%s1 + $0x8] sm:$0xff]
  %v36 = vld [vmem:[%s1 + $0x10] sm:$0xff]
  %v37 = vld [vmem:[%s1 + $0x18] sm:$0xff]
  %v38 = vld [vmem:[%s1 + $0x20] sm:$0xff]
  %v39 = vld [vmem:[%s1 + $0x28] sm:$0xff]
  %v40 = vld [vmem:[%s1 + $0x30] sm:$0xff]
  %v41 = vld [vmem:[%s1 + $0x38] sm:$0xff]
  %v42 = vld [vmem:[%s1 + $0x40] sm:$0xff]
  %v43 = vld [vmem:[%s1 + $0x48] sm:$0xff]
  %v44 = vld [vmem:[%s1 + $0x50] sm:$0xff]
  %v45 = vld [vmem:[%s1 + $0x58] sm:$0xff]
  %v46 = vld [vmem:[%s1 + $0x60] sm:$0xff]
  %v47 = vld [vmem:[%s1 + $0x68] sm:$0xff]
  %v48 = vld [vmem:[%s1 + $0x70] sm:$0xff]
  %v49 = vld [vmem:[%s1 + $0x78] sm:$0xff]
  %v50 = vld [vmem:[%s1 + $0x80] sm:$0xff]
  %v51 = vld [vmem:[%s1 + $0x88] sm:$0xff]
  %v52 = vld [vmem:[%s1 + $0x90] sm:$0xff]
  %v53 = vld [vmem:[%s1 + $0x98] sm:$0xff]
  %v54 = vld [vmem:[%s1 + $0xa0] sm:$0xff]
  %v55 = vld [vmem:[%s1 + $0xa8] sm:$0xff]
  %v56 = vld [vmem:[%s1 + $0xb0] sm:$0xff]
  %v57 = vld [vmem:[%s1 + $0xb8] sm:$0xff]
  %v58 = vld [vmem:[%s1 + $0xc0] sm:$0xff]
  %v59 = vld [vmem:[%s1 + $0xc8] sm:$0xff]
  %v60 = vld [vmem:[%s1 + $0xd0] sm:$0xff]
  %v61 = vld [vmem:[%s1 + $0xd8] sm:$0xff]
  %v62 = vld [vmem:[%s1 + $0xe0] sm:$0xff]
  %v63 = vld [vmem:[%s1 + $0xe8] sm:$0xff]
  %v64 = vld [vmem:[%s1 + $0xf0] sm:$0xff]
  %v65 = vld [vmem:[%s1 + $0xf8] sm:$0xff]
  %v66 = vld [vmem:[%s1 + $0x100] sm:$0xff]
  %v67 = vld [vmem:[%s1 + $0x108] sm:$0xff]
  %v68 = vld [vmem:[%s1 + $0x110] sm:$0xff]
  %v69 = vld [vmem:[%s1 + $0x118] sm:$0xff]
  %v70 = vld [vmem:[%s1 + $0x120] sm:$0xff]
  %v71 = vld [vmem:[%s1 + $0x128] sm:$0xff]
  %v72 = vld [vmem:[%s1 + $0x130] sm:$0xff]
  %v73 = vld [vmem:[%s1 + $0x138] sm:$0xff]
  %v74 = vld [vmem:[%s1 + $0x140] sm:$0xff]
  %v75 = vld [vmem:[%s1 + $0x148] sm:$0xff]
  %v76 = vld [vmem:[%s1 + $0x150] sm:$0xff]
  %v77 = vld [vmem:[%s1 + $0x158] sm:$0xff]
  %v78 = vld [vmem:[%s1 + $0x160] sm:$0xff]
  %v79 = vld [vmem:[%s1 + $0x168] sm:$0xff]
  %v80 = vld [vmem:[%s1 + $0x170] sm:$0xff]
  %v81 = vld [vmem:[%s1 + $0x178] sm:$0xff]
  %v82 = vld [vmem:[%s1 + $0x180] sm:$0xff]
  %v83 = vld [vmem:[%s1 + $0x188] sm:$0xff]
  %v84 = vld [vmem:[%s1 + $0x190] sm:$0xff]
  %v85 = vld [vmem:[%s1 + $0x198] sm:$0xff]
  %v86 = vld [vmem:[%s1 + $0x1a0] sm:$0xff]
  %v87 = vld [vmem:[%s1 + $0x1a8] sm:$0xff]
  %v88 = vld [vmem:[%s1 + $0x1b0] sm:$0xff]
  %v89 = vld [vmem:[%s1 + $0x1b8] sm:$0xff]
  %v90 = vld [vmem:[%s1 + $0x1c0] sm:$0xff]
  %v91 = vld [vmem:[%s1 + $0x1c8] sm:$0xff]
  %v92 = vld [vmem:[%s1 + $0x1d0] sm:$0xff]
  %v93 = vld [vmem:[%s1 + $0x1d8] sm:$0xff]
  %v94 = vld [vmem:[%s1 + $0x1e0] sm:$0xff]
  %v95 = vld [vmem:[%s1 + $0x1e8] sm:$0xff]
  %v96 = vld [vmem:[%s1 + $0x1f0] sm:$0xff]
  %v97 = vld [vmem:[%s1 + $0x1f8] sm:$0xff]
  %v98 = vld [vmem:[%s1 + $0x200] sm:$0xff]
  %v99 = vld [vmem:[%s1 + $0x208] sm:$0xff]
  %v100 = vld [vmem:[%s1 + $0x210] sm:$0xff]
  %v101 = vld [vmem:[%s1 + $0x218] sm:$0xff]
  %v102 = vld [vmem:[%s1 + $0x220] sm:$0xff]
  %v103 = vld [vmem:[%s1 + $0x228] sm:$0xff]
  %v104 = vld [vmem:[%s1 + $0x230] sm:$0xff]
  %v105 = vld [vmem:[%s1 + $0x238] sm:$0xff]
  %v106 = vld [vmem:[%s1 + $0x240] sm:$0xff]
  %v107 = vld [vmem:[%s1 + $0x248] sm:$0xff]
  %v108 = vld [vmem:[%s1 + $0x250] sm:$0xff]
  %v109 = vld [vmem:[%s1 + $0x258] sm:$0xff]
  %v110 = vld [vmem:[%s1 + $0x260] sm:$0xff]
  %v111 = vld [vmem:[%s1 + $0x268] sm:$0xff]
  %v112 = vld [vmem:[%s1 + $0x270] sm:$0xff]
  %v113 = vld [vmem:[%s1 + $0x278] sm:$0xff]
  %v114 = vld [vmem:[%s1 + $0x280] sm:$0xff]
  %v115 = vld [vmem:[%s1 + $0x288] sm:$0xff]
  %v116 = vld [vmem:[%s1 + $0x290] sm:$0xff]
  %v117 = vld [vmem:[%s1 + $0x298] sm:$0xff]
  %v118 = vld [vmem:[%s1 + $0x2a0] sm:$0xff]
  %v119 = vld [vmem:[%s1 + $0x2a8] sm:$0xff]
  %v120 = vld [vmem:[%s1 + $0x2b0] sm:$0xff]
  %v121 = vld [vmem:[%s1 + $0x2b8] sm:$0xff]
  %v122 = vld [vmem:[%s1 + $0x2c0] sm:$0xff]
  %v123 = vld [vmem:[%s1 + $0x2c8] sm:$0xff]
  %v124 = vld [vmem:[%s1 + $0x2d0] sm:$0xff]
  %v125 = vld [vmem:[%s1 + $0x2d8] sm:$0xff]
  %v126 = vld [vmem:[%s1 + $0x2e0] sm:$0xff]
  %v127 = vld [vmem:[%s1 + $0x2e8] sm:$0xff]
  %v128 = vld [vmem:[%s1 + $0x2f0] sm:$0xff]
  %v129 = vld [vmem:[%s1 + $0x2f8] sm:$0xff]
  %v130 = vld [vmem:[%s1 + $0x300] sm:$0xff]
  %v131 = vld [vmem:[%s1 + $0x308] sm:$0xff]
  %v132 = vld [vmem:[%s1 + $0x310] sm:$0xff]
  %v133 = vld [vmem:[%s1 + $0x318] sm:$0xff]
  %v134 = vld [vmem:[%s1 + $0x320] sm:$0xff]
  %v135 = vld [vmem:[%s1 + $0x328] sm:$0xff]
  %v136 = vld [vmem:[%s1 + $0x330] sm:$0xff]
  %v137 = vld [vmem:[%s1 + $0x338] sm:$0xff]
  %v138 = vld [vmem:[%s1 + $0x340] sm:$0xff]
  %v139 = vld [vmem:[%s1 + $0x348] sm:$0xff]
  %v140 = vld [vmem:[%s1 + $0x350] sm:$0xff]
  %v141 = vld [vmem:[%s1 + $0x358] sm:$0xff]
  %v142 = vld [vmem:[%s1 + $0x360] sm:$0xff]
  %v143 = vld [vmem:[%s1 + $0x368] sm:$0xff]
  %v144 = vld [vmem:[%s1 + $0x370] sm:$0xff]
  %v145 = vld [vmem:[%s1 + $0x378] sm:$0xff]
  %v146 = vld [vmem:[%s1 + $0x380] sm:$0xff]
  %v147 = vld [vmem:[%s1 + $0x388] sm:$0xff]
  %v148 = vld [vmem:[%s1 + $0x390] sm:$0xff]
  %v149 = vld [vmem:[%s1 + $0x398] sm:$0xff]
  %v150 = vld [vmem:[%s1 + $0x3a0] sm:$0xff]
  %v151 = vld [vmem:[%s1 + $0x3a8] sm:$0xff]
  %v152 = vld [vmem:[%s1 + $0x3b0] sm:$0xff]
  %v153 = vld [vmem:[%s1 + $0x3b8] sm:$0xff]
  %v154 = vld [vmem:[%s1 + $0x3c0] sm:$0xff]
  %v155 = vld [vmem:[%s1 + $0x3c8] sm:$0xff]
  %v156 = vld [vmem:[%s1 + $0x3d0] sm:$0xff]
  %v157 = vld [vmem:[%s1 + $0x3d8] sm:$0xff]
  %v158 = vld [vmem:[%s1 + $0x3e0] sm:$0xff]
  %v159 = vld [vmem:[%s1 + $0x3e8] sm:$0xff]
  %v160 = vld [vmem:[%s1 + $0x3f0] sm:$0xff]
  %v161 = vld [vmem:[%s1 + $0x3f8] sm:$0xff]
  %v162 = vld [vmem:[%s1 + $0x400] sm:$0xff]
  %v163 = vld [vmem:[%s1 + $0x408] sm:$0xff]
  %v164 = vld [vmem:[%s1 + $0x410] sm:$0xff]
  %v165 = vld [vmem:[%s1 + $0x418] sm:$0xff]
  %v166 = vld [vmem:[%s1 + $0x420] sm:$0xff]
  %v167 = vld [vmem:[%s1 + $0x428] sm:$0xff]
  %v168 = vld [vmem:[%s1 + $0x430] sm:$0xff]
  %v169 = vld [vmem:[%s1 + $0x438] sm:$0xff]
  %v170 = vld [vmem:[%s1 + $0x440] sm:$0xff]
  %v171 = vld [vmem:[%s1 + $0x448] sm:$0xff]
  %v172 = vld [vmem:[%s1 + $0x450] sm:$0xff]
  %v173 = vld [vmem:[%s1 + $0x458] sm:$0xff]
  %v174 = vld [vmem:[%s1 + $0x460] sm:$0xff]
  %v175 = vld [vmem:[%s1 + $0x468] sm:$0xff]
  %v176 = vld [vmem:[%s1 + $0x470] sm:$0xff]
  %v177 = vld [vmem:[%s1 + $0x478] sm:$0xff]
  %v178 = vld [vmem:[%s1 + $0x480] sm:$0xff]
  %v179 = vld [vmem:[%s1 + $0x488] sm:$0xff]
  %v180 = vld [vmem:[%s1 + $0x490] sm:$0xff]
  %v181 = vld [vmem:[%s1 + $0x498] sm:$0xff]
  %v182 = vld [vmem:[%s1 + $0x4a0] sm:$0xff]
  %v183 = vld [vmem:[%s1 + $0x4a8] sm:$0xff]
  %v184 = vld [vmem:[%s1 + $0x4b0] sm:$0xff]
  %v185 = vld [vmem:[%s1 + $0x4b8] sm:$0xff]
  %v186 = vld [vmem:[%s1 + $0x4c0] sm:$0xff]
  %v187 = vld [vmem:[%s1 + $0x4c8] sm:$0xff]
  %v188 = vld [vmem:[%s1 + $0x4d0] sm:$0xff]
  %v189 = vld [vmem:[%s1 + $0x4d8] sm:$0xff]
  %v190 = vld [vmem:[%s1 + $0x4e0] sm:$0xff]
  %v191 = vld [vmem:[%s1 + $0x4e8] sm:$0xff]
  %v192 = vld [vmem:[%s1 + $0x4f0] sm:$0xff]
  %v193 = vld [vmem:[%s1 + $0x4f8] sm:$0xff]
  %v194 = vld [vmem:[%s1 + $0x500] sm:$0xff]
  %v195 = vld [vmem:[%s1 + $0x508] sm:$0xff]
  %v196 = vld [vmem:[%s1 + $0x510] sm:$0xff]
  %v197 = vld [vmem:[%s1 + $0x518] sm:$0xff]
  %v198 = vld [vmem:[%s1 + $0x520] sm:$0xff]
  %v199 = vld [vmem:[%s1 + $0x528] sm:$0xff]
  %v200 = vld [vmem:[%s1 + $0x530] sm:$0xff]
  %v201 = vld [vmem:[%s1 + $0x538] sm:$0xff]
  %v202 = vld [vmem:[%s1 + $0x540] sm:$0xff]
  %v203 = vld [vmem:[%s1 + $0x548] sm:$0xff]
  %v204 = vld [vmem:[%s1 + $0x550] sm:$0xff]
  %v205 = vld [vmem:[%s1 + $0x558] sm:$0xff]
  %v206 = vld [vmem:[%s1 + $0x560] sm:$0xff]
  %v207 = vld [vmem:[%s1 + $0x568] sm:$0xff]
  %v208 = vld [vmem:[%s1 + $0x570] sm:$0xff]
  %v209 = vld [vmem:[%s1 + $0x578] sm:$0xff]
  %v210 = vld [vmem:[%s1 + $0x580] sm:$0xff]
  %v211 = vld [vmem:[%s1 + $0x588] sm:$0xff]
  %v212 = vld [vmem:[%s1 + $0x590] sm:$0xff]
  %v213 = vld [vmem:[%s1 + $0x598] sm:$0xff]
  %v214 = vld [vmem:[%s1 + $0x5a0] sm:$0xff]
  %v215 = vld [vmem:[%s1 + $0x5a8] sm:$0xff]
  %v216 = vld [vmem:[%s1 + $0x5b0] sm:$0xff]
  %v217 = vld [vmem:[%s1 + $0x5b8] sm:$0xff]
  %v218 = vld [vmem:[%s1 + $0x5c0] sm:$0xff]
  %v219 = vld [vmem:[%s1 + $0x5c8] sm:$0xff]
  %v220 = vld [vmem:[%s1 + $0x5d0] sm:$0xff]
  %v221 = vld [vmem:[%s1 + $0x5d8] sm:$0xff]
  %v222 = vld [vmem:[%s1 + $0x5e0] sm:$0xff]
  %v223 = vld [vmem:[%s1 + $0x5e8] sm:$0xff]
  %v224 = vld [vmem:[%s1 + $0x5f0] sm:$0xff]
  %v225 = vld [vmem:[%s1 + $0x5f8] sm:$0xff]
  %v226 = vld [vmem:[%s1 + $0x600] sm:$0xff]
  %v227 = vld [vmem:[%s1 + $0x608] sm:$0xff]
  %v228 = vld [vmem:[%s1 + $0x610] sm:$0xff]
  %v229 = vld [vmem:[%s1 + $0x618] sm:$0xff]
  %v230 = vld [vmem:[%s1 + $0x620] sm:$0xff]
  %v231 = vld [vmem:[%s1 + $0x628] sm:$0xff]
  %v232 = vld [vmem:[%s1 + $0x630] sm:$0xff]
  %v233 = vld [vmem:[%s1 + $0x638] sm:$0xff]
  %v234 = vld [vmem:[%s1 + $0x640] sm:$0xff]
  %v235 = vld [vmem:[%s1 + $0x648] sm:$0xff]
  %v236 = vld [vmem:[%s1 + $0x650] sm:$0xff]
  %v237 = vld [vmem:[%s1 + $0x658] sm:$0xff]
  %v238 = vld [vmem:[%s1 + $0x660] sm:$0xff]
  %v239 = vld [vmem:[%s1 + $0x668] sm:$0xff]
  %v240 = vld [vmem:[%s1 + $0x670] sm:$0xff]
  %v241 = vld [vmem:[%s1 + $0x678] sm:$0xff]
  %v242 = vld [vmem:[%s1 + $0x680] sm:$0xff]
  %v243 = vld [vmem:[%s1 + $0x688] sm:$0xff]
  %v244 = vld [vmem:[%s1 + $0x690] sm:$0xff]
  %v245 = vld [vmem:[%s1 + $0x698] sm:$0xff]
  %v246 = vld [vmem:[%s1 + $0x6a0] sm:$0xff]
  %v247 = vld [vmem:[%s1 + $0x6a8] sm:$0xff]
  %v248 = vld [vmem:[%s1 + $0x6b0] sm:$0xff]
  %v249 = vld [vmem:[%s1 + $0x6b8] sm:$0xff]
  %v250 = vld [vmem:[%s1 + $0x6c0] sm:$0xff]
  %v251 = vld [vmem:[%s1 + $0x6c8] sm:$0xff]
  %v252 = vld [vmem:[%s1 + $0x6d0] sm:$0xff]
  %v253 = vld [vmem:[%s1 + $0x6d8] sm:$0xff]
  %v254 = vld [vmem:[%s1 + $0x6e0] sm:$0xff]
  %v255 = vld [vmem:[%s1 + $0x6e8] sm:$0xff]
  %v256 = vld [vmem:[%s1 + $0x6f0] sm:$0xff]
  %v257 = vld [vmem:[%s1 + $0x6f8] sm:$0xff]
  %v258 = vld [vmem:[%s1 + $0x700] sm:$0xff]
  %v259 = vld [vmem:[%s1 + $0x708] sm:$0xff]
  %v260 = vld [vmem:[%s1 + $0x710] sm:$0xff]
  %v261 = vld [vmem:[%s1 + $0x718] sm:$0xff]
  %v262 = vld [vmem:[%s1 + $0x720] sm:$0xff]
  %v263 = vld [vmem:[%s1 + $0x728] sm:$0xff]
  %v264 = vld [vmem:[%s1 + $0x730] sm:$0xff]
  %v265 = vld [vmem:[%s1 + $0x738] sm:$0xff]
  %v266 = vld [vmem:[%s1 + $0x740] sm:$0xff]
  %v267 = vld [vmem:[%s1 + $0x748] sm:$0xff]
  %v268 = vld [vmem:[%s1 + $0x750] sm:$0xff]
  %v269 = vld [vmem:[%s1 + $0x758] sm:$0xff]
  %v270 = vld [vmem:[%s1 + $0x760] sm:$0xff]
  %v271 = vld [vmem:[%s1 + $0x768] sm:$0xff]
  %v272 = vld [vmem:[%s1 + $0x770] sm:$0xff]
  %v273 = vld [vmem:[%s1 + $0x778] sm:$0xff]
  %v274 = vld [vmem:[%s1 + $0x780] sm:$0xff]
  %v275 = vld [vmem:[%s1 + $0x788] sm:$0xff]
  %v276 = vld [vmem:[%s1 + $0x790] sm:$0xff]
  %v277 = vld [vmem:[%s1 + $0x798] sm:$0xff]
  %v278 = vld [vmem:[%s1 + $0x7a0] sm:$0xff]
  %v279 = vld [vmem:[%s1 + $0x7a8] sm:$0xff]
  %v280 = vld [vmem:[%s1 + $0x7b0] sm:$0xff]
  %v281 = vld [vmem:[%s1 + $0x7b8] sm:$0xff]
  %v282 = vld [vmem:[%s1 + $0x7c0] sm:$0xff]
  %v283 = vld [vmem:[%s1 + $0x7c8] sm:$0xff]
  %v284 = vld [vmem:[%s1 + $0x7d0] sm:$0xff]
  %v285 = vld [vmem:[%s1 + $0x7d8] sm:$0xff]
  %v286 = vld [vmem:[%s1 + $0x7e0] sm:$0xff]
  %v287 = vld [vmem:[%s1 + $0x7e8] sm:$0xff]
  %v288 = vld [vmem:[%s1 + $0x7f0] sm:$0xff]
  %v289 = vld [vmem:[%s1 + $0x7f8] sm:$0xff]
  %v290 = vld [vmem:[%s1 + $0x800] sm:$0xff]
  %v291 = vld [vmem:[%s1 + $0x808] sm:$0xff]
  %v292 = vld [vmem:[%s1 + $0x810] sm:$0xff]
  %v293 = vld [vmem:[%s1 + $0x818] sm:$0xff]
  %v294 = vld [vmem:[%s1 + $0x820] sm:$0xff]
  %v295 = vld [vmem:[%s1 + $0x828] sm:$0xff]
  %v296 = vld [vmem:[%s1 + $0x830] sm:$0xff]
  %v297 = vld [vmem:[%s1 + $0x838] sm:$0xff]
  %v298 = vld [vmem:[%s1 + $0x840] sm:$0xff]
  %v299 = vld [vmem:[%s1 + $0x848] sm:$0xff]
  %v300 = vld [vmem:[%s1 + $0x850] sm:$0xff]
  %v301 = vld [vmem:[%s1 + $0x858] sm:$0xff]
  %v302 = vld [vmem:[%s1 + $0x860] sm:$0xff]
  %v303 = vld [vmem:[%s1 + $0x868] sm:$0xff]
  %v304 = vld [vmem:[%s1 + $0x870] sm:$0xff]
  %v305 = vld [vmem:[%s1 + $0x878] sm:$0xff]
  %v306 = vld [vmem:[%s1 + $0x880] sm:$0xff]
  %v307 = vld [vmem:[%s1 + $0x888] sm:$0xff]
  %v308 = vld [vmem:[%s1 + $0x890] sm:$0xff]
  %v309 = vld [vmem:[%s1 + $0x898] sm:$0xff]
  %v310 = vld [vmem:[%s1 + $0x8a0] sm:$0xff]
  %v311 = vld [vmem:[%s1 + $0x8a8] sm:$0xff]
  %v312 = vld [vmem:[%s1 + $0x8b0] sm:$0xff]
  %v313 = vld [vmem:[%s1 + $0x8b8] sm:$0xff]
  %v314 = vld [vmem:[%s1 + $0x8c0] sm:$0xff]
  %v315 = vld [vmem:[%s1 + $0x8c8] sm:$0xff]
  %v316 = vld [vmem:[%s1 + $0x8d0] sm:$0xff]
  %v317 = vld [vmem:[%s1 + $0x8d8] sm:$0xff]
  %v318 = vld [vmem:[%s1 + $0x8e0] sm:$0xff]
  %v319 = vld [vmem:[%s1 + $0x8e8] sm:$0xff]
  %v320 = vld [vmem:[%s1 + $0x8f0] sm:$0xff]
  %v321 = vld [vmem:[%s1 + $0x8f8] sm:$0xff]
  %v322 = vld [vmem:[%s1 + $0x900] sm:$0xff]
  %v323 = vld [vmem:[%s1 + $0x908] sm:$0xff]
  %v324 = vld [vmem:[%s1 + $0x910] sm:$0xff]
  %v325 = vld [vmem:[%s1 + $0x918] sm:$0xff]
  %v326 = vld [vmem:[%s1 + $0x920] sm:$0xff]
  %v327 = vld [vmem:[%s1 + $0x928] sm:$0xff]
  %v328 = vld [vmem:[%s1 + $0x930] sm:$0xff]
  %v329 = vld [vmem:[%s1 + $0x938] sm:$0xff]
  %v330 = vld [vmem:[%s1 + $0x940] sm:$0xff]
  %v331 = vld [vmem:[%s1 + $0x948] sm:$0xff]
  %v332 = vld [vmem:[%s1 + $0x950] sm:$0xff]
  %v333 = vld [vmem:[%s1 + $0x958] sm:$0xff]
  %v334 = vld [vmem:[%s1 + $0x960] sm:$0xff]
  %v335 = vld [vmem:[%s1 + $0x968] sm:$0xff]
  %v336 = vld [vmem:[%s1 + $0x970] sm:$0xff]
  %v337 = vld [vmem:[%s1 + $0x978] sm:$0xff]
  %v338 = vld [vmem:[%s1 + $0x980] sm:$0xff]
  %v339 = vld [vmem:[%s1 + $0x988] sm:$0xff]
  %v340 = vld [vmem:[%s1 + $0x990] sm:$0xff]
  %v341 = vld [vmem:[%s1 + $0x998] sm:$0xff]
  %v342 = vld [vmem:[%s1 + $0x9a0] sm:$0xff]
  %v343 = vld [vmem:[%s1 + $0x9a8] sm:$0xff]
  %v344 = vld [vmem:[%s1 + $0x9b0] sm:$0xff]
  %v345 = vld [vmem:[%s1 + $0x9b8] sm:$0xff]
  %v346 = vld [vmem:[%s1 + $0x9c0] sm:$0xff]
  %v347 = vld [vmem:[%s1 + $0x9c8] sm:$0xff]
  %v348 = vld [vmem:[%s1 + $0x9d0] sm:$0xff]
  %v349 = vld [vmem:[%s1 + $0x9d8] sm:$0xff]
  %v350 = vld [vmem:[%s1 + $0x9e0] sm:$0xff]
  %v351 = vld [vmem:[%s1 + $0x9e8] sm:$0xff]
  %v352 = vld [vmem:[%s1 + $0x9f0] sm:$0xff]
  %v353 = vld [vmem:[%s1 + $0x9f8] sm:$0xff]
  %v354 = vld [vmem:[%s1 + $0xa00] sm:$0xff]
  %v355 = vld [vmem:[%s1 + $0xa08] sm:$0xff]
  %v356 = vld [vmem:[%s1 + $0xa10] sm:$0xff]
  %v357 = vld [vmem:[%s1 + $0xa18] sm:$0xff]
  %v358 = vld [vmem:[%s1 + $0xa20] sm:$0xff]
  %v359 = vld [vmem:[%s1 + $0xa28] sm:$0xff]
  %v360 = vld [vmem:[%s1 + $0xa30] sm:$0xff]
  %v361 = vld [vmem:[%s1 + $0xa38] sm:$0xff]
  %v362 = vld [vmem:[%s1 + $0xa40] sm:$0xff]
  %v363 = vld [vmem:[%s1 + $0xa48] sm:$0xff]
  %v364 = vld [vmem:[%s1 + $0xa50] sm:$0xff]
  %v365 = vld [vmem:[%s1 + $0xa58] sm:$0xff]
  %v366 = vld [vmem:[%s1 + $0xa60] sm:$0xff]
  %v367 = vld [vmem:[%s1 + $0xa68] sm:$0xff]
  %v368 = vld [vmem:[%s1 + $0xa70] sm:$0xff]
  %v369 = vld [vmem:[%s1 + $0xa78] sm:$0xff]
  %v370 = vld [vmem:[%s1 + $0xa80] sm:$0xff]
  %v371 = vld [vmem:[%s1 + $0xa88] sm:$0xff]
  %v372 = vld [vmem:[%s1 + $0xa90] sm:$0xff]
  %v373 = vld [vmem:[%s1 + $0xa98] sm:$0xff]
  %v374 = vld [vmem:[%s1 + $0xaa0] sm:$0xff]
  %v375 = vld [vmem:[%s1 + $0xaa8] sm:$0xff]
  %v376 = vld [vmem:[%s1 + $0xab0] sm:$0xff]
  %v377 = vld [vmem:[%s1 + $0xab8] sm:$0xff]
  %v378 = vld [vmem:[%s1 + $0xac0] sm:$0xff]
  %v379 = vld [vmem:[%s1 + $0xac8] sm:$0xff]
  %v380 = vld [vmem:[%s1 + $0xad0] sm:$0xff]
  %v381 = vld [vmem:[%s1 + $0xad8] sm:$0xff]
  %v382 = vld [vmem:[%s1 + $0xae0] sm:$0xff]
  %v383 = vld [vmem:[%s1 + $0xae8] sm:$0xff]
  %v384 = vld [vmem:[%s1 + $0xaf0] sm:$0xff]
  %v385 = vld [vmem:[%s1 + $0xaf8] sm:$0xff]
  %v386 = vld [vmem:[%s1 + $0xb00] sm:$0xff]
  %v387 = vld [vmem:[%s1 + $0xb08] sm:$0xff]
  %v388 = vld [vmem:[%s1 + $0xb10] sm:$0xff]
  %v389 = vld [vmem:[%s1 + $0xb18] sm:$0xff]
  %v390 = vld [vmem:[%s1 + $0xb20] sm:$0xff]
  %v391 = vld [vmem:[%s1 + $0xb28] sm:$0xff]
  %v392 = vld [vmem:[%s1 + $0xb30] sm:$0xff]
  %v393 = vld [vmem:[%s1 + $0xb38] sm:$0xff]
  %v394 = vld [vmem:[%s1 + $0xb40] sm:$0xff]
  %v395 = vld [vmem:[%s1 + $0xb48] sm:$0xff]
  %v396 = vld [vmem:[%s1 + $0xb50] sm:$0xff]
  %v397 = vld [vmem:[%s1 + $0xb58] sm:$0xff]
  %v398 = vld [vmem:[%s1 + $0xb60] sm:$0xff]
  %v399 = vld [vmem:[%s1 + $0xb68] sm:$0xff]
  %v400 = vld [vmem:[%s1 + $0xb70] sm:$0xff]
  %v401 = vld [vmem:[%s1 + $0xb78] sm:$0xff]
  %v402 = vld [vmem:[%s1 + $0xb80] sm:$0xff]
  %v403 = vld [vmem:[%s1 + $0xb88] sm:$0xff]
  %v404 = vld [vmem:[%s1 + $0xb90] sm:$0xff]
  %v405 = vld [vmem:[%s1 + $0xb98] sm:$0xff]
  %v406 = vld [vmem:[%s1 + $0xba0] sm:$0xff]
  %v407 = vld [vmem:[%s1 + $0xba8] sm:$0xff]
  %v408 = vld [vmem:[%s1 + $0xbb0] sm:$0xff]
  %v409 = vld [vmem:[%s1 + $0xbb8] sm:$0xff]
  %v410 = vld [vmem:[%s1 + $0xbc0] sm:$0xff]
  %v411 = vld [vmem:[%s1 + $0xbc8] sm:$0xff]
  %v412 = vld [vmem:[%s1 + $0xbd0] sm:$0xff]
  %v413 = vld [vmem:[%s1 + $0xbd8] sm:$0xff]
  %v414 = vld [vmem:[%s1 + $0xbe0] sm:$0xff]
  %v415 = vld [vmem:[%s1 + $0xbe8] sm:$0xff]
  %v416 = vld [vmem:[%s1 + $0xbf0] sm:$0xff]
  %v417 = vld [vmem:[%s1 + $0xbf8] sm:$0xff]
  %v418 = vld [vmem:[%s1 + $0xc00] sm:$0xff]
  %v419 = vld [vmem:[%s1 + $0xc08] sm:$0xff]
  %v420 = vld [vmem:[%s1 + $0xc10] sm:$0xff]
  %v421 = vld [vmem:[%s1 + $0xc18] sm:$0xff]
  %v422 = vld [vmem:[%s1 + $0xc20] sm:$0xff]
  %v423 = vld [vmem:[%s1 + $0xc28] sm:$0xff]
  %v424 = vld [vmem:[%s1 + $0xc30] sm:$0xff]
  %v425 = vld [vmem:[%s1 + $0xc38] sm:$0xff]
  %v426 = vld [vmem:[%s1 + $0xc40] sm:$0xff]
  %v427 = vld [vmem:[%s1 + $0xc48] sm:$0xff]
  %v428 = vld [vmem:[%s1 + $0xc50] sm:$0xff]
  %v429 = vld [vmem:[%s1 + $0xc58] sm:$0xff]
  %v430 = vld [vmem:[%s1 + $0xc60] sm:$0xff]
  %v431 = vld [vmem:[%s1 + $0xc68] sm:$0xff]
  %v432 = vld [vmem:[%s1 + $0xc70] sm:$0xff]
  %v433 = vld [vmem:[%s1 + $0xc78] sm:$0xff]
  %v434 = vld [vmem:[%s1 + $0xc80] sm:$0xff]
  %v435 = vld [vmem:[%s1 + $0xc88] sm:$0xff]
  %v436 = vld [vmem:[%s1 + $0xc90] sm:$0xff]
  %v437 = vld [vmem:[%s1 + $0xc98] sm:$0xff]
  %v438 = vld [vmem:[%s1 + $0xca0] sm:$0xff]
  %v439 = vld [vmem:[%s1 + $0xca8] sm:$0xff]
  %v440 = vld [vmem:[%s1 + $0xcb0] sm:$0xff]
  %v441 = vld [vmem:[%s1 + $0xcb8] sm:$0xff]
  %v442 = vld [vmem:[%s1 + $0xcc0] sm:$0xff]
  %v443 = vld [vmem:[%s1 + $0xcc8] sm:$0xff]
  %v444 = vld [vmem:[%s1 + $0xcd0] sm:$0xff]
  %v445 = vld [vmem:[%s1 + $0xcd8] sm:$0xff]
  %v446 = vld [vmem:[%s1 + $0xce0] sm:$0xff]
  %v447 = vld [vmem:[%s1 + $0xce8] sm:$0xff]
  %v448 = vld [vmem:[%s1 + $0xcf0] sm:$0xff]
  %v449 = vld [vmem:[%s1 + $0xcf8] sm:$0xff]
  %v450 = vld [vmem:[%s1 + $0xd00] sm:$0xff]
  %v451 = vld [vmem:[%s1 + $0xd08] sm:$0xff]
  %v452 = vld [vmem:[%s1 + $0xd10] sm:$0xff]
  %v453 = vld [vmem:[%s1 + $0xd18] sm:$0xff]
  %v454 = vld [vmem:[%s1 + $0xd20] sm:$0xff]
  %v455 = vld [vmem:[%s1 + $0xd28] sm:$0xff]
  %v456 = vld [vmem:[%s1 + $0xd30] sm:$0xff]
  %v457 = vld [vmem:[%s1 + $0xd38] sm:$0xff]
  %v458 = vld [vmem:[%s1 + $0xd40] sm:$0xff]
  %v459 = vld [vmem:[%s1 + $0xd48] sm:$0xff]
  %v460 = vld [vmem:[%s1 + $0xd50] sm:$0xff]
  %v461 = vld [vmem:[%s1 + $0xd58] sm:$0xff]
  %v462 = vld [vmem:[%s1 + $0xd60] sm:$0xff]
  %v463 = vld [vmem:[%s1 + $0xd68] sm:$0xff]
  %v464 = vld [vmem:[%s1 + $0xd70] sm:$0xff]
  %v465 = vld [vmem:[%s1 + $0xd78] sm:$0xff]
  %v466 = vld [vmem:[%s1 + $0xd80] sm:$0xff]
  %v467 = vld [vmem:[%s1 + $0xd88] sm:$0xff]
  %v468 = vld [vmem:[%s1 + $0xd90] sm:$0xff]
  %v469 = vld [vmem:[%s1 + $0xd98] sm:$0xff]
  %v470 = vld [vmem:[%s1 + $0xda0] sm:$0xff]
  %v471 = vld [vmem:[%s1 + $0xda8] sm:$0xff]
  %v472 = vld [vmem:[%s1 + $0xdb0] sm:$0xff]
  %v473 = vld [vmem:[%s1 + $0xdb8] sm:$0xff]
  %v474 = vld [vmem:[%s1 + $0xdc0] sm:$0xff]
  %v475 = vld [vmem:[%s1 + $0xdc8] sm:$0xff]
  %v476 = vld [vmem:[%s1 + $0xdd0] sm:$0xff]
  %v477 = vld [vmem:[%s1 + $0xdd8] sm:$0xff]
  %v478 = vld [vmem:[%s1 + $0xde0] sm:$0xff]
  %v479 = vld [vmem:[%s1 + $0xde8] sm:$0xff]
  %v480 = vld [vmem:[%s1 + $0xdf0] sm:$0xff]
  %v481 = vld [vmem:[%s1 + $0xdf8] sm:$0xff]
  %v482 = vld [vmem:[%s1 + $0xe00] sm:$0xff]
  %v483 = vld [vmem:[%s1 + $0xe08] sm:$0xff]
  %v484 = vld [vmem:[%s1 + $0xe10] sm:$0xff]
  %v485 = vld [vmem:[%s1 + $0xe18] sm:$0xff]
  %v486 = vld [vmem:[%s1 + $0xe20] sm:$0xff]
  %v487 = vld [vmem:[%s1 + $0xe28] sm:$0xff]
  %v488 = vld [vmem:[%s1 + $0xe30] sm:$0xff]
  %v489 = vld [vmem:[%s1 + $0xe38] sm:$0xff]
  %v490 = vld [vmem:[%s1 + $0xe40] sm:$0xff]
  %v491 = vld [vmem:[%s1 + $0xe48] sm:$0xff]
  %v492 = vld [vmem:[%s1 + $0xe50] sm:$0xff]
  %v493 = vld [vmem:[%s1 + $0xe58] sm:$0xff]
  %v494 = vld [vmem:[%s1 + $0xe60] sm:$0xff]
  %v495 = vld [vmem:[%s1 + $0xe68] sm:$0xff]
  %v496 = vld [vmem:[%s1 + $0xe70] sm:$0xff]
  %v497 = vld [vmem:[%s1 + $0xe78] sm:$0xff]
  %v498 = vld [vmem:[%s1 + $0xe80] sm:$0xff]
  %v499 = vld [vmem:[%s1 + $0xe88] sm:$0xff]
  %v500 = vld [vmem:[%s1 + $0xe90] sm:$0xff]
  %v501 = vld [vmem:[%s1 + $0xe98] sm:$0xff]
  %v502 = vld [vmem:[%s1 + $0xea0] sm:$0xff]
  %v503 = vld [vmem:[%s1 + $0xea8] sm:$0xff]
  %v504 = vld [vmem:[%s1 + $0xeb0] sm:$0xff]
  %v505 = vld [vmem:[%s1 + $0xeb8] sm:$0xff]
  %v506 = vld [vmem:[%s1 + $0xec0] sm:$0xff]
  %v507 = vld [vmem:[%s1 + $0xec8] sm:$0xff]
  %v508 = vld [vmem:[%s1 + $0xed0] sm:$0xff]
  %v509 = vld [vmem:[%s1 + $0xed8] sm:$0xff]
  %v510 = vld [vmem:[%s1 + $0xee0] sm:$0xff]
  %v511 = vld [vmem:[%s1 + $0xee8] sm:$0xff]
  %v512 = vld [vmem:[%s1 + $0xef0] sm:$0xff]
  %v513 = vld [vmem:[%s1 + $0xef8] sm:$0xff]
  %v514 = vld [vmem:[%s1 + $0xf00] sm:$0xff]
  %v515 = vld [vmem:[%s1 + $0xf08] sm:$0xff]
  %v516 = vld [vmem:[%s1 + $0xf10] sm:$0xff]
  %v517 = vld [vmem:[%s1 + $0xf18] sm:$0xff]
  %v518 = vld [vmem:[%s1 + $0xf20] sm:$0xff]
  %v519 = vld [vmem:[%s1 + $0xf28] sm:$0xff]
  %v520 = vld [vmem:[%s1 + $0xf30] sm:$0xff]
  %v521 = vld [vmem:[%s1 + $0xf38] sm:$0xff]
  %v522 = vld [vmem:[%s1 + $0xf40] sm:$0xff]
  %v523 = vld [vmem:[%s1 + $0xf48] sm:$0xff]
  %v524 = vld [vmem:[%s1 + $0xf50] sm:$0xff]
  %v525 = vld [vmem:[%s1 + $0xf58] sm:$0xff]
  %v526 = vld [vmem:[%s1 + $0xf60] sm:$0xff]
  %v527 = vld [vmem:[%s1 + $0xf68] sm:$0xff]
  %v528 = vld [vmem:[%s1 + $0xf70] sm:$0xff]
  %v529 = vld [vmem:[%s1 + $0xf78] sm:$0xff]
  %v530 = vld [vmem:[%s1 + $0xf80] sm:$0xff]
  %v531 = vld [vmem:[%s1 + $0xf88] sm:$0xff]
  %v532 = vld [vmem:[%s1 + $0xf90] sm:$0xff]
  %v533 = vld [vmem:[%s1 + $0xf98] sm:$0xff]
  %v534 = vld [vmem:[%s1 + $0xfa0] sm:$0xff]
  %v535 = vld [vmem:[%s1 + $0xfa8] sm:$0xff]
  %v536 = vld [vmem:[%s1 + $0xfb0] sm:$0xff]
  %v537 = vld [vmem:[%s1 + $0xfb8] sm:$0xff]
  %v538 = vld [vmem:[%s1 + $0xfc0] sm:$0xff]
  %v539 = vld [vmem:[%s1 + $0xfc8] sm:$0xff]
  %v540 = vld [vmem:[%s1 + $0xfd0] sm:$0xff]
  %v541 = vld [vmem:[%s1 + $0xfd8] sm:$0xff]
  %v542 = vld [vmem:[%s1 + $0xfe0] sm:$0xff]
  %v543 = vld [vmem:[%s1 + $0xfe8] sm:$0xff]
  %v544 = vld [vmem:[%s1 + $0xff0] sm:$0xff]
  %v545 = vld [vmem:[%s1 + $0xff8] sm:$0xff]
  %v546 = vld [vmem:[%s1 + $0x1000] sm:$0xff]
  %v547 = vld [vmem:[%s1 + $0x1008] sm:$0xff]
  %v548 = vld [vmem:[%s1 + $0x1010] sm:$0xff]
  %v549 = vld [vmem:[%s1 + $0x1018] sm:$0xff]
  %v550 = vld [vmem:[%s1 + $0x1020] sm:$0xff]
  %v551 = vld [vmem:[%s1 + $0x1028] sm:$0xff]
  %v552 = vld [vmem:[%s1 + $0x1030] sm:$0xff]
  %v553 = vld [vmem:[%s1 + $0x1038] sm:$0xff]
  %v554 = vld [vmem:[%s1 + $0x1040] sm:$0xff]
  %v555 = vld [vmem:[%s1 + $0x1048] sm:$0xff]
  %v556 = vld [vmem:[%s1 + $0x1050] sm:$0xff]
  %v557 = vld [vmem:[%s1 + $0x1058] sm:$0xff]
  %v558 = vld [vmem:[%s1 + $0x1060] sm:$0xff]
  %v559 = vld [vmem:[%s1 + $0x1068] sm:$0xff]
  %v560 = vld [vmem:[%s1 + $0x1070] sm:$0xff]
  %v561 = vld [vmem:[%s1 + $0x1078] sm:$0xff]
  %v562 = vld [vmem:[%s1 + $0x1080] sm:$0xff]
  %v563 = vld [vmem:[%s1 + $0x1088] sm:$0xff]
  %v564 = vld [vmem:[%s1 + $0x1090] sm:$0xff]
  %v565 = vld [vmem:[%s1 + $0x1098] sm:$0xff]
  %v566 = vld [vmem:[%s1 + $0x10a0] sm:$0xff]
  %v567 = vld [vmem:[%s1 + $0x10a8] sm:$0xff]
  %v568 = vld [vmem:[%s1 + $0x10b0] sm:$0xff]
  %v569 = vld [vmem:[%s1 + $0x10b8] sm:$0xff]
  %v570 = vld [vmem:[%s1 + $0x10c0] sm:$0xff]
  %v571 = vld [vmem:[%s1 + $0x10c8] sm:$0xff]
  %v572 = vld [vmem:[%s1 + $0x10d0] sm:$0xff]
  %v573 = vld [vmem:[%s1 + $0x10d8] sm:$0xff]
  %v574 = vld [vmem:[%s1 + $0x10e0] sm:$0xff]
  %v575 = vld [vmem:[%s1 + $0x10e8] sm:$0xff]
  %v576 = vld [vmem:[%s1 + $0x10f0] sm:$0xff]
  %v577 = vld [vmem:[%s1 + $0x10f8] sm:$0xff]
  %v578 = vld [vmem:[%s1 + $0x1100] sm:$0xff]
  %v579 = vld [vmem:[%s1 + $0x1108] sm:$0xff]
  %v580 = vld [vmem:[%s1 + $0x1110] sm:$0xff]
  %v581 = vld [vmem:[%s1 + $0x1118] sm:$0xff]
  %v582 = vld [vmem:[%s1 + $0x1120] sm:$0xff]
  %v583 = vld [vmem:[%s1 + $0x1128] sm:$0xff]
  %v584 = vld [vmem:[%s1 + $0x1130] sm:$0xff]
  %v585 = vld [vmem:[%s1 + $0x1138] sm:$0xff]
  %v586 = vld [vmem:[%s1 + $0x1140] sm:$0xff]
  %v587 = vld [vmem:[%s1 + $0x1148] sm:$0xff]
  %v588 = vld [vmem:[%s1 + $0x1150] sm:$0xff]
  %v589 = vld [vmem:[%s1 + $0x1158] sm:$0xff]
  %v590 = vld [vmem:[%s1 + $0x1160] sm:$0xff]
  %v591 = vld [vmem:[%s1 + $0x1168] sm:$0xff]
  %v592 = vld [vmem:[%s1 + $0x1170] sm:$0xff]
  %v593 = vld [vmem:[%s1 + $0x1178] sm:$0xff]
  %v594 = vld [vmem:[%s1 + $0x1180] sm:$0xff]
  %v595 = vld [vmem:[%s1 + $0x1188] sm:$0xff]
  %v596 = vld [vmem:[%s1 + $0x1190] sm:$0xff]
  %v597 = vld [vmem:[%s1 + $0x1198] sm:$0xff]
  %v598 = vld [vmem:[%s1 + $0x11a0] sm:$0xff]
  %v599 = vld [vmem:[%s1 + $0x11a8] sm:$0xff]
  %v600 = vld [vmem:[%s1 + $0x11b0] sm:$0xff]
  %v601 = vld [vmem:[%s1 + $0x11b8] sm:$0xff]
  %v602 = vld [vmem:[%s1 + $0x11c0] sm:$0xff]
  %v603 = vld [vmem:[%s1 + $0x11c8] sm:$0xff]
  %v604 = vld [vmem:[%s1 + $0x11d0] sm:$0xff]
  %v605 = vld [vmem:[%s1 + $0x11d8] sm:$0xff]
  %v606 = vld [vmem:[%s1 + $0x11e0] sm:$0xff]
  %v607 = vld [vmem:[%s1 + $0x11e8] sm:$0xff]
  %v608 = vld [vmem:[%s1 + $0x11f0] sm:$0xff]
  %v609 = vld [vmem:[%s1 + $0x11f8] sm:$0xff]
  %v610 = vld [vmem:[%s1 + $0x1200] sm:$0xff]
  %v611 = vld [vmem:[%s1 + $0x1208] sm:$0xff]
  %v612 = vld [vmem:[%s1 + $0x1210] sm:$0xff]
  %v613 = vld [vmem:[%s1 + $0x1218] sm:$0xff]
  %v614 = vld [vmem:[%s1 + $0x1220] sm:$0xff]
  %v615 = vld [vmem:[%s1 + $0x1228] sm:$0xff]
  %v616 = vld [vmem:[%s1 + $0x1230] sm:$0xff]
  %v617 = vld [vmem:[%s1 + $0x1238] sm:$0xff]
  %v618 = vld [vmem:[%s1 + $0x1240] sm:$0xff]
  %v619 = vld [vmem:[%s1 + $0x1248] sm:$0xff]
  %v620 = vld [vmem:[%s1 + $0x1250] sm:$0xff]
  %v621 = vld [vmem:[%s1 + $0x1258] sm:$0xff]
  %v622 = vld [vmem:[%s1 + $0x1260] sm:$0xff]
  %v623 = vld [vmem:[%s1 + $0x1268] sm:$0xff]
  %v624 = vld [vmem:[%s1 + $0x1270] sm:$0xff]
  %v625 = vld [vmem:[%s1 + $0x1278] sm:$0xff]
  %v626 = vld [vmem:[%s1 + $0x1280] sm:$0xff]
  %v627 = vld [vmem:[%s1 + $0x1288] sm:$0xff]
  %v628 = vld [vmem:[%s1 + $0x1290] sm:$0xff]
  %v629 = vld [vmem:[%s1 + $0x1298] sm:$0xff]
  %v630 = vld [vmem:[%s1 + $0x12a0] sm:$0xff]
  %v631 = vld [vmem:[%s1 + $0x12a8] sm:$0xff]
  %v632 = vld [vmem:[%s1 + $0x12b0] sm:$0xff]
  %v633 = vld [vmem:[%s1 + $0x12b8] sm:$0xff]
  %v634 = vld [vmem:[%s1 + $0x12c0] sm:$0xff]
  %v635 = vld [vmem:[%s1 + $0x12c8] sm:$0xff]
  %v636 = vld [vmem:[%s1 + $0x12d0] sm:$0xff]
  %v637 = vld [vmem:[%s1 + $0x12d8] sm:$0xff]
  %v638 = vld [vmem:[%s1 + $0x12e0] sm:$0xff]
  %v639 = vld [vmem:[%s1 + $0x12e8] sm:$0xff]
  %v640 = vld [vmem:[%s1 + $0x12f0] sm:$0xff]
  %v641 = vld [vmem:[%s1 + $0x12f8] sm:$0xff]
  %v642 = vld [vmem:[%s1 + $0x1300] sm:$0xff]
  %v643 = vld [vmem:[%s1 + $0x1308] sm:$0xff]
  %v644 = vld [vmem:[%s1 + $0x1310] sm:$0xff]
  %v645 = vld [vmem:[%s1 + $0x1318] sm:$0xff]
  %v646 = vld [vmem:[%s1 + $0x1320] sm:$0xff]
  %v647 = vld [vmem:[%s1 + $0x1328] sm:$0xff]
  %v648 = vld [vmem:[%s1 + $0x1330] sm:$0xff]
  %v649 = vld [vmem:[%s1 + $0x1338] sm:$0xff]
  %v650 = vld [vmem:[%s1 + $0x1340] sm:$0xff]
  %v651 = vld [vmem:[%s1 + $0x1348] sm:$0xff]
  %v652 = vld [vmem:[%s1 + $0x1350] sm:$0xff]
  %v653 = vld [vmem:[%s1 + $0x1358] sm:$0xff]
  %v654 = vld [vmem:[%s1 + $0x1360] sm:$0xff]
  %v655 = vld [vmem:[%s1 + $0x1368] sm:$0xff]
  %v656 = vld [vmem:[%s1 + $0x1370] sm:$0xff]
  %v657 = vld [vmem:[%s1 + $0x1378] sm:$0xff]
  %v658 = vld [vmem:[%s1 + $0x1380] sm:$0xff]
  %v659 = vld [vmem:[%s1 + $0x1388] sm:$0xff]
  %v660 = vld [vmem:[%s1 + $0x1390] sm:$0xff]
  %v661 = vld [vmem:[%s1 + $0x1398] sm:$0xff]
  %v662 = vld [vmem:[%s1 + $0x13a0] sm:$0xff]
  %v663 = vld [vmem:[%s1 + $0x13a8] sm:$0xff]
  %v664 = vld [vmem:[%s1 + $0x13b0] sm:$0xff]
  %v665 = vld [vmem:[%s1 + $0x13b8] sm:$0xff]
  %v666 = vld [vmem:[%s1 + $0x13c0] sm:$0xff]
  %v667 = vld [vmem:[%s1 + $0x13c8] sm:$0xff]
  %v668 = vld [vmem:[%s1 + $0x13d0] sm:$0xff]
  %v669 = vld [vmem:[%s1 + $0x13d8] sm:$0xff]
  %v670 = vld [vmem:[%s1 + $0x13e0] sm:$0xff]
  %v671 = vld [vmem:[%s1 + $0x13e8] sm:$0xff]
  %v672 = vld [vmem:[%s1 + $0x13f0] sm:$0xff]
  %v673 = vld [vmem:[%s1 + $0x13f8] sm:$0xff]
  %v674 = vld [vmem:[%s1 + $0x1400] sm:$0xff]
  %v675 = vld [vmem:[%s1 + $0x1408] sm:$0xff]
  %v676 = vld [vmem:[%s1 + $0x1410] sm:$0xff]
  %v677 = vld [vmem:[%s1 + $0x1418] sm:$0xff]
  %v678 = vld [vmem:[%s1 + $0x1420] sm:$0xff]
  %v679 = vld [vmem:[%s1 + $0x1428] sm:$0xff]
  %v680 = vld [vmem:[%s1 + $0x1430] sm:$0xff]
  %v681 = vld [vmem:[%s1 + $0x1438] sm:$0xff]
  %v682 = vld [vmem:[%s1 + $0x1440] sm:$0xff]
  %v683 = vld [vmem:[%s1 + $0x1448] sm:$0xff]
  %v684 = vld [vmem:[%s1 + $0x1450] sm:$0xff]
  %v685 = vld [vmem:[%s1 + $0x1458] sm:$0xff]
  %v686 = vld [vmem:[%s1 + $0x1460] sm:$0xff]
  %v687 = vld [vmem:[%s1 + $0x1468] sm:$0xff]
  %v688 = vld [vmem:[%s1 + $0x1470] sm:$0xff]
  %v689 = vld [vmem:[%s1 + $0x1478] sm:$0xff]
  %v690 = vld [vmem:[%s1 + $0x1480] sm:$0xff]
  %v691 = vld [vmem:[%s1 + $0x1488] sm:$0xff]
  %v692 = vld [vmem:[%s1 + $0x1490] sm:$0xff]
  %v693 = vld [vmem:[%s1 + $0x1498] sm:$0xff]
  %v694 = vld [vmem:[%s1 + $0x14a0] sm:$0xff]
  %v695 = vld [vmem:[%s1 + $0x14a8] sm:$0xff]
  %v696 = vld [vmem:[%s1 + $0x14b0] sm:$0xff]
  %v697 = vld [vmem:[%s1 + $0x14b8] sm:$0xff]
  %v698 = vld [vmem:[%s1 + $0x14c0] sm:$0xff]
  %v699 = vld [vmem:[%s1 + $0x14c8] sm:$0xff]
  %v700 = vld [vmem:[%s1 + $0x14d0] sm:$0xff]
  %v701 = vld [vmem:[%s1 + $0x14d8] sm:$0xff]
  %v702 = vld [vmem:[%s1 + $0x14e0] sm:$0xff]
  %v703 = vld [vmem:[%s1 + $0x14e8] sm:$0xff]
  %v704 = vld [vmem:[%s1 + $0x14f0] sm:$0xff]
  %v705 = vld [vmem:[%s1 + $0x14f8] sm:$0xff]
  %v706 = vld [vmem:[%s1 + $0x1500] sm:$0xff]
  %v707 = vld [vmem:[%s1 + $0x1508] sm:$0xff]
  %v708 = vld [vmem:[%s1 + $0x1510] sm:$0xff]
  %v709 = vld [vmem:[%s1 + $0x1518] sm:$0xff]
  %v710 = vld [vmem:[%s1 + $0x1520] sm:$0xff]
  %v711 = vld [vmem:[%s1 + $0x1528] sm:$0xff]
  %v712 = vld [vmem:[%s1 + $0x1530] sm:$0xff]
  %v713 = vld [vmem:[%s1 + $0x1538] sm:$0xff]
  %v714 = vld [vmem:[%s1 + $0x1540] sm:$0xff]
  %v715 = vld [vmem:[%s1 + $0x1548] sm:$0xff]
  %v716 = vld [vmem:[%s1 + $0x1550] sm:$0xff]
  %v717 = vld [vmem:[%s1 + $0x1558] sm:$0xff]
  %v718 = vld [vmem:[%s1 + $0x1560] sm:$0xff]
  %v719 = vld [vmem:[%s1 + $0x1568] sm:$0xff]
  %v720 = vld [vmem:[%s1 + $0x1570] sm:$0xff]
  %v721 = vld [vmem:[%s1 + $0x1578] sm:$0xff]
  %v722 = vld [vmem:[%s1 + $0x1580] sm:$0xff]
  %v723 = vld [vmem:[%s1 + $0x1588] sm:$0xff]
  %v724 = vld [vmem:[%s1 + $0x1590] sm:$0xff]
  %v725 = vld [vmem:[%s1 + $0x1598] sm:$0xff]
  %v726 = vld [vmem:[%s1 + $0x15a0] sm:$0xff]
  %v727 = vld [vmem:[%s1 + $0x15a8] sm:$0xff]
  %v728 = vld [vmem:[%s1 + $0x15b0] sm:$0xff]
  %v729 = vld [vmem:[%s1 + $0x15b8] sm:$0xff]
  %v730 = vld [vmem:[%s1 + $0x15c0] sm:$0xff]
  %v731 = vld [vmem:[%s1 + $0x15c8] sm:$0xff]
  %v732 = vld [vmem:[%s1 + $0x15d0] sm:$0xff]
  %v733 = vld [vmem:[%s1 + $0x15d8] sm:$0xff]
  %v734 = vld [vmem:[%s1 + $0x15e0] sm:$0xff]
  %v735 = vld [vmem:[%s1 + $0x15e8] sm:$0xff]
  %v736 = vld [vmem:[%s1 + $0x15f0] sm:$0xff]
  %v737 = vld [vmem:[%s1 + $0x15f8] sm:$0xff]
  %v738 = vld [vmem:[%s1 + $0x1600] sm:$0xff]
  %v739 = vld [vmem:[%s1 + $0x1608] sm:$0xff]
  %v740 = vld [vmem:[%s1 + $0x1610] sm:$0xff]
  %v741 = vld [vmem:[%s1 + $0x1618] sm:$0xff]
  %v742 = vld [vmem:[%s1 + $0x1620] sm:$0xff]
  %v743 = vld [vmem:[%s1 + $0x1628] sm:$0xff]
  %v744 = vld [vmem:[%s1 + $0x1630] sm:$0xff]
  %v745 = vld [vmem:[%s1 + $0x1638] sm:$0xff]
  %v746 = vld [vmem:[%s1 + $0x1640] sm:$0xff]
  %v747 = vld [vmem:[%s1 + $0x1648] sm:$0xff]
  %v748 = vld [vmem:[%s1 + $0x1650] sm:$0xff]
  %v749 = vld [vmem:[%s1 + $0x1658] sm:$0xff]
  %v750 = vld [vmem:[%s1 + $0x1660] sm:$0xff]
  %v751 = vld [vmem:[%s1 + $0x1668] sm:$0xff]
  %v752 = vld [vmem:[%s1 + $0x1670] sm:$0xff]
  %v753 = vld [vmem:[%s1 + $0x1678] sm:$0xff]
  %v754 = vld [vmem:[%s1 + $0x1680] sm:$0xff]
  %v755 = vld [vmem:[%s1 + $0x1688] sm:$0xff]
  %v756 = vld [vmem:[%s1 + $0x1690] sm:$0xff]
  %v757 = vld [vmem:[%s1 + $0x1698] sm:$0xff]
  %v758 = vld [vmem:[%s1 + $0x16a0] sm:$0xff]
  %v759 = vld [vmem:[%s1 + $0x16a8] sm:$0xff]
  %v760 = vld [vmem:[%s1 + $0x16b0] sm:$0xff]
  %v761 = vld [vmem:[%s1 + $0x16b8] sm:$0xff]
  %v762 = vld [vmem:[%s1 + $0x16c0] sm:$0xff]
  %v763 = vld [vmem:[%s1 + $0x16c8] sm:$0xff]
  %v764 = vld [vmem:[%s1 + $0x16d0] sm:$0xff]
  %v765 = vld [vmem:[%s1 + $0x16d8] sm:$0xff]
  %v766 = vld [vmem:[%s1 + $0x16e0] sm:$0xff]
  %v767 = vld [vmem:[%s1 + $0x16e8] sm:$0xff]
  %v768 = vld [vmem:[%s1 + $0x16f0] sm:$0xff]
  %v769 = vld [vmem:[%s1 + $0x16f8] sm:$0xff]
  %v770 = vld [vmem:[%s1 + $0x1700] sm:$0xff]
  %v771 = vld [vmem:[%s1 + $0x1708] sm:$0xff]
  %v772 = vld [vmem:[%s1 + $0x1710] sm:$0xff]
  %v773 = vld [vmem:[%s1 + $0x1718] sm:$0xff]
  %v774 = vld [vmem:[%s1 + $0x1720] sm:$0xff]
  %v775 = vld [vmem:[%s1 + $0x1728] sm:$0xff]
  %v776 = vld [vmem:[%s1 + $0x1730] sm:$0xff]
  %v777 = vld [vmem:[%s1 + $0x1738] sm:$0xff]
  %v778 = vld [vmem:[%s1 + $0x1740] sm:$0xff]
  %v779 = vld [vmem:[%s1 + $0x1748] sm:$0xff]
  %v780 = vld [vmem:[%s1 + $0x1750] sm:$0xff]
  %v781 = vld [vmem:[%s1 + $0x1758] sm:$0xff]
  %v782 = vld [vmem:[%s1 + $0x1760] sm:$0xff]
  %v783 = vld [vmem:[%s1 + $0x1768] sm:$0xff]
  %v784 = vld [vmem:[%s1 + $0x1770] sm:$0xff]
  %v785 = vld [vmem:[%s1 + $0x1778] sm:$0xff]
  %v786 = vld [vmem:[%s1 + $0x1780] sm:$0xff]
  %v787 = vld [vmem:[%s1 + $0x1788] sm:$0xff]
  %v788 = vld [vmem:[%s1 + $0x1790] sm:$0xff]
  %v789 = vld [vmem:[%s1 + $0x1798] sm:$0xff]
  %v790 = vld [vmem:[%s1 + $0x17a0] sm:$0xff]
  %v791 = vld [vmem:[%s1 + $0x17a8] sm:$0xff]
  %v792 = vld [vmem:[%s1 + $0x17b0] sm:$0xff]
  %v793 = vld [vmem:[%s1 + $0x17b8] sm:$0xff]
  %v794 = vld [vmem:[%s1 + $0x17c0] sm:$0xff]
  %v795 = vld [vmem:[%s1 + $0x17c8] sm:$0xff]
  %v796 = vld [vmem:[%s1 + $0x17d0] sm:$0xff]
  %v797 = vld [vmem:[%s1 + $0x17d8] sm:$0xff]
  %v798 = vld [vmem:[%s1 + $0x17e0] sm:$0xff]
  %v799 = vld [vmem:[%s1 + $0x17e8] sm:$0xff]
  %v800 = vld [vmem:[%s1 + $0x17f0] sm:$0xff]
  %v801 = vld [vmem:[%s1 + $0x17f8] sm:$0xff]
  %v802 = vld [vmem:[%s1 + $0x1800] sm:$0xff]
  %v803 = vld [vmem:[%s1 + $0x1808] sm:$0xff]
  %v804 = vld [vmem:[%s1 + $0x1810] sm:$0xff]
  %v805 = vld [vmem:[%s1 + $0x1818] sm:$0xff]
  %v806 = vld [vmem:[%s1 + $0x1820] sm:$0xff]
  %v807 = vld [vmem:[%s1 + $0x1828] sm:$0xff]
  %v808 = vld [vmem:[%s1 + $0x1830] sm:$0xff]
  %v809 = vld [vmem:[%s1 + $0x1838] sm:$0xff]
  %v810 = vld [vmem:[%s1 + $0x1840] sm:$0xff]
  %v811 = vld [vmem:[%s1 + $0x1848] sm:$0xff]
  %v812 = vld [vmem:[%s1 + $0x1850] sm:$0xff]
  %v813 = vld [vmem:[%s1 + $0x1858] sm:$0xff]
  %v814 = vld [vmem:[%s1 + $0x1860] sm:$0xff]
  %v815 = vld [vmem:[%s1 + $0x1868] sm:$0xff]
  %v816 = vld [vmem:[%s1 + $0x1870] sm:$0xff]
  %v817 = vld [vmem:[%s1 + $0x1878] sm:$0xff]
  %v818 = vld [vmem:[%s1 + $0x1880] sm:$0xff]
  %v819 = vld [vmem:[%s1 + $0x1888] sm:$0xff]
  %v820 = vld [vmem:[%s1 + $0x1890] sm:$0xff]
  %v821 = vld [vmem:[%s1 + $0x1898] sm:$0xff]
  %v822 = vld [vmem:[%s1 + $0x18a0] sm:$0xff]
  %v823 = vld [vmem:[%s1 + $0x18a8] sm:$0xff]
  %v824 = vld [vmem:[%s1 + $0x18b0] sm:$0xff]
  %v825 = vld [vmem:[%s1 + $0x18b8] sm:$0xff]
  %v826 = vld [vmem:[%s1 + $0x18c0] sm:$0xff]
  %v827 = vld [vmem:[%s1 + $0x18c8] sm:$0xff]
  %v828 = vld [vmem:[%s1 + $0x18d0] sm:$0xff]
  %v829 = vld [vmem:[%s1 + $0x18d8] sm:$0xff]
  %v830 = vld [vmem:[%s1 + $0x18e0] sm:$0xff]
  %v831 = vld [vmem:[%s1 + $0x18e8] sm:$0xff]
  %v832 = vld [vmem:[%s1 + $0x18f0] sm:$0xff]
  %v833 = vld [vmem:[%s1 + $0x18f8] sm:$0xff]
  %v834 = vld [vmem:[%s1 + $0x1900] sm:$0xff]
  %v835 = vld [vmem:[%s1 + $0x1908] sm:$0xff]
  %v836 = vld [vmem:[%s1 + $0x1910] sm:$0xff]
  %v837 = vld [vmem:[%s1 + $0x1918] sm:$0xff]
  %v838 = vld [vmem:[%s1 + $0x1920] sm:$0xff]
  %v839 = vld [vmem:[%s1 + $0x1928] sm:$0xff]
  %v840 = vld [vmem:[%s1 + $0x1930] sm:$0xff]
  %v841 = vld [vmem:[%s1 + $0x1938] sm:$0xff]
  %v842 = vld [vmem:[%s1 + $0x1940] sm:$0xff]
  %v843 = vld [vmem:[%s1 + $0x1948] sm:$0xff]
  %v844 = vld [vmem:[%s1 + $0x1950] sm:$0xff]
  %v845 = vld [vmem:[%s1 + $0x1958] sm:$0xff]
  %v846 = vld [vmem:[%s1 + $0x1960] sm:$0xff]
  %v847 = vld [vmem:[%s1 + $0x1968] sm:$0xff]
  %v848 = vld [vmem:[%s1 + $0x1970] sm:$0xff]
  %v849 = vld [vmem:[%s1 + $0x1978] sm:$0xff]
  %v850 = vld [vmem:[%s1 + $0x1980] sm:$0xff]
  %v851 = vld [vmem:[%s1 + $0x1988] sm:$0xff]
  %v852 = vld [vmem:[%s1 + $0x1990] sm:$0xff]
  %v853 = vld [vmem:[%s1 + $0x1998] sm:$0xff]
  %v854 = vld [vmem:[%s1 + $0x19a0] sm:$0xff]
  %v855 = vld [vmem:[%s1 + $0x19a8] sm:$0xff]
  %v856 = vld [vmem:[%s1 + $0x19b0] sm:$0xff]
  %v857 = vld [vmem:[%s1 + $0x19b8] sm:$0xff]
  %v858 = vld [vmem:[%s1 + $0x19c0] sm:$0xff]
  %v859 = vld [vmem:[%s1 + $0x19c8] sm:$0xff]
  %v860 = vld [vmem:[%s1 + $0x19d0] sm:$0xff]
  %v861 = vld [vmem:[%s1 + $0x19d8] sm:$0xff]
  %v862 = vld [vmem:[%s1 + $0x19e0] sm:$0xff]
  %v863 = vld [vmem:[%s1 + $0x19e8] sm:$0xff]
  %v864 = vld [vmem:[%s1 + $0x19f0] sm:$0xff]
  %v865 = vld [vmem:[%s1 + $0x19f8] sm:$0xff]
  %v866 = vld [vmem:[%s1 + $0x1a00] sm:$0xff]
  %v867 = vld [vmem:[%s1 + $0x1a08] sm:$0xff]
  %v868 = vld [vmem:[%s1 + $0x1a10] sm:$0xff]
  %v869 = vld [vmem:[%s1 + $0x1a18] sm:$0xff]
  %v870 = vld [vmem:[%s1 + $0x1a20] sm:$0xff]
  %v871 = vld [vmem:[%s1 + $0x1a28] sm:$0xff]
  %v872 = vld [vmem:[%s1 + $0x1a30] sm:$0xff]
  %v873 = vld [vmem:[%s1 + $0x1a38] sm:$0xff]
  %v874 = vld [vmem:[%s1 + $0x1a40] sm:$0xff]
  %v875 = vld [vmem:[%s1 + $0x1a48] sm:$0xff]
  %v876 = vld [vmem:[%s1 + $0x1a50] sm:$0xff]
  %v877 = vld [vmem:[%s1 + $0x1a58] sm:$0xff]
  %v878 = vld [vmem:[%s1 + $0x1a60] sm:$0xff]
  %v879 = vld [vmem:[%s1 + $0x1a68] sm:$0xff]
  %v880 = vld [vmem:[%s1 + $0x1a70] sm:$0xff]
  %v881 = vld [vmem:[%s1 + $0x1a78] sm:$0xff]
  %v882 = vld [vmem:[%s1 + $0x1a80] sm:$0xff]
  %v883 = vld [vmem:[%s1 + $0x1a88] sm:$0xff]
  %v884 = vld [vmem:[%s1 + $0x1a90] sm:$0xff]
  %v885 = vld [vmem:[%s1 + $0x1a98] sm:$0xff]
  %v886 = vld [vmem:[%s1 + $0x1aa0] sm:$0xff]
  %v887 = vld [vmem:[%s1 + $0x1aa8] sm:$0xff]
  %v888 = vld [vmem:[%s1 + $0x1ab0] sm:$0xff]
  %v889 = vld [vmem:[%s1 + $0x1ab8] sm:$0xff]
  %v890 = vld [vmem:[%s1 + $0x1ac0] sm:$0xff]
  %v891 = vld [vmem:[%s1 + $0x1ac8] sm:$0xff]
  %v892 = vld [vmem:[%s1 + $0x1ad0] sm:$0xff]
  %v893 = vld [vmem:[%s1 + $0x1ad8] sm:$0xff]
  %v894 = vld [vmem:[%s1 + $0x1ae0] sm:$0xff]
  %v895 = vld [vmem:[%s1 + $0x1ae8] sm:$0xff]
  %v896 = vld [vmem:[%s1 + $0x1af0] sm:$0xff]
  %v897 = vld [vmem:[%s1 + $0x1af8] sm:$0xff]
  %v898 = vld [vmem:[%s1 + $0x1b00] sm:$0xff]
  %v899 = vld [vmem:[%s1 + $0x1b08] sm:$0xff]
  %v900 = vld [vmem:[%s1 + $0x1b10] sm:$0xff]
  %v901 = vld [vmem:[%s1 + $0x1b18] sm:$0xff]
  %v902 = vld [vmem:[%s1 + $0x1b20] sm:$0xff]
  %v903 = vld [vmem:[%s1 + $0x1b28] sm:$0xff]
  %v904 = vld [vmem:[%s1 + $0x1b30] sm:$0xff]
  %v905 = vld [vmem:[%s1 + $0x1b38] sm:$0xff]
  %v906 = vld [vmem:[%s1 + $0x1b40] sm:$0xff]
  %v907 = vld [vmem:[%s1 + $0x1b48] sm:$0xff]
  %v908 = vld [vmem:[%s1 + $0x1b50] sm:$0xff]
  %v909 = vld [vmem:[%s1 + $0x1b58] sm:$0xff]
  %v910 = vld [vmem:[%s1 + $0x1b60] sm:$0xff]
  %v911 = vld [vmem:[%s1 + $0x1b68] sm:$0xff]
  %v912 = vld [vmem:[%s1 + $0x1b70] sm:$0xff]
  %v913 = vld [vmem:[%s1 + $0x1b78] sm:$0xff]
  %v914 = vld [vmem:[%s1 + $0x1b80] sm:$0xff]
  %v915 = vld [vmem:[%s1 + $0x1b88] sm:$0xff]
  %v916 = vld [vmem:[%s1 + $0x1b90] sm:$0xff]
  %v917 = vld [vmem:[%s1 + $0x1b98] sm:$0xff]
  %v918 = vld [vmem:[%s1 + $0x1ba0] sm:$0xff]
  %v919 = vld [vmem:[%s1 + $0x1ba8] sm:$0xff]
  %v920 = vld [vmem:[%s1 + $0x1bb0] sm:$0xff]
  %v921 = vld [vmem:[%s1 + $0x1bb8] sm:$0xff]
  %v922 = vld [vmem:[%s1 + $0x1bc0] sm:$0xff]
  %v923 = vld [vmem:[%s1 + $0x1bc8] sm:$0xff]
  %v924 = vld [vmem:[%s1 + $0x1bd0] sm:$0xff]
  %v925 = vld [vmem:[%s1 + $0x1bd8] sm:$0xff]
  %v926 = vld [vmem:[%s1 + $0x1be0] sm:$0xff]
  %v927 = vld [vmem:[%s1 + $0x1be8] sm:$0xff]
  %v928 = vld [vmem:[%s1 + $0x1bf0] sm:$0xff]
  %v929 = vld [vmem:[%s1 + $0x1bf8] sm:$0xff]
  %v930 = vld [vmem:[%s1 + $0x1c00] sm:$0xff]
  %v931 = vld [vmem:[%s1 + $0x1c08] sm:$0xff]
  %v932 = vld [vmem:[%s1 + $0x1c10] sm:$0xff]
  %v933 = vld [vmem:[%s1 + $0x1c18] sm:$0xff]
  %v934 = vld [vmem:[%s1 + $0x1c20] sm:$0xff]
  %v935 = vld [vmem:[%s1 + $0x1c28] sm:$0xff]
  %v936 = vld [vmem:[%s1 + $0x1c30] sm:$0xff]
  %v937 = vld [vmem:[%s1 + $0x1c38] sm:$0xff]
  %v938 = vld [vmem:[%s1 + $0x1c40] sm:$0xff]
  %v939 = vld [vmem:[%s1 + $0x1c48] sm:$0xff]
  %v940 = vld [vmem:[%s1 + $0x1c50] sm:$0xff]
  %v941 = vld [vmem:[%s1 + $0x1c58] sm:$0xff]
  %v942 = vld [vmem:[%s1 + $0x1c60] sm:$0xff]
  %v943 = vld [vmem:[%s1 + $0x1c68] sm:$0xff]
  %v944 = vld [vmem:[%s1 + $0x1c70] sm:$0xff]
  %v945 = vld [vmem:[%s1 + $0x1c78] sm:$0xff]
  %v946 = vld [vmem:[%s1 + $0x1c80] sm:$0xff]
  %v947 = vld [vmem:[%s1 + $0x1c88] sm:$0xff]
  %v948 = vld [vmem:[%s1 + $0x1c90] sm:$0xff]
  %v949 = vld [vmem:[%s1 + $0x1c98] sm:$0xff]
  %v950 = vld [vmem:[%s1 + $0x1ca0] sm:$0xff]
  %v951 = vld [vmem:[%s1 + $0x1ca8] sm:$0xff]
  %v952 = vld [vmem:[%s1 + $0x1cb0] sm:$0xff]
  %v953 = vld [vmem:[%s1 + $0x1cb8] sm:$0xff]
  %v954 = vld [vmem:[%s1 + $0x1cc0] sm:$0xff]
  %v955 = vld [vmem:[%s1 + $0x1cc8] sm:$0xff]
  %v956 = vld [vmem:[%s1 + $0x1cd0] sm:$0xff]
  %v957 = vld [vmem:[%s1 + $0x1cd8] sm:$0xff]
  %v958 = vld [vmem:[%s1 + $0x1ce0] sm:$0xff]
  %v959 = vld [vmem:[%s1 + $0x1ce8] sm:$0xff]
  %v960 = vld [vmem:[%s1 + $0x1cf0] sm:$0xff]
  %v961 = vld [vmem:[%s1 + $0x1cf8] sm:$0xff]
  %v962 = vld [vmem:[%s1 + $0x1d00] sm:$0xff]
  %v963 = vld [vmem:[%s1 + $0x1d08] sm:$0xff]
  %v964 = vld [vmem:[%s1 + $0x1d10] sm:$0xff]
  %v965 = vld [vmem:[%s1 + $0x1d18] sm:$0xff]
  %v966 = vld [vmem:[%s1 + $0x1d20] sm:$0xff]
  %v967 = vld [vmem:[%s1 + $0x1d28] sm:$0xff]
  %v968 = vld [vmem:[%s1 + $0x1d30] sm:$0xff]
  %v969 = vld [vmem:[%s1 + $0x1d38] sm:$0xff]
  %v970 = vld [vmem:[%s1 + $0x1d40] sm:$0xff]
  %v971 = vld [vmem:[%s1 + $0x1d48] sm:$0xff]
  %v972 = vld [vmem:[%s1 + $0x1d50] sm:$0xff]
  %v973 = vld [vmem:[%s1 + $0x1d58] sm:$0xff]
  %v974 = vld [vmem:[%s1 + $0x1d60] sm:$0xff]
  %v975 = vld [vmem:[%s1 + $0x1d68] sm:$0xff]
  %v976 = vld [vmem:[%s1 + $0x1d70] sm:$0xff]
  %v977 = vld [vmem:[%s1 + $0x1d78] sm:$0xff]
  %v978 = vld [vmem:[%s1 + $0x1d80] sm:$0xff]
  %v979 = vld [vmem:[%s1 + $0x1d88] sm:$0xff]
  %v980 = vld [vmem:[%s1 + $0x1d90] sm:$0xff]
  %v981 = vld [vmem:[%s1 + $0x1d98] sm:$0xff]
  %v982 = vld [vmem:[%s1 + $0x1da0] sm:$0xff]
  %v983 = vld [vmem:[%s1 + $0x1da8] sm:$0xff]
  %v984 = vld [vmem:[%s1 + $0x1db0] sm:$0xff]
  %v985 = vld [vmem:[%s1 + $0x1db8] sm:$0xff]
  %v986 = vld [vmem:[%s1 + $0x1dc0] sm:$0xff]
  %v987 = vld [vmem:[%s1 + $0x1dc8] sm:$0xff]
  %v988 = vld [vmem:[%s1 + $0x1dd0] sm:$0xff]
  %v989 = vld [vmem:[%s1 + $0x1dd8] sm:$0xff]
  %v990 = vld [vmem:[%s1 + $0x1de0] sm:$0xff]
  %v991 = vld [vmem:[%s1 + $0x1de8] sm:$0xff]
  %v992 = vld [vmem:[%s1 + $0x1df0] sm:$0xff]
  %v993 = vld [vmem:[%s1 + $0x1df8] sm:$0xff]
  %v994 = vld [vmem:[%s1 + $0x1e00] sm:$0xff]
  %v995 = vld [vmem:[%s1 + $0x1e08] sm:$0xff]
  %v996 = vld [vmem:[%s1 + $0x1e10] sm:$0xff]
  %v997 = vld [vmem:[%s1 + $0x1e18] sm:$0xff]
  %v998 = vld [vmem:[%s1 + $0x1e20] sm:$0xff]
  %v999 = vld [vmem:[%s1 + $0x1e28] sm:$0xff]
  %v1000 = vld [vmem:[%s1 + $0x1e30] sm:$0xff]
  %v1001 = vld [vmem:[%s1 + $0x1e38] sm:$0xff]
  %v1002 = vld [vmem:[%s1 + $0x1e40] sm:$0xff]
  %v1003 = vld [vmem:[%s1 + $0x1e48] sm:$0xff]
  %v1004 = vld [vmem:[%s1 + $0x1e50] sm:$0xff]
  %v1005 = vld [vmem:[%s1 + $0x1e58] sm:$0xff]
  %v1006 = vld [vmem:[%s1 + $0x1e60] sm:$0xff]
  %v1007 = vld [vmem:[%s1 + $0x1e68] sm:$0xff]
  %v1008 = vld [vmem:[%s1 + $0x1e70] sm:$0xff]
  %v1009 = vld [vmem:[%s1 + $0x1e78] sm:$0xff]
  %v1010 = vld [vmem:[%s1 + $0x1e80] sm:$0xff]
  %v1011 = vld [vmem:[%s1 + $0x1e88] sm:$0xff]
  %v1012 = vld [vmem:[%s1 + $0x1e90] sm:$0xff]
  %v1013 = vld [vmem:[%s1 + $0x1e98] sm:$0xff]
  %v1014 = vld [vmem:[%s1 + $0x1ea0] sm:$0xff]
  %v1015 = vld [vmem:[%s1 + $0x1ea8] sm:$0xff]
  %v1016 = vld [vmem:[%s1 + $0x1eb0] sm:$0xff]
  %v1017 = vld [vmem:[%s1 + $0x1eb8] sm:$0xff]
  %v1018 = vld [vmem:[%s1 + $0x1ec0] sm:$0xff]
  %v1019 = vld [vmem:[%s1 + $0x1ec8] sm:$0xff]
  %v1020 = vld [vmem:[%s1 + $0x1ed0] sm:$0xff]
  %v1021 = vld [vmem:[%s1 + $0x1ed8] sm:$0xff]
  %v1022 = vld [vmem:[%s1 + $0x1ee0] sm:$0xff]
  %v1023 = vld [vmem:[%s1 + $0x1ee8] sm:$0xff]
  %v1024 = vld [vmem:[%s1 + $0x1ef0] sm:$0xff]
  %v1025 = vld [vmem:[%s1 + $0x1ef8] sm:$0xff]
  %v1026 = vld [vmem:[%s1 + $0x1f00] sm:$0xff]
  %v1027 = vld [vmem:[%s1 + $0x1f08] sm:$0xff]
  %v1028 = vld [vmem:[%s1 + $0x1f10] sm:$0xff]
  %v1029 = vld [vmem:[%s1 + $0x1f18] sm:$0xff]
  %v1030 = vld [vmem:[%s1 + $0x1f20] sm:$0xff]
  %v1031 = vld [vmem:[%s1 + $0x1f28] sm:$0xff]
  %v1032 = vld [vmem:[%s1 + $0x1f30] sm:$0xff]
  %v1033 = vld [vmem:[%s1 + $0x1f38] sm:$0xff]
  %v1034 = vld [vmem:[%s1 + $0x1f40] sm:$0xff]
  %v1035 = vld [vmem:[%s1 + $0x1f48] sm:$0xff]
  %v1036 = vld [vmem:[%s1 + $0x1f50] sm:$0xff]
  %v1037 = vld [vmem:[%s1 + $0x1f58] sm:$0xff]
  %v1038 = vld [vmem:[%s1 + $0x1f60] sm:$0xff]
  %v1039 = vld [vmem:[%s1 + $0x1f68] sm:$0xff]
  %v1040 = vld [vmem:[%s1 + $0x1f70] sm:$0xff]
  %v1041 = vld [vmem:[%s1 + $0x1f78] sm:$0xff]
  %v1042 = vld [vmem:[%s1 + $0x1f80] sm:$0xff]
  %v1043 = vld [vmem:[%s1 + $0x1f88] sm:$0xff]
  %v1044 = vld [vmem:[%s1 + $0x1f90] sm:$0xff]
  %v1045 = vld [vmem:[%s1 + $0x1f98] sm:$0xff]
  %v1046 = vld [vmem:[%s1 + $0x1fa0] sm:$0xff]
  %v1047 = vld [vmem:[%s1 + $0x1fa8] sm:$0xff]
  %v1048 = vld [vmem:[%s1 + $0x1fb0] sm:$0xff]
  %v1049 = vld [vmem:[%s1 + $0x1fb8] sm:$0xff]
  %v1050 = vld [vmem:[%s1 + $0x1fc0] sm:$0xff]
  %v1051 = vld [vmem:[%s1 + $0x1fc8] sm:$0xff]
  %v1052 = vld [vmem:[%s1 + $0x1fd0] sm:$0xff]
  %v1053 = vld [vmem:[%s1 + $0x1fd8] sm:$0xff]
  %v1054 = vld [vmem:[%s1 + $0x1fe0] sm:$0xff]
  %v1055 = vld [vmem:[%s1 + $0x1fe8] sm:$0xff]
  %v1056 = vld [vmem:[%s1 + $0x1ff0] sm:$0xff]
  %v1057 = vld [vmem:[%s1 + $0x1ff8] sm:$0xff]
  %v1058 = vld [vmem:[%s2] sm:$0xff]
  %v1060 = vperm.slane %v1058, 0
  %v1061 = vperm.slane %v1058, 1
  %v1062 = vperm.slane %v1058, 2
  %v1063 = vperm.slane %v1058, 3
  %v1064 = vperm.slane %v1058, 4
  %v1065 = vperm.slane %v1058, 5
  %v1066 = vperm.slane %v1058, 6
  %v1067 = vperm.slane %v1058, 7
  %1076 = vmatpush.msra.mxu0 %v154
  %1077 = vmatpush.msra.mxu0 %v146
  %1078 = vmatpush.msra.mxu0 %v138
  %1079 = vmatpush.msra.mxu0 %v130
  %1080 = vmatpush.msra.mxu0 %v122
  %1081 = vmatpush.msra.mxu0 %v114
  %1082 = vmatpush.msra.mxu0 %v106
  %1083 = vmatpush.msra.mxu0 %v98
  %1084 = vmatpush.msra.mxu0 %v90
  %1085 = vmatpush.msra.mxu0 %v82
  %1086 = vmatpush.msra.mxu0 %v74
  %1087 = vmatpush.msra.mxu0 %v66
  %1088 = vmatpush.msra.mxu0 %v58
  %1089 = vmatpush.msra.mxu0 %v50
  %1090 = vmatpush.msra.mxu0 %v42
  %1091 = vmatpush.msra.mxu0 %v34
  %1092 = vmatmul.f32.gmra.mxu0 %v26
  %v1093 = vpop.f32.mrf.mxu0
  %v1094 = vadd.f32 %v1060, %v1093
  %1095 = vdwg.mxu0
  %1096 = vmatpush.msra.mxu0 %v282
  %1097 = vmatpush.msra.mxu0 %v274
  %1098 = vmatpush.msra.mxu0 %v266
  %1099 = vmatpush.msra.mxu0 %v258
  %1100 = vmatpush.msra.mxu0 %v250
  %1101 = vmatpush.msra.mxu0 %v242
  %1102 = vmatpush.msra.mxu0 %v234
  %1103 = vmatpush.msra.mxu0 %v226
  %1104 = vmatpush.msra.mxu0 %v218
  %1105 = vmatpush.msra.mxu0 %v210
  %1106 = vmatpush.msra.mxu0 %v202
  %1107 = vmatpush.msra.mxu0 %v194
  %1108 = vmatpush.msra.mxu0 %v186
  %1109 = vmatpush.msra.mxu0 %v178
  %1110 = vmatpush.msra.mxu0 %v170
  %1111 = vmatpush.msra.mxu0 %v162
  %1112 = vmatmul.f32.gmra.mxu0 %v27
  %v1113 = vpop.f32.mrf.mxu0
  %v1114 = vadd.f32 %v1094, %v1113
  %1115 = vdwg.mxu0
  %1116 = vmatpush.msra.mxu0 %v410
  %1117 = vmatpush.msra.mxu0 %v402
  %1118 = vmatpush.msra.mxu0 %v394
  %1119 = vmatpush.msra.mxu0 %v386
  %1120 = vmatpush.msra.mxu0 %v378
  %1121 = vmatpush.msra.mxu0 %v370
  %1122 = vmatpush.msra.mxu0 %v362
  %1123 = vmatpush.msra.mxu0 %v354
  %1124 = vmatpush.msra.mxu0 %v346
  %1125 = vmatpush.msra.mxu0 %v338
  %1126 = vmatpush.msra.mxu0 %v330
  %1127 = vmatpush.msra.mxu0 %v322
  %1128 = vmatpush.msra.mxu0 %v314
  %1129 = vmatpush.msra.mxu0 %v306
  %1130 = vmatpush.msra.mxu0 %v298
  %1131 = vmatpush.msra.mxu0 %v290
  %1132 = vmatmul.f32.gmra.mxu0 %v28
  %v1133 = vpop.f32.mrf.mxu0
  %v1134 = vadd.f32 %v1114, %v1133
  %1135 = vdwg.mxu0
  %1136 = vmatpush.msra.mxu0 %v538
  %1137 = vmatpush.msra.mxu0 %v530
  %1138 = vmatpush.msra.mxu0 %v522
  %1139 = vmatpush.msra.mxu0 %v514
  %1140 = vmatpush.msra.mxu0 %v506
  %1141 = vmatpush.msra.mxu0 %v498
  %1142 = vmatpush.msra.mxu0 %v490
  %1143 = vmatpush.msra.mxu0 %v482
  %1144 = vmatpush.msra.mxu0 %v474
  %1145 = vmatpush.msra.mxu0 %v466
  %1146 = vmatpush.msra.mxu0 %v458
  %1147 = vmatpush.msra.mxu0 %v450
  %1148 = vmatpush.msra.mxu0 %v442
  %1149 = vmatpush.msra.mxu0 %v434
  %1150 = vmatpush.msra.mxu0 %v426
  %1151 = vmatpush.msra.mxu0 %v418
  %1152 = vmatmul.f32.gmra.mxu0 %v29
  %v1153 = vpop.f32.mrf.mxu0
  %v1154 = vadd.f32 %v1134, %v1153
  %1155 = vdwg.mxu0
  %1156 = vmatpush.msra.mxu0 %v666
  %1157 = vmatpush.msra.mxu0 %v658
  %1158 = vmatpush.msra.mxu0 %v650
  %1159 = vmatpush.msra.mxu0 %v642
  %1160 = vmatpush.msra.mxu0 %v634
  %1161 = vmatpush.msra.mxu0 %v626
  %1162 = vmatpush.msra.mxu0 %v618
  %1163 = vmatpush.msra.mxu0 %v610
  %1164 = vmatpush.msra.mxu0 %v602
  %1165 = vmatpush.msra.mxu0 %v594
  %1166 = vmatpush.msra.mxu0 %v586
  %1167 = vmatpush.msra.mxu0 %v578
  %1168 = vmatpush.msra.mxu0 %v570
  %1169 = vmatpush.msra.mxu0 %v562
  %1170 = vmatpush.msra.mxu0 %v554
  %1171 = vmatpush.msra.mxu0 %v546
  %1172 = vmatmul.f32.gmra.mxu0 %v30
  %v1173 = vpop.f32.mrf.mxu0
  %v1174 = vadd.f32 %v1154, %v1173
  %1175 = vdwg.mxu0
  %1176 = vmatpush.msra.mxu0 %v794
  %1177 = vmatpush.msra.mxu0 %v786
  %1178 = vmatpush.msra.mxu0 %v778
  %1179 = vmatpush.msra.mxu0 %v770
  %1180 = vmatpush.msra.mxu0 %v762
  %1181 = vmatpush.msra.mxu0 %v754
  %1182 = vmatpush.msra.mxu0 %v746
  %1183 = vmatpush.msra.mxu0 %v738
  %1184 = vmatpush.msra.mxu0 %v730
  %1185 = vmatpush.msra.mxu0 %v722
  %1186 = vmatpush.msra.mxu0 %v714
  %1187 = vmatpush.msra.mxu0 %v706
  %1188 = vmatpush.msra.mxu0 %v698
  %1189 = vmatpush.msra.mxu0 %v690
  %1190 = vmatpush.msra.mxu0 %v682
  %1191 = vmatpush.msra.mxu0 %v674
  %1192 = vmatmul.f32.gmra.mxu0 %v31
  %v1193 = vpop.f32.mrf.mxu0
  %v1194 = vadd.f32 %v1174, %v1193
  %1195 = vdwg.mxu0
  %1196 = vmatpush.msra.mxu0 %v922
  %1197 = vmatpush.msra.mxu0 %v914
  %1198 = vmatpush.msra.mxu0 %v906
  %1199 = vmatpush.msra.mxu0 %v898
  %1200 = vmatpush.msra.mxu0 %v890
  %1201 = vmatpush.msra.mxu0 %v882
  %1202 = vmatpush.msra.mxu0 %v874
  %1203 = vmatpush.msra.mxu0 %v866
  %1204 = vmatpush.msra.mxu0 %v858
  %1205 = vmatpush.msra.mxu0 %v850
  %1206 = vmatpush.msra.mxu0 %v842
  %1207 = vmatpush.msra.mxu0 %v834
  %1208 = vmatpush.msra.mxu0 %v826
  %1209 = vmatpush.msra.mxu0 %v818
  %1210 = vmatpush.msra.mxu0 %v810
  %1211 = vmatpush.msra.mxu0 %v802
  %1212 = vmatmul.f32.gmra.mxu0 %v32
  %v1213 = vpop.f32.mrf.mxu0
  %v1214 = vadd.f32 %v1194, %v1213
  %1215 = vdwg.mxu0
  %1216 = vmatpush.msra.mxu0 %v1050
  %1217 = vmatpush.msra.mxu0 %v1042
  %1218 = vmatpush.msra.mxu0 %v1034
  %1219 = vmatpush.msra.mxu0 %v1026
  %1220 = vmatpush.msra.mxu0 %v1018
  %1221 = vmatpush.msra.mxu0 %v1010
  %1222 = vmatpush.msra.mxu0 %v1002
  %1223 = vmatpush.msra.mxu0 %v994
  %1224 = vmatpush.msra.mxu0 %v986
  %1225 = vmatpush.msra.mxu0 %v978
  %1226 = vmatpush.msra.mxu0 %v970
  %1227 = vmatpush.msra.mxu0 %v962
  %1228 = vmatpush.msra.mxu0 %v954
  %1229 = vmatpush.msra.mxu0 %v946
  %1230 = vmatpush.msra.mxu0 %v938
  %1231 = vmatpush.msra.mxu0 %v930
  %1232 = vmatmul.f32.gmra.mxu0 %v33
  %v1233 = vpop.f32.mrf.mxu0
  %v1234 = vadd.f32 %v1214, %v1233
  %1235 = vdwg.mxu0
  %1236 = vmatpush.msra.mxu0 %v155
  %1237 = vmatpush.msra.mxu0 %v147
  %1238 = vmatpush.msra.mxu0 %v139
  %1239 = vmatpush.msra.mxu0 %v131
  %1240 = vmatpush.msra.mxu0 %v123
  %1241 = vmatpush.msra.mxu0 %v115
  %1242 = vmatpush.msra.mxu0 %v107
  %1243 = vmatpush.msra.mxu0 %v99
  %1244 = vmatpush.msra.mxu0 %v91
  %1245 = vmatpush.msra.mxu0 %v83
  %1246 = vmatpush.msra.mxu0 %v75
  %1247 = vmatpush.msra.mxu0 %v67
  %1248 = vmatpush.msra.mxu0 %v59
  %1249 = vmatpush.msra.mxu0 %v51
  %1250 = vmatpush.msra.mxu0 %v43
  %1251 = vmatpush.msra.mxu0 %v35
  %1252 = vmatmul.f32.gmra.mxu0 %v26
  %v1253 = vpop.f32.mrf.mxu0
  %v1254 = vadd.f32 %v1061, %v1253
  %1255 = vdwg.mxu0
  %1256 = vmatpush.msra.mxu0 %v283
  %1257 = vmatpush.msra.mxu0 %v275
  %1258 = vmatpush.msra.mxu0 %v267
  %1259 = vmatpush.msra.mxu0 %v259
  %1260 = vmatpush.msra.mxu0 %v251
  %1261 = vmatpush.msra.mxu0 %v243
  %1262 = vmatpush.msra.mxu0 %v235
  %1263 = vmatpush.msra.mxu0 %v227
  %1264 = vmatpush.msra.mxu0 %v219
  %1265 = vmatpush.msra.mxu0 %v211
  %1266 = vmatpush.msra.mxu0 %v203
  %1267 = vmatpush.msra.mxu0 %v195
  %1268 = vmatpush.msra.mxu0 %v187
  %1269 = vmatpush.msra.mxu0 %v179
  %1270 = vmatpush.msra.mxu0 %v171
  %1271 = vmatpush.msra.mxu0 %v163
  %1272 = vmatmul.f32.gmra.mxu0 %v27
  %v1273 = vpop.f32.mrf.mxu0
  %v1274 = vadd.f32 %v1254, %v1273
  %1275 = vdwg.mxu0
  %1276 = vmatpush.msra.mxu0 %v411
  %1277 = vmatpush.msra.mxu0 %v403
  %1278 = vmatpush.msra.mxu0 %v395
  %1279 = vmatpush.msra.mxu0 %v387
  %1280 = vmatpush.msra.mxu0 %v379
  %1281 = vmatpush.msra.mxu0 %v371
  %1282 = vmatpush.msra.mxu0 %v363
  %1283 = vmatpush.msra.mxu0 %v355
  %1284 = vmatpush.msra.mxu0 %v347
  %1285 = vmatpush.msra.mxu0 %v339
  %1286 = vmatpush.msra.mxu0 %v331
  %1287 = vmatpush.msra.mxu0 %v323
  %1288 = vmatpush.msra.mxu0 %v315
  %1289 = vmatpush.msra.mxu0 %v307
  %1290 = vmatpush.msra.mxu0 %v299
  %1291 = vmatpush.msra.mxu0 %v291
  %1292 = vmatmul.f32.gmra.mxu0 %v28
  %v1293 = vpop.f32.mrf.mxu0
  %v1294 = vadd.f32 %v1274, %v1293
  %1295 = vdwg.mxu0
  %1296 = vmatpush.msra.mxu0 %v539
  %1297 = vmatpush.msra.mxu0 %v531
  %1298 = vmatpush.msra.mxu0 %v523
  %1299 = vmatpush.msra.mxu0 %v515
  %1300 = vmatpush.msra.mxu0 %v507
  %1301 = vmatpush.msra.mxu0 %v499
  %1302 = vmatpush.msra.mxu0 %v491
  %1303 = vmatpush.msra.mxu0 %v483
  %1304 = vmatpush.msra.mxu0 %v475
  %1305 = vmatpush.msra.mxu0 %v467
  %1306 = vmatpush.msra.mxu0 %v459
  %1307 = vmatpush.msra.mxu0 %v451
  %1308 = vmatpush.msra.mxu0 %v443
  %1309 = vmatpush.msra.mxu0 %v435
  %1310 = vmatpush.msra.mxu0 %v427
  %1311 = vmatpush.msra.mxu0 %v419
  %1312 = vmatmul.f32.gmra.mxu0 %v29
  %v1313 = vpop.f32.mrf.mxu0
  %v1314 = vadd.f32 %v1294, %v1313
  %1315 = vdwg.mxu0
  %1316 = vmatpush.msra.mxu0 %v667
  %1317 = vmatpush.msra.mxu0 %v659
  %1318 = vmatpush.msra.mxu0 %v651
  %1319 = vmatpush.msra.mxu0 %v643
  %1320 = vmatpush.msra.mxu0 %v635
  %1321 = vmatpush.msra.mxu0 %v627
  %1322 = vmatpush.msra.mxu0 %v619
  %1323 = vmatpush.msra.mxu0 %v611
  %1324 = vmatpush.msra.mxu0 %v603
  %1325 = vmatpush.msra.mxu0 %v595
  %1326 = vmatpush.msra.mxu0 %v587
  %1327 = vmatpush.msra.mxu0 %v579
  %1328 = vmatpush.msra.mxu0 %v571
  %1329 = vmatpush.msra.mxu0 %v563
  %1330 = vmatpush.msra.mxu0 %v555
  %1331 = vmatpush.msra.mxu0 %v547
  %1332 = vmatmul.f32.gmra.mxu0 %v30
  %v1333 = vpop.f32.mrf.mxu0
  %v1334 = vadd.f32 %v1314, %v1333
  %1335 = vdwg.mxu0
  %1336 = vmatpush.msra.mxu0 %v795
  %1337 = vmatpush.msra.mxu0 %v787
  %1338 = vmatpush.msra.mxu0 %v779
  %1339 = vmatpush.msra.mxu0 %v771
  %1340 = vmatpush.msra.mxu0 %v763
  %1341 = vmatpush.msra.mxu0 %v755
  %1342 = vmatpush.msra.mxu0 %v747
  %1343 = vmatpush.msra.mxu0 %v739
  %1344 = vmatpush.msra.mxu0 %v731
  %1345 = vmatpush.msra.mxu0 %v723
  %1346 = vmatpush.msra.mxu0 %v715
  %1347 = vmatpush.msra.mxu0 %v707
  %1348 = vmatpush.msra.mxu0 %v699
  %1349 = vmatpush.msra.mxu0 %v691
  %1350 = vmatpush.msra.mxu0 %v683
  %1351 = vmatpush.msra.mxu0 %v675
  %1352 = vmatmul.f32.gmra.mxu0 %v31
  %v1353 = vpop.f32.mrf.mxu0
  %v1354 = vadd.f32 %v1334, %v1353
  %1355 = vdwg.mxu0
  %1356 = vmatpush.msra.mxu0 %v923
  %1357 = vmatpush.msra.mxu0 %v915
  %1358 = vmatpush.msra.mxu0 %v907
  %1359 = vmatpush.msra.mxu0 %v899
  %1360 = vmatpush.msra.mxu0 %v891
  %1361 = vmatpush.msra.mxu0 %v883
  %1362 = vmatpush.msra.mxu0 %v875
  %1363 = vmatpush.msra.mxu0 %v867
  %1364 = vmatpush.msra.mxu0 %v859
  %1365 = vmatpush.msra.mxu0 %v851
  %1366 = vmatpush.msra.mxu0 %v843
  %1367 = vmatpush.msra.mxu0 %v835
  %1368 = vmatpush.msra.mxu0 %v827
  %1369 = vmatpush.msra.mxu0 %v819
  %1370 = vmatpush.msra.mxu0 %v811
  %1371 = vmatpush.msra.mxu0 %v803
  %1372 = vmatmul.f32.gmra.mxu0 %v32
  %v1373 = vpop.f32.mrf.mxu0
  %v1374 = vadd.f32 %v1354, %v1373
  %1375 = vdwg.mxu0
  %1376 = vmatpush.msra.mxu0 %v1051
  %1377 = vmatpush.msra.mxu0 %v1043
  %1378 = vmatpush.msra.mxu0 %v1035
  %1379 = vmatpush.msra.mxu0 %v1027
  %1380 = vmatpush.msra.mxu0 %v1019
  %1381 = vmatpush.msra.mxu0 %v1011
  %1382 = vmatpush.msra.mxu0 %v1003
  %1383 = vmatpush.msra.mxu0 %v995
  %1384 = vmatpush.msra.mxu0 %v987
  %1385 = vmatpush.msra.mxu0 %v979
  %1386 = vmatpush.msra.mxu0 %v971
  %1387 = vmatpush.msra.mxu0 %v963
  %1388 = vmatpush.msra.mxu0 %v955
  %1389 = vmatpush.msra.mxu0 %v947
  %1390 = vmatpush.msra.mxu0 %v939
  %1391 = vmatpush.msra.mxu0 %v931
  %1392 = vmatmul.f32.gmra.mxu0 %v33
  %v1393 = vpop.f32.mrf.mxu0
  %v1394 = vadd.f32 %v1374, %v1393
  %1395 = vdwg.mxu0
  %1396 = vmatpush.msra.mxu0 %v156
  %1397 = vmatpush.msra.mxu0 %v148
  %1398 = vmatpush.msra.mxu0 %v140
  %1399 = vmatpush.msra.mxu0 %v132
  %1400 = vmatpush.msra.mxu0 %v124
  %1401 = vmatpush.msra.mxu0 %v116
  %1402 = vmatpush.msra.mxu0 %v108
  %1403 = vmatpush.msra.mxu0 %v100
  %1404 = vmatpush.msra.mxu0 %v92
  %1405 = vmatpush.msra.mxu0 %v84
  %1406 = vmatpush.msra.mxu0 %v76
  %1407 = vmatpush.msra.mxu0 %v68
  %1408 = vmatpush.msra.mxu0 %v60
  %1409 = vmatpush.msra.mxu0 %v52
  %1410 = vmatpush.msra.mxu0 %v44
  %1411 = vmatpush.msra.mxu0 %v36
  %1412 = vmatmul.f32.gmra.mxu0 %v26
  %v1413 = vpop.f32.mrf.mxu0
  %v1414 = vadd.f32 %v1062, %v1413
  %1415 = vdwg.mxu0
  %1416 = vmatpush.msra.mxu0 %v284
  %1417 = vmatpush.msra.mxu0 %v276
  %1418 = vmatpush.msra.mxu0 %v268
  %1419 = vmatpush.msra.mxu0 %v260
  %1420 = vmatpush.msra.mxu0 %v252
  %1421 = vmatpush.msra.mxu0 %v244
  %1422 = vmatpush.msra.mxu0 %v236
  %1423 = vmatpush.msra.mxu0 %v228
  %1424 = vmatpush.msra.mxu0 %v220
  %1425 = vmatpush.msra.mxu0 %v212
  %1426 = vmatpush.msra.mxu0 %v204
  %1427 = vmatpush.msra.mxu0 %v196
  %1428 = vmatpush.msra.mxu0 %v188
  %1429 = vmatpush.msra.mxu0 %v180
  %1430 = vmatpush.msra.mxu0 %v172
  %1431 = vmatpush.msra.mxu0 %v164
  %1432 = vmatmul.f32.gmra.mxu0 %v27
  %v1433 = vpop.f32.mrf.mxu0
  %v1434 = vadd.f32 %v1414, %v1433
  %1435 = vdwg.mxu0
  %1436 = vmatpush.msra.mxu0 %v412
  %1437 = vmatpush.msra.mxu0 %v404
  %1438 = vmatpush.msra.mxu0 %v396
  %1439 = vmatpush.msra.mxu0 %v388
  %1440 = vmatpush.msra.mxu0 %v380
  %1441 = vmatpush.msra.mxu0 %v372
  %1442 = vmatpush.msra.mxu0 %v364
  %1443 = vmatpush.msra.mxu0 %v356
  %1444 = vmatpush.msra.mxu0 %v348
  %1445 = vmatpush.msra.mxu0 %v340
  %1446 = vmatpush.msra.mxu0 %v332
  %1447 = vmatpush.msra.mxu0 %v324
  %1448 = vmatpush.msra.mxu0 %v316
  %1449 = vmatpush.msra.mxu0 %v308
  %1450 = vmatpush.msra.mxu0 %v300
  %1451 = vmatpush.msra.mxu0 %v292
  %1452 = vmatmul.f32.gmra.mxu0 %v28
  %v1453 = vpop.f32.mrf.mxu0
  %v1454 = vadd.f32 %v1434, %v1453
  %1455 = vdwg.mxu0
  %1456 = vmatpush.msra.mxu0 %v540
  %1457 = vmatpush.msra.mxu0 %v532
  %1458 = vmatpush.msra.mxu0 %v524
  %1459 = vmatpush.msra.mxu0 %v516
  %1460 = vmatpush.msra.mxu0 %v508
  %1461 = vmatpush.msra.mxu0 %v500
  %1462 = vmatpush.msra.mxu0 %v492
  %1463 = vmatpush.msra.mxu0 %v484
  %1464 = vmatpush.msra.mxu0 %v476
  %1465 = vmatpush.msra.mxu0 %v468
  %1466 = vmatpush.msra.mxu0 %v460
  %1467 = vmatpush.msra.mxu0 %v452
  %1468 = vmatpush.msra.mxu0 %v444
  %1469 = vmatpush.msra.mxu0 %v436
  %1470 = vmatpush.msra.mxu0 %v428
  %1471 = vmatpush.msra.mxu0 %v420
  %1472 = vmatmul.f32.gmra.mxu0 %v29
  %v1473 = vpop.f32.mrf.mxu0
  %v1474 = vadd.f32 %v1454, %v1473
  %1475 = vdwg.mxu0
  %1476 = vmatpush.msra.mxu0 %v668
  %1477 = vmatpush.msra.mxu0 %v660
  %1478 = vmatpush.msra.mxu0 %v652
  %1479 = vmatpush.msra.mxu0 %v644
  %1480 = vmatpush.msra.mxu0 %v636
  %1481 = vmatpush.msra.mxu0 %v628
  %1482 = vmatpush.msra.mxu0 %v620
  %1483 = vmatpush.msra.mxu0 %v612
  %1484 = vmatpush.msra.mxu0 %v604
  %1485 = vmatpush.msra.mxu0 %v596
  %1486 = vmatpush.msra.mxu0 %v588
  %1487 = vmatpush.msra.mxu0 %v580
  %1488 = vmatpush.msra.mxu0 %v572
  %1489 = vmatpush.msra.mxu0 %v564
  %1490 = vmatpush.msra.mxu0 %v556
  %1491 = vmatpush.msra.mxu0 %v548
  %1492 = vmatmul.f32.gmra.mxu0 %v30
  %v1493 = vpop.f32.mrf.mxu0
  %v1494 = vadd.f32 %v1474, %v1493
  %1495 = vdwg.mxu0
  %1496 = vmatpush.msra.mxu0 %v796
  %1497 = vmatpush.msra.mxu0 %v788
  %1498 = vmatpush.msra.mxu0 %v780
  %1499 = vmatpush.msra.mxu0 %v772
  %1500 = vmatpush.msra.mxu0 %v764
  %1501 = vmatpush.msra.mxu0 %v756
  %1502 = vmatpush.msra.mxu0 %v748
  %1503 = vmatpush.msra.mxu0 %v740
  %1504 = vmatpush.msra.mxu0 %v732
  %1505 = vmatpush.msra.mxu0 %v724
  %1506 = vmatpush.msra.mxu0 %v716
  %1507 = vmatpush.msra.mxu0 %v708
  %1508 = vmatpush.msra.mxu0 %v700
  %1509 = vmatpush.msra.mxu0 %v692
  %1510 = vmatpush.msra.mxu0 %v684
  %1511 = vmatpush.msra.mxu0 %v676
  %1512 = vmatmul.f32.gmra.mxu0 %v31
  %v1513 = vpop.f32.mrf.mxu0
  %v1514 = vadd.f32 %v1494, %v1513
  %1515 = vdwg.mxu0
  %1516 = vmatpush.msra.mxu0 %v924
  %1517 = vmatpush.msra.mxu0 %v916
  %1518 = vmatpush.msra.mxu0 %v908
  %1519 = vmatpush.msra.mxu0 %v900
  %1520 = vmatpush.msra.mxu0 %v892
  %1521 = vmatpush.msra.mxu0 %v884
  %1522 = vmatpush.msra.mxu0 %v876
  %1523 = vmatpush.msra.mxu0 %v868
  %1524 = vmatpush.msra.mxu0 %v860
  %1525 = vmatpush.msra.mxu0 %v852
  %1526 = vmatpush.msra.mxu0 %v844
  %1527 = vmatpush.msra.mxu0 %v836
  %1528 = vmatpush.msra.mxu0 %v828
  %1529 = vmatpush.msra.mxu0 %v820
  %1530 = vmatpush.msra.mxu0 %v812
  %1531 = vmatpush.msra.mxu0 %v804
  %1532 = vmatmul.f32.gmra.mxu0 %v32
  %v1533 = vpop.f32.mrf.mxu0
  %v1534 = vadd.f32 %v1514, %v1533
  %1535 = vdwg.mxu0
  %1536 = vmatpush.msra.mxu0 %v1052
  %1537 = vmatpush.msra.mxu0 %v1044
  %1538 = vmatpush.msra.mxu0 %v1036
  %1539 = vmatpush.msra.mxu0 %v1028
  %1540 = vmatpush.msra.mxu0 %v1020
  %1541 = vmatpush.msra.mxu0 %v1012
  %1542 = vmatpush.msra.mxu0 %v1004
  %1543 = vmatpush.msra.mxu0 %v996
  %1544 = vmatpush.msra.mxu0 %v988
  %1545 = vmatpush.msra.mxu0 %v980
  %1546 = vmatpush.msra.mxu0 %v972
  %1547 = vmatpush.msra.mxu0 %v964
  %1548 = vmatpush.msra.mxu0 %v956
  %1549 = vmatpush.msra.mxu0 %v948
  %1550 = vmatpush.msra.mxu0 %v940
  %1551 = vmatpush.msra.mxu0 %v932
  %1552 = vmatmul.f32.gmra.mxu0 %v33
  %v1553 = vpop.f32.mrf.mxu0
  %v1554 = vadd.f32 %v1534, %v1553
  %1555 = vdwg.mxu0
  %1556 = vmatpush.msra.mxu0 %v157
  %1557 = vmatpush.msra.mxu0 %v149
  %1558 = vmatpush.msra.mxu0 %v141
  %1559 = vmatpush.msra.mxu0 %v133
  %1560 = vmatpush.msra.mxu0 %v125
  %1561 = vmatpush.msra.mxu0 %v117
  %1562 = vmatpush.msra.mxu0 %v109
  %1563 = vmatpush.msra.mxu0 %v101
  %1564 = vmatpush.msra.mxu0 %v93
  %1565 = vmatpush.msra.mxu0 %v85
  %1566 = vmatpush.msra.mxu0 %v77
  %1567 = vmatpush.msra.mxu0 %v69
  %1568 = vmatpush.msra.mxu0 %v61
  %1569 = vmatpush.msra.mxu0 %v53
  %1570 = vmatpush.msra.mxu0 %v45
  %1571 = vmatpush.msra.mxu0 %v37
  %1572 = vmatmul.f32.gmra.mxu0 %v26
  %v1573 = vpop.f32.mrf.mxu0
  %v1574 = vadd.f32 %v1063, %v1573
  %1575 = vdwg.mxu0
  %1576 = vmatpush.msra.mxu0 %v285
  %1577 = vmatpush.msra.mxu0 %v277
  %1578 = vmatpush.msra.mxu0 %v269
  %1579 = vmatpush.msra.mxu0 %v261
  %1580 = vmatpush.msra.mxu0 %v253
  %1581 = vmatpush.msra.mxu0 %v245
  %1582 = vmatpush.msra.mxu0 %v237
  %1583 = vmatpush.msra.mxu0 %v229
  %1584 = vmatpush.msra.mxu0 %v221
  %1585 = vmatpush.msra.mxu0 %v213
  %1586 = vmatpush.msra.mxu0 %v205
  %1587 = vmatpush.msra.mxu0 %v197
  %1588 = vmatpush.msra.mxu0 %v189
  %1589 = vmatpush.msra.mxu0 %v181
  %1590 = vmatpush.msra.mxu0 %v173
  %1591 = vmatpush.msra.mxu0 %v165
  %1592 = vmatmul.f32.gmra.mxu0 %v27
  %v1593 = vpop.f32.mrf.mxu0
  %v1594 = vadd.f32 %v1574, %v1593
  %1595 = vdwg.mxu0
  %1596 = vmatpush.msra.mxu0 %v413
  %1597 = vmatpush.msra.mxu0 %v405
  %1598 = vmatpush.msra.mxu0 %v397
  %1599 = vmatpush.msra.mxu0 %v389
  %1600 = vmatpush.msra.mxu0 %v381
  %1601 = vmatpush.msra.mxu0 %v373
  %1602 = vmatpush.msra.mxu0 %v365
  %1603 = vmatpush.msra.mxu0 %v357
  %1604 = vmatpush.msra.mxu0 %v349
  %1605 = vmatpush.msra.mxu0 %v341
  %1606 = vmatpush.msra.mxu0 %v333
  %1607 = vmatpush.msra.mxu0 %v325
  %1608 = vmatpush.msra.mxu0 %v317
  %1609 = vmatpush.msra.mxu0 %v309
  %1610 = vmatpush.msra.mxu0 %v301
  %1611 = vmatpush.msra.mxu0 %v293
  %1612 = vmatmul.f32.gmra.mxu0 %v28
  %v1613 = vpop.f32.mrf.mxu0
  %v1614 = vadd.f32 %v1594, %v1613
  %1615 = vdwg.mxu0
  %1616 = vmatpush.msra.mxu0 %v541
  %1617 = vmatpush.msra.mxu0 %v533
  %1618 = vmatpush.msra.mxu0 %v525
  %1619 = vmatpush.msra.mxu0 %v517
  %1620 = vmatpush.msra.mxu0 %v509
  %1621 = vmatpush.msra.mxu0 %v501
  %1622 = vmatpush.msra.mxu0 %v493
  %1623 = vmatpush.msra.mxu0 %v485
  %1624 = vmatpush.msra.mxu0 %v477
  %1625 = vmatpush.msra.mxu0 %v469
  %1626 = vmatpush.msra.mxu0 %v461
  %1627 = vmatpush.msra.mxu0 %v453
  %1628 = vmatpush.msra.mxu0 %v445
  %1629 = vmatpush.msra.mxu0 %v437
  %1630 = vmatpush.msra.mxu0 %v429
  %1631 = vmatpush.msra.mxu0 %v421
  %1632 = vmatmul.f32.gmra.mxu0 %v29
  %v1633 = vpop.f32.mrf.mxu0
  %v1634 = vadd.f32 %v1614, %v1633
  %1635 = vdwg.mxu0
  %1636 = vmatpush.msra.mxu0 %v669
  %1637 = vmatpush.msra.mxu0 %v661
  %1638 = vmatpush.msra.mxu0 %v653
  %1639 = vmatpush.msra.mxu0 %v645
  %1640 = vmatpush.msra.mxu0 %v637
  %1641 = vmatpush.msra.mxu0 %v629
  %1642 = vmatpush.msra.mxu0 %v621
  %1643 = vmatpush.msra.mxu0 %v613
  %1644 = vmatpush.msra.mxu0 %v605
  %1645 = vmatpush.msra.mxu0 %v597
  %1646 = vmatpush.msra.mxu0 %v589
  %1647 = vmatpush.msra.mxu0 %v581
  %1648 = vmatpush.msra.mxu0 %v573
  %1649 = vmatpush.msra.mxu0 %v565
  %1650 = vmatpush.msra.mxu0 %v557
  %1651 = vmatpush.msra.mxu0 %v549
  %1652 = vmatmul.f32.gmra.mxu0 %v30
  %v1653 = vpop.f32.mrf.mxu0
  %v1654 = vadd.f32 %v1634, %v1653
  %1655 = vdwg.mxu0
  %1656 = vmatpush.msra.mxu0 %v797
  %1657 = vmatpush.msra.mxu0 %v789
  %1658 = vmatpush.msra.mxu0 %v781
  %1659 = vmatpush.msra.mxu0 %v773
  %1660 = vmatpush.msra.mxu0 %v765
  %1661 = vmatpush.msra.mxu0 %v757
  %1662 = vmatpush.msra.mxu0 %v749
  %1663 = vmatpush.msra.mxu0 %v741
  %1664 = vmatpush.msra.mxu0 %v733
  %1665 = vmatpush.msra.mxu0 %v725
  %1666 = vmatpush.msra.mxu0 %v717
  %1667 = vmatpush.msra.mxu0 %v709
  %1668 = vmatpush.msra.mxu0 %v701
  %1669 = vmatpush.msra.mxu0 %v693
  %1670 = vmatpush.msra.mxu0 %v685
  %1671 = vmatpush.msra.mxu0 %v677
  %1672 = vmatmul.f32.gmra.mxu0 %v31
  %v1673 = vpop.f32.mrf.mxu0
  %v1674 = vadd.f32 %v1654, %v1673
  %1675 = vdwg.mxu0
  %1676 = vmatpush.msra.mxu0 %v925
  %1677 = vmatpush.msra.mxu0 %v917
  %1678 = vmatpush.msra.mxu0 %v909
  %1679 = vmatpush.msra.mxu0 %v901
  %1680 = vmatpush.msra.mxu0 %v893
  %1681 = vmatpush.msra.mxu0 %v885
  %1682 = vmatpush.msra.mxu0 %v877
  %1683 = vmatpush.msra.mxu0 %v869
  %1684 = vmatpush.msra.mxu0 %v861
  %1685 = vmatpush.msra.mxu0 %v853
  %1686 = vmatpush.msra.mxu0 %v845
  %1687 = vmatpush.msra.mxu0 %v837
  %1688 = vmatpush.msra.mxu0 %v829
  %1689 = vmatpush.msra.mxu0 %v821
  %1690 = vmatpush.msra.mxu0 %v813
  %1691 = vmatpush.msra.mxu0 %v805
  %1692 = vmatmul.f32.gmra.mxu0 %v32
  %v1693 = vpop.f32.mrf.mxu0
  %v1694 = vadd.f32 %v1674, %v1693
  %1695 = vdwg.mxu0
  %1696 = vmatpush.msra.mxu0 %v1053
  %1697 = vmatpush.msra.mxu0 %v1045
  %1698 = vmatpush.msra.mxu0 %v1037
  %1699 = vmatpush.msra.mxu0 %v1029
  %1700 = vmatpush.msra.mxu0 %v1021
  %1701 = vmatpush.msra.mxu0 %v1013
  %1702 = vmatpush.msra.mxu0 %v1005
  %1703 = vmatpush.msra.mxu0 %v997
  %1704 = vmatpush.msra.mxu0 %v989
  %1705 = vmatpush.msra.mxu0 %v981
  %1706 = vmatpush.msra.mxu0 %v973
  %1707 = vmatpush.msra.mxu0 %v965
  %1708 = vmatpush.msra.mxu0 %v957
  %1709 = vmatpush.msra.mxu0 %v949
  %1710 = vmatpush.msra.mxu0 %v941
  %1711 = vmatpush.msra.mxu0 %v933
  %1712 = vmatmul.f32.gmra.mxu0 %v33
  %v1713 = vpop.f32.mrf.mxu0
  %v1714 = vadd.f32 %v1694, %v1713
  %1715 = vdwg.mxu0
  %1716 = vmatpush.msra.mxu0 %v158
  %1717 = vmatpush.msra.mxu0 %v150
  %1718 = vmatpush.msra.mxu0 %v142
  %1719 = vmatpush.msra.mxu0 %v134
  %1720 = vmatpush.msra.mxu0 %v126
  %1721 = vmatpush.msra.mxu0 %v118
  %1722 = vmatpush.msra.mxu0 %v110
  %1723 = vmatpush.msra.mxu0 %v102
  %1724 = vmatpush.msra.mxu0 %v94
  %1725 = vmatpush.msra.mxu0 %v86
  %1726 = vmatpush.msra.mxu0 %v78
  %1727 = vmatpush.msra.mxu0 %v70
  %1728 = vmatpush.msra.mxu0 %v62
  %1729 = vmatpush.msra.mxu0 %v54
  %1730 = vmatpush.msra.mxu0 %v46
  %1731 = vmatpush.msra.mxu0 %v38
  %1732 = vmatmul.f32.gmra.mxu0 %v26
  %v1733 = vpop.f32.mrf.mxu0
  %v1734 = vadd.f32 %v1064, %v1733
  %1735 = vdwg.mxu0
  %1736 = vmatpush.msra.mxu0 %v286
  %1737 = vmatpush.msra.mxu0 %v278
  %1738 = vmatpush.msra.mxu0 %v270
  %1739 = vmatpush.msra.mxu0 %v262
  %1740 = vmatpush.msra.mxu0 %v254
  %1741 = vmatpush.msra.mxu0 %v246
  %1742 = vmatpush.msra.mxu0 %v238
  %1743 = vmatpush.msra.mxu0 %v230
  %1744 = vmatpush.msra.mxu0 %v222
  %1745 = vmatpush.msra.mxu0 %v214
  %1746 = vmatpush.msra.mxu0 %v206
  %1747 = vmatpush.msra.mxu0 %v198
  %1748 = vmatpush.msra.mxu0 %v190
  %1749 = vmatpush.msra.mxu0 %v182
  %1750 = vmatpush.msra.mxu0 %v174
  %1751 = vmatpush.msra.mxu0 %v166
  %1752 = vmatmul.f32.gmra.mxu0 %v27
  %v1753 = vpop.f32.mrf.mxu0
  %v1754 = vadd.f32 %v1734, %v1753
  %1755 = vdwg.mxu0
  %1756 = vmatpush.msra.mxu0 %v414
  %1757 = vmatpush.msra.mxu0 %v406
  %1758 = vmatpush.msra.mxu0 %v398
  %1759 = vmatpush.msra.mxu0 %v390
  %1760 = vmatpush.msra.mxu0 %v382
  %1761 = vmatpush.msra.mxu0 %v374
  %1762 = vmatpush.msra.mxu0 %v366
  %1763 = vmatpush.msra.mxu0 %v358
  %1764 = vmatpush.msra.mxu0 %v350
  %1765 = vmatpush.msra.mxu0 %v342
  %1766 = vmatpush.msra.mxu0 %v334
  %1767 = vmatpush.msra.mxu0 %v326
  %1768 = vmatpush.msra.mxu0 %v318
  %1769 = vmatpush.msra.mxu0 %v310
  %1770 = vmatpush.msra.mxu0 %v302
  %1771 = vmatpush.msra.mxu0 %v294
  %1772 = vmatmul.f32.gmra.mxu0 %v28
  %v1773 = vpop.f32.mrf.mxu0
  %v1774 = vadd.f32 %v1754, %v1773
  %1775 = vdwg.mxu0
  %1776 = vmatpush.msra.mxu0 %v542
  %1777 = vmatpush.msra.mxu0 %v534
  %1778 = vmatpush.msra.mxu0 %v526
  %1779 = vmatpush.msra.mxu0 %v518
  %1780 = vmatpush.msra.mxu0 %v510
  %1781 = vmatpush.msra.mxu0 %v502
  %1782 = vmatpush.msra.mxu0 %v494
  %1783 = vmatpush.msra.mxu0 %v486
  %1784 = vmatpush.msra.mxu0 %v478
  %1785 = vmatpush.msra.mxu0 %v470
  %1786 = vmatpush.msra.mxu0 %v462
  %1787 = vmatpush.msra.mxu0 %v454
  %1788 = vmatpush.msra.mxu0 %v446
  %1789 = vmatpush.msra.mxu0 %v438
  %1790 = vmatpush.msra.mxu0 %v430
  %1791 = vmatpush.msra.mxu0 %v422
  %1792 = vmatmul.f32.gmra.mxu0 %v29
  %v1793 = vpop.f32.mrf.mxu0
  %v1794 = vadd.f32 %v1774, %v1793
  %1795 = vdwg.mxu0
  %1796 = vmatpush.msra.mxu0 %v670
  %1797 = vmatpush.msra.mxu0 %v662
  %1798 = vmatpush.msra.mxu0 %v654
  %1799 = vmatpush.msra.mxu0 %v646
  %1800 = vmatpush.msra.mxu0 %v638
  %1801 = vmatpush.msra.mxu0 %v630
  %1802 = vmatpush.msra.mxu0 %v622
  %1803 = vmatpush.msra.mxu0 %v614
  %1804 = vmatpush.msra.mxu0 %v606
  %1805 = vmatpush.msra.mxu0 %v598
  %1806 = vmatpush.msra.mxu0 %v590
  %1807 = vmatpush.msra.mxu0 %v582
  %1808 = vmatpush.msra.mxu0 %v574
  %1809 = vmatpush.msra.mxu0 %v566
  %1810 = vmatpush.msra.mxu0 %v558
  %1811 = vmatpush.msra.mxu0 %v550
  %1812 = vmatmul.f32.gmra.mxu0 %v30
  %v1813 = vpop.f32.mrf.mxu0
  %v1814 = vadd.f32 %v1794, %v1813
  %1815 = vdwg.mxu0
  %1816 = vmatpush.msra.mxu0 %v798
  %1817 = vmatpush.msra.mxu0 %v790
  %1818 = vmatpush.msra.mxu0 %v782
  %1819 = vmatpush.msra.mxu0 %v774
  %1820 = vmatpush.msra.mxu0 %v766
  %1821 = vmatpush.msra.mxu0 %v758
  %1822 = vmatpush.msra.mxu0 %v750
  %1823 = vmatpush.msra.mxu0 %v742
  %1824 = vmatpush.msra.mxu0 %v734
  %1825 = vmatpush.msra.mxu0 %v726
  %1826 = vmatpush.msra.mxu0 %v718
  %1827 = vmatpush.msra.mxu0 %v710
  %1828 = vmatpush.msra.mxu0 %v702
  %1829 = vmatpush.msra.mxu0 %v694
  %1830 = vmatpush.msra.mxu0 %v686
  %1831 = vmatpush.msra.mxu0 %v678
  %1832 = vmatmul.f32.gmra.mxu0 %v31
  %v1833 = vpop.f32.mrf.mxu0
  %v1834 = vadd.f32 %v1814, %v1833
  %1835 = vdwg.mxu0
  %1836 = vmatpush.msra.mxu0 %v926
  %1837 = vmatpush.msra.mxu0 %v918
  %1838 = vmatpush.msra.mxu0 %v910
  %1839 = vmatpush.msra.mxu0 %v902
  %1840 = vmatpush.msra.mxu0 %v894
  %1841 = vmatpush.msra.mxu0 %v886
  %1842 = vmatpush.msra.mxu0 %v878
  %1843 = vmatpush.msra.mxu0 %v870
  %1844 = vmatpush.msra.mxu0 %v862
  %1845 = vmatpush.msra.mxu0 %v854
  %1846 = vmatpush.msra.mxu0 %v846
  %1847 = vmatpush.msra.mxu0 %v838
  %1848 = vmatpush.msra.mxu0 %v830
  %1849 = vmatpush.msra.mxu0 %v822
  %1850 = vmatpush.msra.mxu0 %v814
  %1851 = vmatpush.msra.mxu0 %v806
  %1852 = vmatmul.f32.gmra.mxu0 %v32
  %v1853 = vpop.f32.mrf.mxu0
  %v1854 = vadd.f32 %v1834, %v1853
  %1855 = vdwg.mxu0
  %1856 = vmatpush.msra.mxu0 %v1054
  %1857 = vmatpush.msra.mxu0 %v1046
  %1858 = vmatpush.msra.mxu0 %v1038
  %1859 = vmatpush.msra.mxu0 %v1030
  %1860 = vmatpush.msra.mxu0 %v1022
  %1861 = vmatpush.msra.mxu0 %v1014
  %1862 = vmatpush.msra.mxu0 %v1006
  %1863 = vmatpush.msra.mxu0 %v998
  %1864 = vmatpush.msra.mxu0 %v990
  %1865 = vmatpush.msra.mxu0 %v982
  %1866 = vmatpush.msra.mxu0 %v974
  %1867 = vmatpush.msra.mxu0 %v966
  %1868 = vmatpush.msra.mxu0 %v958
  %1869 = vmatpush.msra.mxu0 %v950
  %1870 = vmatpush.msra.mxu0 %v942
  %1871 = vmatpush.msra.mxu0 %v934
  %1872 = vmatmul.f32.gmra.mxu0 %v33
  %v1873 = vpop.f32.mrf.mxu0
  %v1874 = vadd.f32 %v1854, %v1873
  %1875 = vdwg.mxu0
  %1876 = vmatpush.msra.mxu0 %v159
  %1877 = vmatpush.msra.mxu0 %v151
  %1878 = vmatpush.msra.mxu0 %v143
  %1879 = vmatpush.msra.mxu0 %v135
  %1880 = vmatpush.msra.mxu0 %v127
  %1881 = vmatpush.msra.mxu0 %v119
  %1882 = vmatpush.msra.mxu0 %v111
  %1883 = vmatpush.msra.mxu0 %v103
  %1884 = vmatpush.msra.mxu0 %v95
  %1885 = vmatpush.msra.mxu0 %v87
  %1886 = vmatpush.msra.mxu0 %v79
  %1887 = vmatpush.msra.mxu0 %v71
  %1888 = vmatpush.msra.mxu0 %v63
  %1889 = vmatpush.msra.mxu0 %v55
  %1890 = vmatpush.msra.mxu0 %v47
  %1891 = vmatpush.msra.mxu0 %v39
  %1892 = vmatmul.f32.gmra.mxu0 %v26
  %v1893 = vpop.f32.mrf.mxu0
  %v1894 = vadd.f32 %v1065, %v1893
  %1895 = vdwg.mxu0
  %1896 = vmatpush.msra.mxu0 %v287
  %1897 = vmatpush.msra.mxu0 %v279
  %1898 = vmatpush.msra.mxu0 %v271
  %1899 = vmatpush.msra.mxu0 %v263
  %1900 = vmatpush.msra.mxu0 %v255
  %1901 = vmatpush.msra.mxu0 %v247
  %1902 = vmatpush.msra.mxu0 %v239
  %1903 = vmatpush.msra.mxu0 %v231
  %1904 = vmatpush.msra.mxu0 %v223
  %1905 = vmatpush.msra.mxu0 %v215
  %1906 = vmatpush.msra.mxu0 %v207
  %1907 = vmatpush.msra.mxu0 %v199
  %1908 = vmatpush.msra.mxu0 %v191
  %1909 = vmatpush.msra.mxu0 %v183
  %1910 = vmatpush.msra.mxu0 %v175
  %1911 = vmatpush.msra.mxu0 %v167
  %1912 = vmatmul.f32.gmra.mxu0 %v27
  %v1913 = vpop.f32.mrf.mxu0
  %v1914 = vadd.f32 %v1894, %v1913
  %1915 = vdwg.mxu0
  %1916 = vmatpush.msra.mxu0 %v415
  %1917 = vmatpush.msra.mxu0 %v407
  %1918 = vmatpush.msra.mxu0 %v399
  %1919 = vmatpush.msra.mxu0 %v391
  %1920 = vmatpush.msra.mxu0 %v383
  %1921 = vmatpush.msra.mxu0 %v375
  %1922 = vmatpush.msra.mxu0 %v367
  %1923 = vmatpush.msra.mxu0 %v359
  %1924 = vmatpush.msra.mxu0 %v351
  %1925 = vmatpush.msra.mxu0 %v343
  %1926 = vmatpush.msra.mxu0 %v335
  %1927 = vmatpush.msra.mxu0 %v327
  %1928 = vmatpush.msra.mxu0 %v319
  %1929 = vmatpush.msra.mxu0 %v311
  %1930 = vmatpush.msra.mxu0 %v303
  %1931 = vmatpush.msra.mxu0 %v295
  %1932 = vmatmul.f32.gmra.mxu0 %v28
  %v1933 = vpop.f32.mrf.mxu0
  %v1934 = vadd.f32 %v1914, %v1933
  %1935 = vdwg.mxu0
  %1936 = vmatpush.msra.mxu0 %v543
  %1937 = vmatpush.msra.mxu0 %v535
  %1938 = vmatpush.msra.mxu0 %v527
  %1939 = vmatpush.msra.mxu0 %v519
  %1940 = vmatpush.msra.mxu0 %v511
  %1941 = vmatpush.msra.mxu0 %v503
  %1942 = vmatpush.msra.mxu0 %v495
  %1943 = vmatpush.msra.mxu0 %v487
  %1944 = vmatpush.msra.mxu0 %v479
  %1945 = vmatpush.msra.mxu0 %v471
  %1946 = vmatpush.msra.mxu0 %v463
  %1947 = vmatpush.msra.mxu0 %v455
  %1948 = vmatpush.msra.mxu0 %v447
  %1949 = vmatpush.msra.mxu0 %v439
  %1950 = vmatpush.msra.mxu0 %v431
  %1951 = vmatpush.msra.mxu0 %v423
  %1952 = vmatmul.f32.gmra.mxu0 %v29
  %v1953 = vpop.f32.mrf.mxu0
  %v1954 = vadd.f32 %v1934, %v1953
  %1955 = vdwg.mxu0
  %1956 = vmatpush.msra.mxu0 %v671
  %1957 = vmatpush.msra.mxu0 %v663
  %1958 = vmatpush.msra.mxu0 %v655
  %1959 = vmatpush.msra.mxu0 %v647
  %1960 = vmatpush.msra.mxu0 %v639
  %1961 = vmatpush.msra.mxu0 %v631
  %1962 = vmatpush.msra.mxu0 %v623
  %1963 = vmatpush.msra.mxu0 %v615
  %1964 = vmatpush.msra.mxu0 %v607
  %1965 = vmatpush.msra.mxu0 %v599
  %1966 = vmatpush.msra.mxu0 %v591
  %1967 = vmatpush.msra.mxu0 %v583
  %1968 = vmatpush.msra.mxu0 %v575
  %1969 = vmatpush.msra.mxu0 %v567
  %1970 = vmatpush.msra.mxu0 %v559
  %1971 = vmatpush.msra.mxu0 %v551
  %1972 = vmatmul.f32.gmra.mxu0 %v30
  %v1973 = vpop.f32.mrf.mxu0
  %v1974 = vadd.f32 %v1954, %v1973
  %1975 = vdwg.mxu0
  %1976 = vmatpush.msra.mxu0 %v799
  %1977 = vmatpush.msra.mxu0 %v791
  %1978 = vmatpush.msra.mxu0 %v783
  %1979 = vmatpush.msra.mxu0 %v775
  %1980 = vmatpush.msra.mxu0 %v767
  %1981 = vmatpush.msra.mxu0 %v759
  %1982 = vmatpush.msra.mxu0 %v751
  %1983 = vmatpush.msra.mxu0 %v743
  %1984 = vmatpush.msra.mxu0 %v735
  %1985 = vmatpush.msra.mxu0 %v727
  %1986 = vmatpush.msra.mxu0 %v719
  %1987 = vmatpush.msra.mxu0 %v711
  %1988 = vmatpush.msra.mxu0 %v703
  %1989 = vmatpush.msra.mxu0 %v695
  %1990 = vmatpush.msra.mxu0 %v687
  %1991 = vmatpush.msra.mxu0 %v679
  %1992 = vmatmul.f32.gmra.mxu0 %v31
  %v1993 = vpop.f32.mrf.mxu0
  %v1994 = vadd.f32 %v1974, %v1993
  %1995 = vdwg.mxu0
  %1996 = vmatpush.msra.mxu0 %v927
  %1997 = vmatpush.msra.mxu0 %v919
  %1998 = vmatpush.msra.mxu0 %v911
  %1999 = vmatpush.msra.mxu0 %v903
  %2000 = vmatpush.msra.mxu0 %v895
  %2001 = vmatpush.msra.mxu0 %v887
  %2002 = vmatpush.msra.mxu0 %v879
  %2003 = vmatpush.msra.mxu0 %v871
  %2004 = vmatpush.msra.mxu0 %v863
  %2005 = vmatpush.msra.mxu0 %v855
  %2006 = vmatpush.msra.mxu0 %v847
  %2007 = vmatpush.msra.mxu0 %v839
  %2008 = vmatpush.msra.mxu0 %v831
  %2009 = vmatpush.msra.mxu0 %v823
  %2010 = vmatpush.msra.mxu0 %v815
  %2011 = vmatpush.msra.mxu0 %v807
  %2012 = vmatmul.f32.gmra.mxu0 %v32
  %v2013 = vpop.f32.mrf.mxu0
  %v2014 = vadd.f32 %v1994, %v2013
  %2015 = vdwg.mxu0
  %2016 = vmatpush.msra.mxu0 %v1055
  %2017 = vmatpush.msra.mxu0 %v1047
  %2018 = vmatpush.msra.mxu0 %v1039
  %2019 = vmatpush.msra.mxu0 %v1031
  %2020 = vmatpush.msra.mxu0 %v1023
  %2021 = vmatpush.msra.mxu0 %v1015
  %2022 = vmatpush.msra.mxu0 %v1007
  %2023 = vmatpush.msra.mxu0 %v999
  %2024 = vmatpush.msra.mxu0 %v991
  %2025 = vmatpush.msra.mxu0 %v983
  %2026 = vmatpush.msra.mxu0 %v975
  %2027 = vmatpush.msra.mxu0 %v967
  %2028 = vmatpush.msra.mxu0 %v959
  %2029 = vmatpush.msra.mxu0 %v951
  %2030 = vmatpush.msra.mxu0 %v943
  %2031 = vmatpush.msra.mxu0 %v935
  %2032 = vmatmul.f32.gmra.mxu0 %v33
  %v2033 = vpop.f32.mrf.mxu0
  %v2034 = vadd.f32 %v2014, %v2033
  %2035 = vdwg.mxu0
  %2036 = vmatpush.msra.mxu0 %v160
  %2037 = vmatpush.msra.mxu0 %v152
  %2038 = vmatpush.msra.mxu0 %v144
  %2039 = vmatpush.msra.mxu0 %v136
  %2040 = vmatpush.msra.mxu0 %v128
  %2041 = vmatpush.msra.mxu0 %v120
  %2042 = vmatpush.msra.mxu0 %v112
  %2043 = vmatpush.msra.mxu0 %v104
  %2044 = vmatpush.msra.mxu0 %v96
  %2045 = vmatpush.msra.mxu0 %v88
  %2046 = vmatpush.msra.mxu0 %v80
  %2047 = vmatpush.msra.mxu0 %v72
  %2048 = vmatpush.msra.mxu0 %v64
  %2049 = vmatpush.msra.mxu0 %v56
  %2050 = vmatpush.msra.mxu0 %v48
  %2051 = vmatpush.msra.mxu0 %v40
  %2052 = vmatmul.f32.gmra.mxu0 %v26
  %v2053 = vpop.f32.mrf.mxu0
  %v2054 = vadd.f32 %v1066, %v2053
  %2055 = vdwg.mxu0
  %2056 = vmatpush.msra.mxu0 %v288
  %2057 = vmatpush.msra.mxu0 %v280
  %2058 = vmatpush.msra.mxu0 %v272
  %2059 = vmatpush.msra.mxu0 %v264
  %2060 = vmatpush.msra.mxu0 %v256
  %2061 = vmatpush.msra.mxu0 %v248
  %2062 = vmatpush.msra.mxu0 %v240
  %2063 = vmatpush.msra.mxu0 %v232
  %2064 = vmatpush.msra.mxu0 %v224
  %2065 = vmatpush.msra.mxu0 %v216
  %2066 = vmatpush.msra.mxu0 %v208
  %2067 = vmatpush.msra.mxu0 %v200
  %2068 = vmatpush.msra.mxu0 %v192
  %2069 = vmatpush.msra.mxu0 %v184
  %2070 = vmatpush.msra.mxu0 %v176
  %2071 = vmatpush.msra.mxu0 %v168
  %2072 = vmatmul.f32.gmra.mxu0 %v27
  %v2073 = vpop.f32.mrf.mxu0
  %v2074 = vadd.f32 %v2054, %v2073
  %2075 = vdwg.mxu0
  %2076 = vmatpush.msra.mxu0 %v416
  %2077 = vmatpush.msra.mxu0 %v408
  %2078 = vmatpush.msra.mxu0 %v400
  %2079 = vmatpush.msra.mxu0 %v392
  %2080 = vmatpush.msra.mxu0 %v384
  %2081 = vmatpush.msra.mxu0 %v376
  %2082 = vmatpush.msra.mxu0 %v368
  %2083 = vmatpush.msra.mxu0 %v360
  %2084 = vmatpush.msra.mxu0 %v352
  %2085 = vmatpush.msra.mxu0 %v344
  %2086 = vmatpush.msra.mxu0 %v336
  %2087 = vmatpush.msra.mxu0 %v328
  %2088 = vmatpush.msra.mxu0 %v320
  %2089 = vmatpush.msra.mxu0 %v312
  %2090 = vmatpush.msra.mxu0 %v304
  %2091 = vmatpush.msra.mxu0 %v296
  %2092 = vmatmul.f32.gmra.mxu0 %v28
  %v2093 = vpop.f32.mrf.mxu0
  %v2094 = vadd.f32 %v2074, %v2093
  %2095 = vdwg.mxu0
  %2096 = vmatpush.msra.mxu0 %v544
  %2097 = vmatpush.msra.mxu0 %v536
  %2098 = vmatpush.msra.mxu0 %v528
  %2099 = vmatpush.msra.mxu0 %v520
  %2100 = vmatpush.msra.mxu0 %v512
  %2101 = vmatpush.msra.mxu0 %v504
  %2102 = vmatpush.msra.mxu0 %v496
  %2103 = vmatpush.msra.mxu0 %v488
  %2104 = vmatpush.msra.mxu0 %v480
  %2105 = vmatpush.msra.mxu0 %v472
  %2106 = vmatpush.msra.mxu0 %v464
  %2107 = vmatpush.msra.mxu0 %v456
  %2108 = vmatpush.msra.mxu0 %v448
  %2109 = vmatpush.msra.mxu0 %v440
  %2110 = vmatpush.msra.mxu0 %v432
  %2111 = vmatpush.msra.mxu0 %v424
  %2112 = vmatmul.f32.gmra.mxu0 %v29
  %v2113 = vpop.f32.mrf.mxu0
  %v2114 = vadd.f32 %v2094, %v2113
  %2115 = vdwg.mxu0
  %2116 = vmatpush.msra.mxu0 %v672
  %2117 = vmatpush.msra.mxu0 %v664
  %2118 = vmatpush.msra.mxu0 %v656
  %2119 = vmatpush.msra.mxu0 %v648
  %2120 = vmatpush.msra.mxu0 %v640
  %2121 = vmatpush.msra.mxu0 %v632
  %2122 = vmatpush.msra.mxu0 %v624
  %2123 = vmatpush.msra.mxu0 %v616
  %2124 = vmatpush.msra.mxu0 %v608
  %2125 = vmatpush.msra.mxu0 %v600
  %2126 = vmatpush.msra.mxu0 %v592
  %2127 = vmatpush.msra.mxu0 %v584
  %2128 = vmatpush.msra.mxu0 %v576
  %2129 = vmatpush.msra.mxu0 %v568
  %2130 = vmatpush.msra.mxu0 %v560
  %2131 = vmatpush.msra.mxu0 %v552
  %2132 = vmatmul.f32.gmra.mxu0 %v30
  %v2133 = vpop.f32.mrf.mxu0
  %v2134 = vadd.f32 %v2114, %v2133
  %2135 = vdwg.mxu0
  %2136 = vmatpush.msra.mxu0 %v800
  %2137 = vmatpush.msra.mxu0 %v792
  %2138 = vmatpush.msra.mxu0 %v784
  %2139 = vmatpush.msra.mxu0 %v776
  %2140 = vmatpush.msra.mxu0 %v768
  %2141 = vmatpush.msra.mxu0 %v760
  %2142 = vmatpush.msra.mxu0 %v752
  %2143 = vmatpush.msra.mxu0 %v744
  %2144 = vmatpush.msra.mxu0 %v736
  %2145 = vmatpush.msra.mxu0 %v728
  %2146 = vmatpush.msra.mxu0 %v720
  %2147 = vmatpush.msra.mxu0 %v712
  %2148 = vmatpush.msra.mxu0 %v704
  %2149 = vmatpush.msra.mxu0 %v696
  %2150 = vmatpush.msra.mxu0 %v688
  %2151 = vmatpush.msra.mxu0 %v680
  %2152 = vmatmul.f32.gmra.mxu0 %v31
  %v2153 = vpop.f32.mrf.mxu0
  %v2154 = vadd.f32 %v2134, %v2153
  %2155 = vdwg.mxu0
  %2156 = vmatpush.msra.mxu0 %v928
  %2157 = vmatpush.msra.mxu0 %v920
  %2158 = vmatpush.msra.mxu0 %v912
  %2159 = vmatpush.msra.mxu0 %v904
  %2160 = vmatpush.msra.mxu0 %v896
  %2161 = vmatpush.msra.mxu0 %v888
  %2162 = vmatpush.msra.mxu0 %v880
  %2163 = vmatpush.msra.mxu0 %v872
  %2164 = vmatpush.msra.mxu0 %v864
  %2165 = vmatpush.msra.mxu0 %v856
  %2166 = vmatpush.msra.mxu0 %v848
  %2167 = vmatpush.msra.mxu0 %v840
  %2168 = vmatpush.msra.mxu0 %v832
  %2169 = vmatpush.msra.mxu0 %v824
  %2170 = vmatpush.msra.mxu0 %v816
  %2171 = vmatpush.msra.mxu0 %v808
  %2172 = vmatmul.f32.gmra.mxu0 %v32
  %v2173 = vpop.f32.mrf.mxu0
  %v2174 = vadd.f32 %v2154, %v2173
  %2175 = vdwg.mxu0
  %2176 = vmatpush.msra.mxu0 %v1056
  %2177 = vmatpush.msra.mxu0 %v1048
  %2178 = vmatpush.msra.mxu0 %v1040
  %2179 = vmatpush.msra.mxu0 %v1032
  %2180 = vmatpush.msra.mxu0 %v1024
  %2181 = vmatpush.msra.mxu0 %v1016
  %2182 = vmatpush.msra.mxu0 %v1008
  %2183 = vmatpush.msra.mxu0 %v1000
  %2184 = vmatpush.msra.mxu0 %v992
  %2185 = vmatpush.msra.mxu0 %v984
  %2186 = vmatpush.msra.mxu0 %v976
  %2187 = vmatpush.msra.mxu0 %v968
  %2188 = vmatpush.msra.mxu0 %v960
  %2189 = vmatpush.msra.mxu0 %v952
  %2190 = vmatpush.msra.mxu0 %v944
  %2191 = vmatpush.msra.mxu0 %v936
  %2192 = vmatmul.f32.gmra.mxu0 %v33
  %v2193 = vpop.f32.mrf.mxu0
  %v2194 = vadd.f32 %v2174, %v2193
  %2195 = vdwg.mxu0
  %2196 = vmatpush.msra.mxu0 %v161
  %2197 = vmatpush.msra.mxu0 %v153
  %2198 = vmatpush.msra.mxu0 %v145
  %2199 = vmatpush.msra.mxu0 %v137
  %2200 = vmatpush.msra.mxu0 %v129
  %2201 = vmatpush.msra.mxu0 %v121
  %2202 = vmatpush.msra.mxu0 %v113
  %2203 = vmatpush.msra.mxu0 %v105
  %2204 = vmatpush.msra.mxu0 %v97
  %2205 = vmatpush.msra.mxu0 %v89
  %2206 = vmatpush.msra.mxu0 %v81
  %2207 = vmatpush.msra.mxu0 %v73
  %2208 = vmatpush.msra.mxu0 %v65
  %2209 = vmatpush.msra.mxu0 %v57
  %2210 = vmatpush.msra.mxu0 %v49
  %2211 = vmatpush.msra.mxu0 %v41
  %2212 = vmatmul.f32.gmra.mxu0 %v26
  %v2213 = vpop.f32.mrf.mxu0
  %v2214 = vadd.f32 %v1067, %v2213
  %2215 = vdwg.mxu0
  %2216 = vmatpush.msra.mxu0 %v289
  %2217 = vmatpush.msra.mxu0 %v281
  %2218 = vmatpush.msra.mxu0 %v273
  %2219 = vmatpush.msra.mxu0 %v265
  %2220 = vmatpush.msra.mxu0 %v257
  %2221 = vmatpush.msra.mxu0 %v249
  %2222 = vmatpush.msra.mxu0 %v241
  %2223 = vmatpush.msra.mxu0 %v233
  %2224 = vmatpush.msra.mxu0 %v225
  %2225 = vmatpush.msra.mxu0 %v217
  %2226 = vmatpush.msra.mxu0 %v209
  %2227 = vmatpush.msra.mxu0 %v201
  %2228 = vmatpush.msra.mxu0 %v193
  %2229 = vmatpush.msra.mxu0 %v185
  %2230 = vmatpush.msra.mxu0 %v177
  %2231 = vmatpush.msra.mxu0 %v169
  %2232 = vmatmul.f32.gmra.mxu0 %v27
  %v2233 = vpop.f32.mrf.mxu0
  %v2234 = vadd.f32 %v2214, %v2233
  %2235 = vdwg.mxu0
  %2236 = vmatpush.msra.mxu0 %v417
  %2237 = vmatpush.msra.mxu0 %v409
  %2238 = vmatpush.msra.mxu0 %v401
  %2239 = vmatpush.msra.mxu0 %v393
  %2240 = vmatpush.msra.mxu0 %v385
  %2241 = vmatpush.msra.mxu0 %v377
  %2242 = vmatpush.msra.mxu0 %v369
  %2243 = vmatpush.msra.mxu0 %v361
  %2244 = vmatpush.msra.mxu0 %v353
  %2245 = vmatpush.msra.mxu0 %v345
  %2246 = vmatpush.msra.mxu0 %v337
  %2247 = vmatpush.msra.mxu0 %v329
  %2248 = vmatpush.msra.mxu0 %v321
  %2249 = vmatpush.msra.mxu0 %v313
  %2250 = vmatpush.msra.mxu0 %v305
  %2251 = vmatpush.msra.mxu0 %v297
  %2252 = vmatmul.f32.gmra.mxu0 %v28
  %v2253 = vpop.f32.mrf.mxu0
  %v2254 = vadd.f32 %v2234, %v2253
  %2255 = vdwg.mxu0
  %2256 = vmatpush.msra.mxu0 %v545
  %2257 = vmatpush.msra.mxu0 %v537
  %2258 = vmatpush.msra.mxu0 %v529
  %2259 = vmatpush.msra.mxu0 %v521
  %2260 = vmatpush.msra.mxu0 %v513
  %2261 = vmatpush.msra.mxu0 %v505
  %2262 = vmatpush.msra.mxu0 %v497
  %2263 = vmatpush.msra.mxu0 %v489
  %2264 = vmatpush.msra.mxu0 %v481
  %2265 = vmatpush.msra.mxu0 %v473
  %2266 = vmatpush.msra.mxu0 %v465
  %2267 = vmatpush.msra.mxu0 %v457
  %2268 = vmatpush.msra.mxu0 %v449
  %2269 = vmatpush.msra.mxu0 %v441
  %2270 = vmatpush.msra.mxu0 %v433
  %2271 = vmatpush.msra.mxu0 %v425
  %2272 = vmatmul.f32.gmra.mxu0 %v29
  %v2273 = vpop.f32.mrf.mxu0
  %v2274 = vadd.f32 %v2254, %v2273
  %2275 = vdwg.mxu0
  %2276 = vmatpush.msra.mxu0 %v673
  %2277 = vmatpush.msra.mxu0 %v665
  %2278 = vmatpush.msra.mxu0 %v657
  %2279 = vmatpush.msra.mxu0 %v649
  %2280 = vmatpush.msra.mxu0 %v641
  %2281 = vmatpush.msra.mxu0 %v633
  %2282 = vmatpush.msra.mxu0 %v625
  %2283 = vmatpush.msra.mxu0 %v617
  %2284 = vmatpush.msra.mxu0 %v609
  %2285 = vmatpush.msra.mxu0 %v601
  %2286 = vmatpush.msra.mxu0 %v593
  %2287 = vmatpush.msra.mxu0 %v585
  %2288 = vmatpush.msra.mxu0 %v577
  %2289 = vmatpush.msra.mxu0 %v569
  %2290 = vmatpush.msra.mxu0 %v561
  %2291 = vmatpush.msra.mxu0 %v553
  %2292 = vmatmul.f32.gmra.mxu0 %v30
  %v2293 = vpop.f32.mrf.mxu0
  %v2294 = vadd.f32 %v2274, %v2293
  %2295 = vdwg.mxu0
  %2296 = vmatpush.msra.mxu0 %v801
  %2297 = vmatpush.msra.mxu0 %v793
  %2298 = vmatpush.msra.mxu0 %v785
  %2299 = vmatpush.msra.mxu0 %v777
  %2300 = vmatpush.msra.mxu0 %v769
  %2301 = vmatpush.msra.mxu0 %v761
  %2302 = vmatpush.msra.mxu0 %v753
  %2303 = vmatpush.msra.mxu0 %v745
  %2304 = vmatpush.msra.mxu0 %v737
  %2305 = vmatpush.msra.mxu0 %v729
  %2306 = vmatpush.msra.mxu0 %v721
  %2307 = vmatpush.msra.mxu0 %v713
  %2308 = vmatpush.msra.mxu0 %v705
  %2309 = vmatpush.msra.mxu0 %v697
  %2310 = vmatpush.msra.mxu0 %v689
  %2311 = vmatpush.msra.mxu0 %v681
  %2312 = vmatmul.f32.gmra.mxu0 %v31
  %v2313 = vpop.f32.mrf.mxu0
  %v2314 = vadd.f32 %v2294, %v2313
  %2315 = vdwg.mxu0
  %2316 = vmatpush.msra.mxu0 %v929
  %2317 = vmatpush.msra.mxu0 %v921
  %2318 = vmatpush.msra.mxu0 %v913
  %2319 = vmatpush.msra.mxu0 %v905
  %2320 = vmatpush.msra.mxu0 %v897
  %2321 = vmatpush.msra.mxu0 %v889
  %2322 = vmatpush.msra.mxu0 %v881
  %2323 = vmatpush.msra.mxu0 %v873
  %2324 = vmatpush.msra.mxu0 %v865
  %2325 = vmatpush.msra.mxu0 %v857
  %2326 = vmatpush.msra.mxu0 %v849
  %2327 = vmatpush.msra.mxu0 %v841
  %2328 = vmatpush.msra.mxu0 %v833
  %2329 = vmatpush.msra.mxu0 %v825
  %2330 = vmatpush.msra.mxu0 %v817
  %2331 = vmatpush.msra.mxu0 %v809
  %2332 = vmatmul.f32.gmra.mxu0 %v32
  %v2333 = vpop.f32.mrf.mxu0
  %v2334 = vadd.f32 %v2314, %v2333
  %2335 = vdwg.mxu0
  %2336 = vmatpush.msra.mxu0 %v1057
  %2337 = vmatpush.msra.mxu0 %v1049
  %2338 = vmatpush.msra.mxu0 %v1041
  %2339 = vmatpush.msra.mxu0 %v1033
  %2340 = vmatpush.msra.mxu0 %v1025
  %2341 = vmatpush.msra.mxu0 %v1017
  %2342 = vmatpush.msra.mxu0 %v1009
  %2343 = vmatpush.msra.mxu0 %v1001
  %2344 = vmatpush.msra.mxu0 %v993
  %2345 = vmatpush.msra.mxu0 %v985
  %2346 = vmatpush.msra.mxu0 %v977
  %2347 = vmatpush.msra.mxu0 %v969
  %2348 = vmatpush.msra.mxu0 %v961
  %2349 = vmatpush.msra.mxu0 %v953
  %2350 = vmatpush.msra.mxu0 %v945
  %2351 = vmatpush.msra.mxu0 %v937
  %2352 = vmatmul.f32.gmra.mxu0 %v33
  %v2353 = vpop.f32.mrf.mxu0
  %v2354 = vadd.f32 %v2334, %v2353
  %2355 = vdwg.mxu0
  %v2356 = vmax.f32 %v1234, 0.0
  %v2357 = vmax.f32 %v1394, 0.0
  %v2358 = vmax.f32 %v1554, 0.0
  %v2359 = vmax.f32 %v1714, 0.0
  %v2360 = vmax.f32 %v1874, 0.0
  %v2361 = vmax.f32 %v2034, 0.0
  %v2362 = vmax.f32 %v2194, 0.0
  %v2363 = vmax.f32 %v2354, 0.0
  %v2364 = vld [vmem:[%s3] sm:$0xff]
  %v2365 = vld [vmem:[%s3 + $0x8] sm:$0xff]
  %v2366 = vld [vmem:[%s3 + $0x10] sm:$0xff]
  %v2367 = vld [vmem:[%s3 + $0x18] sm:$0xff]
  %v2368 = vld [vmem:[%s3 + $0x20] sm:$0xff]
  %v2369 = vld [vmem:[%s3 + $0x28] sm:$0xff]
  %v2370 = vld [vmem:[%s3 + $0x30] sm:$0xff]
  %v2371 = vld [vmem:[%s3 + $0x38] sm:$0xff]
  %v2372 = vld [vmem:[%s3 + $0x40] sm:$0xff]
  %v2373 = vld [vmem:[%s3 + $0x48] sm:$0xff]
  %v2374 = vld [vmem:[%s3 + $0x50] sm:$0xff]
  %v2375 = vld [vmem:[%s3 + $0x58] sm:$0xff]
  %v2376 = vld [vmem:[%s3 + $0x60] sm:$0xff]
  %v2377 = vld [vmem:[%s3 + $0x68] sm:$0xff]
  %v2378 = vld [vmem:[%s3 + $0x70] sm:$0xff]
  %v2379 = vld [vmem:[%s3 + $0x78] sm:$0xff]
  %v2380 = vld [vmem:[%s3 + $0x80] sm:$0xff]
  %v2381 = vld [vmem:[%s3 + $0x88] sm:$0xff]
  %v2382 = vld [vmem:[%s3 + $0x90] sm:$0xff]
  %v2383 = vld [vmem:[%s3 + $0x98] sm:$0xff]
  %v2384 = vld [vmem:[%s3 + $0xa0] sm:$0xff]
  %v2385 = vld [vmem:[%s3 + $0xa8] sm:$0xff]
  %v2386 = vld [vmem:[%s3 + $0xb0] sm:$0xff]
  %v2387 = vld [vmem:[%s3 + $0xb8] sm:$0xff]
  %v2388 = vld [vmem:[%s3 + $0xc0] sm:$0xff]
  %v2389 = vld [vmem:[%s3 + $0xc8] sm:$0xff]
  %v2390 = vld [vmem:[%s3 + $0xd0] sm:$0xff]
  %v2391 = vld [vmem:[%s3 + $0xd8] sm:$0xff]
  %v2392 = vld [vmem:[%s3 + $0xe0] sm:$0xff]
  %v2393 = vld [vmem:[%s3 + $0xe8] sm:$0xff]
  %v2394 = vld [vmem:[%s3 + $0xf0] sm:$0xff]
  %v2395 = vld [vmem:[%s3 + $0xf8] sm:$0xff]
  %v2396 = vld [vmem:[%s3 + $0x100] sm:$0xff]
  %v2397 = vld [vmem:[%s3 + $0x108] sm:$0xff]
  %v2398 = vld [vmem:[%s3 + $0x110] sm:$0xff]
  %v2399 = vld [vmem:[%s3 + $0x118] sm:$0xff]
  %v2400 = vld [vmem:[%s3 + $0x120] sm:$0xff]
  %v2401 = vld [vmem:[%s3 + $0x128] sm:$0xff]
  %v2402 = vld [vmem:[%s3 + $0x130] sm:$0xff]
  %v2403 = vld [vmem:[%s3 + $0x138] sm:$0xff]
  %v2404 = vld [vmem:[%s3 + $0x140] sm:$0xff]
  %v2405 = vld [vmem:[%s3 + $0x148] sm:$0xff]
  %v2406 = vld [vmem:[%s3 + $0x150] sm:$0xff]
  %v2407 = vld [vmem:[%s3 + $0x158] sm:$0xff]
  %v2408 = vld [vmem:[%s3 + $0x160] sm:$0xff]
  %v2409 = vld [vmem:[%s3 + $0x168] sm:$0xff]
  %v2410 = vld [vmem:[%s3 + $0x170] sm:$0xff]
  %v2411 = vld [vmem:[%s3 + $0x178] sm:$0xff]
  %v2412 = vld [vmem:[%s3 + $0x180] sm:$0xff]
  %v2413 = vld [vmem:[%s3 + $0x188] sm:$0xff]
  %v2414 = vld [vmem:[%s3 + $0x190] sm:$0xff]
  %v2415 = vld [vmem:[%s3 + $0x198] sm:$0xff]
  %v2416 = vld [vmem:[%s3 + $0x1a0] sm:$0xff]
  %v2417 = vld [vmem:[%s3 + $0x1a8] sm:$0xff]
  %v2418 = vld [vmem:[%s3 + $0x1b0] sm:$0xff]
  %v2419 = vld [vmem:[%s3 + $0x1b8] sm:$0xff]
  %v2420 = vld [vmem:[%s3 + $0x1c0] sm:$0xff]
  %v2421 = vld [vmem:[%s3 + $0x1c8] sm:$0xff]
  %v2422 = vld [vmem:[%s3 + $0x1d0] sm:$0xff]
  %v2423 = vld [vmem:[%s3 + $0x1d8] sm:$0xff]
  %v2424 = vld [vmem:[%s3 + $0x1e0] sm:$0xff]
  %v2425 = vld [vmem:[%s3 + $0x1e8] sm:$0xff]
  %v2426 = vld [vmem:[%s3 + $0x1f0] sm:$0xff]
  %v2427 = vld [vmem:[%s3 + $0x1f8] sm:$0xff]
  %v2428 = vld [vmem:[%s3 + $0x200] sm:$0xff]
  %v2429 = vld [vmem:[%s3 + $0x208] sm:$0xff]
  %v2430 = vld [vmem:[%s3 + $0x210] sm:$0xff]
  %v2431 = vld [vmem:[%s3 + $0x218] sm:$0xff]
  %v2432 = vld [vmem:[%s3 + $0x220] sm:$0xff]
  %v2433 = vld [vmem:[%s3 + $0x228] sm:$0xff]
  %v2434 = vld [vmem:[%s3 + $0x230] sm:$0xff]
  %v2435 = vld [vmem:[%s3 + $0x238] sm:$0xff]
  %v2436 = vld [vmem:[%s3 + $0x240] sm:$0xff]
  %v2437 = vld [vmem:[%s3 + $0x248] sm:$0xff]
  %v2438 = vld [vmem:[%s3 + $0x250] sm:$0xff]
  %v2439 = vld [vmem:[%s3 + $0x258] sm:$0xff]
  %v2440 = vld [vmem:[%s3 + $0x260] sm:$0xff]
  %v2441 = vld [vmem:[%s3 + $0x268] sm:$0xff]
  %v2442 = vld [vmem:[%s3 + $0x270] sm:$0xff]
  %v2443 = vld [vmem:[%s3 + $0x278] sm:$0xff]
  %v2444 = vld [vmem:[%s3 + $0x280] sm:$0xff]
  %v2445 = vld [vmem:[%s3 + $0x288] sm:$0xff]
  %v2446 = vld [vmem:[%s3 + $0x290] sm:$0xff]
  %v2447 = vld [vmem:[%s3 + $0x298] sm:$0xff]
  %v2448 = vld [vmem:[%s3 + $0x2a0] sm:$0xff]
  %v2449 = vld [vmem:[%s3 + $0x2a8] sm:$0xff]
  %v2450 = vld [vmem:[%s3 + $0x2b0] sm:$0xff]
  %v2451 = vld [vmem:[%s3 + $0x2b8] sm:$0xff]
  %v2452 = vld [vmem:[%s3 + $0x2c0] sm:$0xff]
  %v2453 = vld [vmem:[%s3 + $0x2c8] sm:$0xff]
  %v2454 = vld [vmem:[%s3 + $0x2d0] sm:$0xff]
  %v2455 = vld [vmem:[%s3 + $0x2d8] sm:$0xff]
  %v2456 = vld [vmem:[%s3 + $0x2e0] sm:$0xff]
  %v2457 = vld [vmem:[%s3 + $0x2e8] sm:$0xff]
  %v2458 = vld [vmem:[%s3 + $0x2f0] sm:$0xff]
  %v2459 = vld [vmem:[%s3 + $0x2f8] sm:$0xff]
  %v2460 = vld [vmem:[%s3 + $0x300] sm:$0xff]
  %v2461 = vld [vmem:[%s3 + $0x308] sm:$0xff]
  %v2462 = vld [vmem:[%s3 + $0x310] sm:$0xff]
  %v2463 = vld [vmem:[%s3 + $0x318] sm:$0xff]
  %v2464 = vld [vmem:[%s3 + $0x320] sm:$0xff]
  %v2465 = vld [vmem:[%s3 + $0x328] sm:$0xff]
  %v2466 = vld [vmem:[%s3 + $0x330] sm:$0xff]
  %v2467 = vld [vmem:[%s3 + $0x338] sm:$0xff]
  %v2468 = vld [vmem:[%s3 + $0x340] sm:$0xff]
  %v2469 = vld [vmem:[%s3 + $0x348] sm:$0xff]
  %v2470 = vld [vmem:[%s3 + $0x350] sm:$0xff]
  %v2471 = vld [vmem:[%s3 + $0x358] sm:$0xff]
  %v2472 = vld [vmem:[%s3 + $0x360] sm:$0xff]
  %v2473 = vld [vmem:[%s3 + $0x368] sm:$0xff]
  %v2474 = vld [vmem:[%s3 + $0x370] sm:$0xff]
  %v2475 = vld [vmem:[%s3 + $0x378] sm:$0xff]
  %v2476 = vld [vmem:[%s3 + $0x380] sm:$0xff]
  %v2477 = vld [vmem:[%s3 + $0x388] sm:$0xff]
  %v2478 = vld [vmem:[%s3 + $0x390] sm:$0xff]
  %v2479 = vld [vmem:[%s3 + $0x398] sm:$0xff]
  %v2480 = vld [vmem:[%s3 + $0x3a0] sm:$0xff]
  %v2481 = vld [vmem:[%s3 + $0x3a8] sm:$0xff]
  %v2482 = vld [vmem:[%s3 + $0x3b0] sm:$0xff]
  %v2483 = vld [vmem:[%s3 + $0x3b8] sm:$0xff]
  %v2484 = vld [vmem:[%s3 + $0x3c0] sm:$0xff]
  %v2485 = vld [vmem:[%s3 + $0x3c8] sm:$0xff]
  %v2486 = vld [vmem:[%s3 + $0x3d0] sm:$0xff]
  %v2487 = vld [vmem:[%s3 + $0x3d8] sm:$0xff]
  %v2488 = vld [vmem:[%s3 + $0x3e0] sm:$0xff]
  %v2489 = vld [vmem:[%s3 + $0x3e8] sm:$0xff]
  %v2490 = vld [vmem:[%s3 + $0x3f0] sm:$0xff]
  %v2491 = vld [vmem:[%s3 + $0x3f8] sm:$0xff]
  %v2492 = vld [vmem:[%s3 + $0x400] sm:$0xff]
  %v2493 = vld [vmem:[%s3 + $0x408] sm:$0xff]
  %v2494 = vld [vmem:[%s3 + $0x410] sm:$0xff]
  %v2495 = vld [vmem:[%s3 + $0x418] sm:$0xff]
  %v2496 = vld [vmem:[%s3 + $0x420] sm:$0xff]
  %v2497 = vld [vmem:[%s3 + $0x428] sm:$0xff]
  %v2498 = vld [vmem:[%s3 + $0x430] sm:$0xff]
  %v2499 = vld [vmem:[%s3 + $0x438] sm:$0xff]
  %v2500 = vld [vmem:[%s3 + $0x440] sm:$0xff]
  %v2501 = vld [vmem:[%s3 + $0x448] sm:$0xff]
  %v2502 = vld [vmem:[%s3 + $0x450] sm:$0xff]
  %v2503 = vld [vmem:[%s3 + $0x458] sm:$0xff]
  %v2504 = vld [vmem:[%s3 + $0x460] sm:$0xff]
  %v2505 = vld [vmem:[%s3 + $0x468] sm:$0xff]
  %v2506 = vld [vmem:[%s3 + $0x470] sm:$0xff]
  %v2507 = vld [vmem:[%s3 + $0x478] sm:$0xff]
  %v2508 = vld [vmem:[%s3 + $0x480] sm:$0xff]
  %v2509 = vld [vmem:[%s3 + $0x488] sm:$0xff]
  %v2510 = vld [vmem:[%s3 + $0x490] sm:$0xff]
  %v2511 = vld [vmem:[%s3 + $0x498] sm:$0xff]
  %v2512 = vld [vmem:[%s3 + $0x4a0] sm:$0xff]
  %v2513 = vld [vmem:[%s3 + $0x4a8] sm:$0xff]
  %v2514 = vld [vmem:[%s3 + $0x4b0] sm:$0xff]
  %v2515 = vld [vmem:[%s3 + $0x4b8] sm:$0xff]
  %v2516 = vld [vmem:[%s3 + $0x4c0] sm:$0xff]
  %v2517 = vld [vmem:[%s3 + $0x4c8] sm:$0xff]
  %v2518 = vld [vmem:[%s3 + $0x4d0] sm:$0xff]
  %v2519 = vld [vmem:[%s3 + $0x4d8] sm:$0xff]
  %v2520 = vld [vmem:[%s3 + $0x4e0] sm:$0xff]
  %v2521 = vld [vmem:[%s3 + $0x4e8] sm:$0xff]
  %v2522 = vld [vmem:[%s3 + $0x4f0] sm:$0xff]
  %v2523 = vld [vmem:[%s3 + $0x4f8] sm:$0xff]
  %v2524 = vld [vmem:[%s3 + $0x500] sm:$0xff]
  %v2525 = vld [vmem:[%s3 + $0x508] sm:$0xff]
  %v2526 = vld [vmem:[%s3 + $0x510] sm:$0xff]
  %v2527 = vld [vmem:[%s3 + $0x518] sm:$0xff]
  %v2528 = vld [vmem:[%s3 + $0x520] sm:$0xff]
  %v2529 = vld [vmem:[%s3 + $0x528] sm:$0xff]
  %v2530 = vld [vmem:[%s3 + $0x530] sm:$0xff]
  %v2531 = vld [vmem:[%s3 + $0x538] sm:$0xff]
  %v2532 = vld [vmem:[%s3 + $0x540] sm:$0xff]
  %v2533 = vld [vmem:[%s3 + $0x548] sm:$0xff]
  %v2534 = vld [vmem:[%s3 + $0x550] sm:$0xff]
  %v2535 = vld [vmem:[%s3 + $0x558] sm:$0xff]
  %v2536 = vld [vmem:[%s3 + $0x560] sm:$0xff]
  %v2537 = vld [vmem:[%s3 + $0x568] sm:$0xff]
  %v2538 = vld [vmem:[%s3 + $0x570] sm:$0xff]
  %v2539 = vld [vmem:[%s3 + $0x578] sm:$0xff]
  %v2540 = vld [vmem:[%s3 + $0x580] sm:$0xff]
  %v2541 = vld [vmem:[%s3 + $0x588] sm:$0xff]
  %v2542 = vld [vmem:[%s3 + $0x590] sm:$0xff]
  %v2543 = vld [vmem:[%s3 + $0x598] sm:$0xff]
  %v2544 = vld [vmem:[%s3 + $0x5a0] sm:$0xff]
  %v2545 = vld [vmem:[%s3 + $0x5a8] sm:$0xff]
  %v2546 = vld [vmem:[%s3 + $0x5b0] sm:$0xff]
  %v2547 = vld [vmem:[%s3 + $0x5b8] sm:$0xff]
  %v2548 = vld [vmem:[%s3 + $0x5c0] sm:$0xff]
  %v2549 = vld [vmem:[%s3 + $0x5c8] sm:$0xff]
  %v2550 = vld [vmem:[%s3 + $0x5d0] sm:$0xff]
  %v2551 = vld [vmem:[%s3 + $0x5d8] sm:$0xff]
  %v2552 = vld [vmem:[%s3 + $0x5e0] sm:$0xff]
  %v2553 = vld [vmem:[%s3 + $0x5e8] sm:$0xff]
  %v2554 = vld [vmem:[%s3 + $0x5f0] sm:$0xff]
  %v2555 = vld [vmem:[%s3 + $0x5f8] sm:$0xff]
  %v2556 = vld [vmem:[%s3 + $0x600] sm:$0xff]
  %v2557 = vld [vmem:[%s3 + $0x608] sm:$0xff]
  %v2558 = vld [vmem:[%s3 + $0x610] sm:$0xff]
  %v2559 = vld [vmem:[%s3 + $0x618] sm:$0xff]
  %v2560 = vld [vmem:[%s3 + $0x620] sm:$0xff]
  %v2561 = vld [vmem:[%s3 + $0x628] sm:$0xff]
  %v2562 = vld [vmem:[%s3 + $0x630] sm:$0xff]
  %v2563 = vld [vmem:[%s3 + $0x638] sm:$0xff]
  %v2564 = vld [vmem:[%s3 + $0x640] sm:$0xff]
  %v2565 = vld [vmem:[%s3 + $0x648] sm:$0xff]
  %v2566 = vld [vmem:[%s3 + $0x650] sm:$0xff]
  %v2567 = vld [vmem:[%s3 + $0x658] sm:$0xff]
  %v2568 = vld [vmem:[%s3 + $0x660] sm:$0xff]
  %v2569 = vld [vmem:[%s3 + $0x668] sm:$0xff]
  %v2570 = vld [vmem:[%s3 + $0x670] sm:$0xff]
  %v2571 = vld [vmem:[%s3 + $0x678] sm:$0xff]
  %v2572 = vld [vmem:[%s3 + $0x680] sm:$0xff]
  %v2573 = vld [vmem:[%s3 + $0x688] sm:$0xff]
  %v2574 = vld [vmem:[%s3 + $0x690] sm:$0xff]
  %v2575 = vld [vmem:[%s3 + $0x698] sm:$0xff]
  %v2576 = vld [vmem:[%s3 + $0x6a0] sm:$0xff]
  %v2577 = vld [vmem:[%s3 + $0x6a8] sm:$0xff]
  %v2578 = vld [vmem:[%s3 + $0x6b0] sm:$0xff]
  %v2579 = vld [vmem:[%s3 + $0x6b8] sm:$0xff]
  %v2580 = vld [vmem:[%s3 + $0x6c0] sm:$0xff]
  %v2581 = vld [vmem:[%s3 + $0x6c8] sm:$0xff]
  %v2582 = vld [vmem:[%s3 + $0x6d0] sm:$0xff]
  %v2583 = vld [vmem:[%s3 + $0x6d8] sm:$0xff]
  %v2584 = vld [vmem:[%s3 + $0x6e0] sm:$0xff]
  %v2585 = vld [vmem:[%s3 + $0x6e8] sm:$0xff]
  %v2586 = vld [vmem:[%s3 + $0x6f0] sm:$0xff]
  %v2587 = vld [vmem:[%s3 + $0x6f8] sm:$0xff]
  %v2588 = vld [vmem:[%s3 + $0x700] sm:$0xff]
  %v2589 = vld [vmem:[%s3 + $0x708] sm:$0xff]
  %v2590 = vld [vmem:[%s3 + $0x710] sm:$0xff]
  %v2591 = vld [vmem:[%s3 + $0x718] sm:$0xff]
  %v2592 = vld [vmem:[%s3 + $0x720] sm:$0xff]
  %v2593 = vld [vmem:[%s3 + $0x728] sm:$0xff]
  %v2594 = vld [vmem:[%s3 + $0x730] sm:$0xff]
  %v2595 = vld [vmem:[%s3 + $0x738] sm:$0xff]
  %v2596 = vld [vmem:[%s3 + $0x740] sm:$0xff]
  %v2597 = vld [vmem:[%s3 + $0x748] sm:$0xff]
  %v2598 = vld [vmem:[%s3 + $0x750] sm:$0xff]
  %v2599 = vld [vmem:[%s3 + $0x758] sm:$0xff]
  %v2600 = vld [vmem:[%s3 + $0x760] sm:$0xff]
  %v2601 = vld [vmem:[%s3 + $0x768] sm:$0xff]
  %v2602 = vld [vmem:[%s3 + $0x770] sm:$0xff]
  %v2603 = vld [vmem:[%s3 + $0x778] sm:$0xff]
  %v2604 = vld [vmem:[%s3 + $0x780] sm:$0xff]
  %v2605 = vld [vmem:[%s3 + $0x788] sm:$0xff]
  %v2606 = vld [vmem:[%s3 + $0x790] sm:$0xff]
  %v2607 = vld [vmem:[%s3 + $0x798] sm:$0xff]
  %v2608 = vld [vmem:[%s3 + $0x7a0] sm:$0xff]
  %v2609 = vld [vmem:[%s3 + $0x7a8] sm:$0xff]
  %v2610 = vld [vmem:[%s3 + $0x7b0] sm:$0xff]
  %v2611 = vld [vmem:[%s3 + $0x7b8] sm:$0xff]
  %v2612 = vld [vmem:[%s3 + $0x7c0] sm:$0xff]
  %v2613 = vld [vmem:[%s3 + $0x7c8] sm:$0xff]
  %v2614 = vld [vmem:[%s3 + $0x7d0] sm:$0xff]
  %v2615 = vld [vmem:[%s3 + $0x7d8] sm:$0xff]
  %v2616 = vld [vmem:[%s3 + $0x7e0] sm:$0xff]
  %v2617 = vld [vmem:[%s3 + $0x7e8] sm:$0xff]
  %v2618 = vld [vmem:[%s3 + $0x7f0] sm:$0xff]
  %v2619 = vld [vmem:[%s3 + $0x7f8] sm:$0xff]
  %v2620 = vld [vmem:[%s3 + $0x800] sm:$0xff]
  %v2621 = vld [vmem:[%s3 + $0x808] sm:$0xff]
  %v2622 = vld [vmem:[%s3 + $0x810] sm:$0xff]
  %v2623 = vld [vmem:[%s3 + $0x818] sm:$0xff]
  %v2624 = vld [vmem:[%s3 + $0x820] sm:$0xff]
  %v2625 = vld [vmem:[%s3 + $0x828] sm:$0xff]
  %v2626 = vld [vmem:[%s3 + $0x830] sm:$0xff]
  %v2627 = vld [vmem:[%s3 + $0x838] sm:$0xff]
  %v2628 = vld [vmem:[%s3 + $0x840] sm:$0xff]
  %v2629 = vld [vmem:[%s3 + $0x848] sm:$0xff]
  %v2630 = vld [vmem:[%s3 + $0x850] sm:$0xff]
  %v2631 = vld [vmem:[%s3 + $0x858] sm:$0xff]
  %v2632 = vld [vmem:[%s3 + $0x860] sm:$0xff]
  %v2633 = vld [vmem:[%s3 + $0x868] sm:$0xff]
  %v2634 = vld [vmem:[%s3 + $0x870] sm:$0xff]
  %v2635 = vld [vmem:[%s3 + $0x878] sm:$0xff]
  %v2636 = vld [vmem:[%s3 + $0x880] sm:$0xff]
  %v2637 = vld [vmem:[%s3 + $0x888] sm:$0xff]
  %v2638 = vld [vmem:[%s3 + $0x890] sm:$0xff]
  %v2639 = vld [vmem:[%s3 + $0x898] sm:$0xff]
  %v2640 = vld [vmem:[%s3 + $0x8a0] sm:$0xff]
  %v2641 = vld [vmem:[%s3 + $0x8a8] sm:$0xff]
  %v2642 = vld [vmem:[%s3 + $0x8b0] sm:$0xff]
  %v2643 = vld [vmem:[%s3 + $0x8b8] sm:$0xff]
  %v2644 = vld [vmem:[%s3 + $0x8c0] sm:$0xff]
  %v2645 = vld [vmem:[%s3 + $0x8c8] sm:$0xff]
  %v2646 = vld [vmem:[%s3 + $0x8d0] sm:$0xff]
  %v2647 = vld [vmem:[%s3 + $0x8d8] sm:$0xff]
  %v2648 = vld [vmem:[%s3 + $0x8e0] sm:$0xff]
  %v2649 = vld [vmem:[%s3 + $0x8e8] sm:$0xff]
  %v2650 = vld [vmem:[%s3 + $0x8f0] sm:$0xff]
  %v2651 = vld [vmem:[%s3 + $0x8f8] sm:$0xff]
  %v2652 = vld [vmem:[%s3 + $0x900] sm:$0xff]
  %v2653 = vld [vmem:[%s3 + $0x908] sm:$0xff]
  %v2654 = vld [vmem:[%s3 + $0x910] sm:$0xff]
  %v2655 = vld [vmem:[%s3 + $0x918] sm:$0xff]
  %v2656 = vld [vmem:[%s3 + $0x920] sm:$0xff]
  %v2657 = vld [vmem:[%s3 + $0x928] sm:$0xff]
  %v2658 = vld [vmem:[%s3 + $0x930] sm:$0xff]
  %v2659 = vld [vmem:[%s3 + $0x938] sm:$0xff]
  %v2660 = vld [vmem:[%s3 + $0x940] sm:$0xff]
  %v2661 = vld [vmem:[%s3 + $0x948] sm:$0xff]
  %v2662 = vld [vmem:[%s3 + $0x950] sm:$0xff]
  %v2663 = vld [vmem:[%s3 + $0x958] sm:$0xff]
  %v2664 = vld [vmem:[%s3 + $0x960] sm:$0xff]
  %v2665 = vld [vmem:[%s3 + $0x968] sm:$0xff]
  %v2666 = vld [vmem:[%s3 + $0x970] sm:$0xff]
  %v2667 = vld [vmem:[%s3 + $0x978] sm:$0xff]
  %v2668 = vld [vmem:[%s3 + $0x980] sm:$0xff]
  %v2669 = vld [vmem:[%s3 + $0x988] sm:$0xff]
  %v2670 = vld [vmem:[%s3 + $0x990] sm:$0xff]
  %v2671 = vld [vmem:[%s3 + $0x998] sm:$0xff]
  %v2672 = vld [vmem:[%s3 + $0x9a0] sm:$0xff]
  %v2673 = vld [vmem:[%s3 + $0x9a8] sm:$0xff]
  %v2674 = vld [vmem:[%s3 + $0x9b0] sm:$0xff]
  %v2675 = vld [vmem:[%s3 + $0x9b8] sm:$0xff]
  %v2676 = vld [vmem:[%s3 + $0x9c0] sm:$0xff]
  %v2677 = vld [vmem:[%s3 + $0x9c8] sm:$0xff]
  %v2678 = vld [vmem:[%s3 + $0x9d0] sm:$0xff]
  %v2679 = vld [vmem:[%s3 + $0x9d8] sm:$0xff]
  %v2680 = vld [vmem:[%s3 + $0x9e0] sm:$0xff]
  %v2681 = vld [vmem:[%s3 + $0x9e8] sm:$0xff]
  %v2682 = vld [vmem:[%s3 + $0x9f0] sm:$0xff]
  %v2683 = vld [vmem:[%s3 + $0x9f8] sm:$0xff]
  %v2684 = vld [vmem:[%s3 + $0xa00] sm:$0xff]
  %v2685 = vld [vmem:[%s3 + $0xa08] sm:$0xff]
  %v2686 = vld [vmem:[%s3 + $0xa10] sm:$0xff]
  %v2687 = vld [vmem:[%s3 + $0xa18] sm:$0xff]
  %v2688 = vld [vmem:[%s3 + $0xa20] sm:$0xff]
  %v2689 = vld [vmem:[%s3 + $0xa28] sm:$0xff]
  %v2690 = vld [vmem:[%s3 + $0xa30] sm:$0xff]
  %v2691 = vld [vmem:[%s3 + $0xa38] sm:$0xff]
  %v2692 = vld [vmem:[%s3 + $0xa40] sm:$0xff]
  %v2693 = vld [vmem:[%s3 + $0xa48] sm:$0xff]
  %v2694 = vld [vmem:[%s3 + $0xa50] sm:$0xff]
  %v2695 = vld [vmem:[%s3 + $0xa58] sm:$0xff]
  %v2696 = vld [vmem:[%s3 + $0xa60] sm:$0xff]
  %v2697 = vld [vmem:[%s3 + $0xa68] sm:$0xff]
  %v2698 = vld [vmem:[%s3 + $0xa70] sm:$0xff]
  %v2699 = vld [vmem:[%s3 + $0xa78] sm:$0xff]
  %v2700 = vld [vmem:[%s3 + $0xa80] sm:$0xff]
  %v2701 = vld [vmem:[%s3 + $0xa88] sm:$0xff]
  %v2702 = vld [vmem:[%s3 + $0xa90] sm:$0xff]
  %v2703 = vld [vmem:[%s3 + $0xa98] sm:$0xff]
  %v2704 = vld [vmem:[%s3 + $0xaa0] sm:$0xff]
  %v2705 = vld [vmem:[%s3 + $0xaa8] sm:$0xff]
  %v2706 = vld [vmem:[%s3 + $0xab0] sm:$0xff]
  %v2707 = vld [vmem:[%s3 + $0xab8] sm:$0xff]
  %v2708 = vld [vmem:[%s3 + $0xac0] sm:$0xff]
  %v2709 = vld [vmem:[%s3 + $0xac8] sm:$0xff]
  %v2710 = vld [vmem:[%s3 + $0xad0] sm:$0xff]
  %v2711 = vld [vmem:[%s3 + $0xad8] sm:$0xff]
  %v2712 = vld [vmem:[%s3 + $0xae0] sm:$0xff]
  %v2713 = vld [vmem:[%s3 + $0xae8] sm:$0xff]
  %v2714 = vld [vmem:[%s3 + $0xaf0] sm:$0xff]
  %v2715 = vld [vmem:[%s3 + $0xaf8] sm:$0xff]
  %v2716 = vld [vmem:[%s3 + $0xb00] sm:$0xff]
  %v2717 = vld [vmem:[%s3 + $0xb08] sm:$0xff]
  %v2718 = vld [vmem:[%s3 + $0xb10] sm:$0xff]
  %v2719 = vld [vmem:[%s3 + $0xb18] sm:$0xff]
  %v2720 = vld [vmem:[%s3 + $0xb20] sm:$0xff]
  %v2721 = vld [vmem:[%s3 + $0xb28] sm:$0xff]
  %v2722 = vld [vmem:[%s3 + $0xb30] sm:$0xff]
  %v2723 = vld [vmem:[%s3 + $0xb38] sm:$0xff]
  %v2724 = vld [vmem:[%s3 + $0xb40] sm:$0xff]
  %v2725 = vld [vmem:[%s3 + $0xb48] sm:$0xff]
  %v2726 = vld [vmem:[%s3 + $0xb50] sm:$0xff]
  %v2727 = vld [vmem:[%s3 + $0xb58] sm:$0xff]
  %v2728 = vld [vmem:[%s3 + $0xb60] sm:$0xff]
  %v2729 = vld [vmem:[%s3 + $0xb68] sm:$0xff]
  %v2730 = vld [vmem:[%s3 + $0xb70] sm:$0xff]
  %v2731 = vld [vmem:[%s3 + $0xb78] sm:$0xff]
  %v2732 = vld [vmem:[%s3 + $0xb80] sm:$0xff]
  %v2733 = vld [vmem:[%s3 + $0xb88] sm:$0xff]
  %v2734 = vld [vmem:[%s3 + $0xb90] sm:$0xff]
  %v2735 = vld [vmem:[%s3 + $0xb98] sm:$0xff]
  %v2736 = vld [vmem:[%s3 + $0xba0] sm:$0xff]
  %v2737 = vld [vmem:[%s3 + $0xba8] sm:$0xff]
  %v2738 = vld [vmem:[%s3 + $0xbb0] sm:$0xff]
  %v2739 = vld [vmem:[%s3 + $0xbb8] sm:$0xff]
  %v2740 = vld [vmem:[%s3 + $0xbc0] sm:$0xff]
  %v2741 = vld [vmem:[%s3 + $0xbc8] sm:$0xff]
  %v2742 = vld [vmem:[%s3 + $0xbd0] sm:$0xff]
  %v2743 = vld [vmem:[%s3 + $0xbd8] sm:$0xff]
  %v2744 = vld [vmem:[%s3 + $0xbe0] sm:$0xff]
  %v2745 = vld [vmem:[%s3 + $0xbe8] sm:$0xff]
  %v2746 = vld [vmem:[%s3 + $0xbf0] sm:$0xff]
  %v2747 = vld [vmem:[%s3 + $0xbf8] sm:$0xff]
  %v2748 = vld [vmem:[%s3 + $0xc00] sm:$0xff]
  %v2749 = vld [vmem:[%s3 + $0xc08] sm:$0xff]
  %v2750 = vld [vmem:[%s3 + $0xc10] sm:$0xff]
  %v2751 = vld [vmem:[%s3 + $0xc18] sm:$0xff]
  %v2752 = vld [vmem:[%s3 + $0xc20] sm:$0xff]
  %v2753 = vld [vmem:[%s3 + $0xc28] sm:$0xff]
  %v2754 = vld [vmem:[%s3 + $0xc30] sm:$0xff]
  %v2755 = vld [vmem:[%s3 + $0xc38] sm:$0xff]
  %v2756 = vld [vmem:[%s3 + $0xc40] sm:$0xff]
  %v2757 = vld [vmem:[%s3 + $0xc48] sm:$0xff]
  %v2758 = vld [vmem:[%s3 + $0xc50] sm:$0xff]
  %v2759 = vld [vmem:[%s3 + $0xc58] sm:$0xff]
  %v2760 = vld [vmem:[%s3 + $0xc60] sm:$0xff]
  %v2761 = vld [vmem:[%s3 + $0xc68] sm:$0xff]
  %v2762 = vld [vmem:[%s3 + $0xc70] sm:$0xff]
  %v2763 = vld [vmem:[%s3 + $0xc78] sm:$0xff]
  %v2764 = vld [vmem:[%s3 + $0xc80] sm:$0xff]
  %v2765 = vld [vmem:[%s3 + $0xc88] sm:$0xff]
  %v2766 = vld [vmem:[%s3 + $0xc90] sm:$0xff]
  %v2767 = vld [vmem:[%s3 + $0xc98] sm:$0xff]
  %v2768 = vld [vmem:[%s3 + $0xca0] sm:$0xff]
  %v2769 = vld [vmem:[%s3 + $0xca8] sm:$0xff]
  %v2770 = vld [vmem:[%s3 + $0xcb0] sm:$0xff]
  %v2771 = vld [vmem:[%s3 + $0xcb8] sm:$0xff]
  %v2772 = vld [vmem:[%s3 + $0xcc0] sm:$0xff]
  %v2773 = vld [vmem:[%s3 + $0xcc8] sm:$0xff]
  %v2774 = vld [vmem:[%s3 + $0xcd0] sm:$0xff]
  %v2775 = vld [vmem:[%s3 + $0xcd8] sm:$0xff]
  %v2776 = vld [vmem:[%s3 + $0xce0] sm:$0xff]
  %v2777 = vld [vmem:[%s3 + $0xce8] sm:$0xff]
  %v2778 = vld [vmem:[%s3 + $0xcf0] sm:$0xff]
  %v2779 = vld [vmem:[%s3 + $0xcf8] sm:$0xff]
  %v2780 = vld [vmem:[%s3 + $0xd00] sm:$0xff]
  %v2781 = vld [vmem:[%s3 + $0xd08] sm:$0xff]
  %v2782 = vld [vmem:[%s3 + $0xd10] sm:$0xff]
  %v2783 = vld [vmem:[%s3 + $0xd18] sm:$0xff]
  %v2784 = vld [vmem:[%s3 + $0xd20] sm:$0xff]
  %v2785 = vld [vmem:[%s3 + $0xd28] sm:$0xff]
  %v2786 = vld [vmem:[%s3 + $0xd30] sm:$0xff]
  %v2787 = vld [vmem:[%s3 + $0xd38] sm:$0xff]
  %v2788 = vld [vmem:[%s3 + $0xd40] sm:$0xff]
  %v2789 = vld [vmem:[%s3 + $0xd48] sm:$0xff]
  %v2790 = vld [vmem:[%s3 + $0xd50] sm:$0xff]
  %v2791 = vld [vmem:[%s3 + $0xd58] sm:$0xff]
  %v2792 = vld [vmem:[%s3 + $0xd60] sm:$0xff]
  %v2793 = vld [vmem:[%s3 + $0xd68] sm:$0xff]
  %v2794 = vld [vmem:[%s3 + $0xd70] sm:$0xff]
  %v2795 = vld [vmem:[%s3 + $0xd78] sm:$0xff]
  %v2796 = vld [vmem:[%s3 + $0xd80] sm:$0xff]
  %v2797 = vld [vmem:[%s3 + $0xd88] sm:$0xff]
  %v2798 = vld [vmem:[%s3 + $0xd90] sm:$0xff]
  %v2799 = vld [vmem:[%s3 + $0xd98] sm:$0xff]
  %v2800 = vld [vmem:[%s3 + $0xda0] sm:$0xff]
  %v2801 = vld [vmem:[%s3 + $0xda8] sm:$0xff]
  %v2802 = vld [vmem:[%s3 + $0xdb0] sm:$0xff]
  %v2803 = vld [vmem:[%s3 + $0xdb8] sm:$0xff]
  %v2804 = vld [vmem:[%s3 + $0xdc0] sm:$0xff]
  %v2805 = vld [vmem:[%s3 + $0xdc8] sm:$0xff]
  %v2806 = vld [vmem:[%s3 + $0xdd0] sm:$0xff]
  %v2807 = vld [vmem:[%s3 + $0xdd8] sm:$0xff]
  %v2808 = vld [vmem:[%s3 + $0xde0] sm:$0xff]
  %v2809 = vld [vmem:[%s3 + $0xde8] sm:$0xff]
  %v2810 = vld [vmem:[%s3 + $0xdf0] sm:$0xff]
  %v2811 = vld [vmem:[%s3 + $0xdf8] sm:$0xff]
  %v2812 = vld [vmem:[%s3 + $0xe00] sm:$0xff]
  %v2813 = vld [vmem:[%s3 + $0xe08] sm:$0xff]
  %v2814 = vld [vmem:[%s3 + $0xe10] sm:$0xff]
  %v2815 = vld [vmem:[%s3 + $0xe18] sm:$0xff]
  %v2816 = vld [vmem:[%s3 + $0xe20] sm:$0xff]
  %v2817 = vld [vmem:[%s3 + $0xe28] sm:$0xff]
  %v2818 = vld [vmem:[%s3 + $0xe30] sm:$0xff]
  %v2819 = vld [vmem:[%s3 + $0xe38] sm:$0xff]
  %v2820 = vld [vmem:[%s3 + $0xe40] sm:$0xff]
  %v2821 = vld [vmem:[%s3 + $0xe48] sm:$0xff]
  %v2822 = vld [vmem:[%s3 + $0xe50] sm:$0xff]
  %v2823 = vld [vmem:[%s3 + $0xe58] sm:$0xff]
  %v2824 = vld [vmem:[%s3 + $0xe60] sm:$0xff]
  %v2825 = vld [vmem:[%s3 + $0xe68] sm:$0xff]
  %v2826 = vld [vmem:[%s3 + $0xe70] sm:$0xff]
  %v2827 = vld [vmem:[%s3 + $0xe78] sm:$0xff]
  %v2828 = vld [vmem:[%s3 + $0xe80] sm:$0xff]
  %v2829 = vld [vmem:[%s3 + $0xe88] sm:$0xff]
  %v2830 = vld [vmem:[%s3 + $0xe90] sm:$0xff]
  %v2831 = vld [vmem:[%s3 + $0xe98] sm:$0xff]
  %v2832 = vld [vmem:[%s3 + $0xea0] sm:$0xff]
  %v2833 = vld [vmem:[%s3 + $0xea8] sm:$0xff]
  %v2834 = vld [vmem:[%s3 + $0xeb0] sm:$0xff]
  %v2835 = vld [vmem:[%s3 + $0xeb8] sm:$0xff]
  %v2836 = vld [vmem:[%s3 + $0xec0] sm:$0xff]
  %v2837 = vld [vmem:[%s3 + $0xec8] sm:$0xff]
  %v2838 = vld [vmem:[%s3 + $0xed0] sm:$0xff]
  %v2839 = vld [vmem:[%s3 + $0xed8] sm:$0xff]
  %v2840 = vld [vmem:[%s3 + $0xee0] sm:$0xff]
  %v2841 = vld [vmem:[%s3 + $0xee8] sm:$0xff]
  %v2842 = vld [vmem:[%s3 + $0xef0] sm:$0xff]
  %v2843 = vld [vmem:[%s3 + $0xef8] sm:$0xff]
  %v2844 = vld [vmem:[%s3 + $0xf00] sm:$0xff]
  %v2845 = vld [vmem:[%s3 + $0xf08] sm:$0xff]
  %v2846 = vld [vmem:[%s3 + $0xf10] sm:$0xff]
  %v2847 = vld [vmem:[%s3 + $0xf18] sm:$0xff]
  %v2848 = vld [vmem:[%s3 + $0xf20] sm:$0xff]
  %v2849 = vld [vmem:[%s3 + $0xf28] sm:$0xff]
  %v2850 = vld [vmem:[%s3 + $0xf30] sm:$0xff]
  %v2851 = vld [vmem:[%s3 + $0xf38] sm:$0xff]
  %v2852 = vld [vmem:[%s3 + $0xf40] sm:$0xff]
  %v2853 = vld [vmem:[%s3 + $0xf48] sm:$0xff]
  %v2854 = vld [vmem:[%s3 + $0xf50] sm:$0xff]
  %v2855 = vld [vmem:[%s3 + $0xf58] sm:$0xff]
  %v2856 = vld [vmem:[%s3 + $0xf60] sm:$0xff]
  %v2857 = vld [vmem:[%s3 + $0xf68] sm:$0xff]
  %v2858 = vld [vmem:[%s3 + $0xf70] sm:$0xff]
  %v2859 = vld [vmem:[%s3 + $0xf78] sm:$0xff]
  %v2860 = vld [vmem:[%s3 + $0xf80] sm:$0xff]
  %v2861 = vld [vmem:[%s3 + $0xf88] sm:$0xff]
  %v2862 = vld [vmem:[%s3 + $0xf90] sm:$0xff]
  %v2863 = vld [vmem:[%s3 + $0xf98] sm:$0xff]
  %v2864 = vld [vmem:[%s3 + $0xfa0] sm:$0xff]
  %v2865 = vld [vmem:[%s3 + $0xfa8] sm:$0xff]
  %v2866 = vld [vmem:[%s3 + $0xfb0] sm:$0xff]
  %v2867 = vld [vmem:[%s3 + $0xfb8] sm:$0xff]
  %v2868 = vld [vmem:[%s3 + $0xfc0] sm:$0xff]
  %v2869 = vld [vmem:[%s3 + $0xfc8] sm:$0xff]
  %v2870 = vld [vmem:[%s3 + $0xfd0] sm:$0xff]
  %v2871 = vld [vmem:[%s3 + $0xfd8] sm:$0xff]
  %v2872 = vld [vmem:[%s3 + $0xfe0] sm:$0xff]
  %v2873 = vld [vmem:[%s3 + $0xfe8] sm:$0xff]
  %v2874 = vld [vmem:[%s3 + $0xff0] sm:$0xff]
  %v2875 = vld [vmem:[%s3 + $0xff8] sm:$0xff]
  %v2876 = vld [vmem:[%s4] sm:$0xf]
  %v2878 = vperm.slane %v2876, 0
  %v2879 = vperm.slane %v2876, 1
  %v2880 = vperm.slane %v2876, 2
  %v2881 = vperm.slane %v2876, 3
  %2886 = vmatpush.msra.mxu0 %v2424
  %2887 = vmatpush.msra.mxu0 %v2420
  %2888 = vmatpush.msra.mxu0 %v2416
  %2889 = vmatpush.msra.mxu0 %v2412
  %2890 = vmatpush.msra.mxu0 %v2408
  %2891 = vmatpush.msra.mxu0 %v2404
  %2892 = vmatpush.msra.mxu0 %v2400
  %2893 = vmatpush.msra.mxu0 %v2396
  %2894 = vmatpush.msra.mxu0 %v2392
  %2895 = vmatpush.msra.mxu0 %v2388
  %2896 = vmatpush.msra.mxu0 %v2384
  %2897 = vmatpush.msra.mxu0 %v2380
  %2898 = vmatpush.msra.mxu0 %v2376
  %2899 = vmatpush.msra.mxu0 %v2372
  %2900 = vmatpush.msra.mxu0 %v2368
  %2901 = vmatpush.msra.mxu0 %v2364
  %2902 = vmatmul.f32.gmra.mxu0 %v2356
  %v2903 = vpop.f32.mrf.mxu0
  %v2904 = vadd.f32 %v2878, %v2903
  %2905 = vdwg.mxu0
  %2906 = vmatpush.msra.mxu0 %v2488
  %2907 = vmatpush.msra.mxu0 %v2484
  %2908 = vmatpush.msra.mxu0 %v2480
  %2909 = vmatpush.msra.mxu0 %v2476
  %2910 = vmatpush.msra.mxu0 %v2472
  %2911 = vmatpush.msra.mxu0 %v2468
  %2912 = vmatpush.msra.mxu0 %v2464
  %2913 = vmatpush.msra.mxu0 %v2460
  %2914 = vmatpush.msra.mxu0 %v2456
  %2915 = vmatpush.msra.mxu0 %v2452
  %2916 = vmatpush.msra.mxu0 %v2448
  %2917 = vmatpush.msra.mxu0 %v2444
  %2918 = vmatpush.msra.mxu0 %v2440
  %2919 = vmatpush.msra.mxu0 %v2436
  %2920 = vmatpush.msra.mxu0 %v2432
  %2921 = vmatpush.msra.mxu0 %v2428
  %2922 = vmatmul.f32.gmra.mxu0 %v2357
  %v2923 = vpop.f32.mrf.mxu0
  %v2924 = vadd.f32 %v2904, %v2923
  %2925 = vdwg.mxu0
  %2926 = vmatpush.msra.mxu0 %v2552
  %2927 = vmatpush.msra.mxu0 %v2548
  %2928 = vmatpush.msra.mxu0 %v2544
  %2929 = vmatpush.msra.mxu0 %v2540
  %2930 = vmatpush.msra.mxu0 %v2536
  %2931 = vmatpush.msra.mxu0 %v2532
  %2932 = vmatpush.msra.mxu0 %v2528
  %2933 = vmatpush.msra.mxu0 %v2524
  %2934 = vmatpush.msra.mxu0 %v2520
  %2935 = vmatpush.msra.mxu0 %v2516
  %2936 = vmatpush.msra.mxu0 %v2512
  %2937 = vmatpush.msra.mxu0 %v2508
  %2938 = vmatpush.msra.mxu0 %v2504
  %2939 = vmatpush.msra.mxu0 %v2500
  %2940 = vmatpush.msra.mxu0 %v2496
  %2941 = vmatpush.msra.mxu0 %v2492
  %2942 = vmatmul.f32.gmra.mxu0 %v2358
  %v2943 = vpop.f32.mrf.mxu0
  %v2944 = vadd.f32 %v2924, %v2943
  %2945 = vdwg.mxu0
  %2946 = vmatpush.msra.mxu0 %v2616
  %2947 = vmatpush.msra.mxu0 %v2612
  %2948 = vmatpush.msra.mxu0 %v2608
  %2949 = vmatpush.msra.mxu0 %v2604
  %2950 = vmatpush.msra.mxu0 %v2600
  %2951 = vmatpush.msra.mxu0 %v2596
  %2952 = vmatpush.msra.mxu0 %v2592
  %2953 = vmatpush.msra.mxu0 %v2588
  %2954 = vmatpush.msra.mxu0 %v2584
  %2955 = vmatpush.msra.mxu0 %v2580
  %2956 = vmatpush.msra.mxu0 %v2576
  %2957 = vmatpush.msra.mxu0 %v2572
  %2958 = vmatpush.msra.mxu0 %v2568
  %2959 = vmatpush.msra.mxu0 %v2564
  %2960 = vmatpush.msra.mxu0 %v2560
  %2961 = vmatpush.msra.mxu0 %v2556
  %2962 = vmatmul.f32.gmra.mxu0 %v2359
  %v2963 = vpop.f32.mrf.mxu0
  %v2964 = vadd.f32 %v2944, %v2963
  %2965 = vdwg.mxu0
  %2966 = vmatpush.msra.mxu0 %v2680
  %2967 = vmatpush.msra.mxu0 %v2676
  %2968 = vmatpush.msra.mxu0 %v2672
  %2969 = vmatpush.msra.mxu0 %v2668
  %2970 = vmatpush.msra.mxu0 %v2664
  %2971 = vmatpush.msra.mxu0 %v2660
  %2972 = vmatpush.msra.mxu0 %v2656
  %2973 = vmatpush.msra.mxu0 %v2652
  %2974 = vmatpush.msra.mxu0 %v2648
  %2975 = vmatpush.msra.mxu0 %v2644
  %2976 = vmatpush.msra.mxu0 %v2640
  %2977 = vmatpush.msra.mxu0 %v2636
  %2978 = vmatpush.msra.mxu0 %v2632
  %2979 = vmatpush.msra.mxu0 %v2628
  %2980 = vmatpush.msra.mxu0 %v2624
  %2981 = vmatpush.msra.mxu0 %v2620
  %2982 = vmatmul.f32.gmra.mxu0 %v2360
  %v2983 = vpop.f32.mrf.mxu0
  %v2984 = vadd.f32 %v2964, %v2983
  %2985 = vdwg.mxu0
  %2986 = vmatpush.msra.mxu0 %v2744
  %2987 = vmatpush.msra.mxu0 %v2740
  %2988 = vmatpush.msra.mxu0 %v2736
  %2989 = vmatpush.msra.mxu0 %v2732
  %2990 = vmatpush.msra.mxu0 %v2728
  %2991 = vmatpush.msra.mxu0 %v2724
  %2992 = vmatpush.msra.mxu0 %v2720
  %2993 = vmatpush.msra.mxu0 %v2716
  %2994 = vmatpush.msra.mxu0 %v2712
  %2995 = vmatpush.msra.mxu0 %v2708
  %2996 = vmatpush.msra.mxu0 %v2704
  %2997 = vmatpush.msra.mxu0 %v2700
  %2998 = vmatpush.msra.mxu0 %v2696
  %2999 = vmatpush.msra.mxu0 %v2692
  %3000 = vmatpush.msra.mxu0 %v2688
  %3001 = vmatpush.msra.mxu0 %v2684
  %3002 = vmatmul.f32.gmra.mxu0 %v2361
  %v3003 = vpop.f32.mrf.mxu0
  %v3004 = vadd.f32 %v2984, %v3003
  %3005 = vdwg.mxu0
  %3006 = vmatpush.msra.mxu0 %v2808
  %3007 = vmatpush.msra.mxu0 %v2804
  %3008 = vmatpush.msra.mxu0 %v2800
  %3009 = vmatpush.msra.mxu0 %v2796
  %3010 = vmatpush.msra.mxu0 %v2792
  %3011 = vmatpush.msra.mxu0 %v2788
  %3012 = vmatpush.msra.mxu0 %v2784
  %3013 = vmatpush.msra.mxu0 %v2780
  %3014 = vmatpush.msra.mxu0 %v2776
  %3015 = vmatpush.msra.mxu0 %v2772
  %3016 = vmatpush.msra.mxu0 %v2768
  %3017 = vmatpush.msra.mxu0 %v2764
  %3018 = vmatpush.msra.mxu0 %v2760
  %3019 = vmatpush.msra.mxu0 %v2756
  %3020 = vmatpush.msra.mxu0 %v2752
  %3021 = vmatpush.msra.mxu0 %v2748
  %3022 = vmatmul.f32.gmra.mxu0 %v2362
  %v3023 = vpop.f32.mrf.mxu0
  %v3024 = vadd.f32 %v3004, %v3023
  %3025 = vdwg.mxu0
  %3026 = vmatpush.msra.mxu0 %v2872
  %3027 = vmatpush.msra.mxu0 %v2868
  %3028 = vmatpush.msra.mxu0 %v2864
  %3029 = vmatpush.msra.mxu0 %v2860
  %3030 = vmatpush.msra.mxu0 %v2856
  %3031 = vmatpush.msra.mxu0 %v2852
  %3032 = vmatpush.msra.mxu0 %v2848
  %3033 = vmatpush.msra.mxu0 %v2844
  %3034 = vmatpush.msra.mxu0 %v2840
  %3035 = vmatpush.msra.mxu0 %v2836
  %3036 = vmatpush.msra.mxu0 %v2832
  %3037 = vmatpush.msra.mxu0 %v2828
  %3038 = vmatpush.msra.mxu0 %v2824
  %3039 = vmatpush.msra.mxu0 %v2820
  %3040 = vmatpush.msra.mxu0 %v2816
  %3041 = vmatpush.msra.mxu0 %v2812
  %3042 = vmatmul.f32.gmra.mxu0 %v2363
  %v3043 = vpop.f32.mrf.mxu0
  %v3044 = vadd.f32 %v3024, %v3043
  %3045 = vdwg.mxu0
  %3046 = vmatpush.msra.mxu0 %v2425
  %3047 = vmatpush.msra.mxu0 %v2421
  %3048 = vmatpush.msra.mxu0 %v2417
  %3049 = vmatpush.msra.mxu0 %v2413
  %3050 = vmatpush.msra.mxu0 %v2409
  %3051 = vmatpush.msra.mxu0 %v2405
  %3052 = vmatpush.msra.mxu0 %v2401
  %3053 = vmatpush.msra.mxu0 %v2397
  %3054 = vmatpush.msra.mxu0 %v2393
  %3055 = vmatpush.msra.mxu0 %v2389
  %3056 = vmatpush.msra.mxu0 %v2385
  %3057 = vmatpush.msra.mxu0 %v2381
  %3058 = vmatpush.msra.mxu0 %v2377
  %3059 = vmatpush.msra.mxu0 %v2373
  %3060 = vmatpush.msra.mxu0 %v2369
  %3061 = vmatpush.msra.mxu0 %v2365
  %3062 = vmatmul.f32.gmra.mxu0 %v2356
  %v3063 = vpop.f32.mrf.mxu0
  %v3064 = vadd.f32 %v2879, %v3063
  %3065 = vdwg.mxu0
  %3066 = vmatpush.msra.mxu0 %v2489
  %3067 = vmatpush.msra.mxu0 %v2485
  %3068 = vmatpush.msra.mxu0 %v2481
  %3069 = vmatpush.msra.mxu0 %v2477
  %3070 = vmatpush.msra.mxu0 %v2473
  %3071 = vmatpush.msra.mxu0 %v2469
  %3072 = vmatpush.msra.mxu0 %v2465
  %3073 = vmatpush.msra.mxu0 %v2461
  %3074 = vmatpush.msra.mxu0 %v2457
  %3075 = vmatpush.msra.mxu0 %v2453
  %3076 = vmatpush.msra.mxu0 %v2449
  %3077 = vmatpush.msra.mxu0 %v2445
  %3078 = vmatpush.msra.mxu0 %v2441
  %3079 = vmatpush.msra.mxu0 %v2437
  %3080 = vmatpush.msra.mxu0 %v2433
  %3081 = vmatpush.msra.mxu0 %v2429
  %3082 = vmatmul.f32.gmra.mxu0 %v2357
  %v3083 = vpop.f32.mrf.mxu0
  %v3084 = vadd.f32 %v3064, %v3083
  %3085 = vdwg.mxu0
  %3086 = vmatpush.msra.mxu0 %v2553
  %3087 = vmatpush.msra.mxu0 %v2549
  %3088 = vmatpush.msra.mxu0 %v2545
  %3089 = vmatpush.msra.mxu0 %v2541
  %3090 = vmatpush.msra.mxu0 %v2537
  %3091 = vmatpush.msra.mxu0 %v2533
  %3092 = vmatpush.msra.mxu0 %v2529
  %3093 = vmatpush.msra.mxu0 %v2525
  %3094 = vmatpush.msra.mxu0 %v2521
  %3095 = vmatpush.msra.mxu0 %v2517
  %3096 = vmatpush.msra.mxu0 %v2513
  %3097 = vmatpush.msra.mxu0 %v2509
  %3098 = vmatpush.msra.mxu0 %v2505
  %3099 = vmatpush.msra.mxu0 %v2501
  %3100 = vmatpush.msra.mxu0 %v2497
  %3101 = vmatpush.msra.mxu0 %v2493
  %3102 = vmatmul.f32.gmra.mxu0 %v2358
  %v3103 = vpop.f32.mrf.mxu0
  %v3104 = vadd.f32 %v3084, %v3103
  %3105 = vdwg.mxu0
  %3106 = vmatpush.msra.mxu0 %v2617
  %3107 = vmatpush.msra.mxu0 %v2613
  %3108 = vmatpush.msra.mxu0 %v2609
  %3109 = vmatpush.msra.mxu0 %v2605
  %3110 = vmatpush.msra.mxu0 %v2601
  %3111 = vmatpush.msra.mxu0 %v2597
  %3112 = vmatpush.msra.mxu0 %v2593
  %3113 = vmatpush.msra.mxu0 %v2589
  %3114 = vmatpush.msra.mxu0 %v2585
  %3115 = vmatpush.msra.mxu0 %v2581
  %3116 = vmatpush.msra.mxu0 %v2577
  %3117 = vmatpush.msra.mxu0 %v2573
  %3118 = vmatpush.msra.mxu0 %v2569
  %3119 = vmatpush.msra.mxu0 %v2565
  %3120 = vmatpush.msra.mxu0 %v2561
  %3121 = vmatpush.msra.mxu0 %v2557
  %3122 = vmatmul.f32.gmra.mxu0 %v2359
  %v3123 = vpop.f32.mrf.mxu0
  %v3124 = vadd.f32 %v3104, %v3123
  %3125 = vdwg.mxu0
  %3126 = vmatpush.msra.mxu0 %v2681
  %3127 = vmatpush.msra.mxu0 %v2677
  %3128 = vmatpush.msra.mxu0 %v2673
  %3129 = vmatpush.msra.mxu0 %v2669
  %3130 = vmatpush.msra.mxu0 %v2665
  %3131 = vmatpush.msra.mxu0 %v2661
  %3132 = vmatpush.msra.mxu0 %v2657
  %3133 = vmatpush.msra.mxu0 %v2653
  %3134 = vmatpush.msra.mxu0 %v2649
  %3135 = vmatpush.msra.mxu0 %v2645
  %3136 = vmatpush.msra.mxu0 %v2641
  %3137 = vmatpush.msra.mxu0 %v2637
  %3138 = vmatpush.msra.mxu0 %v2633
  %3139 = vmatpush.msra.mxu0 %v2629
  %3140 = vmatpush.msra.mxu0 %v2625
  %3141 = vmatpush.msra.mxu0 %v2621
  %3142 = vmatmul.f32.gmra.mxu0 %v2360
  %v3143 = vpop.f32.mrf.mxu0
  %v3144 = vadd.f32 %v3124, %v3143
  %3145 = vdwg.mxu0
  %3146 = vmatpush.msra.mxu0 %v2745
  %3147 = vmatpush.msra.mxu0 %v2741
  %3148 = vmatpush.msra.mxu0 %v2737
  %3149 = vmatpush.msra.mxu0 %v2733
  %3150 = vmatpush.msra.mxu0 %v2729
  %3151 = vmatpush.msra.mxu0 %v2725
  %3152 = vmatpush.msra.mxu0 %v2721
  %3153 = vmatpush.msra.mxu0 %v2717
  %3154 = vmatpush.msra.mxu0 %v2713
  %3155 = vmatpush.msra.mxu0 %v2709
  %3156 = vmatpush.msra.mxu0 %v2705
  %3157 = vmatpush.msra.mxu0 %v2701
  %3158 = vmatpush.msra.mxu0 %v2697
  %3159 = vmatpush.msra.mxu0 %v2693
  %3160 = vmatpush.msra.mxu0 %v2689
  %3161 = vmatpush.msra.mxu0 %v2685
  %3162 = vmatmul.f32.gmra.mxu0 %v2361
  %v3163 = vpop.f32.mrf.mxu0
  %v3164 = vadd.f32 %v3144, %v3163
  %3165 = vdwg.mxu0
  %3166 = vmatpush.msra.mxu0 %v2809
  %3167 = vmatpush.msra.mxu0 %v2805
  %3168 = vmatpush.msra.mxu0 %v2801
  %3169 = vmatpush.msra.mxu0 %v2797
  %3170 = vmatpush.msra.mxu0 %v2793
  %3171 = vmatpush.msra.mxu0 %v2789
  %3172 = vmatpush.msra.mxu0 %v2785
  %3173 = vmatpush.msra.mxu0 %v2781
  %3174 = vmatpush.msra.mxu0 %v2777
  %3175 = vmatpush.msra.mxu0 %v2773
  %3176 = vmatpush.msra.mxu0 %v2769
  %3177 = vmatpush.msra.mxu0 %v2765
  %3178 = vmatpush.msra.mxu0 %v2761
  %3179 = vmatpush.msra.mxu0 %v2757
  %3180 = vmatpush.msra.mxu0 %v2753
  %3181 = vmatpush.msra.mxu0 %v2749
  %3182 = vmatmul.f32.gmra.mxu0 %v2362
  %v3183 = vpop.f32.mrf.mxu0
  %v3184 = vadd.f32 %v3164, %v3183
  %3185 = vdwg.mxu0
  %3186 = vmatpush.msra.mxu0 %v2873
  %3187 = vmatpush.msra.mxu0 %v2869
  %3188 = vmatpush.msra.mxu0 %v2865
  %3189 = vmatpush.msra.mxu0 %v2861
  %3190 = vmatpush.msra.mxu0 %v2857
  %3191 = vmatpush.msra.mxu0 %v2853
  %3192 = vmatpush.msra.mxu0 %v2849
  %3193 = vmatpush.msra.mxu0 %v2845
  %3194 = vmatpush.msra.mxu0 %v2841
  %3195 = vmatpush.msra.mxu0 %v2837
  %3196 = vmatpush.msra.mxu0 %v2833
  %3197 = vmatpush.msra.mxu0 %v2829
  %3198 = vmatpush.msra.mxu0 %v2825
  %3199 = vmatpush.msra.mxu0 %v2821
  %3200 = vmatpush.msra.mxu0 %v2817
  %3201 = vmatpush.msra.mxu0 %v2813
  %3202 = vmatmul.f32.gmra.mxu0 %v2363
  %v3203 = vpop.f32.mrf.mxu0
  %v3204 = vadd.f32 %v3184, %v3203
  %3205 = vdwg.mxu0
  %3206 = vmatpush.msra.mxu0 %v2426
  %3207 = vmatpush.msra.mxu0 %v2422
  %3208 = vmatpush.msra.mxu0 %v2418
  %3209 = vmatpush.msra.mxu0 %v2414
  %3210 = vmatpush.msra.mxu0 %v2410
  %3211 = vmatpush.msra.mxu0 %v2406
  %3212 = vmatpush.msra.mxu0 %v2402
  %3213 = vmatpush.msra.mxu0 %v2398
  %3214 = vmatpush.msra.mxu0 %v2394
  %3215 = vmatpush.msra.mxu0 %v2390
  %3216 = vmatpush.msra.mxu0 %v2386
  %3217 = vmatpush.msra.mxu0 %v2382
  %3218 = vmatpush.msra.mxu0 %v2378
  %3219 = vmatpush.msra.mxu0 %v2374
  %3220 = vmatpush.msra.mxu0 %v2370
  %3221 = vmatpush.msra.mxu0 %v2366
  %3222 = vmatmul.f32.gmra.mxu0 %v2356
  %v3223 = vpop.f32.mrf.mxu0
  %v3224 = vadd.f32 %v2880, %v3223
  %3225 = vdwg.mxu0
  %3226 = vmatpush.msra.mxu0 %v2490
  %3227 = vmatpush.msra.mxu0 %v2486
  %3228 = vmatpush.msra.mxu0 %v2482
  %3229 = vmatpush.msra.mxu0 %v2478
  %3230 = vmatpush.msra.mxu0 %v2474
  %3231 = vmatpush.msra.mxu0 %v2470
  %3232 = vmatpush.msra.mxu0 %v2466
  %3233 = vmatpush.msra.mxu0 %v2462
  %3234 = vmatpush.msra.mxu0 %v2458
  %3235 = vmatpush.msra.mxu0 %v2454
  %3236 = vmatpush.msra.mxu0 %v2450
  %3237 = vmatpush.msra.mxu0 %v2446
  %3238 = vmatpush.msra.mxu0 %v2442
  %3239 = vmatpush.msra.mxu0 %v2438
  %3240 = vmatpush.msra.mxu0 %v2434
  %3241 = vmatpush.msra.mxu0 %v2430
  %3242 = vmatmul.f32.gmra.mxu0 %v2357
  %v3243 = vpop.f32.mrf.mxu0
  %v3244 = vadd.f32 %v3224, %v3243
  %3245 = vdwg.mxu0
  %3246 = vmatpush.msra.mxu0 %v2554
  %3247 = vmatpush.msra.mxu0 %v2550
  %3248 = vmatpush.msra.mxu0 %v2546
  %3249 = vmatpush.msra.mxu0 %v2542
  %3250 = vmatpush.msra.mxu0 %v2538
  %3251 = vmatpush.msra.mxu0 %v2534
  %3252 = vmatpush.msra.mxu0 %v2530
  %3253 = vmatpush.msra.mxu0 %v2526
  %3254 = vmatpush.msra.mxu0 %v2522
  %3255 = vmatpush.msra.mxu0 %v2518
  %3256 = vmatpush.msra.mxu0 %v2514
  %3257 = vmatpush.msra.mxu0 %v2510
  %3258 = vmatpush.msra.mxu0 %v2506
  %3259 = vmatpush.msra.mxu0 %v2502
  %3260 = vmatpush.msra.mxu0 %v2498
  %3261 = vmatpush.msra.mxu0 %v2494
  %3262 = vmatmul.f32.gmra.mxu0 %v2358
  %v3263 = vpop.f32.mrf.mxu0
  %v3264 = vadd.f32 %v3244, %v3263
  %3265 = vdwg.mxu0
  %3266 = vmatpush.msra.mxu0 %v2618
  %3267 = vmatpush.msra.mxu0 %v2614
  %3268 = vmatpush.msra.mxu0 %v2610
  %3269 = vmatpush.msra.mxu0 %v2606
  %3270 = vmatpush.msra.mxu0 %v2602
  %3271 = vmatpush.msra.mxu0 %v2598
  %3272 = vmatpush.msra.mxu0 %v2594
  %3273 = vmatpush.msra.mxu0 %v2590
  %3274 = vmatpush.msra.mxu0 %v2586
  %3275 = vmatpush.msra.mxu0 %v2582
  %3276 = vmatpush.msra.mxu0 %v2578
  %3277 = vmatpush.msra.mxu0 %v2574
  %3278 = vmatpush.msra.mxu0 %v2570
  %3279 = vmatpush.msra.mxu0 %v2566
  %3280 = vmatpush.msra.mxu0 %v2562
  %3281 = vmatpush.msra.mxu0 %v2558
  %3282 = vmatmul.f32.gmra.mxu0 %v2359
  %v3283 = vpop.f32.mrf.mxu0
  %v3284 = vadd.f32 %v3264, %v3283
  %3285 = vdwg.mxu0
  %3286 = vmatpush.msra.mxu0 %v2682
  %3287 = vmatpush.msra.mxu0 %v2678
  %3288 = vmatpush.msra.mxu0 %v2674
  %3289 = vmatpush.msra.mxu0 %v2670
  %3290 = vmatpush.msra.mxu0 %v2666
  %3291 = vmatpush.msra.mxu0 %v2662
  %3292 = vmatpush.msra.mxu0 %v2658
  %3293 = vmatpush.msra.mxu0 %v2654
  %3294 = vmatpush.msra.mxu0 %v2650
  %3295 = vmatpush.msra.mxu0 %v2646
  %3296 = vmatpush.msra.mxu0 %v2642
  %3297 = vmatpush.msra.mxu0 %v2638
  %3298 = vmatpush.msra.mxu0 %v2634
  %3299 = vmatpush.msra.mxu0 %v2630
  %3300 = vmatpush.msra.mxu0 %v2626
  %3301 = vmatpush.msra.mxu0 %v2622
  %3302 = vmatmul.f32.gmra.mxu0 %v2360
  %v3303 = vpop.f32.mrf.mxu0
  %v3304 = vadd.f32 %v3284, %v3303
  %3305 = vdwg.mxu0
  %3306 = vmatpush.msra.mxu0 %v2746
  %3307 = vmatpush.msra.mxu0 %v2742
  %3308 = vmatpush.msra.mxu0 %v2738
  %3309 = vmatpush.msra.mxu0 %v2734
  %3310 = vmatpush.msra.mxu0 %v2730
  %3311 = vmatpush.msra.mxu0 %v2726
  %3312 = vmatpush.msra.mxu0 %v2722
  %3313 = vmatpush.msra.mxu0 %v2718
  %3314 = vmatpush.msra.mxu0 %v2714
  %3315 = vmatpush.msra.mxu0 %v2710
  %3316 = vmatpush.msra.mxu0 %v2706
  %3317 = vmatpush.msra.mxu0 %v2702
  %3318 = vmatpush.msra.mxu0 %v2698
  %3319 = vmatpush.msra.mxu0 %v2694
  %3320 = vmatpush.msra.mxu0 %v2690
  %3321 = vmatpush.msra.mxu0 %v2686
  %3322 = vmatmul.f32.gmra.mxu0 %v2361
  %v3323 = vpop.f32.mrf.mxu0
  %v3324 = vadd.f32 %v3304, %v3323
  %3325 = vdwg.mxu0
  %3326 = vmatpush.msra.mxu0 %v2810
  %3327 = vmatpush.msra.mxu0 %v2806
  %3328 = vmatpush.msra.mxu0 %v2802
  %3329 = vmatpush.msra.mxu0 %v2798
  %3330 = vmatpush.msra.mxu0 %v2794
  %3331 = vmatpush.msra.mxu0 %v2790
  %3332 = vmatpush.msra.mxu0 %v2786
  %3333 = vmatpush.msra.mxu0 %v2782
  %3334 = vmatpush.msra.mxu0 %v2778
  %3335 = vmatpush.msra.mxu0 %v2774
  %3336 = vmatpush.msra.mxu0 %v2770
  %3337 = vmatpush.msra.mxu0 %v2766
  %3338 = vmatpush.msra.mxu0 %v2762
  %3339 = vmatpush.msra.mxu0 %v2758
  %3340 = vmatpush.msra.mxu0 %v2754
  %3341 = vmatpush.msra.mxu0 %v2750
  %3342 = vmatmul.f32.gmra.mxu0 %v2362
  %v3343 = vpop.f32.mrf.mxu0
  %v3344 = vadd.f32 %v3324, %v3343
  %3345 = vdwg.mxu0
  %3346 = vmatpush.msra.mxu0 %v2874
  %3347 = vmatpush.msra.mxu0 %v2870
  %3348 = vmatpush.msra.mxu0 %v2866
  %3349 = vmatpush.msra.mxu0 %v2862
  %3350 = vmatpush.msra.mxu0 %v2858
  %3351 = vmatpush.msra.mxu0 %v2854
  %3352 = vmatpush.msra.mxu0 %v2850
  %3353 = vmatpush.msra.mxu0 %v2846
  %3354 = vmatpush.msra.mxu0 %v2842
  %3355 = vmatpush.msra.mxu0 %v2838
  %3356 = vmatpush.msra.mxu0 %v2834
  %3357 = vmatpush.msra.mxu0 %v2830
  %3358 = vmatpush.msra.mxu0 %v2826
  %3359 = vmatpush.msra.mxu0 %v2822
  %3360 = vmatpush.msra.mxu0 %v2818
  %3361 = vmatpush.msra.mxu0 %v2814
  %3362 = vmatmul.f32.gmra.mxu0 %v2363
  %v3363 = vpop.f32.mrf.mxu0
  %v3364 = vadd.f32 %v3344, %v3363
  %3365 = vdwg.mxu0
  %3366 = vmatpush.msra.mxu0 %v2427
  %3367 = vmatpush.msra.mxu0 %v2423
  %3368 = vmatpush.msra.mxu0 %v2419
  %3369 = vmatpush.msra.mxu0 %v2415
  %3370 = vmatpush.msra.mxu0 %v2411
  %3371 = vmatpush.msra.mxu0 %v2407
  %3372 = vmatpush.msra.mxu0 %v2403
  %3373 = vmatpush.msra.mxu0 %v2399
  %3374 = vmatpush.msra.mxu0 %v2395
  %3375 = vmatpush.msra.mxu0 %v2391
  %3376 = vmatpush.msra.mxu0 %v2387
  %3377 = vmatpush.msra.mxu0 %v2383
  %3378 = vmatpush.msra.mxu0 %v2379
  %3379 = vmatpush.msra.mxu0 %v2375
  %3380 = vmatpush.msra.mxu0 %v2371
  %3381 = vmatpush.msra.mxu0 %v2367
  %3382 = vmatmul.f32.gmra.mxu0 %v2356
  %v3383 = vpop.f32.mrf.mxu0
  %v3384 = vadd.f32 %v2881, %v3383
  %3385 = vdwg.mxu0
  %3386 = vmatpush.msra.mxu0 %v2491
  %3387 = vmatpush.msra.mxu0 %v2487
  %3388 = vmatpush.msra.mxu0 %v2483
  %3389 = vmatpush.msra.mxu0 %v2479
  %3390 = vmatpush.msra.mxu0 %v2475
  %3391 = vmatpush.msra.mxu0 %v2471
  %3392 = vmatpush.msra.mxu0 %v2467
  %3393 = vmatpush.msra.mxu0 %v2463
  %3394 = vmatpush.msra.mxu0 %v2459
  %3395 = vmatpush.msra.mxu0 %v2455
  %3396 = vmatpush.msra.mxu0 %v2451
  %3397 = vmatpush.msra.mxu0 %v2447
  %3398 = vmatpush.msra.mxu0 %v2443
  %3399 = vmatpush.msra.mxu0 %v2439
  %3400 = vmatpush.msra.mxu0 %v2435
  %3401 = vmatpush.msra.mxu0 %v2431
  %3402 = vmatmul.f32.gmra.mxu0 %v2357
  %v3403 = vpop.f32.mrf.mxu0
  %v3404 = vadd.f32 %v3384, %v3403
  %3405 = vdwg.mxu0
  %3406 = vmatpush.msra.mxu0 %v2555
  %3407 = vmatpush.msra.mxu0 %v2551
  %3408 = vmatpush.msra.mxu0 %v2547
  %3409 = vmatpush.msra.mxu0 %v2543
  %3410 = vmatpush.msra.mxu0 %v2539
  %3411 = vmatpush.msra.mxu0 %v2535
  %3412 = vmatpush.msra.mxu0 %v2531
  %3413 = vmatpush.msra.mxu0 %v2527
  %3414 = vmatpush.msra.mxu0 %v2523
  %3415 = vmatpush.msra.mxu0 %v2519
  %3416 = vmatpush.msra.mxu0 %v2515
  %3417 = vmatpush.msra.mxu0 %v2511
  %3418 = vmatpush.msra.mxu0 %v2507
  %3419 = vmatpush.msra.mxu0 %v2503
  %3420 = vmatpush.msra.mxu0 %v2499
  %3421 = vmatpush.msra.mxu0 %v2495
  %3422 = vmatmul.f32.gmra.mxu0 %v2358
  %v3423 = vpop.f32.mrf.mxu0
  %v3424 = vadd.f32 %v3404, %v3423
  %3425 = vdwg.mxu0
  %3426 = vmatpush.msra.mxu0 %v2619
  %3427 = vmatpush.msra.mxu0 %v2615
  %3428 = vmatpush.msra.mxu0 %v2611
  %3429 = vmatpush.msra.mxu0 %v2607
  %3430 = vmatpush.msra.mxu0 %v2603
  %3431 = vmatpush.msra.mxu0 %v2599
  %3432 = vmatpush.msra.mxu0 %v2595
  %3433 = vmatpush.msra.mxu0 %v2591
  %3434 = vmatpush.msra.mxu0 %v2587
  %3435 = vmatpush.msra.mxu0 %v2583
  %3436 = vmatpush.msra.mxu0 %v2579
  %3437 = vmatpush.msra.mxu0 %v2575
  %3438 = vmatpush.msra.mxu0 %v2571
  %3439 = vmatpush.msra.mxu0 %v2567
  %3440 = vmatpush.msra.mxu0 %v2563
  %3441 = vmatpush.msra.mxu0 %v2559
  %3442 = vmatmul.f32.gmra.mxu0 %v2359
  %v3443 = vpop.f32.mrf.mxu0
  %v3444 = vadd.f32 %v3424, %v3443
  %3445 = vdwg.mxu0
  %3446 = vmatpush.msra.mxu0 %v2683
  %3447 = vmatpush.msra.mxu0 %v2679
  %3448 = vmatpush.msra.mxu0 %v2675
  %3449 = vmatpush.msra.mxu0 %v2671
  %3450 = vmatpush.msra.mxu0 %v2667
  %3451 = vmatpush.msra.mxu0 %v2663
  %3452 = vmatpush.msra.mxu0 %v2659
  %3453 = vmatpush.msra.mxu0 %v2655
  %3454 = vmatpush.msra.mxu0 %v2651
  %3455 = vmatpush.msra.mxu0 %v2647
  %3456 = vmatpush.msra.mxu0 %v2643
  %3457 = vmatpush.msra.mxu0 %v2639
  %3458 = vmatpush.msra.mxu0 %v2635
  %3459 = vmatpush.msra.mxu0 %v2631
  %3460 = vmatpush.msra.mxu0 %v2627
  %3461 = vmatpush.msra.mxu0 %v2623
  %3462 = vmatmul.f32.gmra.mxu0 %v2360
  %v3463 = vpop.f32.mrf.mxu0
  %v3464 = vadd.f32 %v3444, %v3463
  %3465 = vdwg.mxu0
  %3466 = vmatpush.msra.mxu0 %v2747
  %3467 = vmatpush.msra.mxu0 %v2743
  %3468 = vmatpush.msra.mxu0 %v2739
  %3469 = vmatpush.msra.mxu0 %v2735
  %3470 = vmatpush.msra.mxu0 %v2731
  %3471 = vmatpush.msra.mxu0 %v2727
  %3472 = vmatpush.msra.mxu0 %v2723
  %3473 = vmatpush.msra.mxu0 %v2719
  %3474 = vmatpush.msra.mxu0 %v2715
  %3475 = vmatpush.msra.mxu0 %v2711
  %3476 = vmatpush.msra.mxu0 %v2707
  %3477 = vmatpush.msra.mxu0 %v2703
  %3478 = vmatpush.msra.mxu0 %v2699
  %3479 = vmatpush.msra.mxu0 %v2695
  %3480 = vmatpush.msra.mxu0 %v2691
  %3481 = vmatpush.msra.mxu0 %v2687
  %3482 = vmatmul.f32.gmra.mxu0 %v2361
  %v3483 = vpop.f32.mrf.mxu0
  %v3484 = vadd.f32 %v3464, %v3483
  %3485 = vdwg.mxu0
  %3486 = vmatpush.msra.mxu0 %v2811
  %3487 = vmatpush.msra.mxu0 %v2807
  %3488 = vmatpush.msra.mxu0 %v2803
  %3489 = vmatpush.msra.mxu0 %v2799
  %3490 = vmatpush.msra.mxu0 %v2795
  %3491 = vmatpush.msra.mxu0 %v2791
  %3492 = vmatpush.msra.mxu0 %v2787
  %3493 = vmatpush.msra.mxu0 %v2783
  %3494 = vmatpush.msra.mxu0 %v2779
  %3495 = vmatpush.msra.mxu0 %v2775
  %3496 = vmatpush.msra.mxu0 %v2771
  %3497 = vmatpush.msra.mxu0 %v2767
  %3498 = vmatpush.msra.mxu0 %v2763
  %3499 = vmatpush.msra.mxu0 %v2759
  %3500 = vmatpush.msra.mxu0 %v2755
  %3501 = vmatpush.msra.mxu0 %v2751
  %3502 = vmatmul.f32.gmra.mxu0 %v2362
  %v3503 = vpop.f32.mrf.mxu0
  %v3504 = vadd.f32 %v3484, %v3503
  %3505 = vdwg.mxu0
  %3506 = vmatpush.msra.mxu0 %v2875
  %3507 = vmatpush.msra.mxu0 %v2871
  %3508 = vmatpush.msra.mxu0 %v2867
  %3509 = vmatpush.msra.mxu0 %v2863
  %3510 = vmatpush.msra.mxu0 %v2859
  %3511 = vmatpush.msra.mxu0 %v2855
  %3512 = vmatpush.msra.mxu0 %v2851
  %3513 = vmatpush.msra.mxu0 %v2847
  %3514 = vmatpush.msra.mxu0 %v2843
  %3515 = vmatpush.msra.mxu0 %v2839
  %3516 = vmatpush.msra.mxu0 %v2835
  %3517 = vmatpush.msra.mxu0 %v2831
  %3518 = vmatpush.msra.mxu0 %v2827
  %3519 = vmatpush.msra.mxu0 %v2823
  %3520 = vmatpush.msra.mxu0 %v2819
  %3521 = vmatpush.msra.mxu0 %v2815
  %3522 = vmatmul.f32.gmra.mxu0 %v2363
  %v3523 = vpop.f32.mrf.mxu0
  %v3524 = vadd.f32 %v3504, %v3523
  %3525 = vdwg.mxu0
  %v3526 = vmax.f32 %v3044, 0.0
  %v3527 = vmax.f32 %v3204, 0.0
  %v3528 = vmax.f32 %v3364, 0.0
  %v3529 = vmax.f32 %v3524, 0.0
  %v3530 = vld [vmem:[%s5] sm:$0xff]
  %v3531 = vld [vmem:[%s5 + $0x8] sm:$0xff]
  %v3532 = vld [vmem:[%s5 + $0x10] sm:$0xff]
  %v3533 = vld [vmem:[%s5 + $0x18] sm:$0xff]
  %v3534 = vld [vmem:[%s5 + $0x20] sm:$0xff]
  %v3535 = vld [vmem:[%s5 + $0x28] sm:$0xff]
  %v3536 = vld [vmem:[%s5 + $0x30] sm:$0xff]
  %v3537 = vld [vmem:[%s5 + $0x38] sm:$0xff]
  %v3538 = vld [vmem:[%s5 + $0x40] sm:$0xff]
  %v3539 = vld [vmem:[%s5 + $0x48] sm:$0xff]
  %v3540 = vld [vmem:[%s5 + $0x50] sm:$0xff]
  %v3541 = vld [vmem:[%s5 + $0x58] sm:$0xff]
  %v3542 = vld [vmem:[%s5 + $0x60] sm:$0xff]
  %v3543 = vld [vmem:[%s5 + $0x68] sm:$0xff]
  %v3544 = vld [vmem:[%s5 + $0x70] sm:$0xff]
  %v3545 = vld [vmem:[%s5 + $0x78] sm:$0xff]
  %v3546 = vld [vmem:[%s5 + $0x80] sm:$0xff]
  %v3547 = vld [vmem:[%s5 + $0x88] sm:$0xff]
  %v3548 = vld [vmem:[%s5 + $0x90] sm:$0xff]
  %v3549 = vld [vmem:[%s5 + $0x98] sm:$0xff]
  %v3550 = vld [vmem:[%s5 + $0xa0] sm:$0xff]
  %v3551 = vld [vmem:[%s5 + $0xa8] sm:$0xff]
  %v3552 = vld [vmem:[%s5 + $0xb0] sm:$0xff]
  %v3553 = vld [vmem:[%s5 + $0xb8] sm:$0xff]
  %v3554 = vld [vmem:[%s5 + $0xc0] sm:$0xff]
  %v3555 = vld [vmem:[%s5 + $0xc8] sm:$0xff]
  %v3556 = vld [vmem:[%s5 + $0xd0] sm:$0xff]
  %v3557 = vld [vmem:[%s5 + $0xd8] sm:$0xff]
  %v3558 = vld [vmem:[%s5 + $0xe0] sm:$0xff]
  %v3559 = vld [vmem:[%s5 + $0xe8] sm:$0xff]
  %v3560 = vld [vmem:[%s5 + $0xf0] sm:$0xff]
  %v3561 = vld [vmem:[%s5 + $0xf8] sm:$0xff]
  %v3562 = vld [vmem:[%s5 + $0x100] sm:$0xff]
  %v3563 = vld [vmem:[%s5 + $0x108] sm:$0xff]
  %v3564 = vld [vmem:[%s5 + $0x110] sm:$0xff]
  %v3565 = vld [vmem:[%s5 + $0x118] sm:$0xff]
  %v3566 = vld [vmem:[%s5 + $0x120] sm:$0xff]
  %v3567 = vld [vmem:[%s5 + $0x128] sm:$0xff]
  %v3568 = vld [vmem:[%s5 + $0x130] sm:$0xff]
  %v3569 = vld [vmem:[%s5 + $0x138] sm:$0xff]
  %v3570 = vld [vmem:[%s5 + $0x140] sm:$0xff]
  %v3571 = vld [vmem:[%s5 + $0x148] sm:$0xff]
  %v3572 = vld [vmem:[%s5 + $0x150] sm:$0xff]
  %v3573 = vld [vmem:[%s5 + $0x158] sm:$0xff]
  %v3574 = vld [vmem:[%s5 + $0x160] sm:$0xff]
  %v3575 = vld [vmem:[%s5 + $0x168] sm:$0xff]
  %v3576 = vld [vmem:[%s5 + $0x170] sm:$0xff]
  %v3577 = vld [vmem:[%s5 + $0x178] sm:$0xff]
  %v3578 = vld [vmem:[%s5 + $0x180] sm:$0xff]
  %v3579 = vld [vmem:[%s5 + $0x188] sm:$0xff]
  %v3580 = vld [vmem:[%s5 + $0x190] sm:$0xff]
  %v3581 = vld [vmem:[%s5 + $0x198] sm:$0xff]
  %v3582 = vld [vmem:[%s5 + $0x1a0] sm:$0xff]
  %v3583 = vld [vmem:[%s5 + $0x1a8] sm:$0xff]
  %v3584 = vld [vmem:[%s5 + $0x1b0] sm:$0xff]
  %v3585 = vld [vmem:[%s5 + $0x1b8] sm:$0xff]
  %v3586 = vld [vmem:[%s5 + $0x1c0] sm:$0xff]
  %v3587 = vld [vmem:[%s5 + $0x1c8] sm:$0xff]
  %v3588 = vld [vmem:[%s5 + $0x1d0] sm:$0xff]
  %v3589 = vld [vmem:[%s5 + $0x1d8] sm:$0xff]
  %v3590 = vld [vmem:[%s5 + $0x1e0] sm:$0xff]
  %v3591 = vld [vmem:[%s5 + $0x1e8] sm:$0xff]
  %v3592 = vld [vmem:[%s5 + $0x1f0] sm:$0xff]
  %v3593 = vld [vmem:[%s5 + $0x1f8] sm:$0xff]
  %v3594 = vld [vmem:[%s6] sm:$0x1]
  %v3596 = vperm.slane %v3594, 0
  %3598 = vmatpush.msra.mxu0 %v3545
  %3599 = vmatpush.msra.mxu0 %v3544
  %3600 = vmatpush.msra.mxu0 %v3543
  %3601 = vmatpush.msra.mxu0 %v3542
  %3602 = vmatpush.msra.mxu0 %v3541
  %3603 = vmatpush.msra.mxu0 %v3540
  %3604 = vmatpush.msra.mxu0 %v3539
  %3605 = vmatpush.msra.mxu0 %v3538
  %3606 = vmatpush.msra.mxu0 %v3537
  %3607 = vmatpush.msra.mxu0 %v3536
  %3608 = vmatpush.msra.mxu0 %v3535
  %3609 = vmatpush.msra.mxu0 %v3534
  %3610 = vmatpush.msra.mxu0 %v3533
  %3611 = vmatpush.msra.mxu0 %v3532
  %3612 = vmatpush.msra.mxu0 %v3531
  %3613 = vmatpush.msra.mxu0 %v3530
  %3614 = vmatmul.f32.gmra.mxu0 %v3526
  %v3615 = vpop.f32.mrf.mxu0
  %v3616 = vadd.f32 %v3596, %v3615
  %3617 = vdwg.mxu0
  %3618 = vmatpush.msra.mxu0 %v3561
  %3619 = vmatpush.msra.mxu0 %v3560
  %3620 = vmatpush.msra.mxu0 %v3559
  %3621 = vmatpush.msra.mxu0 %v3558
  %3622 = vmatpush.msra.mxu0 %v3557
  %3623 = vmatpush.msra.mxu0 %v3556
  %3624 = vmatpush.msra.mxu0 %v3555
  %3625 = vmatpush.msra.mxu0 %v3554
  %3626 = vmatpush.msra.mxu0 %v3553
  %3627 = vmatpush.msra.mxu0 %v3552
  %3628 = vmatpush.msra.mxu0 %v3551
  %3629 = vmatpush.msra.mxu0 %v3550
  %3630 = vmatpush.msra.mxu0 %v3549
  %3631 = vmatpush.msra.mxu0 %v3548
  %3632 = vmatpush.msra.mxu0 %v3547
  %3633 = vmatpush.msra.mxu0 %v3546
  %3634 = vmatmul.f32.gmra.mxu0 %v3527
  %v3635 = vpop.f32.mrf.mxu0
  %v3636 = vadd.f32 %v3616, %v3635
  %3637 = vdwg.mxu0
  %3638 = vmatpush.msra.mxu0 %v3577
  %3639 = vmatpush.msra.mxu0 %v3576
  %3640 = vmatpush.msra.mxu0 %v3575
  %3641 = vmatpush.msra.mxu0 %v3574
  %3642 = vmatpush.msra.mxu0 %v3573
  %3643 = vmatpush.msra.mxu0 %v3572
  %3644 = vmatpush.msra.mxu0 %v3571
  %3645 = vmatpush.msra.mxu0 %v3570
  %3646 = vmatpush.msra.mxu0 %v3569
  %3647 = vmatpush.msra.mxu0 %v3568
  %3648 = vmatpush.msra.mxu0 %v3567
  %3649 = vmatpush.msra.mxu0 %v3566
  %3650 = vmatpush.msra.mxu0 %v3565
  %3651 = vmatpush.msra.mxu0 %v3564
  %3652 = vmatpush.msra.mxu0 %v3563
  %3653 = vmatpush.msra.mxu0 %v3562
  %3654 = vmatmul.f32.gmra.mxu0 %v3528
  %v3655 = vpop.f32.mrf.mxu0
  %v3656 = vadd.f32 %v3636, %v3655
  %3657 = vdwg.mxu0
  %3658 = vmatpush.msra.mxu0 %v3593
  %3659 = vmatpush.msra.mxu0 %v3592
  %3660 = vmatpush.msra.mxu0 %v3591
  %3661 = vmatpush.msra.mxu0 %v3590
  %3662 = vmatpush.msra.mxu0 %v3589
  %3663 = vmatpush.msra.mxu0 %v3588
  %3664 = vmatpush.msra.mxu0 %v3587
  %3665 = vmatpush.msra.mxu0 %v3586
  %3666 = vmatpush.msra.mxu0 %v3585
  %3667 = vmatpush.msra.mxu0 %v3584
  %3668 = vmatpush.msra.mxu0 %v3583
  %3669 = vmatpush.msra.mxu0 %v3582
  %3670 = vmatpush.msra.mxu0 %v3581
  %3671 = vmatpush.msra.mxu0 %v3580
  %3672 = vmatpush.msra.mxu0 %v3579
  %3673 = vmatpush.msra.mxu0 %v3578
  %3674 = vmatmul.f32.gmra.mxu0 %v3529
  %v3675 = vpop.f32.mrf.mxu0
  %v3676 = vadd.f32 %v3656, %v3675
  %3677 = vdwg.mxu0
  %3678 = vst [vmem:[%s7] sm:$0xff] %v3676
  // Predicated region
  $region30: #{baseline_forward.7} parent=0 // pred_check
    _
  $region31: #{baseline_forward.7} parent=0 // pred_check_branch
    %3680 = sbr.rel (0) target = $region33
  $region32: #{baseline_forward.7} parent=0 // pred_region
    _
  $region33: #{baseline_forward.7} parent=0 // pred_fallthru
    _
  // Predicated region
  $region34: #{baseline_forward.7} parent=0 // pred_check
    _
  $region35: #{baseline_forward.7} parent=0 // pred_check_branch
    %3682 = sbr.rel (0) target = $region37
  $region36: #{baseline_forward.7} parent=0 // pred_region
    _
  $region37: #{baseline_forward.7} parent=0 // pred_fallthru
    _

</llo_original>
